<compile_context>
chip_gen: v7x
topology: tpu7x:2x2x1
jax: 0.10.0
libtpu: 0.0.40
codegen_flags: <defaults>
</compile_context>

<pallas_src>
import functools

import jax
import jax.numpy as jnp
from jax.experimental import pallas as pl
from jax.experimental.pallas import tpu as pltpu

D_MODEL = 512
N_HEADS = 8
HEAD_DIM = D_MODEL // N_HEADS
D_FF = 2048
N_LAYERS = 6
NUM_GROUPS = 5
LN_EPS = 1e-5

# Packed per-layer vector layout (all offsets are multiples of 128 lanes).
_VEC_FIELDS = (
    ("in_b", 3 * D_MODEL),    # in_proj bias
    ("in_s", 3 * D_MODEL),    # in_proj per-output-channel scale
    ("out_b", D_MODEL),       # out_proj bias
    ("out_s", D_MODEL),       # out_proj scale
    ("ln1_g", D_MODEL),
    ("ln1_b", D_MODEL),
    ("b1", D_FF),             # ffn linear1 bias
    ("w1_s", D_FF),           # ffn linear1 scale
    ("b2", D_MODEL),          # ffn linear2 bias
    ("w2_s", D_MODEL),        # ffn linear2 scale
    ("ln2_g", D_MODEL),
    ("ln2_b", D_MODEL),
)
VEC_OFFSETS = {}
_off = 0
for _name, _n in _VEC_FIELDS:
    VEC_OFFSETS[_name] = (_off, _n)
    _off += _n
VEC_TOTAL = _off  # 11264


def _layernorm(x, gamma, beta):
    # LayerNorm over the last dim, biased variance, eps=1e-5 (PyTorch default).
    mu = jnp.mean(x, axis=-1, keepdims=True)
    xc = x - mu
    var = jnp.mean(xc * xc, axis=-1, keepdims=True)
    return xc * jax.lax.rsqrt(var + LN_EPS) * gamma + beta


def _deq_dot(x_bf, w_q_ref, scale, bias):
    """x @ dequant(int8 weight); per-output-channel scale after the f32 acc."""
    w_bf = w_q_ref[...].astype(jnp.float32).astype(jnp.bfloat16)
    y = jnp.dot(x_bf, w_bf, preferred_element_type=jnp.float32)
    return y * scale + bias


# ----------------------------- Fused kernel -----------------------------

def _encoder_stack_kernel(
    # resident (constant-index) inputs
    x_ref, emb_w_ref, emb_b_ref,
    # per-layer streamed int8 weights (leading layer dim squeezed by BlockSpec)
    in_w_ref, out_w_ref, w1_ref, w2_ref,
    # per-layer packed vectors (biases / LN params / quant scales)
    vec_ref,
    # resident head weights
    fc_w_ref, fc_b_ref,
    # output
    o_ref,
    # VMEM scratch (persists across the layer grid)
    act_ref,
    *, seq_len, batch):

    layer = pl.program_id(0)

    def vec(name):
        off, n = VEC_OFFSETS[name]
        return vec_ref[:, off:off + n]           # (1, n) f32, lane-aligned

    # ---- layer-0 prologue: embedding Linear(input_dim -> 512) ----
    @pl.when(layer == 0)
    def _embed():
        act_ref[...] = (
            jnp.dot(x_ref[...].astype(jnp.bfloat16), emb_w_ref[...],
                    preferred_element_type=jnp.float32)
            + emb_b_ref[...])

    h = act_ref[...]                              # (B*S, D) f32, row = b*S + s
    h_bf = h.astype(jnp.bfloat16)

    # ---- self-attention: fused QKV projection (int8 weights) ----
    qkv = _deq_dot(h_bf, in_w_ref, vec("in_s"), vec("in_b"))   # (B*S, 3D) f32

    scale = 1.0 / (HEAD_DIM ** 0.5)
    q = qkv[:, 0:D_MODEL] * scale                 # fold 1/sqrt(Dh) into q
    k = qkv[:, D_MODEL:2 * D_MODEL]
    v = qkv[:, 2 * D_MODEL:3 * D_MODEL]

    batch_outs = []
    for b in range(batch):                        # static, tiny (B=2)
        r0 = b * seq_len
        qb = q[r0:r0 + seq_len, :].astype(jnp.bfloat16)
        kb = k[r0:r0 + seq_len, :].astype(jnp.bfloat16)
        vb = v[r0:r0 + seq_len, :].astype(jnp.bfloat16)
        head_outs = []
        for hh in range(N_HEADS):                 # static, 8 heads
            c0 = hh * HEAD_DIM
            qh = qb[:, c0:c0 + HEAD_DIM]
            kh = kb[:, c0:c0 + HEAD_DIM]
            vh = vb[:, c0:c0 + HEAD_DIM]
            s = jax.lax.dot_general(
                qh, kh, (((1,), (1,)), ((), ())),
                preferred_element_type=jnp.float32)           # (S, S)
            m = jnp.max(s, axis=-1, keepdims=True)
            p = jnp.exp(s - m)
            denom = jnp.sum(p, axis=-1, keepdims=True)
            p = p * pl.reciprocal(denom, approx=True)         # EUP, frees VALU
            head_outs.append(jnp.dot(p.astype(jnp.bfloat16), vh,
                                     preferred_element_type=jnp.float32))
        # concatenate all heads once (avoids masked 64-lane stores)
        batch_outs.append(jnp.concatenate(head_outs, axis=-1))  # (S, D)
    attn = jnp.concatenate(batch_outs, axis=0)                   # (B*S, D) f32

    attn = _deq_dot(attn.astype(jnp.bfloat16), out_w_ref,
                    vec("out_s"), vec("out_b"))

    # ---- Add & LayerNorm 1 (post-LN; dropout is identity at inference) ----
    x1 = _layernorm(attn + h, vec("ln1_g"), vec("ln1_b"))

    # ---- FFN: Linear(512->2048) + ReLU + Linear(2048->512), int8 weights ----
    ff = jnp.maximum(
        _deq_dot(x1.astype(jnp.bfloat16), w1_ref, vec("w1_s"), vec("b1")), 0.0)
    ff = _deq_dot(ff.astype(jnp.bfloat16), w2_ref, vec("w2_s"), vec("b2"))

    # ---- Add & LayerNorm 2 ----
    x2 = _layernorm(ff + x1, vec("ln2_g"), vec("ln2_b"))
    act_ref[...] = x2

    # ---- last-layer epilogue: mean over batch (dim=1) + final fc ----
    @pl.when(layer == pl.num_programs(0) - 1)
    def _finalize():
        pooled = x2[0:seq_len, :]
        for b in range(1, batch):
            pooled = pooled + x2[b * seq_len:(b + 1) * seq_len, :]
        pooled = pooled * (1.0 / batch)
        o_ref[...] = (
            jnp.dot(pooled.astype(jnp.bfloat16), fc_w_ref[...],
                    preferred_element_type=jnp.float32)
            + fc_b_ref[...]).astype(o_ref.dtype)


# ----------------------------- Wrapper -----------------------------

def transformer_forward(x, params):
    # x: (S, B, input_dim)  ->  (S, NUM_GROUPS)
    S, B, input_dim = x.shape
    # In-kernel row layout is (B, S, D) flattened (contiguous per-batch
    # sequences -> contiguous attention slices); one tiny XLA transpose here.
    x_flat = jnp.transpose(x, (1, 0, 2)).reshape(B * S, input_dim)

    def const_spec(shape):
        return pl.BlockSpec(shape, lambda l: (0, 0))

    def per_layer_spec(shape):
        return pl.BlockSpec((None,) + shape, lambda l: (l, 0, 0))

    grid_spec = pltpu.PrefetchScalarGridSpec(
        num_scalar_prefetch=0,
        grid=(N_LAYERS,),
        in_specs=[
            const_spec((B * S, input_dim)),          # x
            const_spec((input_dim, D_MODEL)),        # emb_w (bf16)
            const_spec((1, D_MODEL)),                # emb_b
            per_layer_spec((D_MODEL, 3 * D_MODEL)),  # in_proj_w  (int8)
            per_layer_spec((D_MODEL, D_MODEL)),      # out_proj_w (int8)
            per_layer_spec((D_MODEL, D_FF)),         # w1         (int8)
            per_layer_spec((D_FF, D_MODEL)),         # w2         (int8)
            per_layer_spec((1, VEC_TOTAL)),          # packed per-layer vectors
            const_spec((D_MODEL, NUM_GROUPS)),       # fc_w (bf16)
            const_spec((1, NUM_GROUPS)),             # fc_b
        ],
        out_specs=pl.BlockSpec((S, NUM_GROUPS), lambda l: (0, 0)),
        scratch_shapes=[
            pltpu.VMEM((B * S, D_MODEL), jnp.float32),   # activation carry
        ],
    )

    kernel = functools.partial(_encoder_stack_kernel, seq_len=S, batch=B)

    return pl.pallas_call(
        kernel,
        out_shape=jax.ShapeDtypeStruct((S, NUM_GROUPS), jnp.float32),
        grid_spec=grid_spec,
        compiler_params=pltpu.CompilerParams(
            dimension_semantics=("arbitrary",),
            vmem_limit_bytes=32 * 1024 * 1024,
        ),
    )(x_flat,
      params["emb_w"], params["emb_b"],
      params["in_proj_w_q"], params["out_proj_w_q"],
      params["w1_q"], params["w2_q"],
      params["layer_vecs"],
      params["fc_w"], params["fc_b"])


# ----------------------------- Parameter init -----------------------------

def _quantize_per_out_channel(w):
    # w: (L, in, out) f32 -> (int8 weights, per-output-channel f32 scales)
    s = jnp.max(jnp.abs(w), axis=-2) / 127.0         # (L, out)
    s = jnp.maximum(s, 1e-8)
    q = jnp.round(w / s[:, None, :]).astype(jnp.int8)
    return q, s


def init_params(key, input_dim):
    # NOTE: (in, out) layout; real PyTorch checkpoints are (out, in) -> transpose.
    def w(k, shape, scale=0.02):
        return scale * jax.random.normal(k, shape, dtype=jnp.float32)

    ks = jax.random.split(key, 6)

    in_proj_w = w(ks[1], (N_LAYERS, D_MODEL, 3 * D_MODEL))
    out_proj_w = w(ks[2], (N_LAYERS, D_MODEL, D_MODEL))
    w1 = w(ks[3], (N_LAYERS, D_MODEL, D_FF))
    w2 = w(ks[4], (N_LAYERS, D_FF, D_MODEL))

    in_q, in_s = _quantize_per_out_channel(in_proj_w)
    out_q, out_s = _quantize_per_out_channel(out_proj_w)
    w1_q, w1_s = _quantize_per_out_channel(w1)
    w2_q, w2_s = _quantize_per_out_channel(w2)

    zeros = lambda n: jnp.zeros((N_LAYERS, n), jnp.float32)
    ones = lambda n: jnp.ones((N_LAYERS, n), jnp.float32)
    fields = {
        "in_b": zeros(3 * D_MODEL), "in_s": in_s,
        "out_b": zeros(D_MODEL), "out_s": out_s,
        "ln1_g": ones(D_MODEL), "ln1_b": zeros(D_MODEL),
        "b1": zeros(D_FF), "w1_s": w1_s,
        "b2": zeros(D_MODEL), "w2_s": w2_s,
        "ln2_g": ones(D_MODEL), "ln2_b": zeros(D_MODEL),
    }
    layer_vecs = jnp.concatenate(
        [fields[name] for name, _ in _VEC_FIELDS], axis=-1)[:, None, :]
    assert layer_vecs.shape == (N_LAYERS, 1, VEC_TOTAL)

    return {
        "emb_w": w(ks[0], (input_dim, D_MODEL)).astype(jnp.bfloat16),
        "emb_b": jnp.zeros((1, D_MODEL), jnp.float32),
        "in_proj_w_q": in_q,
        "out_proj_w_q": out_q,
        "w1_q": w1_q,
        "w2_q": w2_q,
        "layer_vecs": layer_vecs,
        "fc_w": w(ks[5], (D_MODEL, NUM_GROUPS)).astype(jnp.bfloat16),
        "fc_b": jnp.zeros((1, NUM_GROUPS), jnp.float32),
    }


# ----------------------------- Main -----------------------------

if __name__ == "__main__":
    S, B, INPUT_DIM = 8, 2, 16
    key = jax.random.PRNGKey(0)
    k_x, k_p = jax.random.split(key)

    x = jax.random.normal(k_x, (S, B, INPUT_DIM), dtype=jnp.float32)
    params = init_params(k_p, INPUT_DIM)

    out = jax.jit(transformer_forward)(x, params)
    out = jax.block_until_ready(out)

    assert out.shape == (S, NUM_GROUPS), out.shape
    assert out.dtype == jnp.float32
    print("KERNEL_OK")
</pallas_src>

<mosaic_0001>
module attributes {stable_mosaic.version = 11 : i64} {
  func.func @_encoder_stack_kernel(%arg0: i32, %arg1: memref<16x16xf32, #tpu.memory_space<vmem>>, %arg2: memref<16x512xbf16, #tpu.memory_space<vmem>>, %arg3: memref<1x512xf32, #tpu.memory_space<vmem>>, %arg4: memref<1x512x1536xi8, #tpu.memory_space<vmem>>, %arg5: memref<1x512x512xi8, #tpu.memory_space<vmem>>, %arg6: memref<1x512x2048xi8, #tpu.memory_space<vmem>>, %arg7: memref<1x2048x512xi8, #tpu.memory_space<vmem>>, %arg8: memref<1x1x11264xf32, #tpu.memory_space<vmem>>, %arg9: memref<512x5xbf16, #tpu.memory_space<vmem>>, %arg10: memref<1x5xf32, #tpu.memory_space<vmem>>, %arg11: memref<8x5xf32, #tpu.memory_space<vmem>>, %arg12: memref<16x512xf32, #tpu.memory_space<vmem>>) attributes {dimension_semantics = [#tpu.dimension_semantics<arbitrary>], iteration_bounds = array<i64: 6>, scalar_prefetch = 0 : i64, scratch_operands = 1 : i64, tpu.core_type = #tpu.core_type<tc>, window_params = [{pipeline_mode = #tpu.pipeline_mode<synchronous>, transform_indices = @transform_0, window_bounds = array<i64: 16, 16>}, {pipeline_mode = #tpu.pipeline_mode<synchronous>, transform_indices = @transform_1, window_bounds = array<i64: 16, 512>}, {pipeline_mode = #tpu.pipeline_mode<synchronous>, transform_indices = @transform_2, window_bounds = array<i64: 1, 512>}, {transform_indices = @transform_3, window_bounds = array<i64: 1, 512, 1536>}, {transform_indices = @transform_4, window_bounds = array<i64: 1, 512, 512>}, {transform_indices = @transform_5, window_bounds = array<i64: 1, 512, 2048>}, {transform_indices = @transform_6, window_bounds = array<i64: 1, 2048, 512>}, {transform_indices = @transform_7, window_bounds = array<i64: 1, 1, 11264>}, {pipeline_mode = #tpu.pipeline_mode<synchronous>, transform_indices = @transform_8, window_bounds = array<i64: 512, 5>}, {pipeline_mode = #tpu.pipeline_mode<synchronous>, transform_indices = @transform_9, window_bounds = array<i64: 1, 5>}, {pipeline_mode = #tpu.pipeline_mode<synchronous>, transform_indices = @transform_10, window_bounds = array<i64: 8, 5>}]} {
    %c0_i32 = arith.constant 0 : i32
    %0 = arith.cmpi eq, %arg0, %c0_i32 : i32
    %1 = arith.extui %0 : i1 to i32
    %c0_i32_0 = arith.constant 0 : i32
    %2 = arith.cmpi ne, %1, %c0_i32_0 : i32
    scf.if %2 {
      %c0_121 = arith.constant 0 : index
      %c0_122 = arith.constant 0 : index
      %392 = vector.load %arg1[%c0_121, %c0_122] : memref<16x16xf32, #tpu.memory_space<vmem>>, vector<16x16xf32>
      %393 = arith.truncf %392 : vector<16x16xf32> to vector<16x16xbf16>
      %c0_123 = arith.constant 0 : index
      %c0_124 = arith.constant 0 : index
      %394 = vector.load %arg2[%c0_123, %c0_124] : memref<16x512xbf16, #tpu.memory_space<vmem>>, vector<16x512xbf16>
      %cst_125 = arith.constant dense<0.000000e+00> : vector<16x512xf32>
      %395 = tpu.matmul %393, %394, %cst_125 {dimension_numbers = #tpu.dot_dimension_numbers<[1], [0], [0], [1], [0, 0, 1, 1], [], []>} : vector<16x16xbf16>, vector<16x512xbf16>, vector<16x512xf32> -> vector<16x512xf32>
      %c0_126 = arith.constant 0 : index
      %c0_127 = arith.constant 0 : index
      %396 = vector.load %arg3[%c0_126, %c0_127] : memref<1x512xf32, #tpu.memory_space<vmem>>, vector<1x512xf32>
      %397 = vector.broadcast %396 : vector<1x512xf32> to vector<16x512xf32>
      %398 = arith.addf %395, %397 : vector<16x512xf32>
      %c0_128 = arith.constant 0 : index
      %c0_129 = arith.constant 0 : index
      %399 = vector.load %arg12[%c0_128, %c0_129] : memref<16x512xf32, #tpu.memory_space<vmem>>, vector<16x512xf32>
      tpu.vector_store %arg12[%c0_128, %c0_129], %398 {strides = array<i32>} : memref<16x512xf32, #tpu.memory_space<vmem>>, vector<16x512xf32>,
    } else {
    }
    %c0 = arith.constant 0 : index
    %c0_1 = arith.constant 0 : index
    %3 = vector.load %arg12[%c0, %c0_1] : memref<16x512xf32, #tpu.memory_space<vmem>>, vector<16x512xf32>
    %4 = arith.truncf %3 : vector<16x512xf32> to vector<16x512xbf16>
    %c0_2 = arith.constant 0 : index
    %c0_3 = arith.constant 0 : index
    %c1536 = arith.constant 1536 : index
    %5 = vector.load %arg8[%c0_2, %c0_3, %c1536] : memref<1x1x11264xf32, #tpu.memory_space<vmem>>, vector<1x1x1536xf32>
    %6 = vector.shape_cast %5 : vector<1x1x1536xf32> to vector<1x1536xf32>
    %c0_4 = arith.constant 0 : index
    %c0_5 = arith.constant 0 : index
    %c0_6 = arith.constant 0 : index
    %7 = vector.load %arg8[%c0_4, %c0_5, %c0_6] : memref<1x1x11264xf32, #tpu.memory_space<vmem>>, vector<1x1x1536xf32>
    %8 = vector.shape_cast %7 : vector<1x1x1536xf32> to vector<1x1536xf32>
    %c0_7 = arith.constant 0 : index
    %c0_8 = arith.constant 0 : index
    %c0_9 = arith.constant 0 : index
    %9 = vector.load %arg4[%c0_7, %c0_8, %c0_9] : memref<1x512x1536xi8, #tpu.memory_space<vmem>>, vector<1x512x1536xi8>
    %10 = vector.shape_cast %9 : vector<1x512x1536xi8> to vector<512x1536xi8>
    %11 = arith.sitofp %10 : vector<512x1536xi8> to vector<512x1536xf32>
    %12 = arith.truncf %11 : vector<512x1536xf32> to vector<512x1536xbf16>
    %cst = arith.constant dense<0.000000e+00> : vector<16x1536xf32>
    %13 = tpu.matmul %4, %12, %cst {dimension_numbers = #tpu.dot_dimension_numbers<[1], [0], [0], [1], [0, 0, 1, 1], [], []>} : vector<16x512xbf16>, vector<512x1536xbf16>, vector<16x1536xf32> -> vector<16x1536xf32>
    %14 = vector.broadcast %6 : vector<1x1536xf32> to vector<16x1536xf32>
    %15 = arith.mulf %13, %14 : vector<16x1536xf32>
    %16 = vector.broadcast %8 : vector<1x1536xf32> to vector<16x1536xf32>
    %17 = arith.addf %15, %16 : vector<16x1536xf32>
    %18 = vector.extract_strided_slice %17 {offsets = [0, 0], sizes = [16, 512], strides = [1, 1]} : vector<16x1536xf32> to vector<16x512xf32>
    %cst_10 = arith.constant 1.250000e-01 : f32
    %19 = vector.broadcast %cst_10 : f32 to vector<16x512xf32>
    %20 = arith.mulf %18, %19 : vector<16x512xf32>
    %21 = vector.extract_strided_slice %17 {offsets = [0, 512], sizes = [16, 512], strides = [1, 1]} : vector<16x1536xf32> to vector<16x512xf32>
    %22 = vector.extract_strided_slice %17 {offsets = [0, 1024], sizes = [16, 512], strides = [1, 1]} : vector<16x1536xf32> to vector<16x512xf32>
    %23 = vector.extract_strided_slice %20 {offsets = [0, 0], sizes = [8, 512], strides = [1, 1]} : vector<16x512xf32> to vector<8x512xf32>
    %24 = arith.truncf %23 : vector<8x512xf32> to vector<8x512xbf16>
    %25 = vector.extract_strided_slice %21 {offsets = [0, 0], sizes = [8, 512], strides = [1, 1]} : vector<16x512xf32> to vector<8x512xf32>
    %26 = arith.truncf %25 : vector<8x512xf32> to vector<8x512xbf16>
    %27 = vector.extract_strided_slice %22 {offsets = [0, 0], sizes = [8, 512], strides = [1, 1]} : vector<16x512xf32> to vector<8x512xf32>
    %28 = arith.truncf %27 : vector<8x512xf32> to vector<8x512xbf16>
    %29 = vector.extract_strided_slice %24 {offsets = [0, 0], sizes = [8, 64], strides = [1, 1]} : vector<8x512xbf16> to vector<8x64xbf16>
    %30 = vector.extract_strided_slice %26 {offsets = [0, 0], sizes = [8, 64], strides = [1, 1]} : vector<8x512xbf16> to vector<8x64xbf16>
    %31 = vector.extract_strided_slice %28 {offsets = [0, 0], sizes = [8, 64], strides = [1, 1]} : vector<8x512xbf16> to vector<8x64xbf16>
    %cst_11 = arith.constant dense<0.000000e+00> : vector<8x8xf32>
    %32 = tpu.matmul %29, %30, %cst_11 {dimension_numbers = #tpu.dot_dimension_numbers<[1], [1], [0], [0], [0, 0, 1, 0], [], []>} : vector<8x64xbf16>, vector<8x64xbf16>, vector<8x8xf32> -> vector<8x8xf32>
    %cst_12 = arith.constant dense<0xFF800000> : vector<8xf32>
    %33 = vector.multi_reduction <maximumf>, %32, %cst_12 [1] : vector<8x8xf32> to vector<8xf32>
    %34 = vector.shape_cast %33 : vector<8xf32> to vector<8x1xf32>
    %35 = vector.broadcast %34 : vector<8x1xf32> to vector<8x8xf32>
    %36 = arith.subf %32, %35 : vector<8x8xf32>
    %37 = math.exp %36 : vector<8x8xf32>
    %cst_13 = arith.constant dense<0.000000e+00> : vector<8xf32>
    %38 = vector.multi_reduction <add>, %37, %cst_13 [1] : vector<8x8xf32> to vector<8xf32>
    %39 = vector.shape_cast %38 : vector<8xf32> to vector<8x1xf32>
    %40 = tpu.reciprocal %39 {approx = true} : vector<8x1xf32> -> vector<8x1xf32>
    %41 = vector.broadcast %40 : vector<8x1xf32> to vector<8x8xf32>
    %42 = arith.mulf %37, %41 : vector<8x8xf32>
    %43 = arith.truncf %42 : vector<8x8xf32> to vector<8x8xbf16>
    %cst_14 = arith.constant dense<0.000000e+00> : vector<8x64xf32>
    %44 = tpu.matmul %43, %31, %cst_14 {dimension_numbers = #tpu.dot_dimension_numbers<[1], [0], [0], [1], [0, 0, 1, 1], [], []>} : vector<8x8xbf16>, vector<8x64xbf16>, vector<8x64xf32> -> vector<8x64xf32>
    %45 = vector.extract_strided_slice %24 {offsets = [0, 64], sizes = [8, 64], strides = [1, 1]} : vector<8x512xbf16> to vector<8x64xbf16>
    %46 = vector.extract_strided_slice %26 {offsets = [0, 64], sizes = [8, 64], strides = [1, 1]} : vector<8x512xbf16> to vector<8x64xbf16>
    %47 = vector.extract_strided_slice %28 {offsets = [0, 64], sizes = [8, 64], strides = [1, 1]} : vector<8x512xbf16> to vector<8x64xbf16>
    %cst_15 = arith.constant dense<0.000000e+00> : vector<8x8xf32>
    %48 = tpu.matmul %45, %46, %cst_15 {dimension_numbers = #tpu.dot_dimension_numbers<[1], [1], [0], [0], [0, 0, 1, 0], [], []>} : vector<8x64xbf16>, vector<8x64xbf16>, vector<8x8xf32> -> vector<8x8xf32>
    %cst_16 = arith.constant dense<0xFF800000> : vector<8xf32>
    %49 = vector.multi_reduction <maximumf>, %48, %cst_16 [1] : vector<8x8xf32> to vector<8xf32>
    %50 = vector.shape_cast %49 : vector<8xf32> to vector<8x1xf32>
    %51 = vector.broadcast %50 : vector<8x1xf32> to vector<8x8xf32>
    %52 = arith.subf %48, %51 : vector<8x8xf32>
    %53 = math.exp %52 : vector<8x8xf32>
    %cst_17 = arith.constant dense<0.000000e+00> : vector<8xf32>
    %54 = vector.multi_reduction <add>, %53, %cst_17 [1] : vector<8x8xf32> to vector<8xf32>
    %55 = vector.shape_cast %54 : vector<8xf32> to vector<8x1xf32>
    %56 = tpu.reciprocal %55 {approx = true} : vector<8x1xf32> -> vector<8x1xf32>
    %57 = vector.broadcast %56 : vector<8x1xf32> to vector<8x8xf32>
    %58 = arith.mulf %53, %57 : vector<8x8xf32>
    %59 = arith.truncf %58 : vector<8x8xf32> to vector<8x8xbf16>
    %cst_18 = arith.constant dense<0.000000e+00> : vector<8x64xf32>
    %60 = tpu.matmul %59, %47, %cst_18 {dimension_numbers = #tpu.dot_dimension_numbers<[1], [0], [0], [1], [0, 0, 1, 1], [], []>} : vector<8x8xbf16>, vector<8x64xbf16>, vector<8x64xf32> -> vector<8x64xf32>
    %61 = vector.extract_strided_slice %24 {offsets = [0, 128], sizes = [8, 64], strides = [1, 1]} : vector<8x512xbf16> to vector<8x64xbf16>
    %62 = vector.extract_strided_slice %26 {offsets = [0, 128], sizes = [8, 64], strides = [1, 1]} : vector<8x512xbf16> to vector<8x64xbf16>
    %63 = vector.extract_strided_slice %28 {offsets = [0, 128], sizes = [8, 64], strides = [1, 1]} : vector<8x512xbf16> to vector<8x64xbf16>
    %cst_19 = arith.constant dense<0.000000e+00> : vector<8x8xf32>
    %64 = tpu.matmul %61, %62, %cst_19 {dimension_numbers = #tpu.dot_dimension_numbers<[1], [1], [0], [0], [0, 0, 1, 0], [], []>} : vector<8x64xbf16>, vector<8x64xbf16>, vector<8x8xf32> -> vector<8x8xf32>
    %cst_20 = arith.constant dense<0xFF800000> : vector<8xf32>
    %65 = vector.multi_reduction <maximumf>, %64, %cst_20 [1] : vector<8x8xf32> to vector<8xf32>
    %66 = vector.shape_cast %65 : vector<8xf32> to vector<8x1xf32>
    %67 = vector.broadcast %66 : vector<8x1xf32> to vector<8x8xf32>
    %68 = arith.subf %64, %67 : vector<8x8xf32>
    %69 = math.exp %68 : vector<8x8xf32>
    %cst_21 = arith.constant dense<0.000000e+00> : vector<8xf32>
    %70 = vector.multi_reduction <add>, %69, %cst_21 [1] : vector<8x8xf32> to vector<8xf32>
    %71 = vector.shape_cast %70 : vector<8xf32> to vector<8x1xf32>
    %72 = tpu.reciprocal %71 {approx = true} : vector<8x1xf32> -> vector<8x1xf32>
    %73 = vector.broadcast %72 : vector<8x1xf32> to vector<8x8xf32>
    %74 = arith.mulf %69, %73 : vector<8x8xf32>
    %75 = arith.truncf %74 : vector<8x8xf32> to vector<8x8xbf16>
    %cst_22 = arith.constant dense<0.000000e+00> : vector<8x64xf32>
    %76 = tpu.matmul %75, %63, %cst_22 {dimension_numbers = #tpu.dot_dimension_numbers<[1], [0], [0], [1], [0, 0, 1, 1], [], []>} : vector<8x8xbf16>, vector<8x64xbf16>, vector<8x64xf32> -> vector<8x64xf32>
    %77 = vector.extract_strided_slice %24 {offsets = [0, 192], sizes = [8, 64], strides = [1, 1]} : vector<8x512xbf16> to vector<8x64xbf16>
    %78 = vector.extract_strided_slice %26 {offsets = [0, 192], sizes = [8, 64], strides = [1, 1]} : vector<8x512xbf16> to vector<8x64xbf16>
    %79 = vector.extract_strided_slice %28 {offsets = [0, 192], sizes = [8, 64], strides = [1, 1]} : vector<8x512xbf16> to vector<8x64xbf16>
    %cst_23 = arith.constant dense<0.000000e+00> : vector<8x8xf32>
    %80 = tpu.matmul %77, %78, %cst_23 {dimension_numbers = #tpu.dot_dimension_numbers<[1], [1], [0], [0], [0, 0, 1, 0], [], []>} : vector<8x64xbf16>, vector<8x64xbf16>, vector<8x8xf32> -> vector<8x8xf32>
    %cst_24 = arith.constant dense<0xFF800000> : vector<8xf32>
    %81 = vector.multi_reduction <maximumf>, %80, %cst_24 [1] : vector<8x8xf32> to vector<8xf32>
    %82 = vector.shape_cast %81 : vector<8xf32> to vector<8x1xf32>
    %83 = vector.broadcast %82 : vector<8x1xf32> to vector<8x8xf32>
    %84 = arith.subf %80, %83 : vector<8x8xf32>
    %85 = math.exp %84 : vector<8x8xf32>
    %cst_25 = arith.constant dense<0.000000e+00> : vector<8xf32>
    %86 = vector.multi_reduction <add>, %85, %cst_25 [1] : vector<8x8xf32> to vector<8xf32>
    %87 = vector.shape_cast %86 : vector<8xf32> to vector<8x1xf32>
    %88 = tpu.reciprocal %87 {approx = true} : vector<8x1xf32> -> vector<8x1xf32>
    %89 = vector.broadcast %88 : vector<8x1xf32> to vector<8x8xf32>
    %90 = arith.mulf %85, %89 : vector<8x8xf32>
    %91 = arith.truncf %90 : vector<8x8xf32> to vector<8x8xbf16>
    %cst_26 = arith.constant dense<0.000000e+00> : vector<8x64xf32>
    %92 = tpu.matmul %91, %79, %cst_26 {dimension_numbers = #tpu.dot_dimension_numbers<[1], [0], [0], [1], [0, 0, 1, 1], [], []>} : vector<8x8xbf16>, vector<8x64xbf16>, vector<8x64xf32> -> vector<8x64xf32>
    %93 = vector.extract_strided_slice %24 {offsets = [0, 256], sizes = [8, 64], strides = [1, 1]} : vector<8x512xbf16> to vector<8x64xbf16>
    %94 = vector.extract_strided_slice %26 {offsets = [0, 256], sizes = [8, 64], strides = [1, 1]} : vector<8x512xbf16> to vector<8x64xbf16>
    %95 = vector.extract_strided_slice %28 {offsets = [0, 256], sizes = [8, 64], strides = [1, 1]} : vector<8x512xbf16> to vector<8x64xbf16>
    %cst_27 = arith.constant dense<0.000000e+00> : vector<8x8xf32>
    %96 = tpu.matmul %93, %94, %cst_27 {dimension_numbers = #tpu.dot_dimension_numbers<[1], [1], [0], [0], [0, 0, 1, 0], [], []>} : vector<8x64xbf16>, vector<8x64xbf16>, vector<8x8xf32> -> vector<8x8xf32>
    %cst_28 = arith.constant dense<0xFF800000> : vector<8xf32>
    %97 = vector.multi_reduction <maximumf>, %96, %cst_28 [1] : vector<8x8xf32> to vector<8xf32>
    %98 = vector.shape_cast %97 : vector<8xf32> to vector<8x1xf32>
    %99 = vector.broadcast %98 : vector<8x1xf32> to vector<8x8xf32>
    %100 = arith.subf %96, %99 : vector<8x8xf32>
    %101 = math.exp %100 : vector<8x8xf32>
    %cst_29 = arith.constant dense<0.000000e+00> : vector<8xf32>
    %102 = vector.multi_reduction <add>, %101, %cst_29 [1] : vector<8x8xf32> to vector<8xf32>
    %103 = vector.shape_cast %102 : vector<8xf32> to vector<8x1xf32>
    %104 = tpu.reciprocal %103 {approx = true} : vector<8x1xf32> -> vector<8x1xf32>
    %105 = vector.broadcast %104 : vector<8x1xf32> to vector<8x8xf32>
    %106 = arith.mulf %101, %105 : vector<8x8xf32>
    %107 = arith.truncf %106 : vector<8x8xf32> to vector<8x8xbf16>
    %cst_30 = arith.constant dense<0.000000e+00> : vector<8x64xf32>
    %108 = tpu.matmul %107, %95, %cst_30 {dimension_numbers = #tpu.dot_dimension_numbers<[1], [0], [0], [1], [0, 0, 1, 1], [], []>} : vector<8x8xbf16>, vector<8x64xbf16>, vector<8x64xf32> -> vector<8x64xf32>
    %109 = vector.extract_strided_slice %24 {offsets = [0, 320], sizes = [8, 64], strides = [1, 1]} : vector<8x512xbf16> to vector<8x64xbf16>
    %110 = vector.extract_strided_slice %26 {offsets = [0, 320], sizes = [8, 64], strides = [1, 1]} : vector<8x512xbf16> to vector<8x64xbf16>
    %111 = vector.extract_strided_slice %28 {offsets = [0, 320], sizes = [8, 64], strides = [1, 1]} : vector<8x512xbf16> to vector<8x64xbf16>
    %cst_31 = arith.constant dense<0.000000e+00> : vector<8x8xf32>
    %112 = tpu.matmul %109, %110, %cst_31 {dimension_numbers = #tpu.dot_dimension_numbers<[1], [1], [0], [0], [0, 0, 1, 0], [], []>} : vector<8x64xbf16>, vector<8x64xbf16>, vector<8x8xf32> -> vector<8x8xf32>
    %cst_32 = arith.constant dense<0xFF800000> : vector<8xf32>
    %113 = vector.multi_reduction <maximumf>, %112, %cst_32 [1] : vector<8x8xf32> to vector<8xf32>
    %114 = vector.shape_cast %113 : vector<8xf32> to vector<8x1xf32>
    %115 = vector.broadcast %114 : vector<8x1xf32> to vector<8x8xf32>
    %116 = arith.subf %112, %115 : vector<8x8xf32>
    %117 = math.exp %116 : vector<8x8xf32>
    %cst_33 = arith.constant dense<0.000000e+00> : vector<8xf32>
    %118 = vector.multi_reduction <add>, %117, %cst_33 [1] : vector<8x8xf32> to vector<8xf32>
    %119 = vector.shape_cast %118 : vector<8xf32> to vector<8x1xf32>
    %120 = tpu.reciprocal %119 {approx = true} : vector<8x1xf32> -> vector<8x1xf32>
    %121 = vector.broadcast %120 : vector<8x1xf32> to vector<8x8xf32>
    %122 = arith.mulf %117, %121 : vector<8x8xf32>
    %123 = arith.truncf %122 : vector<8x8xf32> to vector<8x8xbf16>
    %cst_34 = arith.constant dense<0.000000e+00> : vector<8x64xf32>
    %124 = tpu.matmul %123, %111, %cst_34 {dimension_numbers = #tpu.dot_dimension_numbers<[1], [0], [0], [1], [0, 0, 1, 1], [], []>} : vector<8x8xbf16>, vector<8x64xbf16>, vector<8x64xf32> -> vector<8x64xf32>
    %125 = vector.extract_strided_slice %24 {offsets = [0, 384], sizes = [8, 64], strides = [1, 1]} : vector<8x512xbf16> to vector<8x64xbf16>
    %126 = vector.extract_strided_slice %26 {offsets = [0, 384], sizes = [8, 64], strides = [1, 1]} : vector<8x512xbf16> to vector<8x64xbf16>
    %127 = vector.extract_strided_slice %28 {offsets = [0, 384], sizes = [8, 64], strides = [1, 1]} : vector<8x512xbf16> to vector<8x64xbf16>
    %cst_35 = arith.constant dense<0.000000e+00> : vector<8x8xf32>
    %128 = tpu.matmul %125, %126, %cst_35 {dimension_numbers = #tpu.dot_dimension_numbers<[1], [1], [0], [0], [0, 0, 1, 0], [], []>} : vector<8x64xbf16>, vector<8x64xbf16>, vector<8x8xf32> -> vector<8x8xf32>
    %cst_36 = arith.constant dense<0xFF800000> : vector<8xf32>
    %129 = vector.multi_reduction <maximumf>, %128, %cst_36 [1] : vector<8x8xf32> to vector<8xf32>
    %130 = vector.shape_cast %129 : vector<8xf32> to vector<8x1xf32>
    %131 = vector.broadcast %130 : vector<8x1xf32> to vector<8x8xf32>
    %132 = arith.subf %128, %131 : vector<8x8xf32>
    %133 = math.exp %132 : vector<8x8xf32>
    %cst_37 = arith.constant dense<0.000000e+00> : vector<8xf32>
    %134 = vector.multi_reduction <add>, %133, %cst_37 [1] : vector<8x8xf32> to vector<8xf32>
    %135 = vector.shape_cast %134 : vector<8xf32> to vector<8x1xf32>
    %136 = tpu.reciprocal %135 {approx = true} : vector<8x1xf32> -> vector<8x1xf32>
    %137 = vector.broadcast %136 : vector<8x1xf32> to vector<8x8xf32>
    %138 = arith.mulf %133, %137 : vector<8x8xf32>
    %139 = arith.truncf %138 : vector<8x8xf32> to vector<8x8xbf16>
    %cst_38 = arith.constant dense<0.000000e+00> : vector<8x64xf32>
    %140 = tpu.matmul %139, %127, %cst_38 {dimension_numbers = #tpu.dot_dimension_numbers<[1], [0], [0], [1], [0, 0, 1, 1], [], []>} : vector<8x8xbf16>, vector<8x64xbf16>, vector<8x64xf32> -> vector<8x64xf32>
    %141 = vector.extract_strided_slice %24 {offsets = [0, 448], sizes = [8, 64], strides = [1, 1]} : vector<8x512xbf16> to vector<8x64xbf16>
    %142 = vector.extract_strided_slice %26 {offsets = [0, 448], sizes = [8, 64], strides = [1, 1]} : vector<8x512xbf16> to vector<8x64xbf16>
    %143 = vector.extract_strided_slice %28 {offsets = [0, 448], sizes = [8, 64], strides = [1, 1]} : vector<8x512xbf16> to vector<8x64xbf16>
    %cst_39 = arith.constant dense<0.000000e+00> : vector<8x8xf32>
    %144 = tpu.matmul %141, %142, %cst_39 {dimension_numbers = #tpu.dot_dimension_numbers<[1], [1], [0], [0], [0, 0, 1, 0], [], []>} : vector<8x64xbf16>, vector<8x64xbf16>, vector<8x8xf32> -> vector<8x8xf32>
    %cst_40 = arith.constant dense<0xFF800000> : vector<8xf32>
    %145 = vector.multi_reduction <maximumf>, %144, %cst_40 [1] : vector<8x8xf32> to vector<8xf32>
    %146 = vector.shape_cast %145 : vector<8xf32> to vector<8x1xf32>
    %147 = vector.broadcast %146 : vector<8x1xf32> to vector<8x8xf32>
    %148 = arith.subf %144, %147 : vector<8x8xf32>
    %149 = math.exp %148 : vector<8x8xf32>
    %cst_41 = arith.constant dense<0.000000e+00> : vector<8xf32>
    %150 = vector.multi_reduction <add>, %149, %cst_41 [1] : vector<8x8xf32> to vector<8xf32>
    %151 = vector.shape_cast %150 : vector<8xf32> to vector<8x1xf32>
    %152 = tpu.reciprocal %151 {approx = true} : vector<8x1xf32> -> vector<8x1xf32>
    %153 = vector.broadcast %152 : vector<8x1xf32> to vector<8x8xf32>
    %154 = arith.mulf %149, %153 : vector<8x8xf32>
    %155 = arith.truncf %154 : vector<8x8xf32> to vector<8x8xbf16>
    %cst_42 = arith.constant dense<0.000000e+00> : vector<8x64xf32>
    %156 = tpu.matmul %155, %143, %cst_42 {dimension_numbers = #tpu.dot_dimension_numbers<[1], [0], [0], [1], [0, 0, 1, 1], [], []>} : vector<8x8xbf16>, vector<8x64xbf16>, vector<8x64xf32> -> vector<8x64xf32>
    %157 = tpu.concatenate %44, %60, %76, %92, %108, %124, %140, %156 in 1 : vector<8x64xf32>, vector<8x64xf32>, vector<8x64xf32>, vector<8x64xf32>, vector<8x64xf32>, vector<8x64xf32>, vector<8x64xf32>, vector<8x64xf32> -> vector<8x512xf32>
    %158 = vector.extract_strided_slice %20 {offsets = [8, 0], sizes = [8, 512], strides = [1, 1]} : vector<16x512xf32> to vector<8x512xf32>
    %159 = arith.truncf %158 : vector<8x512xf32> to vector<8x512xbf16>
    %160 = vector.extract_strided_slice %21 {offsets = [8, 0], sizes = [8, 512], strides = [1, 1]} : vector<16x512xf32> to vector<8x512xf32>
    %161 = arith.truncf %160 : vector<8x512xf32> to vector<8x512xbf16>
    %162 = vector.extract_strided_slice %22 {offsets = [8, 0], sizes = [8, 512], strides = [1, 1]} : vector<16x512xf32> to vector<8x512xf32>
    %163 = arith.truncf %162 : vector<8x512xf32> to vector<8x512xbf16>
    %164 = vector.extract_strided_slice %159 {offsets = [0, 0], sizes = [8, 64], strides = [1, 1]} : vector<8x512xbf16> to vector<8x64xbf16>
    %165 = vector.extract_strided_slice %161 {offsets = [0, 0], sizes = [8, 64], strides = [1, 1]} : vector<8x512xbf16> to vector<8x64xbf16>
    %166 = vector.extract_strided_slice %163 {offsets = [0, 0], sizes = [8, 64], strides = [1, 1]} : vector<8x512xbf16> to vector<8x64xbf16>
    %cst_43 = arith.constant dense<0.000000e+00> : vector<8x8xf32>
    %167 = tpu.matmul %164, %165, %cst_43 {dimension_numbers = #tpu.dot_dimension_numbers<[1], [1], [0], [0], [0, 0, 1, 0], [], []>} : vector<8x64xbf16>, vector<8x64xbf16>, vector<8x8xf32> -> vector<8x8xf32>
    %cst_44 = arith.constant dense<0xFF800000> : vector<8xf32>
    %168 = vector.multi_reduction <maximumf>, %167, %cst_44 [1] : vector<8x8xf32> to vector<8xf32>
    %169 = vector.shape_cast %168 : vector<8xf32> to vector<8x1xf32>
    %170 = vector.broadcast %169 : vector<8x1xf32> to vector<8x8xf32>
    %171 = arith.subf %167, %170 : vector<8x8xf32>
    %172 = math.exp %171 : vector<8x8xf32>
    %cst_45 = arith.constant dense<0.000000e+00> : vector<8xf32>
    %173 = vector.multi_reduction <add>, %172, %cst_45 [1] : vector<8x8xf32> to vector<8xf32>
    %174 = vector.shape_cast %173 : vector<8xf32> to vector<8x1xf32>
    %175 = tpu.reciprocal %174 {approx = true} : vector<8x1xf32> -> vector<8x1xf32>
    %176 = vector.broadcast %175 : vector<8x1xf32> to vector<8x8xf32>
    %177 = arith.mulf %172, %176 : vector<8x8xf32>
    %178 = arith.truncf %177 : vector<8x8xf32> to vector<8x8xbf16>
    %cst_46 = arith.constant dense<0.000000e+00> : vector<8x64xf32>
    %179 = tpu.matmul %178, %166, %cst_46 {dimension_numbers = #tpu.dot_dimension_numbers<[1], [0], [0], [1], [0, 0, 1, 1], [], []>} : vector<8x8xbf16>, vector<8x64xbf16>, vector<8x64xf32> -> vector<8x64xf32>
    %180 = vector.extract_strided_slice %159 {offsets = [0, 64], sizes = [8, 64], strides = [1, 1]} : vector<8x512xbf16> to vector<8x64xbf16>
    %181 = vector.extract_strided_slice %161 {offsets = [0, 64], sizes = [8, 64], strides = [1, 1]} : vector<8x512xbf16> to vector<8x64xbf16>
    %182 = vector.extract_strided_slice %163 {offsets = [0, 64], sizes = [8, 64], strides = [1, 1]} : vector<8x512xbf16> to vector<8x64xbf16>
    %cst_47 = arith.constant dense<0.000000e+00> : vector<8x8xf32>
    %183 = tpu.matmul %180, %181, %cst_47 {dimension_numbers = #tpu.dot_dimension_numbers<[1], [1], [0], [0], [0, 0, 1, 0], [], []>} : vector<8x64xbf16>, vector<8x64xbf16>, vector<8x8xf32> -> vector<8x8xf32>
    %cst_48 = arith.constant dense<0xFF800000> : vector<8xf32>
    %184 = vector.multi_reduction <maximumf>, %183, %cst_48 [1] : vector<8x8xf32> to vector<8xf32>
    %185 = vector.shape_cast %184 : vector<8xf32> to vector<8x1xf32>
    %186 = vector.broadcast %185 : vector<8x1xf32> to vector<8x8xf32>
    %187 = arith.subf %183, %186 : vector<8x8xf32>
    %188 = math.exp %187 : vector<8x8xf32>
    %cst_49 = arith.constant dense<0.000000e+00> : vector<8xf32>
    %189 = vector.multi_reduction <add>, %188, %cst_49 [1] : vector<8x8xf32> to vector<8xf32>
    %190 = vector.shape_cast %189 : vector<8xf32> to vector<8x1xf32>
    %191 = tpu.reciprocal %190 {approx = true} : vector<8x1xf32> -> vector<8x1xf32>
    %192 = vector.broadcast %191 : vector<8x1xf32> to vector<8x8xf32>
    %193 = arith.mulf %188, %192 : vector<8x8xf32>
    %194 = arith.truncf %193 : vector<8x8xf32> to vector<8x8xbf16>
    %cst_50 = arith.constant dense<0.000000e+00> : vector<8x64xf32>
    %195 = tpu.matmul %194, %182, %cst_50 {dimension_numbers = #tpu.dot_dimension_numbers<[1], [0], [0], [1], [0, 0, 1, 1], [], []>} : vector<8x8xbf16>, vector<8x64xbf16>, vector<8x64xf32> -> vector<8x64xf32>
    %196 = vector.extract_strided_slice %159 {offsets = [0, 128], sizes = [8, 64], strides = [1, 1]} : vector<8x512xbf16> to vector<8x64xbf16>
    %197 = vector.extract_strided_slice %161 {offsets = [0, 128], sizes = [8, 64], strides = [1, 1]} : vector<8x512xbf16> to vector<8x64xbf16>
    %198 = vector.extract_strided_slice %163 {offsets = [0, 128], sizes = [8, 64], strides = [1, 1]} : vector<8x512xbf16> to vector<8x64xbf16>
    %cst_51 = arith.constant dense<0.000000e+00> : vector<8x8xf32>
    %199 = tpu.matmul %196, %197, %cst_51 {dimension_numbers = #tpu.dot_dimension_numbers<[1], [1], [0], [0], [0, 0, 1, 0], [], []>} : vector<8x64xbf16>, vector<8x64xbf16>, vector<8x8xf32> -> vector<8x8xf32>
    %cst_52 = arith.constant dense<0xFF800000> : vector<8xf32>
    %200 = vector.multi_reduction <maximumf>, %199, %cst_52 [1] : vector<8x8xf32> to vector<8xf32>
    %201 = vector.shape_cast %200 : vector<8xf32> to vector<8x1xf32>
    %202 = vector.broadcast %201 : vector<8x1xf32> to vector<8x8xf32>
    %203 = arith.subf %199, %202 : vector<8x8xf32>
    %204 = math.exp %203 : vector<8x8xf32>
    %cst_53 = arith.constant dense<0.000000e+00> : vector<8xf32>
    %205 = vector.multi_reduction <add>, %204, %cst_53 [1] : vector<8x8xf32> to vector<8xf32>
    %206 = vector.shape_cast %205 : vector<8xf32> to vector<8x1xf32>
    %207 = tpu.reciprocal %206 {approx = true} : vector<8x1xf32> -> vector<8x1xf32>
    %208 = vector.broadcast %207 : vector<8x1xf32> to vector<8x8xf32>
    %209 = arith.mulf %204, %208 : vector<8x8xf32>
    %210 = arith.truncf %209 : vector<8x8xf32> to vector<8x8xbf16>
    %cst_54 = arith.constant dense<0.000000e+00> : vector<8x64xf32>
    %211 = tpu.matmul %210, %198, %cst_54 {dimension_numbers = #tpu.dot_dimension_numbers<[1], [0], [0], [1], [0, 0, 1, 1], [], []>} : vector<8x8xbf16>, vector<8x64xbf16>, vector<8x64xf32> -> vector<8x64xf32>
    %212 = vector.extract_strided_slice %159 {offsets = [0, 192], sizes = [8, 64], strides = [1, 1]} : vector<8x512xbf16> to vector<8x64xbf16>
    %213 = vector.extract_strided_slice %161 {offsets = [0, 192], sizes = [8, 64], strides = [1, 1]} : vector<8x512xbf16> to vector<8x64xbf16>
    %214 = vector.extract_strided_slice %163 {offsets = [0, 192], sizes = [8, 64], strides = [1, 1]} : vector<8x512xbf16> to vector<8x64xbf16>
    %cst_55 = arith.constant dense<0.000000e+00> : vector<8x8xf32>
    %215 = tpu.matmul %212, %213, %cst_55 {dimension_numbers = #tpu.dot_dimension_numbers<[1], [1], [0], [0], [0, 0, 1, 0], [], []>} : vector<8x64xbf16>, vector<8x64xbf16>, vector<8x8xf32> -> vector<8x8xf32>
    %cst_56 = arith.constant dense<0xFF800000> : vector<8xf32>
    %216 = vector.multi_reduction <maximumf>, %215, %cst_56 [1] : vector<8x8xf32> to vector<8xf32>
    %217 = vector.shape_cast %216 : vector<8xf32> to vector<8x1xf32>
    %218 = vector.broadcast %217 : vector<8x1xf32> to vector<8x8xf32>
    %219 = arith.subf %215, %218 : vector<8x8xf32>
    %220 = math.exp %219 : vector<8x8xf32>
    %cst_57 = arith.constant dense<0.000000e+00> : vector<8xf32>
    %221 = vector.multi_reduction <add>, %220, %cst_57 [1] : vector<8x8xf32> to vector<8xf32>
    %222 = vector.shape_cast %221 : vector<8xf32> to vector<8x1xf32>
    %223 = tpu.reciprocal %222 {approx = true} : vector<8x1xf32> -> vector<8x1xf32>
    %224 = vector.broadcast %223 : vector<8x1xf32> to vector<8x8xf32>
    %225 = arith.mulf %220, %224 : vector<8x8xf32>
    %226 = arith.truncf %225 : vector<8x8xf32> to vector<8x8xbf16>
    %cst_58 = arith.constant dense<0.000000e+00> : vector<8x64xf32>
    %227 = tpu.matmul %226, %214, %cst_58 {dimension_numbers = #tpu.dot_dimension_numbers<[1], [0], [0], [1], [0, 0, 1, 1], [], []>} : vector<8x8xbf16>, vector<8x64xbf16>, vector<8x64xf32> -> vector<8x64xf32>
    %228 = vector.extract_strided_slice %159 {offsets = [0, 256], sizes = [8, 64], strides = [1, 1]} : vector<8x512xbf16> to vector<8x64xbf16>
    %229 = vector.extract_strided_slice %161 {offsets = [0, 256], sizes = [8, 64], strides = [1, 1]} : vector<8x512xbf16> to vector<8x64xbf16>
    %230 = vector.extract_strided_slice %163 {offsets = [0, 256], sizes = [8, 64], strides = [1, 1]} : vector<8x512xbf16> to vector<8x64xbf16>
    %cst_59 = arith.constant dense<0.000000e+00> : vector<8x8xf32>
    %231 = tpu.matmul %228, %229, %cst_59 {dimension_numbers = #tpu.dot_dimension_numbers<[1], [1], [0], [0], [0, 0, 1, 0], [], []>} : vector<8x64xbf16>, vector<8x64xbf16>, vector<8x8xf32> -> vector<8x8xf32>
    %cst_60 = arith.constant dense<0xFF800000> : vector<8xf32>
    %232 = vector.multi_reduction <maximumf>, %231, %cst_60 [1] : vector<8x8xf32> to vector<8xf32>
    %233 = vector.shape_cast %232 : vector<8xf32> to vector<8x1xf32>
    %234 = vector.broadcast %233 : vector<8x1xf32> to vector<8x8xf32>
    %235 = arith.subf %231, %234 : vector<8x8xf32>
    %236 = math.exp %235 : vector<8x8xf32>
    %cst_61 = arith.constant dense<0.000000e+00> : vector<8xf32>
    %237 = vector.multi_reduction <add>, %236, %cst_61 [1] : vector<8x8xf32> to vector<8xf32>
    %238 = vector.shape_cast %237 : vector<8xf32> to vector<8x1xf32>
    %239 = tpu.reciprocal %238 {approx = true} : vector<8x1xf32> -> vector<8x1xf32>
    %240 = vector.broadcast %239 : vector<8x1xf32> to vector<8x8xf32>
    %241 = arith.mulf %236, %240 : vector<8x8xf32>
    %242 = arith.truncf %241 : vector<8x8xf32> to vector<8x8xbf16>
    %cst_62 = arith.constant dense<0.000000e+00> : vector<8x64xf32>
    %243 = tpu.matmul %242, %230, %cst_62 {dimension_numbers = #tpu.dot_dimension_numbers<[1], [0], [0], [1], [0, 0, 1, 1], [], []>} : vector<8x8xbf16>, vector<8x64xbf16>, vector<8x64xf32> -> vector<8x64xf32>
    %244 = vector.extract_strided_slice %159 {offsets = [0, 320], sizes = [8, 64], strides = [1, 1]} : vector<8x512xbf16> to vector<8x64xbf16>
    %245 = vector.extract_strided_slice %161 {offsets = [0, 320], sizes = [8, 64], strides = [1, 1]} : vector<8x512xbf16> to vector<8x64xbf16>
    %246 = vector.extract_strided_slice %163 {offsets = [0, 320], sizes = [8, 64], strides = [1, 1]} : vector<8x512xbf16> to vector<8x64xbf16>
    %cst_63 = arith.constant dense<0.000000e+00> : vector<8x8xf32>
    %247 = tpu.matmul %244, %245, %cst_63 {dimension_numbers = #tpu.dot_dimension_numbers<[1], [1], [0], [0], [0, 0, 1, 0], [], []>} : vector<8x64xbf16>, vector<8x64xbf16>, vector<8x8xf32> -> vector<8x8xf32>
    %cst_64 = arith.constant dense<0xFF800000> : vector<8xf32>
    %248 = vector.multi_reduction <maximumf>, %247, %cst_64 [1] : vector<8x8xf32> to vector<8xf32>
    %249 = vector.shape_cast %248 : vector<8xf32> to vector<8x1xf32>
    %250 = vector.broadcast %249 : vector<8x1xf32> to vector<8x8xf32>
    %251 = arith.subf %247, %250 : vector<8x8xf32>
    %252 = math.exp %251 : vector<8x8xf32>
    %cst_65 = arith.constant dense<0.000000e+00> : vector<8xf32>
    %253 = vector.multi_reduction <add>, %252, %cst_65 [1] : vector<8x8xf32> to vector<8xf32>
    %254 = vector.shape_cast %253 : vector<8xf32> to vector<8x1xf32>
    %255 = tpu.reciprocal %254 {approx = true} : vector<8x1xf32> -> vector<8x1xf32>
    %256 = vector.broadcast %255 : vector<8x1xf32> to vector<8x8xf32>
    %257 = arith.mulf %252, %256 : vector<8x8xf32>
    %258 = arith.truncf %257 : vector<8x8xf32> to vector<8x8xbf16>
    %cst_66 = arith.constant dense<0.000000e+00> : vector<8x64xf32>
    %259 = tpu.matmul %258, %246, %cst_66 {dimension_numbers = #tpu.dot_dimension_numbers<[1], [0], [0], [1], [0, 0, 1, 1], [], []>} : vector<8x8xbf16>, vector<8x64xbf16>, vector<8x64xf32> -> vector<8x64xf32>
    %260 = vector.extract_strided_slice %159 {offsets = [0, 384], sizes = [8, 64], strides = [1, 1]} : vector<8x512xbf16> to vector<8x64xbf16>
    %261 = vector.extract_strided_slice %161 {offsets = [0, 384], sizes = [8, 64], strides = [1, 1]} : vector<8x512xbf16> to vector<8x64xbf16>
    %262 = vector.extract_strided_slice %163 {offsets = [0, 384], sizes = [8, 64], strides = [1, 1]} : vector<8x512xbf16> to vector<8x64xbf16>
    %cst_67 = arith.constant dense<0.000000e+00> : vector<8x8xf32>
    %263 = tpu.matmul %260, %261, %cst_67 {dimension_numbers = #tpu.dot_dimension_numbers<[1], [1], [0], [0], [0, 0, 1, 0], [], []>} : vector<8x64xbf16>, vector<8x64xbf16>, vector<8x8xf32> -> vector<8x8xf32>
    %cst_68 = arith.constant dense<0xFF800000> : vector<8xf32>
    %264 = vector.multi_reduction <maximumf>, %263, %cst_68 [1] : vector<8x8xf32> to vector<8xf32>
    %265 = vector.shape_cast %264 : vector<8xf32> to vector<8x1xf32>
    %266 = vector.broadcast %265 : vector<8x1xf32> to vector<8x8xf32>
    %267 = arith.subf %263, %266 : vector<8x8xf32>
    %268 = math.exp %267 : vector<8x8xf32>
    %cst_69 = arith.constant dense<0.000000e+00> : vector<8xf32>
    %269 = vector.multi_reduction <add>, %268, %cst_69 [1] : vector<8x8xf32> to vector<8xf32>
    %270 = vector.shape_cast %269 : vector<8xf32> to vector<8x1xf32>
    %271 = tpu.reciprocal %270 {approx = true} : vector<8x1xf32> -> vector<8x1xf32>
    %272 = vector.broadcast %271 : vector<8x1xf32> to vector<8x8xf32>
    %273 = arith.mulf %268, %272 : vector<8x8xf32>
    %274 = arith.truncf %273 : vector<8x8xf32> to vector<8x8xbf16>
    %cst_70 = arith.constant dense<0.000000e+00> : vector<8x64xf32>
    %275 = tpu.matmul %274, %262, %cst_70 {dimension_numbers = #tpu.dot_dimension_numbers<[1], [0], [0], [1], [0, 0, 1, 1], [], []>} : vector<8x8xbf16>, vector<8x64xbf16>, vector<8x64xf32> -> vector<8x64xf32>
    %276 = vector.extract_strided_slice %159 {offsets = [0, 448], sizes = [8, 64], strides = [1, 1]} : vector<8x512xbf16> to vector<8x64xbf16>
    %277 = vector.extract_strided_slice %161 {offsets = [0, 448], sizes = [8, 64], strides = [1, 1]} : vector<8x512xbf16> to vector<8x64xbf16>
    %278 = vector.extract_strided_slice %163 {offsets = [0, 448], sizes = [8, 64], strides = [1, 1]} : vector<8x512xbf16> to vector<8x64xbf16>
    %cst_71 = arith.constant dense<0.000000e+00> : vector<8x8xf32>
    %279 = tpu.matmul %276, %277, %cst_71 {dimension_numbers = #tpu.dot_dimension_numbers<[1], [1], [0], [0], [0, 0, 1, 0], [], []>} : vector<8x64xbf16>, vector<8x64xbf16>, vector<8x8xf32> -> vector<8x8xf32>
    %cst_72 = arith.constant dense<0xFF800000> : vector<8xf32>
    %280 = vector.multi_reduction <maximumf>, %279, %cst_72 [1] : vector<8x8xf32> to vector<8xf32>
    %281 = vector.shape_cast %280 : vector<8xf32> to vector<8x1xf32>
    %282 = vector.broadcast %281 : vector<8x1xf32> to vector<8x8xf32>
    %283 = arith.subf %279, %282 : vector<8x8xf32>
    %284 = math.exp %283 : vector<8x8xf32>
    %cst_73 = arith.constant dense<0.000000e+00> : vector<8xf32>
    %285 = vector.multi_reduction <add>, %284, %cst_73 [1] : vector<8x8xf32> to vector<8xf32>
    %286 = vector.shape_cast %285 : vector<8xf32> to vector<8x1xf32>
    %287 = tpu.reciprocal %286 {approx = true} : vector<8x1xf32> -> vector<8x1xf32>
    %288 = vector.broadcast %287 : vector<8x1xf32> to vector<8x8xf32>
    %289 = arith.mulf %284, %288 : vector<8x8xf32>
    %290 = arith.truncf %289 : vector<8x8xf32> to vector<8x8xbf16>
    %cst_74 = arith.constant dense<0.000000e+00> : vector<8x64xf32>
    %291 = tpu.matmul %290, %278, %cst_74 {dimension_numbers = #tpu.dot_dimension_numbers<[1], [0], [0], [1], [0, 0, 1, 1], [], []>} : vector<8x8xbf16>, vector<8x64xbf16>, vector<8x64xf32> -> vector<8x64xf32>
    %292 = tpu.concatenate %179, %195, %211, %227, %243, %259, %275, %291 in 1 : vector<8x64xf32>, vector<8x64xf32>, vector<8x64xf32>, vector<8x64xf32>, vector<8x64xf32>, vector<8x64xf32>, vector<8x64xf32>, vector<8x64xf32> -> vector<8x512xf32>
    %293 = tpu.concatenate %157, %292 in 0 : vector<8x512xf32>, vector<8x512xf32> -> vector<16x512xf32>
    %294 = arith.truncf %293 : vector<16x512xf32> to vector<16x512xbf16>
    %c0_75 = arith.constant 0 : index
    %c0_76 = arith.constant 0 : index
    %c3584 = arith.constant 3584 : index
    %295 = vector.load %arg8[%c0_75, %c0_76, %c3584] : memref<1x1x11264xf32, #tpu.memory_space<vmem>>, vector<1x1x512xf32>
    %296 = vector.shape_cast %295 : vector<1x1x512xf32> to vector<1x512xf32>
    %c0_77 = arith.constant 0 : index
    %c0_78 = arith.constant 0 : index
    %c3072 = arith.constant 3072 : index
    %297 = vector.load %arg8[%c0_77, %c0_78, %c3072] : memref<1x1x11264xf32, #tpu.memory_space<vmem>>, vector<1x1x512xf32>
    %298 = vector.shape_cast %297 : vector<1x1x512xf32> to vector<1x512xf32>
    %c0_79 = arith.constant 0 : index
    %c0_80 = arith.constant 0 : index
    %c0_81 = arith.constant 0 : index
    %299 = vector.load %arg5[%c0_79, %c0_80, %c0_81] : memref<1x512x512xi8, #tpu.memory_space<vmem>>, vector<1x512x512xi8>
    %300 = vector.shape_cast %299 : vector<1x512x512xi8> to vector<512x512xi8>
    %301 = arith.sitofp %300 : vector<512x512xi8> to vector<512x512xf32>
    %302 = arith.truncf %301 : vector<512x512xf32> to vector<512x512xbf16>
    %cst_82 = arith.constant dense<0.000000e+00> : vector<16x512xf32>
    %303 = tpu.matmul %294, %302, %cst_82 {dimension_numbers = #tpu.dot_dimension_numbers<[1], [0], [0], [1], [0, 0, 1, 1], [], []>} : vector<16x512xbf16>, vector<512x512xbf16>, vector<16x512xf32> -> vector<16x512xf32>
    %304 = vector.broadcast %296 : vector<1x512xf32> to vector<16x512xf32>
    %305 = arith.mulf %303, %304 : vector<16x512xf32>
    %306 = vector.broadcast %298 : vector<1x512xf32> to vector<16x512xf32>
    %307 = arith.addf %305, %306 : vector<16x512xf32>
    %308 = arith.addf %307, %3 : vector<16x512xf32>
    %c0_83 = arith.constant 0 : index
    %c0_84 = arith.constant 0 : index
    %c4096 = arith.constant 4096 : index
    %309 = vector.load %arg8[%c0_83, %c0_84, %c4096] : memref<1x1x11264xf32, #tpu.memory_space<vmem>>, vector<1x1x512xf32>
    %310 = vector.shape_cast %309 : vector<1x1x512xf32> to vector<1x512xf32>
    %c0_85 = arith.constant 0 : index
    %c0_86 = arith.constant 0 : index
    %c4608 = arith.constant 4608 : index
    %311 = vector.load %arg8[%c0_85, %c0_86, %c4608] : memref<1x1x11264xf32, #tpu.memory_space<vmem>>, vector<1x1x512xf32>
    %312 = vector.shape_cast %311 : vector<1x1x512xf32> to vector<1x512xf32>
    %cst_87 = arith.constant dense<0.000000e+00> : vector<16xf32>
    %313 = vector.multi_reduction <add>, %308, %cst_87 [1] : vector<16x512xf32> to vector<16xf32>
    %314 = vector.shape_cast %313 : vector<16xf32> to vector<16x1xf32>
    %cst_88 = arith.constant 5.120000e+02 : f32
    %315 = vector.broadcast %cst_88 : f32 to vector<16x1xf32>
    %316 = arith.divf %314, %315 : vector<16x1xf32>
    %317 = vector.broadcast %316 : vector<16x1xf32> to vector<16x512xf32>
    %318 = arith.subf %308, %317 : vector<16x512xf32>
    %319 = arith.mulf %318, %318 : vector<16x512xf32>
    %cst_89 = arith.constant dense<0.000000e+00> : vector<16xf32>
    %320 = vector.multi_reduction <add>, %319, %cst_89 [1] : vector<16x512xf32> to vector<16xf32>
    %321 = vector.shape_cast %320 : vector<16xf32> to vector<16x1xf32>
    %cst_90 = arith.constant 5.120000e+02 : f32
    %322 = vector.broadcast %cst_90 : f32 to vector<16x1xf32>
    %323 = arith.divf %321, %322 : vector<16x1xf32>
    %cst_91 = arith.constant 9.99999974E-6 : f32
    %324 = vector.broadcast %cst_91 : f32 to vector<16x1xf32>
    %325 = arith.addf %323, %324 : vector<16x1xf32>
    %326 = math.rsqrt %325 : vector<16x1xf32>
    %327 = vector.broadcast %326 : vector<16x1xf32> to vector<16x512xf32>
    %328 = arith.mulf %318, %327 : vector<16x512xf32>
    %329 = vector.broadcast %310 : vector<1x512xf32> to vector<16x512xf32>
    %330 = arith.mulf %328, %329 : vector<16x512xf32>
    %331 = vector.broadcast %312 : vector<1x512xf32> to vector<16x512xf32>
    %332 = arith.addf %330, %331 : vector<16x512xf32>
    %333 = arith.truncf %332 : vector<16x512xf32> to vector<16x512xbf16>
    %c0_92 = arith.constant 0 : index
    %c0_93 = arith.constant 0 : index
    %c7168 = arith.constant 7168 : index
    %334 = vector.load %arg8[%c0_92, %c0_93, %c7168] : memref<1x1x11264xf32, #tpu.memory_space<vmem>>, vector<1x1x2048xf32>
    %335 = vector.shape_cast %334 : vector<1x1x2048xf32> to vector<1x2048xf32>
    %c0_94 = arith.constant 0 : index
    %c0_95 = arith.constant 0 : index
    %c5120 = arith.constant 5120 : index
    %336 = vector.load %arg8[%c0_94, %c0_95, %c5120] : memref<1x1x11264xf32, #tpu.memory_space<vmem>>, vector<1x1x2048xf32>
    %337 = vector.shape_cast %336 : vector<1x1x2048xf32> to vector<1x2048xf32>
    %c0_96 = arith.constant 0 : index
    %c0_97 = arith.constant 0 : index
    %c0_98 = arith.constant 0 : index
    %338 = vector.load %arg6[%c0_96, %c0_97, %c0_98] : memref<1x512x2048xi8, #tpu.memory_space<vmem>>, vector<1x512x2048xi8>
    %339 = vector.shape_cast %338 : vector<1x512x2048xi8> to vector<512x2048xi8>
    %340 = arith.sitofp %339 : vector<512x2048xi8> to vector<512x2048xf32>
    %341 = arith.truncf %340 : vector<512x2048xf32> to vector<512x2048xbf16>
    %cst_99 = arith.constant dense<0.000000e+00> : vector<16x2048xf32>
    %342 = tpu.matmul %333, %341, %cst_99 {dimension_numbers = #tpu.dot_dimension_numbers<[1], [0], [0], [1], [0, 0, 1, 1], [], []>} : vector<16x512xbf16>, vector<512x2048xbf16>, vector<16x2048xf32> -> vector<16x2048xf32>
    %343 = vector.broadcast %335 : vector<1x2048xf32> to vector<16x2048xf32>
    %344 = arith.mulf %342, %343 : vector<16x2048xf32>
    %345 = vector.broadcast %337 : vector<1x2048xf32> to vector<16x2048xf32>
    %346 = arith.addf %344, %345 : vector<16x2048xf32>
    %cst_100 = arith.constant 0.000000e+00 : f32
    %347 = vector.broadcast %cst_100 : f32 to vector<16x2048xf32>
    %348 = arith.maximumf %346, %347 : vector<16x2048xf32>
    %349 = arith.truncf %348 : vector<16x2048xf32> to vector<16x2048xbf16>
    %c0_101 = arith.constant 0 : index
    %c0_102 = arith.constant 0 : index
    %c9728 = arith.constant 9728 : index
    %350 = vector.load %arg8[%c0_101, %c0_102, %c9728] : memref<1x1x11264xf32, #tpu.memory_space<vmem>>, vector<1x1x512xf32>
    %351 = vector.shape_cast %350 : vector<1x1x512xf32> to vector<1x512xf32>
    %c0_103 = arith.constant 0 : index
    %c0_104 = arith.constant 0 : index
    %c9216 = arith.constant 9216 : index
    %352 = vector.load %arg8[%c0_103, %c0_104, %c9216] : memref<1x1x11264xf32, #tpu.memory_space<vmem>>, vector<1x1x512xf32>
    %353 = vector.shape_cast %352 : vector<1x1x512xf32> to vector<1x512xf32>
    %c0_105 = arith.constant 0 : index
    %c0_106 = arith.constant 0 : index
    %c0_107 = arith.constant 0 : index
    %354 = vector.load %arg7[%c0_105, %c0_106, %c0_107] : memref<1x2048x512xi8, #tpu.memory_space<vmem>>, vector<1x2048x512xi8>
    %355 = vector.shape_cast %354 : vector<1x2048x512xi8> to vector<2048x512xi8>
    %356 = arith.sitofp %355 : vector<2048x512xi8> to vector<2048x512xf32>
    %357 = arith.truncf %356 : vector<2048x512xf32> to vector<2048x512xbf16>
    %cst_108 = arith.constant dense<0.000000e+00> : vector<16x512xf32>
    %358 = tpu.matmul %349, %357, %cst_108 {dimension_numbers = #tpu.dot_dimension_numbers<[1], [0], [0], [1], [0, 0, 1, 1], [], []>} : vector<16x2048xbf16>, vector<2048x512xbf16>, vector<16x512xf32> -> vector<16x512xf32>
    %359 = vector.broadcast %351 : vector<1x512xf32> to vector<16x512xf32>
    %360 = arith.mulf %358, %359 : vector<16x512xf32>
    %361 = vector.broadcast %353 : vector<1x512xf32> to vector<16x512xf32>
    %362 = arith.addf %360, %361 : vector<16x512xf32>
    %363 = arith.addf %362, %332 : vector<16x512xf32>
    %c0_109 = arith.constant 0 : index
    %c0_110 = arith.constant 0 : index
    %c10240 = arith.constant 10240 : index
    %364 = vector.load %arg8[%c0_109, %c0_110, %c10240] : memref<1x1x11264xf32, #tpu.memory_space<vmem>>, vector<1x1x512xf32>
    %365 = vector.shape_cast %364 : vector<1x1x512xf32> to vector<1x512xf32>
    %c0_111 = arith.constant 0 : index
    %c0_112 = arith.constant 0 : index
    %c10752 = arith.constant 10752 : index
    %366 = vector.load %arg8[%c0_111, %c0_112, %c10752] : memref<1x1x11264xf32, #tpu.memory_space<vmem>>, vector<1x1x512xf32>
    %367 = vector.shape_cast %366 : vector<1x1x512xf32> to vector<1x512xf32>
    %cst_113 = arith.constant dense<0.000000e+00> : vector<16xf32>
    %368 = vector.multi_reduction <add>, %363, %cst_113 [1] : vector<16x512xf32> to vector<16xf32>
    %369 = vector.shape_cast %368 : vector<16xf32> to vector<16x1xf32>
    %cst_114 = arith.constant 5.120000e+02 : f32
    %370 = vector.broadcast %cst_114 : f32 to vector<16x1xf32>
    %371 = arith.divf %369, %370 : vector<16x1xf32>
    %372 = vector.broadcast %371 : vector<16x1xf32> to vector<16x512xf32>
    %373 = arith.subf %363, %372 : vector<16x512xf32>
    %374 = arith.mulf %373, %373 : vector<16x512xf32>
    %cst_115 = arith.constant dense<0.000000e+00> : vector<16xf32>
    %375 = vector.multi_reduction <add>, %374, %cst_115 [1] : vector<16x512xf32> to vector<16xf32>
    %376 = vector.shape_cast %375 : vector<16xf32> to vector<16x1xf32>
    %cst_116 = arith.constant 5.120000e+02 : f32
    %377 = vector.broadcast %cst_116 : f32 to vector<16x1xf32>
    %378 = arith.divf %376, %377 : vector<16x1xf32>
    %cst_117 = arith.constant 9.99999974E-6 : f32
    %379 = vector.broadcast %cst_117 : f32 to vector<16x1xf32>
    %380 = arith.addf %378, %379 : vector<16x1xf32>
    %381 = math.rsqrt %380 : vector<16x1xf32>
    %382 = vector.broadcast %381 : vector<16x1xf32> to vector<16x512xf32>
    %383 = arith.mulf %373, %382 : vector<16x512xf32>
    %384 = vector.broadcast %365 : vector<1x512xf32> to vector<16x512xf32>
    %385 = arith.mulf %383, %384 : vector<16x512xf32>
    %386 = vector.broadcast %367 : vector<1x512xf32> to vector<16x512xf32>
    %387 = arith.addf %385, %386 : vector<16x512xf32>
    %c0_118 = arith.constant 0 : index
    %c0_119 = arith.constant 0 : index
    %388 = vector.load %arg12[%c0_118, %c0_119] : memref<16x512xf32, #tpu.memory_space<vmem>>, vector<16x512xf32>
    tpu.vector_store %arg12[%c0_118, %c0_119], %387 {strides = array<i32>} : memref<16x512xf32, #tpu.memory_space<vmem>>, vector<16x512xf32>,
    %c5_i32 = arith.constant 5 : i32
    %389 = arith.cmpi eq, %arg0, %c5_i32 : i32
    %390 = arith.extui %389 : i1 to i32
    %c0_i32_120 = arith.constant 0 : i32
    %391 = arith.cmpi ne, %390, %c0_i32_120 : i32
    scf.if %391 {
      %392 = vector.extract_strided_slice %387 {offsets = [0, 0], sizes = [8, 512], strides = [1, 1]} : vector<16x512xf32> to vector<8x512xf32>
      %393 = vector.extract_strided_slice %387 {offsets = [8, 0], sizes = [8, 512], strides = [1, 1]} : vector<16x512xf32> to vector<8x512xf32>
      %394 = arith.addf %392, %393 : vector<8x512xf32>
      %cst_121 = arith.constant 5.000000e-01 : f32
      %395 = vector.broadcast %cst_121 : f32 to vector<8x512xf32>
      %396 = arith.mulf %394, %395 : vector<8x512xf32>
      %397 = arith.truncf %396 : vector<8x512xf32> to vector<8x512xbf16>
      %c0_122 = arith.constant 0 : index
      %c0_123 = arith.constant 0 : index
      %398 = vector.load %arg9[%c0_122, %c0_123] : memref<512x5xbf16, #tpu.memory_space<vmem>>, vector<512x5xbf16>
      %cst_124 = arith.constant dense<0.000000e+00> : vector<8x5xf32>
      %399 = tpu.matmul %397, %398, %cst_124 {dimension_numbers = #tpu.dot_dimension_numbers<[1], [0], [0], [1], [0, 0, 1, 1], [], []>} : vector<8x512xbf16>, vector<512x5xbf16>, vector<8x5xf32> -> vector<8x5xf32>
      %c0_125 = arith.constant 0 : index
      %c0_126 = arith.constant 0 : index
      %400 = vector.load %arg10[%c0_125, %c0_126] : memref<1x5xf32, #tpu.memory_space<vmem>>, vector<1x5xf32>
      %401 = vector.broadcast %400 : vector<1x5xf32> to vector<8x5xf32>
      %402 = arith.addf %399, %401 : vector<8x5xf32>
      %c0_127 = arith.constant 0 : index
      %c0_128 = arith.constant 0 : index
      %403 = vector.load %arg11[%c0_127, %c0_128] : memref<8x5xf32, #tpu.memory_space<vmem>>, vector<8x5xf32>
      tpu.vector_store %arg11[%c0_127, %c0_128], %402 {strides = array<i32>} : memref<8x5xf32, #tpu.memory_space<vmem>>, vector<8x5xf32>,
    } else {
    }
    return
  }
  func.func @transform_0(%arg0: i32) -> (i32, i32) {
    %c0_i32 = arith.constant 0 : i32
    %c0_i32_0 = arith.constant 0 : i32
    %c0_i32_1 = arith.constant 0 : i32
    return %c0_i32, %c0_i32_0 : i32, i32
  }
  func.func @transform_1(%arg0: i32) -> (i32, i32) {
    %c0_i32 = arith.constant 0 : i32
    %c0_i32_0 = arith.constant 0 : i32
    %c0_i32_1 = arith.constant 0 : i32
    return %c0_i32, %c0_i32_0 : i32, i32
  }
  func.func @transform_2(%arg0: i32) -> (i32, i32) {
    %c0_i32 = arith.constant 0 : i32
    %c0_i32_0 = arith.constant 0 : i32
    %c0_i32_1 = arith.constant 0 : i32
    return %c0_i32, %c0_i32_0 : i32, i32
  }
  func.func @transform_3(%arg0: i32) -> (i32, i32, i32) {
    %c0_i32 = arith.constant 0 : i32
    %c0_i32_0 = arith.constant 0 : i32
    %c0_i32_1 = arith.constant 0 : i32
    return %arg0, %c0_i32, %c0_i32_0 : i32, i32, i32
  }
  func.func @transform_4(%arg0: i32) -> (i32, i32, i32) {
    %c0_i32 = arith.constant 0 : i32
    %c0_i32_0 = arith.constant 0 : i32
    %c0_i32_1 = arith.constant 0 : i32
    return %arg0, %c0_i32, %c0_i32_0 : i32, i32, i32
  }
  func.func @transform_5(%arg0: i32) -> (i32, i32, i32) {
    %c0_i32 = arith.constant 0 : i32
    %c0_i32_0 = arith.constant 0 : i32
    %c0_i32_1 = arith.constant 0 : i32
    return %arg0, %c0_i32, %c0_i32_0 : i32, i32, i32
  }
  func.func @transform_6(%arg0: i32) -> (i32, i32, i32) {
    %c0_i32 = arith.constant 0 : i32
    %c0_i32_0 = arith.constant 0 : i32
    %c0_i32_1 = arith.constant 0 : i32
    return %arg0, %c0_i32, %c0_i32_0 : i32, i32, i32
  }
  func.func @transform_7(%arg0: i32) -> (i32, i32, i32) {
    %c0_i32 = arith.constant 0 : i32
    %c0_i32_0 = arith.constant 0 : i32
    %c0_i32_1 = arith.constant 0 : i32
    return %arg0, %c0_i32, %c0_i32_0 : i32, i32, i32
  }
  func.func @transform_8(%arg0: i32) -> (i32, i32) {
    %c0_i32 = arith.constant 0 : i32
    %c0_i32_0 = arith.constant 0 : i32
    %c0_i32_1 = arith.constant 0 : i32
    return %c0_i32, %c0_i32_0 : i32, i32
  }
  func.func @transform_9(%arg0: i32) -> (i32, i32) {
    %c0_i32 = arith.constant 0 : i32
    %c0_i32_0 = arith.constant 0 : i32
    %c0_i32_1 = arith.constant 0 : i32
    return %c0_i32, %c0_i32_0 : i32, i32
  }
  func.func @transform_10(%arg0: i32) -> (i32, i32) {
    %c0_i32 = arith.constant 0 : i32
    %c0_i32_0 = arith.constant 0 : i32
    %c0_i32_1 = arith.constant 0 : i32
    return %c0_i32, %c0_i32_0 : i32, i32
  }
}

</mosaic_0001>

<llo_original>
// kernel: transformer_forward.1
$region0: #{transformer_forward.1}
  #allocation0 [shape = 'u32[]', space=smem, size = 0x4, offset = 0x4, fixed_abs, tag = 'smem constant byte address 0x4 - core index']
  #allocation1 [shape = 'u32[144,128]{1,0:T(1,128)}', space=vmem, size = 0x12000, scoped, tag = 'internal scratch']
  #allocation2 [shape = 'f32[16,512]{1,0:T(8,128)}', space=vmem, size = 0x8000, scoped, tag = 'scratch operand']
  %s0 = inlined_call_operand.vmem [shape: f32[16,16], index: 0, kind: input, shape index: {}]
  %s1 = inlined_call_operand.hbm [shape: bf16[16,512], index: 1, kind: input, shape index: {}]
  %s2 = inlined_call_operand.hbm [shape: f32[1,512], index: 2, kind: input, shape index: {}]
  %s3 = inlined_call_operand.hbm [shape: s8[6,512,1536], index: 3, kind: input, shape index: {}]
  %s4 = inlined_call_operand.hbm [shape: s8[6,512,512], index: 4, kind: input, shape index: {}]
  %s5 = inlined_call_operand.hbm [shape: s8[6,512,2048], index: 5, kind: input, shape index: {}]
  %s6 = inlined_call_operand.hbm [shape: s8[6,2048,512], index: 6, kind: input, shape index: {}]
  %s7 = inlined_call_operand.hbm [shape: f32[6,1,11264], index: 7, kind: input, shape index: {}]
  %s8 = inlined_call_operand.vmem [shape: bf16[512,5], index: 8, kind: input, shape index: {}]
  %s9 = inlined_call_operand.hbm [shape: f32[1,5], index: 9, kind: input, shape index: {}]
  %s10 = inlined_call_operand.hbm [shape: f32[8,5], index: 10, kind: output, shape index: {}]
  %s11 = sld [smem:[#allocation0]]
  $region113: #{transformer_forward.1} parent=0
    _
  %s13 = ssub.s32 1, %s11
  %s14 = scalar_select 0, %s13, %s11
  $region1: #{transformer_forward.1} parent=0
    #allocation3 [shape = 'u8[16384]{0}', space=vmem, size = 0x4000, scoped, tag = 'input window, operand 1, single buffered']
    #allocation4 [shape = 's32[2]{0}', space=sflag, size = 0x8, scoped, tag = 'scoped memory for transformer_forward.1']
    #allocation5 [shape = 's32[2]{0}', space=sflag, size = 0x8, scoped, tag = 'scoped memory for transformer_forward.1']
    #allocation6 [shape = 'u8[2048]{0}', space=vmem, size = 0x800, scoped, tag = 'input window, operand 2, single buffered']
    #allocation7 [shape = 's32[1]{0}', space=sflag, size = 0x4, scoped, tag = 'scoped memory for transformer_forward.1']
    #allocation8 [shape = 'u8[1572864]{0}', space=vmem, size = 0x180000, scoped, tag = 'input window, operand 3']
    #allocation9 [shape = 'u8[524288]{0}', space=vmem, size = 0x80000, scoped, tag = 'input window, operand 4']
    #allocation10 [shape = 'u8[2097152]{0}', space=vmem, size = 0x200000, scoped, tag = 'input window, operand 5']
    #allocation11 [shape = 'u8[2097152]{0}', space=vmem, size = 0x200000, scoped, tag = 'input window, operand 6']
    #allocation12 [shape = 'u8[90112]{0}', space=vmem, size = 0x16000, scoped, tag = 'input window, operand 7']
    #allocation13 [shape = 'u8[512]{0}', space=vmem, size = 0x400, scoped, tag = 'input window, operand 9, single buffered']
    #allocation14 [shape = 'u8[4096]{0}', space=vmem, size = 0x1000, scoped, tag = 'output window, operand 0, single buffered']
    %15 = vsyncpa [#allocation4], 0
    %16 = vsyncpa [#allocation7], 0
    %17 = vsyncpa [#allocation5], 0
    loop: start=0, step=1, limit=8
    $region2: #{transformer_forward.1} parent=1 // loop_pre_header
      _
    $region3: #{transformer_forward.1} parent=1 // loop_header
      %s19 = sphi 0, %s23
      %p20 = scmp.ge.s32.totalorder %s19, 8
      %s27 = sphi 0, %s27
      %s29 = sphi 0, %s27
      %s30 = sphi 0, %s29
      %s44 = sphi 0, %s30
      %s48 = sphi 0, %s48
      %s50 = sphi 0, %s48
      %s51 = sphi 0, %s50
      %s65 = sphi 0, %s51
      %s69 = sphi 0, %s69
      %s71 = sphi 0, %s69
      %s72 = sphi 0, %s71
      %s86 = sphi 0, %s72
      %s92 = sphi 0, %s94
      %s95 = sphi 0, %s92
      %s96 = sphi 0, %s95
      %s112 = sphi 0, %s96
      %s118 = sphi 0, %s120
      %s121 = sphi 0, %s118
      %s122 = sphi 0, %s121
      %s138 = sphi 0, %s122
      %s144 = sphi 0, %s146
      %s147 = sphi 0, %s144
      %s148 = sphi 0, %s147
      %s164 = sphi 0, %s148
      %s170 = sphi 0, %s172
      %s173 = sphi 0, %s170
      %s174 = sphi 0, %s173
      %s190 = sphi 0, %s174
      %s196 = sphi 0, %s198
      %s199 = sphi 0, %s196
      %s200 = sphi 0, %s199
      %s216 = sphi 0, %s200
      %s220 = sphi 0, %s220
      %s222 = sphi 0, %s220
      %s223 = sphi 0, %s222
      %s237 = sphi 0, %s223
      %s241 = sphi 0, %s241
      %s243 = sphi 0, %s241
      %s244 = sphi 0, %s243
      %s258 = sphi 0, %s244
      %s262 = sphi 0, %s262
      %s264 = sphi 0, %s262
      %s265 = sphi 0, %s264
      %s279 = sphi 0, %s265
    $region4: #{transformer_forward.1} parent=1 // loop_header_branch
      %22 = sbr.rel (%p20) target = $region8
    $region5: #{transformer_forward.1} parent=1 // loop_body
      %s24 = ssub.s32 %s19, 1
      %s25 = ssub.s32 %s19, 2
      %s26 = sadd.s32 %s19, 1
      %s28 = sadd.s32 %s27, 1
      %p31 = scmp.eq.s32.totalorder %s19, 5
      %p32 = scmp.ne.s32.totalorder %s27, %s29
      %p33 = scmp.eq.s32.totalorder %s19, 0
      %p34 = por %p32, %p33
      %p35 = scmp.ne.s32.totalorder %s27, %s29
      %p36 = scmp.eq.s32.totalorder %s24, 5
      %p37 = por %p35, %p36
      %p38 = scmp.ne.s32.totalorder %s29, %s30
      %p39 = scmp.eq.s32.totalorder %s24, 0
      %p40 = por %p38, %p39
      %p41 = scmp.ne.s32.totalorder %s29, %s30
      %p42 = scmp.eq.s32.totalorder %s25, 5
      %p43 = por %p41, %p42
      %p45 = scmp.ne.s32.totalorder %s30, %s44
      %p46 = scmp.eq.s32.totalorder %s25, 0
      %p47 = por %p45, %p46
      %s49 = sadd.s32 %s48, 1
      %p52 = scmp.eq.s32.totalorder %s19, 5
      %p53 = scmp.ne.s32.totalorder %s48, %s50
      %p54 = scmp.eq.s32.totalorder %s19, 0
      %p55 = por %p53, %p54
      %p56 = scmp.ne.s32.totalorder %s48, %s50
      %p57 = scmp.eq.s32.totalorder %s24, 5
      %p58 = por %p56, %p57
      %p59 = scmp.ne.s32.totalorder %s50, %s51
      %p60 = scmp.eq.s32.totalorder %s24, 0
      %p61 = por %p59, %p60
      %p62 = scmp.ne.s32.totalorder %s50, %s51
      %p63 = scmp.eq.s32.totalorder %s25, 5
      %p64 = por %p62, %p63
      %p66 = scmp.ne.s32.totalorder %s51, %s65
      %p67 = scmp.eq.s32.totalorder %s25, 0
      %p68 = por %p66, %p67
      %s70 = sadd.s32 %s69, 1
      %p73 = scmp.eq.s32.totalorder %s19, 5
      %p74 = scmp.ne.s32.totalorder %s69, %s71
      %p75 = scmp.eq.s32.totalorder %s19, 0
      %p76 = por %p74, %p75
      %p77 = scmp.ne.s32.totalorder %s69, %s71
      %p78 = scmp.eq.s32.totalorder %s24, 5
      %p79 = por %p77, %p78
      %p80 = scmp.ne.s32.totalorder %s71, %s72
      %p81 = scmp.eq.s32.totalorder %s24, 0
      %p82 = por %p80, %p81
      %p83 = scmp.ne.s32.totalorder %s71, %s72
      %p84 = scmp.eq.s32.totalorder %s25, 5
      %p85 = por %p83, %p84
      %p87 = scmp.ne.s32.totalorder %s72, %s86
      %p88 = scmp.eq.s32.totalorder %s25, 0
      %p89 = por %p87, %p88
      %s90 = ssub.s32 %s19, %s26
      %p91 = scmp.eq.s32.totalorder %s90, 0
      %s93 = sadd.s32 %s92, 1
      %s94 = scalar_select %p91, %s92, %s93
      %p97 = pneg %p91
      %p98 = scmp.eq.s32.totalorder %s19, 5
      %p99 = por %p97, %p98
      %p100 = scmp.ne.s32.totalorder %s92, %s95
      %p101 = scmp.eq.s32.totalorder %s19, 0
      %p102 = por %p100, %p101
      %p103 = scmp.ne.s32.totalorder %s92, %s95
      %p104 = scmp.eq.s32.totalorder %s24, 5
      %p105 = por %p103, %p104
      %p106 = scmp.ne.s32.totalorder %s95, %s96
      %p107 = scmp.eq.s32.totalorder %s24, 0
      %p108 = por %p106, %p107
      %p109 = scmp.ne.s32.totalorder %s95, %s96
      %p110 = scmp.eq.s32.totalorder %s25, 5
      %p111 = por %p109, %p110
      %p113 = scmp.ne.s32.totalorder %s96, %s112
      %p114 = scmp.eq.s32.totalorder %s25, 0
      %p115 = por %p113, %p114
      %s116 = ssub.s32 %s19, %s26
      %p117 = scmp.eq.s32.totalorder %s116, 0
      %s119 = sadd.s32 %s118, 1
      %s120 = scalar_select %p117, %s118, %s119
      %p123 = pneg %p117
      %p124 = scmp.eq.s32.totalorder %s19, 5
      %p125 = por %p123, %p124
      %p126 = scmp.ne.s32.totalorder %s118, %s121
      %p127 = scmp.eq.s32.totalorder %s19, 0
      %p128 = por %p126, %p127
      %p129 = scmp.ne.s32.totalorder %s118, %s121
      %p130 = scmp.eq.s32.totalorder %s24, 5
      %p131 = por %p129, %p130
      %p132 = scmp.ne.s32.totalorder %s121, %s122
      %p133 = scmp.eq.s32.totalorder %s24, 0
      %p134 = por %p132, %p133
      %p135 = scmp.ne.s32.totalorder %s121, %s122
      %p136 = scmp.eq.s32.totalorder %s25, 5
      %p137 = por %p135, %p136
      %p139 = scmp.ne.s32.totalorder %s122, %s138
      %p140 = scmp.eq.s32.totalorder %s25, 0
      %p141 = por %p139, %p140
      %s142 = ssub.s32 %s19, %s26
      %p143 = scmp.eq.s32.totalorder %s142, 0
      %s145 = sadd.s32 %s144, 1
      %s146 = scalar_select %p143, %s144, %s145
      %p149 = pneg %p143
      %p150 = scmp.eq.s32.totalorder %s19, 5
      %p151 = por %p149, %p150
      %p152 = scmp.ne.s32.totalorder %s144, %s147
      %p153 = scmp.eq.s32.totalorder %s19, 0
      %p154 = por %p152, %p153
      %p155 = scmp.ne.s32.totalorder %s144, %s147
      %p156 = scmp.eq.s32.totalorder %s24, 5
      %p157 = por %p155, %p156
      %p158 = scmp.ne.s32.totalorder %s147, %s148
      %p159 = scmp.eq.s32.totalorder %s24, 0
      %p160 = por %p158, %p159
      %p161 = scmp.ne.s32.totalorder %s147, %s148
      %p162 = scmp.eq.s32.totalorder %s25, 5
      %p163 = por %p161, %p162
      %p165 = scmp.ne.s32.totalorder %s148, %s164
      %p166 = scmp.eq.s32.totalorder %s25, 0
      %p167 = por %p165, %p166
      %s168 = ssub.s32 %s19, %s26
      %p169 = scmp.eq.s32.totalorder %s168, 0
      %s171 = sadd.s32 %s170, 1
      %s172 = scalar_select %p169, %s170, %s171
      %p175 = pneg %p169
      %p176 = scmp.eq.s32.totalorder %s19, 5
      %p177 = por %p175, %p176
      %p178 = scmp.ne.s32.totalorder %s170, %s173
      %p179 = scmp.eq.s32.totalorder %s19, 0
      %p180 = por %p178, %p179
      %p181 = scmp.ne.s32.totalorder %s170, %s173
      %p182 = scmp.eq.s32.totalorder %s24, 5
      %p183 = por %p181, %p182
      %p184 = scmp.ne.s32.totalorder %s173, %s174
      %p185 = scmp.eq.s32.totalorder %s24, 0
      %p186 = por %p184, %p185
      %p187 = scmp.ne.s32.totalorder %s173, %s174
      %p188 = scmp.eq.s32.totalorder %s25, 5
      %p189 = por %p187, %p188
      %p191 = scmp.ne.s32.totalorder %s174, %s190
      %p192 = scmp.eq.s32.totalorder %s25, 0
      %p193 = por %p191, %p192
      %s194 = ssub.s32 %s19, %s26
      %p195 = scmp.eq.s32.totalorder %s194, 0
      %s197 = sadd.s32 %s196, 1
      %s198 = scalar_select %p195, %s196, %s197
      %p201 = pneg %p195
      %p202 = scmp.eq.s32.totalorder %s19, 5
      %p203 = por %p201, %p202
      %p204 = scmp.ne.s32.totalorder %s196, %s199
      %p205 = scmp.eq.s32.totalorder %s19, 0
      %p206 = por %p204, %p205
      %p207 = scmp.ne.s32.totalorder %s196, %s199
      %p208 = scmp.eq.s32.totalorder %s24, 5
      %p209 = por %p207, %p208
      %p210 = scmp.ne.s32.totalorder %s199, %s200
      %p211 = scmp.eq.s32.totalorder %s24, 0
      %p212 = por %p210, %p211
      %p213 = scmp.ne.s32.totalorder %s199, %s200
      %p214 = scmp.eq.s32.totalorder %s25, 5
      %p215 = por %p213, %p214
      %p217 = scmp.ne.s32.totalorder %s200, %s216
      %p218 = scmp.eq.s32.totalorder %s25, 0
      %p219 = por %p217, %p218
      %s221 = sadd.s32 %s220, 1
      %p224 = scmp.eq.s32.totalorder %s19, 5
      %p225 = scmp.ne.s32.totalorder %s220, %s222
      %p226 = scmp.eq.s32.totalorder %s19, 0
      %p227 = por %p225, %p226
      %p228 = scmp.ne.s32.totalorder %s220, %s222
      %p229 = scmp.eq.s32.totalorder %s24, 5
      %p230 = por %p228, %p229
      %p231 = scmp.ne.s32.totalorder %s222, %s223
      %p232 = scmp.eq.s32.totalorder %s24, 0
      %p233 = por %p231, %p232
      %p234 = scmp.ne.s32.totalorder %s222, %s223
      %p235 = scmp.eq.s32.totalorder %s25, 5
      %p236 = por %p234, %p235
      %p238 = scmp.ne.s32.totalorder %s223, %s237
      %p239 = scmp.eq.s32.totalorder %s25, 0
      %p240 = por %p238, %p239
      %s242 = sadd.s32 %s241, 1
      %p245 = scmp.eq.s32.totalorder %s19, 5
      %p246 = scmp.ne.s32.totalorder %s241, %s243
      %p247 = scmp.eq.s32.totalorder %s19, 0
      %p248 = por %p246, %p247
      %p249 = scmp.ne.s32.totalorder %s241, %s243
      %p250 = scmp.eq.s32.totalorder %s24, 5
      %p251 = por %p249, %p250
      %p252 = scmp.ne.s32.totalorder %s243, %s244
      %p253 = scmp.eq.s32.totalorder %s24, 0
      %p254 = por %p252, %p253
      %p255 = scmp.ne.s32.totalorder %s243, %s244
      %p256 = scmp.eq.s32.totalorder %s25, 5
      %p257 = por %p255, %p256
      %p259 = scmp.ne.s32.totalorder %s244, %s258
      %p260 = scmp.eq.s32.totalorder %s25, 0
      %p261 = por %p259, %p260
      %s263 = sadd.s32 %s262, 1
      %p266 = scmp.eq.s32.totalorder %s19, 5
      %p267 = scmp.ne.s32.totalorder %s262, %s264
      %p268 = scmp.eq.s32.totalorder %s19, 0
      %p269 = por %p267, %p268
      %p270 = scmp.ne.s32.totalorder %s262, %s264
      %p271 = scmp.eq.s32.totalorder %s24, 5
      %p272 = por %p270, %p271
      %p273 = scmp.ne.s32.totalorder %s264, %s265
      %p274 = scmp.eq.s32.totalorder %s24, 0
      %p275 = por %p273, %p274
      %p276 = scmp.ne.s32.totalorder %s264, %s265
      %p277 = scmp.eq.s32.totalorder %s25, 5
      %p278 = por %p276, %p277
      %p280 = scmp.ne.s32.totalorder %s265, %s279
      %p281 = scmp.eq.s32.totalorder %s25, 0
      %p282 = por %p280, %p281
      %p283 = scmp.le.s32.totalorder 1, %s19
      %p284 = scmp.lt.s32.totalorder %s19, 7
      %p285 = pnand %p283, %p284
      %p286 = pneg %p285
      // Predicated region
      $region9: #{transformer_forward.1} parent=5 // pred_check
        _
      $region10: #{transformer_forward.1} parent=5 // pred_check_branch
        %288 = sbr.rel (%p285) target = $region12
      $region11: #{transformer_forward.1} parent=5 // pred_region
        %s289 = ssub.s32 %s19, 1
        // Predicated region
        $region13: #{transformer_forward.1} parent=11 // pred_check
          %p290 = pneg %p40
        $region14: #{transformer_forward.1} parent=11 // pred_check_branch
          %292 = sbr.rel (%p290) target = $region16
        $region15: #{transformer_forward.1} parent=11 // pred_region
          _
        $region16: #{transformer_forward.1} parent=11 // pred_fallthru
          _
        // Predicated region
        $region17: #{transformer_forward.1} parent=11 // pred_check
          %p293 = pneg %p61
        $region18: #{transformer_forward.1} parent=11 // pred_check_branch
          %295 = sbr.rel (%p293) target = $region20
        $region19: #{transformer_forward.1} parent=11 // pred_region
          %s297 = ssub.s32 512, 512
          %298 = vsyncadd [#allocation4], %s297
          %s299 = sshll.u32 [#allocation3], 4
          %s300 = int_to_ptr.vmem [resolvable:$true] %s299
          %305 = dma.hbm_to_vmem [thread:$0]  %s1, 512, %s300, [#allocation4], 256, 256, 16
        $region20: #{transformer_forward.1} parent=11 // pred_fallthru
          _
        // Predicated region
        $region21: #{transformer_forward.1} parent=11 // pred_check
          %p306 = pneg %p82
        $region22: #{transformer_forward.1} parent=11 // pred_check_branch
          %308 = sbr.rel (%p306) target = $region24
        $region23: #{transformer_forward.1} parent=11 // pred_region
          %s310 = ssub.s32 64, 64
          %311 = vsyncadd [#allocation7], %s310
          %s313 = sshll.u32 [#allocation6], 4
          %s314 = int_to_ptr.vmem [resolvable:$true] %s313
          %316 = dma.hbm_to_vmem [thread:$0]  %s2, 64, %s314, [#allocation7]
        $region24: #{transformer_forward.1} parent=11 // pred_fallthru
          _
        // Predicated region
        $region25: #{transformer_forward.1} parent=11 // pred_check
          %p317 = pneg %p233
        $region26: #{transformer_forward.1} parent=11 // pred_check_branch
          %319 = sbr.rel (%p317) target = $region28
        $region27: #{transformer_forward.1} parent=11 // pred_region
          _
        $region28: #{transformer_forward.1} parent=11 // pred_fallthru
          _
        // Predicated region
        $region29: #{transformer_forward.1} parent=11 // pred_check
          %p320 = pneg %p254
        $region30: #{transformer_forward.1} parent=11 // pred_check_branch
          %322 = sbr.rel (%p320) target = $region32
        $region31: #{transformer_forward.1} parent=11 // pred_region
          %s324 = ssub.s32 16, 16
          %325 = vsyncadd [#allocation7], %s324
          %s327 = sshll.u32 [#allocation13], 4
          %s328 = int_to_ptr.vmem [resolvable:$true] %s327
          %330 = dma.hbm_to_vmem [thread:$0]  %s9, 16, %s328, [#allocation7]
        $region32: #{transformer_forward.1} parent=11 // pred_fallthru
          _
      $region12: #{transformer_forward.1} parent=5 // pred_fallthru
        _
      %p331 = scmp.lt.s32.totalorder %s19, 6
      // Predicated region
      $region33: #{transformer_forward.1} parent=5 // pred_check
        %p332 = pneg %p331
      $region34: #{transformer_forward.1} parent=5 // pred_check_branch
        %334 = sbr.rel (%p332) target = $region36
      $region35: #{transformer_forward.1} parent=5 // pred_region
        // Predicated region
        $region37: #{transformer_forward.1} parent=35 // pred_check
          %p335 = pneg %p102
        $region38: #{transformer_forward.1} parent=35 // pred_check_branch
          %337 = sbr.rel (%p335) target = $region40
        $region39: #{transformer_forward.1} parent=35 // pred_region
          %s338 = sand.u32 %s19, 1
          %s339 = scalar_lea.sflag [#allocation4], %s338
          %s340 = sand.u32 %s92, 1
          %s341 = smul.addr %s340, 1536
          %s342 = scalar_lea.vmem [#allocation8], %s341
          %s344 = ssub.s32 24576, 24576
          %345 = vsyncadd %s339, %s344
          %s346 = smul.addr %s19, 192
          %s347 = smul.addr %s346, 128
          %s348 = scalar_lea.hbm %s3, %s347
          %s349 = sshll.u32 %s342, 4
          %s350 = int_to_ptr.vmem [resolvable:$true] %s349
          %355 = dma.hbm_to_vmem [thread:$0]  %s348, 24576, %s350, %s339, 1536, 1536, 96
        $region40: #{transformer_forward.1} parent=35 // pred_fallthru
          _
        // Predicated region
        $region41: #{transformer_forward.1} parent=35 // pred_check
          %p356 = pneg %p128
        $region42: #{transformer_forward.1} parent=35 // pred_check_branch
          %358 = sbr.rel (%p356) target = $region44
        $region43: #{transformer_forward.1} parent=35 // pred_region
          %s359 = sand.u32 %s19, 1
          %s360 = scalar_lea.sflag [#allocation4], %s359
          %s361 = sand.u32 %s118, 1
          %s362 = smul.addr %s361, 512
          %s363 = scalar_lea.vmem [#allocation9], %s362
          %s365 = ssub.s32 8192, 8192
          %366 = vsyncadd %s360, %s365
          %s367 = smul.addr %s19, 64
          %s368 = smul.addr %s367, 128
          %s369 = scalar_lea.hbm %s4, %s368
          %s370 = sshll.u32 %s363, 4
          %s371 = int_to_ptr.vmem [resolvable:$true] %s370
          %376 = dma.hbm_to_vmem [thread:$0]  %s369, 8192, %s371, %s360, 512, 512, 32
        $region44: #{transformer_forward.1} parent=35 // pred_fallthru
          _
        // Predicated region
        $region45: #{transformer_forward.1} parent=35 // pred_check
          %p377 = pneg %p154
        $region46: #{transformer_forward.1} parent=35 // pred_check_branch
          %379 = sbr.rel (%p377) target = $region48
        $region47: #{transformer_forward.1} parent=35 // pred_region
          %s380 = sand.u32 %s19, 1
          %s381 = scalar_lea.sflag [#allocation4], %s380
          %s382 = sand.u32 %s144, 1
          %s383 = smul.addr %s382, 2048
          %s384 = scalar_lea.vmem [#allocation10], %s383
          %s386 = ssub.s32 32768, 32768
          %387 = vsyncadd %s381, %s386
          %s388 = smul.addr %s19, 256
          %s389 = smul.addr %s388, 128
          %s390 = scalar_lea.hbm %s5, %s389
          %s391 = sshll.u32 %s384, 4
          %s392 = int_to_ptr.vmem [resolvable:$true] %s391
          %397 = dma.hbm_to_vmem [thread:$0]  %s390, 32768, %s392, %s381, 2048, 2048, 128
        $region48: #{transformer_forward.1} parent=35 // pred_fallthru
          _
        // Predicated region
        $region49: #{transformer_forward.1} parent=35 // pred_check
          %p398 = pneg %p180
        $region50: #{transformer_forward.1} parent=35 // pred_check_branch
          %400 = sbr.rel (%p398) target = $region52
        $region51: #{transformer_forward.1} parent=35 // pred_region
          %s401 = sand.u32 %s19, 1
          %s402 = scalar_lea.sflag [#allocation4], %s401
          %s403 = sand.u32 %s170, 1
          %s404 = smul.addr %s403, 2048
          %s405 = scalar_lea.vmem [#allocation11], %s404
          %s407 = ssub.s32 32768, 32768
          %408 = vsyncadd %s402, %s407
          %s409 = smul.addr %s19, 256
          %s410 = smul.addr %s409, 128
          %s411 = scalar_lea.hbm %s6, %s410
          %s412 = sshll.u32 %s405, 4
          %s413 = int_to_ptr.vmem [resolvable:$true] %s412
          %418 = dma.hbm_to_vmem [thread:$0]  %s411, 32768, %s413, %s402, 512, 512, 32
        $region52: #{transformer_forward.1} parent=35 // pred_fallthru
          _
        // Predicated region
        $region53: #{transformer_forward.1} parent=35 // pred_check
          %p419 = pneg %p206
        $region54: #{transformer_forward.1} parent=35 // pred_check_branch
          %421 = sbr.rel (%p419) target = $region56
        $region55: #{transformer_forward.1} parent=35 // pred_region
          %s422 = sand.u32 %s19, 1
          %s423 = scalar_lea.sflag [#allocation4], %s422
          %s424 = sand.u32 %s196, 1
          %s425 = smul.addr %s424, 88
          %s426 = scalar_lea.vmem [#allocation12], %s425
          %s428 = ssub.s32 1408, 1408
          %429 = vsyncadd %s423, %s428
          %s430 = smul.addr %s19, 88
          %s431 = smul.addr %s430, 16
          %s432 = scalar_lea.hbm %s7, %s431
          %s434 = sshll.u32 %s426, 4
          %s435 = int_to_ptr.vmem [resolvable:$true] %s434
          %437 = dma.hbm_to_vmem [thread:$0]  %s432, 1408, %s435, %s423
        $region56: #{transformer_forward.1} parent=35 // pred_fallthru
          _
      $region36: #{transformer_forward.1} parent=5 // pred_fallthru
        _
      %p438 = scmp.le.s32.totalorder 1, %s19
      %p439 = scmp.lt.s32.totalorder %s19, 7
      %p440 = pnand %p438, %p439
      %p441 = pneg %p440
      // Predicated region
      $region57: #{transformer_forward.1} parent=5 // pred_check
        _
      $region58: #{transformer_forward.1} parent=5 // pred_check_branch
        %443 = sbr.rel (%p440) target = $region60
      $region59: #{transformer_forward.1} parent=5 // pred_region
        %s444 = ssub.s32 %s19, 1
        // Predicated region
        $region61: #{transformer_forward.1} parent=59 // pred_check
          %p445 = pneg %p61
        $region62: #{transformer_forward.1} parent=59 // pred_check_branch
          %447 = sbr.rel (%p445) target = $region64
        $region63: #{transformer_forward.1} parent=59 // pred_region
          %448 = dma.done [#allocation4], 512
        $region64: #{transformer_forward.1} parent=59 // pred_fallthru
          _
        // Predicated region
        $region65: #{transformer_forward.1} parent=59 // pred_check
          %p449 = pneg %p82
        $region66: #{transformer_forward.1} parent=59 // pred_check_branch
          %451 = sbr.rel (%p449) target = $region68
        $region67: #{transformer_forward.1} parent=59 // pred_region
          %452 = dma.done [#allocation7], 64
        $region68: #{transformer_forward.1} parent=59 // pred_fallthru
          _
        %s453 = sand.u32 %s24, 1
        %s454 = scalar_lea.sflag [#allocation4], %s453
        %s455 = sand.u32 %s95, 1
        %s456 = smul.addr %s455, 1536
        %s457 = scalar_lea.vmem [#allocation8], %s456
        // Predicated region
        $region69: #{transformer_forward.1} parent=59 // pred_check
          %p458 = pneg %p108
        $region70: #{transformer_forward.1} parent=59 // pred_check_branch
          %460 = sbr.rel (%p458) target = $region72
        $region71: #{transformer_forward.1} parent=59 // pred_region
          %461 = dma.done %s454, 24576
        $region72: #{transformer_forward.1} parent=59 // pred_fallthru
          _
        %s462 = sand.u32 %s24, 1
        %s463 = scalar_lea.sflag [#allocation4], %s462
        %s464 = sand.u32 %s121, 1
        %s465 = smul.addr %s464, 512
        %s466 = scalar_lea.vmem [#allocation9], %s465
        // Predicated region
        $region73: #{transformer_forward.1} parent=59 // pred_check
          %p467 = pneg %p134
        $region74: #{transformer_forward.1} parent=59 // pred_check_branch
          %469 = sbr.rel (%p467) target = $region76
        $region75: #{transformer_forward.1} parent=59 // pred_region
          %470 = dma.done %s463, 8192
        $region76: #{transformer_forward.1} parent=59 // pred_fallthru
          _
        %s471 = sand.u32 %s24, 1
        %s472 = scalar_lea.sflag [#allocation4], %s471
        %s473 = sand.u32 %s147, 1
        %s474 = smul.addr %s473, 2048
        %s475 = scalar_lea.vmem [#allocation10], %s474
        // Predicated region
        $region77: #{transformer_forward.1} parent=59 // pred_check
          %p476 = pneg %p160
        $region78: #{transformer_forward.1} parent=59 // pred_check_branch
          %478 = sbr.rel (%p476) target = $region80
        $region79: #{transformer_forward.1} parent=59 // pred_region
          %479 = dma.done %s472, 32768
        $region80: #{transformer_forward.1} parent=59 // pred_fallthru
          _
        %s480 = sand.u32 %s24, 1
        %s481 = scalar_lea.sflag [#allocation4], %s480
        %s482 = sand.u32 %s173, 1
        %s483 = smul.addr %s482, 2048
        %s484 = scalar_lea.vmem [#allocation11], %s483
        // Predicated region
        $region81: #{transformer_forward.1} parent=59 // pred_check
          %p485 = pneg %p186
        $region82: #{transformer_forward.1} parent=59 // pred_check_branch
          %487 = sbr.rel (%p485) target = $region84
        $region83: #{transformer_forward.1} parent=59 // pred_region
          %488 = dma.done %s481, 32768
        $region84: #{transformer_forward.1} parent=59 // pred_fallthru
          _
        %s489 = sand.u32 %s24, 1
        %s490 = scalar_lea.sflag [#allocation4], %s489
        %s491 = sand.u32 %s199, 1
        %s492 = smul.addr %s491, 88
        %s493 = scalar_lea.vmem [#allocation12], %s492
        // Predicated region
        $region85: #{transformer_forward.1} parent=59 // pred_check
          %p494 = pneg %p212
        $region86: #{transformer_forward.1} parent=59 // pred_check_branch
          %496 = sbr.rel (%p494) target = $region88
        $region87: #{transformer_forward.1} parent=59 // pred_region
          %497 = dma.done %s490, 1408
        $region88: #{transformer_forward.1} parent=59 // pred_fallthru
          _
        // Predicated region
        $region89: #{transformer_forward.1} parent=59 // pred_check
          %p498 = pneg %p254
        $region90: #{transformer_forward.1} parent=59 // pred_check_branch
          %500 = sbr.rel (%p498) target = $region92
        $region91: #{transformer_forward.1} parent=59 // pred_region
          %501 = dma.done [#allocation7], 16
        $region92: #{transformer_forward.1} parent=59 // pred_fallthru
          _
        %p502 = pneg %p40
        %p503 = pneg %p37
        %p504 = pneg %p61
        %p505 = pneg %p58
        %p506 = pneg %p82
        %p507 = pneg %p79
        %s508 = sand.u32 %s24, 1
        %s509 = scalar_lea.sflag [#allocation4], %s508
        %s510 = sand.u32 %s95, 1
        %s511 = smul.addr %s510, 1536
        %s512 = scalar_lea.vmem [#allocation8], %s511
        %p513 = pneg %p108
        %p514 = pneg %p105
        %s515 = sand.u32 %s24, 1
        %s516 = scalar_lea.sflag [#allocation4], %s515
        %s517 = sand.u32 %s121, 1
        %s518 = smul.addr %s517, 512
        %s519 = scalar_lea.vmem [#allocation9], %s518
        %p520 = pneg %p134
        %p521 = pneg %p131
        %s522 = sand.u32 %s24, 1
        %s523 = scalar_lea.sflag [#allocation4], %s522
        %s524 = sand.u32 %s147, 1
        %s525 = smul.addr %s524, 2048
        %s526 = scalar_lea.vmem [#allocation10], %s525
        %p527 = pneg %p160
        %p528 = pneg %p157
        %s529 = sand.u32 %s24, 1
        %s530 = scalar_lea.sflag [#allocation4], %s529
        %s531 = sand.u32 %s173, 1
        %s532 = smul.addr %s531, 2048
        %s533 = scalar_lea.vmem [#allocation11], %s532
        %p534 = pneg %p186
        %p535 = pneg %p183
        %s536 = sand.u32 %s24, 1
        %s537 = scalar_lea.sflag [#allocation4], %s536
        %s538 = sand.u32 %s199, 1
        %s539 = smul.addr %s538, 88
        %s540 = scalar_lea.vmem [#allocation12], %s539
        %p541 = pneg %p212
        %p542 = pneg %p209
        %p543 = pneg %p233
        %p544 = pneg %p230
        %p545 = pneg %p254
        %p546 = pneg %p251
        %p547 = pneg %p275
        %p548 = pneg %p272
        %p550 = scmp.eq.s32.totalorder %s24, 0
        // Predicated region
        $region93: #{transformer_forward.1} parent=59 // pred_check
          %p551 = pneg %p550
        $region94: #{transformer_forward.1} parent=59 // pred_check_branch
          %553 = sbr.rel (%p551) target = $region96
        $region95: #{transformer_forward.1} parent=59 // pred_region
          %v554 = vld [vmem:[%s0] sm:$0xff]
          %v555 = vld [vmem:[%s0 + $0x8] sm:$0xff]
          %v556 = vpack.c.bf16 %v555, %v554
          %v557 = vld [vmem:[#allocation3] sm:$0xff]
          %v558 = vld [vmem:[#allocation3 + $0x8] sm:$0xff]
          %v559 = vld [vmem:[#allocation3 + $0x10] sm:$0xff]
          %v560 = vld [vmem:[#allocation3 + $0x18] sm:$0xff]
          %v561 = vld [vmem:[#allocation6] sm:$0xf]
          %v563 = vlaneseq
          %v564 = vshrl.u32 %v563, 7
          %v565 = vsub.s32 0, %v564
          %v566 = vrot.slane %v561, %v565
          %v567 = vlaneseq
          %v568 = vshrl.u32 %v567, 7
          %v569 = vsub.s32 1, %v568
          %v570 = vrot.slane %v561, %v569
          %v571 = vlaneseq
          %v572 = vshrl.u32 %v571, 7
          %v573 = vsub.s32 2, %v572
          %v574 = vrot.slane %v561, %v573
          %v575 = vlaneseq
          %v576 = vshrl.u32 %v575, 7
          %v577 = vsub.s32 3, %v576
          %v578 = vrot.slane %v561, %v577
          %v587 = vunpack.c.l.b16 %v557
          %v588 = vunpack.c.h.b16 %v557
          %v589 = vunpack.c.l.b16 %v558
          %v590 = vunpack.c.h.b16 %v558
          %v591 = vunpack.c.l.b16 %v559
          %v592 = vunpack.c.h.b16 %v559
          %v593 = vunpack.c.l.b16 %v560
          %v594 = vunpack.c.h.b16 %v560
          %v595 = vpack.c.b16 %v591, %v587
          %v596 = vpack.c.b16 %v592, %v588
          %v597 = vpack.c.b16 %v593, %v589
          %v598 = vpack.c.b16 %v594, %v590
          %vm603 = vcmask 130048
          %v605 = vsel %vm603, %v556, 0
          %607 = vmatprep.subr.bf16.mxu0 %v596
          %608 = vmatpush1.bf16.msra.mxu0 %v595
          %609 = vmatprep.subr.bf16.mxu0 0
          %610 = vmatpush1.bf16.msra.mxu0 0
          %611 = vmatprep.subr.bf16.mxu0 0
          %612 = vmatpush1.bf16.msra.mxu0 0
          %613 = vmatprep.subr.bf16.mxu0 0
          %614 = vmatpush1.bf16.msra.mxu0 0
          %615 = vmatprep.subr.bf16.mxu0 0
          %616 = vmatpush1.bf16.msra.mxu0 0
          %617 = vmatprep.subr.bf16.mxu0 0
          %618 = vmatpush1.bf16.msra.mxu0 0
          %619 = vmatprep.subr.bf16.mxu0 0
          %620 = vmatpush1.bf16.msra.mxu0 0
          %621 = vmatprep.subr.bf16.mxu0 0
          %622 = vmatpush1.bf16.msra.mxu0 0
          %623 = vmatprep.subr.bf16.mxu0 0
          %624 = vmatpush1.bf16.msra.mxu0 0
          %625 = vmatprep.subr.bf16.mxu0 0
          %626 = vmatpush1.bf16.msra.mxu0 0
          %627 = vmatprep.subr.bf16.mxu0 0
          %628 = vmatpush1.bf16.msra.mxu0 0
          %629 = vmatprep.subr.bf16.mxu0 0
          %630 = vmatpush1.bf16.msra.mxu0 0
          %631 = vmatprep.subr.bf16.mxu0 0
          %632 = vmatpush1.bf16.msra.mxu0 0
          %633 = vmatprep.subr.bf16.mxu0 0
          %634 = vmatpush1.bf16.msra.mxu0 0
          %635 = vmatprep.subr.bf16.mxu0 0
          %636 = vmatpush1.bf16.msra.mxu0 0
          %637 = vmatprep.subr.bf16.mxu0 0
          %638 = vmatpush1.bf16.msra.mxu0 0
          %639 = vmatprep.mubr.bf16.mxu0 0
          %640 = vmatmul.mubr.bf16.gmra.mrb[0].mxu0 %v605
          %v641 = vpop.f32.mrb[0].mxu0
          %v642 = vadd.f32 %v566, %v641
          %v643 = vpop.f32.mrb[0].mxu0
          %v644 = vadd.f32 %v570, %v643
          %v645 = vpop.f32.mrb[0].mxu0
          %v646 = vadd.f32 %v566, %v645
          %v647 = vpop.f32.mrb[0].mxu0
          %v648 = vadd.f32 %v570, %v647
          %649 = vdwg.mxu0
          %650 = vmatprep.subr.bf16.mxu0 %v598
          %651 = vmatpush1.bf16.msra.mxu0 %v597
          %652 = vmatprep.subr.bf16.mxu0 0
          %653 = vmatpush1.bf16.msra.mxu0 0
          %654 = vmatprep.subr.bf16.mxu0 0
          %655 = vmatpush1.bf16.msra.mxu0 0
          %656 = vmatprep.subr.bf16.mxu0 0
          %657 = vmatpush1.bf16.msra.mxu0 0
          %658 = vmatprep.subr.bf16.mxu0 0
          %659 = vmatpush1.bf16.msra.mxu0 0
          %660 = vmatprep.subr.bf16.mxu0 0
          %661 = vmatpush1.bf16.msra.mxu0 0
          %662 = vmatprep.subr.bf16.mxu0 0
          %663 = vmatpush1.bf16.msra.mxu0 0
          %664 = vmatprep.subr.bf16.mxu0 0
          %665 = vmatpush1.bf16.msra.mxu0 0
          %666 = vmatprep.subr.bf16.mxu0 0
          %667 = vmatpush1.bf16.msra.mxu0 0
          %668 = vmatprep.subr.bf16.mxu0 0
          %669 = vmatpush1.bf16.msra.mxu0 0
          %670 = vmatprep.subr.bf16.mxu0 0
          %671 = vmatpush1.bf16.msra.mxu0 0
          %672 = vmatprep.subr.bf16.mxu0 0
          %673 = vmatpush1.bf16.msra.mxu0 0
          %674 = vmatprep.subr.bf16.mxu0 0
          %675 = vmatpush1.bf16.msra.mxu0 0
          %676 = vmatprep.subr.bf16.mxu0 0
          %677 = vmatpush1.bf16.msra.mxu0 0
          %678 = vmatprep.subr.bf16.mxu0 0
          %679 = vmatpush1.bf16.msra.mxu0 0
          %680 = vmatprep.subr.bf16.mxu0 0
          %681 = vmatpush1.bf16.msra.mxu0 0
          %682 = vmatprep.mubr.bf16.mxu0 0
          %683 = vmatmul.mubr.bf16.gmra.mrb[0].mxu0 %v605
          %v684 = vpop.f32.mrb[0].mxu0
          %v685 = vadd.f32 %v574, %v684
          %v686 = vpop.f32.mrb[0].mxu0
          %v687 = vadd.f32 %v578, %v686
          %v688 = vpop.f32.mrb[0].mxu0
          %v689 = vadd.f32 %v574, %v688
          %v690 = vpop.f32.mrb[0].mxu0
          %v691 = vadd.f32 %v578, %v690
          %692 = vdwg.mxu0
          %693 = vst [vmem:[#allocation2] sm:$0xff] %v642
          %694 = vst [vmem:[#allocation2 + $0x8] sm:$0xff] %v644
          %695 = vst [vmem:[#allocation2 + $0x10] sm:$0xff] %v685
          %696 = vst [vmem:[#allocation2 + $0x18] sm:$0xff] %v687
          %697 = vst [vmem:[#allocation2 + $0x20] sm:$0xff] %v646
          %698 = vst [vmem:[#allocation2 + $0x28] sm:$0xff] %v648
          %699 = vst [vmem:[#allocation2 + $0x30] sm:$0xff] %v689
          %700 = vst [vmem:[#allocation2 + $0x38] sm:$0xff] %v691
        $region96: #{transformer_forward.1} parent=59 // pred_fallthru
          _
        %v701 = vld [vmem:[#allocation2] sm:$0xff]
        %v702 = vld [vmem:[#allocation2 + $0x8] sm:$0xff]
        %v703 = vld [vmem:[#allocation2 + $0x10] sm:$0xff]
        %v704 = vld [vmem:[#allocation2 + $0x18] sm:$0xff]
        %v705 = vld [vmem:[#allocation2 + $0x20] sm:$0xff]
        %v706 = vld [vmem:[#allocation2 + $0x28] sm:$0xff]
        %v707 = vld [vmem:[#allocation2 + $0x30] sm:$0xff]
        %v708 = vld [vmem:[#allocation2 + $0x38] sm:$0xff]
        %v709 = vpack.c.bf16 %v705, %v701
        %v710 = vpack.c.bf16 %v706, %v702
        %v711 = vpack.c.bf16 %v707, %v703
        %v712 = vpack.c.bf16 %v708, %v704
        %v713 = vld [vmem:[%s493 + $0xc] sm:$0xff]
        %v714 = vld [vmem:[%s493 + $0x14] sm:$0xf]
        %v715 = vld [vmem:[%s493] sm:$0xff]
        %v716 = vld [vmem:[%s493 + $0x8] sm:$0xf]
        %v717 = vld [vmem:[%s457] sm:$0xff]
        %v718 = vld [vmem:[%s457 + $0x8] sm:$0xff]
        %v719 = vld [vmem:[%s457 + $0x10] sm:$0xff]
        %v720 = vld [vmem:[%s457 + $0x18] sm:$0xff]
        %v721 = vld [vmem:[%s457 + $0x20] sm:$0xff]
        %v722 = vld [vmem:[%s457 + $0x28] sm:$0xff]
        %v723 = vld [vmem:[%s457 + $0x30] sm:$0xff]
        %v724 = vld [vmem:[%s457 + $0x38] sm:$0xff]
        %v725 = vld [vmem:[%s457 + $0x40] sm:$0xff]
        %v726 = vld [vmem:[%s457 + $0x48] sm:$0xff]
        %v727 = vld [vmem:[%s457 + $0x50] sm:$0xff]
        %v728 = vld [vmem:[%s457 + $0x58] sm:$0xff]
        %v729 = vld [vmem:[%s457 + $0x60] sm:$0xff]
        %v730 = vld [vmem:[%s457 + $0x68] sm:$0xff]
        %v731 = vld [vmem:[%s457 + $0x70] sm:$0xff]
        %v732 = vld [vmem:[%s457 + $0x78] sm:$0xff]
        %v733 = vld [vmem:[%s457 + $0x80] sm:$0xff]
        %v734 = vld [vmem:[%s457 + $0x88] sm:$0xff]
        %v735 = vld [vmem:[%s457 + $0x90] sm:$0xff]
        %v736 = vld [vmem:[%s457 + $0x98] sm:$0xff]
        %v737 = vld [vmem:[%s457 + $0xa0] sm:$0xff]
        %v738 = vld [vmem:[%s457 + $0xa8] sm:$0xff]
        %v739 = vld [vmem:[%s457 + $0xb0] sm:$0xff]
        %v740 = vld [vmem:[%s457 + $0xb8] sm:$0xff]
        %v741 = vld [vmem:[%s457 + $0xc0] sm:$0xff]
        %v742 = vld [vmem:[%s457 + $0xc8] sm:$0xff]
        %v743 = vld [vmem:[%s457 + $0xd0] sm:$0xff]
        %v744 = vld [vmem:[%s457 + $0xd8] sm:$0xff]
        %v745 = vld [vmem:[%s457 + $0xe0] sm:$0xff]
        %v746 = vld [vmem:[%s457 + $0xe8] sm:$0xff]
        %v747 = vld [vmem:[%s457 + $0xf0] sm:$0xff]
        %v748 = vld [vmem:[%s457 + $0xf8] sm:$0xff]
        %v749 = vld [vmem:[%s457 + $0x100] sm:$0xff]
        %v750 = vld [vmem:[%s457 + $0x108] sm:$0xff]
        %v751 = vld [vmem:[%s457 + $0x110] sm:$0xff]
        %v752 = vld [vmem:[%s457 + $0x118] sm:$0xff]
        %v753 = vld [vmem:[%s457 + $0x120] sm:$0xff]
        %v754 = vld [vmem:[%s457 + $0x128] sm:$0xff]
        %v755 = vld [vmem:[%s457 + $0x130] sm:$0xff]
        %v756 = vld [vmem:[%s457 + $0x138] sm:$0xff]
        %v757 = vld [vmem:[%s457 + $0x140] sm:$0xff]
        %v758 = vld [vmem:[%s457 + $0x148] sm:$0xff]
        %v759 = vld [vmem:[%s457 + $0x150] sm:$0xff]
        %v760 = vld [vmem:[%s457 + $0x158] sm:$0xff]
        %v761 = vld [vmem:[%s457 + $0x160] sm:$0xff]
        %v762 = vld [vmem:[%s457 + $0x168] sm:$0xff]
        %v763 = vld [vmem:[%s457 + $0x170] sm:$0xff]
        %v764 = vld [vmem:[%s457 + $0x178] sm:$0xff]
        %v765 = vld [vmem:[%s457 + $0x180] sm:$0xff]
        %v766 = vld [vmem:[%s457 + $0x188] sm:$0xff]
        %v767 = vld [vmem:[%s457 + $0x190] sm:$0xff]
        %v768 = vld [vmem:[%s457 + $0x198] sm:$0xff]
        %v769 = vld [vmem:[%s457 + $0x1a0] sm:$0xff]
        %v770 = vld [vmem:[%s457 + $0x1a8] sm:$0xff]
        %v771 = vld [vmem:[%s457 + $0x1b0] sm:$0xff]
        %v772 = vld [vmem:[%s457 + $0x1b8] sm:$0xff]
        %v773 = vld [vmem:[%s457 + $0x1c0] sm:$0xff]
        %v774 = vld [vmem:[%s457 + $0x1c8] sm:$0xff]
        %v775 = vld [vmem:[%s457 + $0x1d0] sm:$0xff]
        %v776 = vld [vmem:[%s457 + $0x1d8] sm:$0xff]
        %v777 = vld [vmem:[%s457 + $0x1e0] sm:$0xff]
        %v778 = vld [vmem:[%s457 + $0x1e8] sm:$0xff]
        %v779 = vld [vmem:[%s457 + $0x1f0] sm:$0xff]
        %v780 = vld [vmem:[%s457 + $0x1f8] sm:$0xff]
        %v781 = vld [vmem:[%s457 + $0x200] sm:$0xff]
        %v782 = vld [vmem:[%s457 + $0x208] sm:$0xff]
        %v783 = vld [vmem:[%s457 + $0x210] sm:$0xff]
        %v784 = vld [vmem:[%s457 + $0x218] sm:$0xff]
        %v785 = vld [vmem:[%s457 + $0x220] sm:$0xff]
        %v786 = vld [vmem:[%s457 + $0x228] sm:$0xff]
        %v787 = vld [vmem:[%s457 + $0x230] sm:$0xff]
        %v788 = vld [vmem:[%s457 + $0x238] sm:$0xff]
        %v789 = vld [vmem:[%s457 + $0x240] sm:$0xff]
        %v790 = vld [vmem:[%s457 + $0x248] sm:$0xff]
        %v791 = vld [vmem:[%s457 + $0x250] sm:$0xff]
        %v792 = vld [vmem:[%s457 + $0x258] sm:$0xff]
        %v793 = vld [vmem:[%s457 + $0x260] sm:$0xff]
        %v794 = vld [vmem:[%s457 + $0x268] sm:$0xff]
        %v795 = vld [vmem:[%s457 + $0x270] sm:$0xff]
        %v796 = vld [vmem:[%s457 + $0x278] sm:$0xff]
        %v797 = vld [vmem:[%s457 + $0x280] sm:$0xff]
        %v798 = vld [vmem:[%s457 + $0x288] sm:$0xff]
        %v799 = vld [vmem:[%s457 + $0x290] sm:$0xff]
        %v800 = vld [vmem:[%s457 + $0x298] sm:$0xff]
        %v801 = vld [vmem:[%s457 + $0x2a0] sm:$0xff]
        %v802 = vld [vmem:[%s457 + $0x2a8] sm:$0xff]
        %v803 = vld [vmem:[%s457 + $0x2b0] sm:$0xff]
        %v804 = vld [vmem:[%s457 + $0x2b8] sm:$0xff]
        %v805 = vld [vmem:[%s457 + $0x2c0] sm:$0xff]
        %v806 = vld [vmem:[%s457 + $0x2c8] sm:$0xff]
        %v807 = vld [vmem:[%s457 + $0x2d0] sm:$0xff]
        %v808 = vld [vmem:[%s457 + $0x2d8] sm:$0xff]
        %v809 = vld [vmem:[%s457 + $0x2e0] sm:$0xff]
        %v810 = vld [vmem:[%s457 + $0x2e8] sm:$0xff]
        %v811 = vld [vmem:[%s457 + $0x2f0] sm:$0xff]
        %v812 = vld [vmem:[%s457 + $0x2f8] sm:$0xff]
        %v813 = vld [vmem:[%s457 + $0x300] sm:$0xff]
        %v814 = vld [vmem:[%s457 + $0x308] sm:$0xff]
        %v815 = vld [vmem:[%s457 + $0x310] sm:$0xff]
        %v816 = vld [vmem:[%s457 + $0x318] sm:$0xff]
        %v817 = vld [vmem:[%s457 + $0x320] sm:$0xff]
        %v818 = vld [vmem:[%s457 + $0x328] sm:$0xff]
        %v819 = vld [vmem:[%s457 + $0x330] sm:$0xff]
        %v820 = vld [vmem:[%s457 + $0x338] sm:$0xff]
        %v821 = vld [vmem:[%s457 + $0x340] sm:$0xff]
        %v822 = vld [vmem:[%s457 + $0x348] sm:$0xff]
        %v823 = vld [vmem:[%s457 + $0x350] sm:$0xff]
        %v824 = vld [vmem:[%s457 + $0x358] sm:$0xff]
        %v825 = vld [vmem:[%s457 + $0x360] sm:$0xff]
        %v826 = vld [vmem:[%s457 + $0x368] sm:$0xff]
        %v827 = vld [vmem:[%s457 + $0x370] sm:$0xff]
        %v828 = vld [vmem:[%s457 + $0x378] sm:$0xff]
        %v829 = vld [vmem:[%s457 + $0x380] sm:$0xff]
        %v830 = vld [vmem:[%s457 + $0x388] sm:$0xff]
        %v831 = vld [vmem:[%s457 + $0x390] sm:$0xff]
        %v832 = vld [vmem:[%s457 + $0x398] sm:$0xff]
        %v833 = vld [vmem:[%s457 + $0x3a0] sm:$0xff]
        %v834 = vld [vmem:[%s457 + $0x3a8] sm:$0xff]
        %v835 = vld [vmem:[%s457 + $0x3b0] sm:$0xff]
        %v836 = vld [vmem:[%s457 + $0x3b8] sm:$0xff]
        %v837 = vld [vmem:[%s457 + $0x3c0] sm:$0xff]
        %v838 = vld [vmem:[%s457 + $0x3c8] sm:$0xff]
        %v839 = vld [vmem:[%s457 + $0x3d0] sm:$0xff]
        %v840 = vld [vmem:[%s457 + $0x3d8] sm:$0xff]
        %v841 = vld [vmem:[%s457 + $0x3e0] sm:$0xff]
        %v842 = vld [vmem:[%s457 + $0x3e8] sm:$0xff]
        %v843 = vld [vmem:[%s457 + $0x3f0] sm:$0xff]
        %v844 = vld [vmem:[%s457 + $0x3f8] sm:$0xff]
        %v845 = vld [vmem:[%s457 + $0x400] sm:$0xff]
        %v846 = vld [vmem:[%s457 + $0x408] sm:$0xff]
        %v847 = vld [vmem:[%s457 + $0x410] sm:$0xff]
        %v848 = vld [vmem:[%s457 + $0x418] sm:$0xff]
        %v849 = vld [vmem:[%s457 + $0x420] sm:$0xff]
        %v850 = vld [vmem:[%s457 + $0x428] sm:$0xff]
        %v851 = vld [vmem:[%s457 + $0x430] sm:$0xff]
        %v852 = vld [vmem:[%s457 + $0x438] sm:$0xff]
        %v853 = vld [vmem:[%s457 + $0x440] sm:$0xff]
        %v854 = vld [vmem:[%s457 + $0x448] sm:$0xff]
        %v855 = vld [vmem:[%s457 + $0x450] sm:$0xff]
        %v856 = vld [vmem:[%s457 + $0x458] sm:$0xff]
        %v857 = vld [vmem:[%s457 + $0x460] sm:$0xff]
        %v858 = vld [vmem:[%s457 + $0x468] sm:$0xff]
        %v859 = vld [vmem:[%s457 + $0x470] sm:$0xff]
        %v860 = vld [vmem:[%s457 + $0x478] sm:$0xff]
        %v861 = vld [vmem:[%s457 + $0x480] sm:$0xff]
        %v862 = vld [vmem:[%s457 + $0x488] sm:$0xff]
        %v863 = vld [vmem:[%s457 + $0x490] sm:$0xff]
        %v864 = vld [vmem:[%s457 + $0x498] sm:$0xff]
        %v865 = vld [vmem:[%s457 + $0x4a0] sm:$0xff]
        %v866 = vld [vmem:[%s457 + $0x4a8] sm:$0xff]
        %v867 = vld [vmem:[%s457 + $0x4b0] sm:$0xff]
        %v868 = vld [vmem:[%s457 + $0x4b8] sm:$0xff]
        %v869 = vld [vmem:[%s457 + $0x4c0] sm:$0xff]
        %v870 = vld [vmem:[%s457 + $0x4c8] sm:$0xff]
        %v871 = vld [vmem:[%s457 + $0x4d0] sm:$0xff]
        %v872 = vld [vmem:[%s457 + $0x4d8] sm:$0xff]
        %v873 = vld [vmem:[%s457 + $0x4e0] sm:$0xff]
        %v874 = vld [vmem:[%s457 + $0x4e8] sm:$0xff]
        %v875 = vld [vmem:[%s457 + $0x4f0] sm:$0xff]
        %v876 = vld [vmem:[%s457 + $0x4f8] sm:$0xff]
        %v877 = vld [vmem:[%s457 + $0x500] sm:$0xff]
        %v878 = vld [vmem:[%s457 + $0x508] sm:$0xff]
        %v879 = vld [vmem:[%s457 + $0x510] sm:$0xff]
        %v880 = vld [vmem:[%s457 + $0x518] sm:$0xff]
        %v881 = vld [vmem:[%s457 + $0x520] sm:$0xff]
        %v882 = vld [vmem:[%s457 + $0x528] sm:$0xff]
        %v883 = vld [vmem:[%s457 + $0x530] sm:$0xff]
        %v884 = vld [vmem:[%s457 + $0x538] sm:$0xff]
        %v885 = vld [vmem:[%s457 + $0x540] sm:$0xff]
        %v886 = vld [vmem:[%s457 + $0x548] sm:$0xff]
        %v887 = vld [vmem:[%s457 + $0x550] sm:$0xff]
        %v888 = vld [vmem:[%s457 + $0x558] sm:$0xff]
        %v889 = vld [vmem:[%s457 + $0x560] sm:$0xff]
        %v890 = vld [vmem:[%s457 + $0x568] sm:$0xff]
        %v891 = vld [vmem:[%s457 + $0x570] sm:$0xff]
        %v892 = vld [vmem:[%s457 + $0x578] sm:$0xff]
        %v893 = vld [vmem:[%s457 + $0x580] sm:$0xff]
        %v894 = vld [vmem:[%s457 + $0x588] sm:$0xff]
        %v895 = vld [vmem:[%s457 + $0x590] sm:$0xff]
        %v896 = vld [vmem:[%s457 + $0x598] sm:$0xff]
        %v897 = vld [vmem:[%s457 + $0x5a0] sm:$0xff]
        %v898 = vld [vmem:[%s457 + $0x5a8] sm:$0xff]
        %v899 = vld [vmem:[%s457 + $0x5b0] sm:$0xff]
        %v900 = vld [vmem:[%s457 + $0x5b8] sm:$0xff]
        %v901 = vld [vmem:[%s457 + $0x5c0] sm:$0xff]
        %v902 = vld [vmem:[%s457 + $0x5c8] sm:$0xff]
        %v903 = vld [vmem:[%s457 + $0x5d0] sm:$0xff]
        %v904 = vld [vmem:[%s457 + $0x5d8] sm:$0xff]
        %v905 = vld [vmem:[%s457 + $0x5e0] sm:$0xff]
        %v906 = vld [vmem:[%s457 + $0x5e8] sm:$0xff]
        %v907 = vld [vmem:[%s457 + $0x5f0] sm:$0xff]
        %v908 = vld [vmem:[%s457 + $0x5f8] sm:$0xff]
        %v909 = vunpack.c.l.s8.bf16 %v717
        %v910 = vunpack.c.l.s8.bf16 %v718
        %v911 = vunpack.c.l.s8.bf16 %v719
        %v912 = vunpack.c.l.s8.bf16 %v720
        %v913 = vunpack.c.l.s8.bf16 %v721
        %v914 = vunpack.c.l.s8.bf16 %v722
        %v915 = vunpack.c.l.s8.bf16 %v723
        %v916 = vunpack.c.l.s8.bf16 %v724
        %v917 = vunpack.c.l.s8.bf16 %v725
        %v918 = vunpack.c.l.s8.bf16 %v726
        %v919 = vunpack.c.l.s8.bf16 %v727
        %v920 = vunpack.c.l.s8.bf16 %v728
        %v921 = vunpack.c.h.s8.bf16 %v717
        %v922 = vunpack.c.h.s8.bf16 %v718
        %v923 = vunpack.c.h.s8.bf16 %v719
        %v924 = vunpack.c.h.s8.bf16 %v720
        %v925 = vunpack.c.h.s8.bf16 %v721
        %v926 = vunpack.c.h.s8.bf16 %v722
        %v927 = vunpack.c.h.s8.bf16 %v723
        %v928 = vunpack.c.h.s8.bf16 %v724
        %v929 = vunpack.c.h.s8.bf16 %v725
        %v930 = vunpack.c.h.s8.bf16 %v726
        %v931 = vunpack.c.h.s8.bf16 %v727
        %v932 = vunpack.c.h.s8.bf16 %v728
        %v933 = vunpack.c.l.s8.bf16 %v729
        %v934 = vunpack.c.l.s8.bf16 %v730
        %v935 = vunpack.c.l.s8.bf16 %v731
        %v936 = vunpack.c.l.s8.bf16 %v732
        %v937 = vunpack.c.l.s8.bf16 %v733
        %v938 = vunpack.c.l.s8.bf16 %v734
        %v939 = vunpack.c.l.s8.bf16 %v735
        %v940 = vunpack.c.l.s8.bf16 %v736
        %v941 = vunpack.c.l.s8.bf16 %v737
        %v942 = vunpack.c.l.s8.bf16 %v738
        %v943 = vunpack.c.l.s8.bf16 %v739
        %v944 = vunpack.c.l.s8.bf16 %v740
        %v945 = vunpack.c.h.s8.bf16 %v729
        %v946 = vunpack.c.h.s8.bf16 %v730
        %v947 = vunpack.c.h.s8.bf16 %v731
        %v948 = vunpack.c.h.s8.bf16 %v732
        %v949 = vunpack.c.h.s8.bf16 %v733
        %v950 = vunpack.c.h.s8.bf16 %v734
        %v951 = vunpack.c.h.s8.bf16 %v735
        %v952 = vunpack.c.h.s8.bf16 %v736
        %v953 = vunpack.c.h.s8.bf16 %v737
        %v954 = vunpack.c.h.s8.bf16 %v738
        %v955 = vunpack.c.h.s8.bf16 %v739
        %v956 = vunpack.c.h.s8.bf16 %v740
        %v957 = vunpack.c.l.s8.bf16 %v741
        %v958 = vunpack.c.l.s8.bf16 %v742
        %v959 = vunpack.c.l.s8.bf16 %v743
        %v960 = vunpack.c.l.s8.bf16 %v744
        %v961 = vunpack.c.l.s8.bf16 %v745
        %v962 = vunpack.c.l.s8.bf16 %v746
        %v963 = vunpack.c.l.s8.bf16 %v747
        %v964 = vunpack.c.l.s8.bf16 %v748
        %v965 = vunpack.c.l.s8.bf16 %v749
        %v966 = vunpack.c.l.s8.bf16 %v750
        %v967 = vunpack.c.l.s8.bf16 %v751
        %v968 = vunpack.c.l.s8.bf16 %v752
        %v969 = vunpack.c.h.s8.bf16 %v741
        %v970 = vunpack.c.h.s8.bf16 %v742
        %v971 = vunpack.c.h.s8.bf16 %v743
        %v972 = vunpack.c.h.s8.bf16 %v744
        %v973 = vunpack.c.h.s8.bf16 %v745
        %v974 = vunpack.c.h.s8.bf16 %v746
        %v975 = vunpack.c.h.s8.bf16 %v747
        %v976 = vunpack.c.h.s8.bf16 %v748
        %v977 = vunpack.c.h.s8.bf16 %v749
        %v978 = vunpack.c.h.s8.bf16 %v750
        %v979 = vunpack.c.h.s8.bf16 %v751
        %v980 = vunpack.c.h.s8.bf16 %v752
        %v981 = vunpack.c.l.s8.bf16 %v753
        %v982 = vunpack.c.l.s8.bf16 %v754
        %v983 = vunpack.c.l.s8.bf16 %v755
        %v984 = vunpack.c.l.s8.bf16 %v756
        %v985 = vunpack.c.l.s8.bf16 %v757
        %v986 = vunpack.c.l.s8.bf16 %v758
        %v987 = vunpack.c.l.s8.bf16 %v759
        %v988 = vunpack.c.l.s8.bf16 %v760
        %v989 = vunpack.c.l.s8.bf16 %v761
        %v990 = vunpack.c.l.s8.bf16 %v762
        %v991 = vunpack.c.l.s8.bf16 %v763
        %v992 = vunpack.c.l.s8.bf16 %v764
        %v993 = vunpack.c.h.s8.bf16 %v753
        %v994 = vunpack.c.h.s8.bf16 %v754
        %v995 = vunpack.c.h.s8.bf16 %v755
        %v996 = vunpack.c.h.s8.bf16 %v756
        %v997 = vunpack.c.h.s8.bf16 %v757
        %v998 = vunpack.c.h.s8.bf16 %v758
        %v999 = vunpack.c.h.s8.bf16 %v759
        %v1000 = vunpack.c.h.s8.bf16 %v760
        %v1001 = vunpack.c.h.s8.bf16 %v761
        %v1002 = vunpack.c.h.s8.bf16 %v762
        %v1003 = vunpack.c.h.s8.bf16 %v763
        %v1004 = vunpack.c.h.s8.bf16 %v764
        %v1005 = vunpack.c.l.s8.bf16 %v765
        %v1006 = vunpack.c.l.s8.bf16 %v766
        %v1007 = vunpack.c.l.s8.bf16 %v767
        %v1008 = vunpack.c.l.s8.bf16 %v768
        %v1009 = vunpack.c.l.s8.bf16 %v769
        %v1010 = vunpack.c.l.s8.bf16 %v770
        %v1011 = vunpack.c.l.s8.bf16 %v771
        %v1012 = vunpack.c.l.s8.bf16 %v772
        %v1013 = vunpack.c.l.s8.bf16 %v773
        %v1014 = vunpack.c.l.s8.bf16 %v774
        %v1015 = vunpack.c.l.s8.bf16 %v775
        %v1016 = vunpack.c.l.s8.bf16 %v776
        %v1017 = vunpack.c.h.s8.bf16 %v765
        %v1018 = vunpack.c.h.s8.bf16 %v766
        %v1019 = vunpack.c.h.s8.bf16 %v767
        %v1020 = vunpack.c.h.s8.bf16 %v768
        %v1021 = vunpack.c.h.s8.bf16 %v769
        %v1022 = vunpack.c.h.s8.bf16 %v770
        %v1023 = vunpack.c.h.s8.bf16 %v771
        %v1024 = vunpack.c.h.s8.bf16 %v772
        %v1025 = vunpack.c.h.s8.bf16 %v773
        %v1026 = vunpack.c.h.s8.bf16 %v774
        %v1027 = vunpack.c.h.s8.bf16 %v775
        %v1028 = vunpack.c.h.s8.bf16 %v776
        %v1029 = vunpack.c.l.s8.bf16 %v777
        %v1030 = vunpack.c.l.s8.bf16 %v778
        %v1031 = vunpack.c.l.s8.bf16 %v779
        %v1032 = vunpack.c.l.s8.bf16 %v780
        %v1033 = vunpack.c.l.s8.bf16 %v781
        %v1034 = vunpack.c.l.s8.bf16 %v782
        %v1035 = vunpack.c.l.s8.bf16 %v783
        %v1036 = vunpack.c.l.s8.bf16 %v784
        %v1037 = vunpack.c.l.s8.bf16 %v785
        %v1038 = vunpack.c.l.s8.bf16 %v786
        %v1039 = vunpack.c.l.s8.bf16 %v787
        %v1040 = vunpack.c.l.s8.bf16 %v788
        %v1041 = vunpack.c.h.s8.bf16 %v777
        %v1042 = vunpack.c.h.s8.bf16 %v778
        %v1043 = vunpack.c.h.s8.bf16 %v779
        %v1044 = vunpack.c.h.s8.bf16 %v780
        %v1045 = vunpack.c.h.s8.bf16 %v781
        %v1046 = vunpack.c.h.s8.bf16 %v782
        %v1047 = vunpack.c.h.s8.bf16 %v783
        %v1048 = vunpack.c.h.s8.bf16 %v784
        %v1049 = vunpack.c.h.s8.bf16 %v785
        %v1050 = vunpack.c.h.s8.bf16 %v786
        %v1051 = vunpack.c.h.s8.bf16 %v787
        %v1052 = vunpack.c.h.s8.bf16 %v788
        %v1053 = vunpack.c.l.s8.bf16 %v789
        %v1054 = vunpack.c.l.s8.bf16 %v790
        %v1055 = vunpack.c.l.s8.bf16 %v791
        %v1056 = vunpack.c.l.s8.bf16 %v792
        %v1057 = vunpack.c.l.s8.bf16 %v793
        %v1058 = vunpack.c.l.s8.bf16 %v794
        %v1059 = vunpack.c.l.s8.bf16 %v795
        %v1060 = vunpack.c.l.s8.bf16 %v796
        %v1061 = vunpack.c.l.s8.bf16 %v797
        %v1062 = vunpack.c.l.s8.bf16 %v798
        %v1063 = vunpack.c.l.s8.bf16 %v799
        %v1064 = vunpack.c.l.s8.bf16 %v800
        %v1065 = vunpack.c.h.s8.bf16 %v789
        %v1066 = vunpack.c.h.s8.bf16 %v790
        %v1067 = vunpack.c.h.s8.bf16 %v791
        %v1068 = vunpack.c.h.s8.bf16 %v792
        %v1069 = vunpack.c.h.s8.bf16 %v793
        %v1070 = vunpack.c.h.s8.bf16 %v794
        %v1071 = vunpack.c.h.s8.bf16 %v795
        %v1072 = vunpack.c.h.s8.bf16 %v796
        %v1073 = vunpack.c.h.s8.bf16 %v797
        %v1074 = vunpack.c.h.s8.bf16 %v798
        %v1075 = vunpack.c.h.s8.bf16 %v799
        %v1076 = vunpack.c.h.s8.bf16 %v800
        %v1077 = vunpack.c.l.s8.bf16 %v801
        %v1078 = vunpack.c.l.s8.bf16 %v802
        %v1079 = vunpack.c.l.s8.bf16 %v803
        %v1080 = vunpack.c.l.s8.bf16 %v804
        %v1081 = vunpack.c.l.s8.bf16 %v805
        %v1082 = vunpack.c.l.s8.bf16 %v806
        %v1083 = vunpack.c.l.s8.bf16 %v807
        %v1084 = vunpack.c.l.s8.bf16 %v808
        %v1085 = vunpack.c.l.s8.bf16 %v809
        %v1086 = vunpack.c.l.s8.bf16 %v810
        %v1087 = vunpack.c.l.s8.bf16 %v811
        %v1088 = vunpack.c.l.s8.bf16 %v812
        %v1089 = vunpack.c.h.s8.bf16 %v801
        %v1090 = vunpack.c.h.s8.bf16 %v802
        %v1091 = vunpack.c.h.s8.bf16 %v803
        %v1092 = vunpack.c.h.s8.bf16 %v804
        %v1093 = vunpack.c.h.s8.bf16 %v805
        %v1094 = vunpack.c.h.s8.bf16 %v806
        %v1095 = vunpack.c.h.s8.bf16 %v807
        %v1096 = vunpack.c.h.s8.bf16 %v808
        %v1097 = vunpack.c.h.s8.bf16 %v809
        %v1098 = vunpack.c.h.s8.bf16 %v810
        %v1099 = vunpack.c.h.s8.bf16 %v811
        %v1100 = vunpack.c.h.s8.bf16 %v812
        %v1101 = vunpack.c.l.s8.bf16 %v813
        %v1102 = vunpack.c.l.s8.bf16 %v814
        %v1103 = vunpack.c.l.s8.bf16 %v815
        %v1104 = vunpack.c.l.s8.bf16 %v816
        %v1105 = vunpack.c.l.s8.bf16 %v817
        %v1106 = vunpack.c.l.s8.bf16 %v818
        %v1107 = vunpack.c.l.s8.bf16 %v819
        %v1108 = vunpack.c.l.s8.bf16 %v820
        %v1109 = vunpack.c.l.s8.bf16 %v821
        %v1110 = vunpack.c.l.s8.bf16 %v822
        %v1111 = vunpack.c.l.s8.bf16 %v823
        %v1112 = vunpack.c.l.s8.bf16 %v824
        %v1113 = vunpack.c.h.s8.bf16 %v813
        %v1114 = vunpack.c.h.s8.bf16 %v814
        %v1115 = vunpack.c.h.s8.bf16 %v815
        %v1116 = vunpack.c.h.s8.bf16 %v816
        %v1117 = vunpack.c.h.s8.bf16 %v817
        %v1118 = vunpack.c.h.s8.bf16 %v818
        %v1119 = vunpack.c.h.s8.bf16 %v819
        %v1120 = vunpack.c.h.s8.bf16 %v820
        %v1121 = vunpack.c.h.s8.bf16 %v821
        %v1122 = vunpack.c.h.s8.bf16 %v822
        %v1123 = vunpack.c.h.s8.bf16 %v823
        %v1124 = vunpack.c.h.s8.bf16 %v824
        %v1125 = vunpack.c.l.s8.bf16 %v825
        %v1126 = vunpack.c.l.s8.bf16 %v826
        %v1127 = vunpack.c.l.s8.bf16 %v827
        %v1128 = vunpack.c.l.s8.bf16 %v828
        %v1129 = vunpack.c.l.s8.bf16 %v829
        %v1130 = vunpack.c.l.s8.bf16 %v830
        %v1131 = vunpack.c.l.s8.bf16 %v831
        %v1132 = vunpack.c.l.s8.bf16 %v832
        %v1133 = vunpack.c.l.s8.bf16 %v833
        %v1134 = vunpack.c.l.s8.bf16 %v834
        %v1135 = vunpack.c.l.s8.bf16 %v835
        %v1136 = vunpack.c.l.s8.bf16 %v836
        %v1137 = vunpack.c.h.s8.bf16 %v825
        %v1138 = vunpack.c.h.s8.bf16 %v826
        %v1139 = vunpack.c.h.s8.bf16 %v827
        %v1140 = vunpack.c.h.s8.bf16 %v828
        %v1141 = vunpack.c.h.s8.bf16 %v829
        %v1142 = vunpack.c.h.s8.bf16 %v830
        %v1143 = vunpack.c.h.s8.bf16 %v831
        %v1144 = vunpack.c.h.s8.bf16 %v832
        %v1145 = vunpack.c.h.s8.bf16 %v833
        %v1146 = vunpack.c.h.s8.bf16 %v834
        %v1147 = vunpack.c.h.s8.bf16 %v835
        %v1148 = vunpack.c.h.s8.bf16 %v836
        %v1149 = vunpack.c.l.s8.bf16 %v837
        %v1150 = vunpack.c.l.s8.bf16 %v838
        %v1151 = vunpack.c.l.s8.bf16 %v839
        %v1152 = vunpack.c.l.s8.bf16 %v840
        %v1153 = vunpack.c.l.s8.bf16 %v841
        %v1154 = vunpack.c.l.s8.bf16 %v842
        %v1155 = vunpack.c.l.s8.bf16 %v843
        %v1156 = vunpack.c.l.s8.bf16 %v844
        %v1157 = vunpack.c.l.s8.bf16 %v845
        %v1158 = vunpack.c.l.s8.bf16 %v846
        %v1159 = vunpack.c.l.s8.bf16 %v847
        %v1160 = vunpack.c.l.s8.bf16 %v848
        %v1161 = vunpack.c.h.s8.bf16 %v837
        %v1162 = vunpack.c.h.s8.bf16 %v838
        %v1163 = vunpack.c.h.s8.bf16 %v839
        %v1164 = vunpack.c.h.s8.bf16 %v840
        %v1165 = vunpack.c.h.s8.bf16 %v841
        %v1166 = vunpack.c.h.s8.bf16 %v842
        %v1167 = vunpack.c.h.s8.bf16 %v843
        %v1168 = vunpack.c.h.s8.bf16 %v844
        %v1169 = vunpack.c.h.s8.bf16 %v845
        %v1170 = vunpack.c.h.s8.bf16 %v846
        %v1171 = vunpack.c.h.s8.bf16 %v847
        %v1172 = vunpack.c.h.s8.bf16 %v848
        %v1173 = vunpack.c.l.s8.bf16 %v849
        %v1174 = vunpack.c.l.s8.bf16 %v850
        %v1175 = vunpack.c.l.s8.bf16 %v851
        %v1176 = vunpack.c.l.s8.bf16 %v852
        %v1177 = vunpack.c.l.s8.bf16 %v853
        %v1178 = vunpack.c.l.s8.bf16 %v854
        %v1179 = vunpack.c.l.s8.bf16 %v855
        %v1180 = vunpack.c.l.s8.bf16 %v856
        %v1181 = vunpack.c.l.s8.bf16 %v857
        %v1182 = vunpack.c.l.s8.bf16 %v858
        %v1183 = vunpack.c.l.s8.bf16 %v859
        %v1184 = vunpack.c.l.s8.bf16 %v860
        %v1185 = vunpack.c.h.s8.bf16 %v849
        %v1186 = vunpack.c.h.s8.bf16 %v850
        %v1187 = vunpack.c.h.s8.bf16 %v851
        %v1188 = vunpack.c.h.s8.bf16 %v852
        %v1189 = vunpack.c.h.s8.bf16 %v853
        %v1190 = vunpack.c.h.s8.bf16 %v854
        %v1191 = vunpack.c.h.s8.bf16 %v855
        %v1192 = vunpack.c.h.s8.bf16 %v856
        %v1193 = vunpack.c.h.s8.bf16 %v857
        %v1194 = vunpack.c.h.s8.bf16 %v858
        %v1195 = vunpack.c.h.s8.bf16 %v859
        %v1196 = vunpack.c.h.s8.bf16 %v860
        %v1197 = vunpack.c.l.s8.bf16 %v861
        %v1198 = vunpack.c.l.s8.bf16 %v862
        %v1199 = vunpack.c.l.s8.bf16 %v863
        %v1200 = vunpack.c.l.s8.bf16 %v864
        %v1201 = vunpack.c.l.s8.bf16 %v865
        %v1202 = vunpack.c.l.s8.bf16 %v866
        %v1203 = vunpack.c.l.s8.bf16 %v867
        %v1204 = vunpack.c.l.s8.bf16 %v868
        %v1205 = vunpack.c.l.s8.bf16 %v869
        %v1206 = vunpack.c.l.s8.bf16 %v870
        %v1207 = vunpack.c.l.s8.bf16 %v871
        %v1208 = vunpack.c.l.s8.bf16 %v872
        %v1209 = vunpack.c.h.s8.bf16 %v861
        %v1210 = vunpack.c.h.s8.bf16 %v862
        %v1211 = vunpack.c.h.s8.bf16 %v863
        %v1212 = vunpack.c.h.s8.bf16 %v864
        %v1213 = vunpack.c.h.s8.bf16 %v865
        %v1214 = vunpack.c.h.s8.bf16 %v866
        %v1215 = vunpack.c.h.s8.bf16 %v867
        %v1216 = vunpack.c.h.s8.bf16 %v868
        %v1217 = vunpack.c.h.s8.bf16 %v869
        %v1218 = vunpack.c.h.s8.bf16 %v870
        %v1219 = vunpack.c.h.s8.bf16 %v871
        %v1220 = vunpack.c.h.s8.bf16 %v872
        %v1221 = vunpack.c.l.s8.bf16 %v873
        %v1222 = vunpack.c.l.s8.bf16 %v874
        %v1223 = vunpack.c.l.s8.bf16 %v875
        %v1224 = vunpack.c.l.s8.bf16 %v876
        %v1225 = vunpack.c.l.s8.bf16 %v877
        %v1226 = vunpack.c.l.s8.bf16 %v878
        %v1227 = vunpack.c.l.s8.bf16 %v879
        %v1228 = vunpack.c.l.s8.bf16 %v880
        %v1229 = vunpack.c.l.s8.bf16 %v881
        %v1230 = vunpack.c.l.s8.bf16 %v882
        %v1231 = vunpack.c.l.s8.bf16 %v883
        %v1232 = vunpack.c.l.s8.bf16 %v884
        %v1233 = vunpack.c.h.s8.bf16 %v873
        %v1234 = vunpack.c.h.s8.bf16 %v874
        %v1235 = vunpack.c.h.s8.bf16 %v875
        %v1236 = vunpack.c.h.s8.bf16 %v876
        %v1237 = vunpack.c.h.s8.bf16 %v877
        %v1238 = vunpack.c.h.s8.bf16 %v878
        %v1239 = vunpack.c.h.s8.bf16 %v879
        %v1240 = vunpack.c.h.s8.bf16 %v880
        %v1241 = vunpack.c.h.s8.bf16 %v881
        %v1242 = vunpack.c.h.s8.bf16 %v882
        %v1243 = vunpack.c.h.s8.bf16 %v883
        %v1244 = vunpack.c.h.s8.bf16 %v884
        %v1245 = vunpack.c.l.s8.bf16 %v885
        %v1246 = vunpack.c.l.s8.bf16 %v886
        %v1247 = vunpack.c.l.s8.bf16 %v887
        %v1248 = vunpack.c.l.s8.bf16 %v888
        %v1249 = vunpack.c.l.s8.bf16 %v889
        %v1250 = vunpack.c.l.s8.bf16 %v890
        %v1251 = vunpack.c.l.s8.bf16 %v891
        %v1252 = vunpack.c.l.s8.bf16 %v892
        %v1253 = vunpack.c.l.s8.bf16 %v893
        %v1254 = vunpack.c.l.s8.bf16 %v894
        %v1255 = vunpack.c.l.s8.bf16 %v895
        %v1256 = vunpack.c.l.s8.bf16 %v896
        %v1257 = vunpack.c.h.s8.bf16 %v885
        %v1258 = vunpack.c.h.s8.bf16 %v886
        %v1259 = vunpack.c.h.s8.bf16 %v887
        %v1260 = vunpack.c.h.s8.bf16 %v888
        %v1261 = vunpack.c.h.s8.bf16 %v889
        %v1262 = vunpack.c.h.s8.bf16 %v890
        %v1263 = vunpack.c.h.s8.bf16 %v891
        %v1264 = vunpack.c.h.s8.bf16 %v892
        %v1265 = vunpack.c.h.s8.bf16 %v893
        %v1266 = vunpack.c.h.s8.bf16 %v894
        %v1267 = vunpack.c.h.s8.bf16 %v895
        %v1268 = vunpack.c.h.s8.bf16 %v896
        %v1269 = vunpack.c.l.s8.bf16 %v897
        %v1270 = vunpack.c.l.s8.bf16 %v898
        %v1271 = vunpack.c.l.s8.bf16 %v899
        %v1272 = vunpack.c.l.s8.bf16 %v900
        %v1273 = vunpack.c.l.s8.bf16 %v901
        %v1274 = vunpack.c.l.s8.bf16 %v902
        %v1275 = vunpack.c.l.s8.bf16 %v903
        %v1276 = vunpack.c.l.s8.bf16 %v904
        %v1277 = vunpack.c.l.s8.bf16 %v905
        %v1278 = vunpack.c.l.s8.bf16 %v906
        %v1279 = vunpack.c.l.s8.bf16 %v907
        %v1280 = vunpack.c.l.s8.bf16 %v908
        %v1281 = vunpack.c.h.s8.bf16 %v897
        %v1282 = vunpack.c.h.s8.bf16 %v898
        %v1283 = vunpack.c.h.s8.bf16 %v899
        %v1284 = vunpack.c.h.s8.bf16 %v900
        %v1285 = vunpack.c.h.s8.bf16 %v901
        %v1286 = vunpack.c.h.s8.bf16 %v902
        %v1287 = vunpack.c.h.s8.bf16 %v903
        %v1288 = vunpack.c.h.s8.bf16 %v904
        %v1289 = vunpack.c.h.s8.bf16 %v905
        %v1290 = vunpack.c.h.s8.bf16 %v906
        %v1291 = vunpack.c.h.s8.bf16 %v907
        %v1292 = vunpack.c.h.s8.bf16 %v908
        %1293 = vmatprep.subr.bf16.mxu0 %v910
        %1294 = vmatpush1.bf16.msra.mxu0 %v909
        %1295 = vmatprep.subr.bf16.mxu0 %v922
        %1296 = vmatpush1.bf16.msra.mxu0 %v921
        %1297 = vmatprep.subr.bf16.mxu0 %v934
        %1298 = vmatpush1.bf16.msra.mxu0 %v933
        %1299 = vmatprep.subr.bf16.mxu0 %v946
        %1300 = vmatpush1.bf16.msra.mxu0 %v945
        %1301 = vmatprep.subr.bf16.mxu0 %v958
        %1302 = vmatpush1.bf16.msra.mxu0 %v957
        %1303 = vmatprep.subr.bf16.mxu0 %v970
        %1304 = vmatpush1.bf16.msra.mxu0 %v969
        %1305 = vmatprep.subr.bf16.mxu0 %v982
        %1306 = vmatpush1.bf16.msra.mxu0 %v981
        %1307 = vmatprep.subr.bf16.mxu0 %v994
        %1308 = vmatpush1.bf16.msra.mxu0 %v993
        %1309 = vmatprep.subr.bf16.mxu0 %v1006
        %1310 = vmatpush1.bf16.msra.mxu0 %v1005
        %1311 = vmatprep.subr.bf16.mxu0 %v1018
        %1312 = vmatpush1.bf16.msra.mxu0 %v1017
        %1313 = vmatprep.subr.bf16.mxu0 %v1030
        %1314 = vmatpush1.bf16.msra.mxu0 %v1029
        %1315 = vmatprep.subr.bf16.mxu0 %v1042
        %1316 = vmatpush1.bf16.msra.mxu0 %v1041
        %1317 = vmatprep.subr.bf16.mxu0 %v1054
        %1318 = vmatpush1.bf16.msra.mxu0 %v1053
        %1319 = vmatprep.subr.bf16.mxu0 %v1066
        %1320 = vmatpush1.bf16.msra.mxu0 %v1065
        %1321 = vmatprep.subr.bf16.mxu0 %v1078
        %1322 = vmatpush1.bf16.msra.mxu0 %v1077
        %1323 = vmatprep.subr.bf16.mxu0 %v1090
        %1324 = vmatpush1.bf16.msra.mxu0 %v1089
        %1325 = vmatprep.mubr.bf16.mxu0 %v710
        %1326 = vmatmul.mubr.bf16.gmra.mrb[0].mxu0 %v709
        %v1327 = vpop.f32.mrb[0].mxu0
        %v1328 = vadd.f32 0.0, %v1327
        %v1329 = vpop.f32.mrb[0].mxu0
        %v1330 = vadd.f32 0.0, %v1329
        %v1331 = vpop.f32.mrb[0].mxu0
        %v1332 = vadd.f32 0.0, %v1331
        %v1333 = vpop.f32.mrb[0].mxu0
        %v1334 = vadd.f32 0.0, %v1333
        %1335 = vdwg.mxu0
        %1336 = vmatprep.subr.bf16.mxu0 %v1102
        %1337 = vmatpush1.bf16.msra.mxu0 %v1101
        %1338 = vmatprep.subr.bf16.mxu0 %v1114
        %1339 = vmatpush1.bf16.msra.mxu0 %v1113
        %1340 = vmatprep.subr.bf16.mxu0 %v1126
        %1341 = vmatpush1.bf16.msra.mxu0 %v1125
        %1342 = vmatprep.subr.bf16.mxu0 %v1138
        %1343 = vmatpush1.bf16.msra.mxu0 %v1137
        %1344 = vmatprep.subr.bf16.mxu0 %v1150
        %1345 = vmatpush1.bf16.msra.mxu0 %v1149
        %1346 = vmatprep.subr.bf16.mxu0 %v1162
        %1347 = vmatpush1.bf16.msra.mxu0 %v1161
        %1348 = vmatprep.subr.bf16.mxu0 %v1174
        %1349 = vmatpush1.bf16.msra.mxu0 %v1173
        %1350 = vmatprep.subr.bf16.mxu0 %v1186
        %1351 = vmatpush1.bf16.msra.mxu0 %v1185
        %1352 = vmatprep.subr.bf16.mxu0 %v1198
        %1353 = vmatpush1.bf16.msra.mxu0 %v1197
        %1354 = vmatprep.subr.bf16.mxu0 %v1210
        %1355 = vmatpush1.bf16.msra.mxu0 %v1209
        %1356 = vmatprep.subr.bf16.mxu0 %v1222
        %1357 = vmatpush1.bf16.msra.mxu0 %v1221
        %1358 = vmatprep.subr.bf16.mxu0 %v1234
        %1359 = vmatpush1.bf16.msra.mxu0 %v1233
        %1360 = vmatprep.subr.bf16.mxu0 %v1246
        %1361 = vmatpush1.bf16.msra.mxu0 %v1245
        %1362 = vmatprep.subr.bf16.mxu0 %v1258
        %1363 = vmatpush1.bf16.msra.mxu0 %v1257
        %1364 = vmatprep.subr.bf16.mxu0 %v1270
        %1365 = vmatpush1.bf16.msra.mxu0 %v1269
        %1366 = vmatprep.subr.bf16.mxu0 %v1282
        %1367 = vmatpush1.bf16.msra.mxu0 %v1281
        %1368 = vmatprep.mubr.bf16.mxu0 %v712
        %1369 = vmatmul.mubr.bf16.gmra.mrb[0].mxu0 %v711
        %v1370 = vpop.f32.mrb[0].mxu0
        %v1371 = vadd.f32 %v1328, %v1370
        %v1372 = vpop.f32.mrb[0].mxu0
        %v1373 = vadd.f32 %v1330, %v1372
        %v1374 = vpop.f32.mrb[0].mxu0
        %v1375 = vadd.f32 %v1332, %v1374
        %v1376 = vpop.f32.mrb[0].mxu0
        %v1377 = vadd.f32 %v1334, %v1376
        %1378 = vdwg.mxu0
        %1379 = vmatprep.subr.bf16.mxu0 %v912
        %1380 = vmatpush1.bf16.msra.mxu0 %v911
        %1381 = vmatprep.subr.bf16.mxu0 %v924
        %1382 = vmatpush1.bf16.msra.mxu0 %v923
        %1383 = vmatprep.subr.bf16.mxu0 %v936
        %1384 = vmatpush1.bf16.msra.mxu0 %v935
        %1385 = vmatprep.subr.bf16.mxu0 %v948
        %1386 = vmatpush1.bf16.msra.mxu0 %v947
        %1387 = vmatprep.subr.bf16.mxu0 %v960
        %1388 = vmatpush1.bf16.msra.mxu0 %v959
        %1389 = vmatprep.subr.bf16.mxu0 %v972
        %1390 = vmatpush1.bf16.msra.mxu0 %v971
        %1391 = vmatprep.subr.bf16.mxu0 %v984
        %1392 = vmatpush1.bf16.msra.mxu0 %v983
        %1393 = vmatprep.subr.bf16.mxu0 %v996
        %1394 = vmatpush1.bf16.msra.mxu0 %v995
        %1395 = vmatprep.subr.bf16.mxu0 %v1008
        %1396 = vmatpush1.bf16.msra.mxu0 %v1007
        %1397 = vmatprep.subr.bf16.mxu0 %v1020
        %1398 = vmatpush1.bf16.msra.mxu0 %v1019
        %1399 = vmatprep.subr.bf16.mxu0 %v1032
        %1400 = vmatpush1.bf16.msra.mxu0 %v1031
        %1401 = vmatprep.subr.bf16.mxu0 %v1044
        %1402 = vmatpush1.bf16.msra.mxu0 %v1043
        %1403 = vmatprep.subr.bf16.mxu0 %v1056
        %1404 = vmatpush1.bf16.msra.mxu0 %v1055
        %1405 = vmatprep.subr.bf16.mxu0 %v1068
        %1406 = vmatpush1.bf16.msra.mxu0 %v1067
        %1407 = vmatprep.subr.bf16.mxu0 %v1080
        %1408 = vmatpush1.bf16.msra.mxu0 %v1079
        %1409 = vmatprep.subr.bf16.mxu0 %v1092
        %1410 = vmatpush1.bf16.msra.mxu0 %v1091
        %1411 = vmatprep.mubr.bf16.mxu0 %v710
        %1412 = vmatmul.mubr.bf16.gmra.mrb[0].mxu0 %v709
        %v1413 = vpop.f32.mrb[0].mxu0
        %v1414 = vadd.f32 0.0, %v1413
        %v1415 = vpop.f32.mrb[0].mxu0
        %v1416 = vadd.f32 0.0, %v1415
        %v1417 = vpop.f32.mrb[0].mxu0
        %v1418 = vadd.f32 0.0, %v1417
        %v1419 = vpop.f32.mrb[0].mxu0
        %v1420 = vadd.f32 0.0, %v1419
        %1421 = vdwg.mxu0
        %1422 = vmatprep.subr.bf16.mxu0 %v1104
        %1423 = vmatpush1.bf16.msra.mxu0 %v1103
        %1424 = vmatprep.subr.bf16.mxu0 %v1116
        %1425 = vmatpush1.bf16.msra.mxu0 %v1115
        %1426 = vmatprep.subr.bf16.mxu0 %v1128
        %1427 = vmatpush1.bf16.msra.mxu0 %v1127
        %1428 = vmatprep.subr.bf16.mxu0 %v1140
        %1429 = vmatpush1.bf16.msra.mxu0 %v1139
        %1430 = vmatprep.subr.bf16.mxu0 %v1152
        %1431 = vmatpush1.bf16.msra.mxu0 %v1151
        %1432 = vmatprep.subr.bf16.mxu0 %v1164
        %1433 = vmatpush1.bf16.msra.mxu0 %v1163
        %1434 = vmatprep.subr.bf16.mxu0 %v1176
        %1435 = vmatpush1.bf16.msra.mxu0 %v1175
        %1436 = vmatprep.subr.bf16.mxu0 %v1188
        %1437 = vmatpush1.bf16.msra.mxu0 %v1187
        %1438 = vmatprep.subr.bf16.mxu0 %v1200
        %1439 = vmatpush1.bf16.msra.mxu0 %v1199
        %1440 = vmatprep.subr.bf16.mxu0 %v1212
        %1441 = vmatpush1.bf16.msra.mxu0 %v1211
        %1442 = vmatprep.subr.bf16.mxu0 %v1224
        %1443 = vmatpush1.bf16.msra.mxu0 %v1223
        %1444 = vmatprep.subr.bf16.mxu0 %v1236
        %1445 = vmatpush1.bf16.msra.mxu0 %v1235
        %1446 = vmatprep.subr.bf16.mxu0 %v1248
        %1447 = vmatpush1.bf16.msra.mxu0 %v1247
        %1448 = vmatprep.subr.bf16.mxu0 %v1260
        %1449 = vmatpush1.bf16.msra.mxu0 %v1259
        %1450 = vmatprep.subr.bf16.mxu0 %v1272
        %1451 = vmatpush1.bf16.msra.mxu0 %v1271
        %1452 = vmatprep.subr.bf16.mxu0 %v1284
        %1453 = vmatpush1.bf16.msra.mxu0 %v1283
        %1454 = vmatprep.mubr.bf16.mxu0 %v712
        %1455 = vmatmul.mubr.bf16.gmra.mrb[0].mxu0 %v711
        %v1456 = vpop.f32.mrb[0].mxu0
        %v1457 = vadd.f32 %v1414, %v1456
        %v1458 = vpop.f32.mrb[0].mxu0
        %v1459 = vadd.f32 %v1416, %v1458
        %v1460 = vpop.f32.mrb[0].mxu0
        %v1461 = vadd.f32 %v1418, %v1460
        %v1462 = vpop.f32.mrb[0].mxu0
        %v1463 = vadd.f32 %v1420, %v1462
        %1464 = vdwg.mxu0
        %1465 = vmatprep.subr.bf16.mxu0 %v914
        %1466 = vmatpush1.bf16.msra.mxu0 %v913
        %1467 = vmatprep.subr.bf16.mxu0 %v926
        %1468 = vmatpush1.bf16.msra.mxu0 %v925
        %1469 = vmatprep.subr.bf16.mxu0 %v938
        %1470 = vmatpush1.bf16.msra.mxu0 %v937
        %1471 = vmatprep.subr.bf16.mxu0 %v950
        %1472 = vmatpush1.bf16.msra.mxu0 %v949
        %1473 = vmatprep.subr.bf16.mxu0 %v962
        %1474 = vmatpush1.bf16.msra.mxu0 %v961
        %1475 = vmatprep.subr.bf16.mxu0 %v974
        %1476 = vmatpush1.bf16.msra.mxu0 %v973
        %1477 = vmatprep.subr.bf16.mxu0 %v986
        %1478 = vmatpush1.bf16.msra.mxu0 %v985
        %1479 = vmatprep.subr.bf16.mxu0 %v998
        %1480 = vmatpush1.bf16.msra.mxu0 %v997
        %1481 = vmatprep.subr.bf16.mxu0 %v1010
        %1482 = vmatpush1.bf16.msra.mxu0 %v1009
        %1483 = vmatprep.subr.bf16.mxu0 %v1022
        %1484 = vmatpush1.bf16.msra.mxu0 %v1021
        %1485 = vmatprep.subr.bf16.mxu0 %v1034
        %1486 = vmatpush1.bf16.msra.mxu0 %v1033
        %1487 = vmatprep.subr.bf16.mxu0 %v1046
        %1488 = vmatpush1.bf16.msra.mxu0 %v1045
        %1489 = vmatprep.subr.bf16.mxu0 %v1058
        %1490 = vmatpush1.bf16.msra.mxu0 %v1057
        %1491 = vmatprep.subr.bf16.mxu0 %v1070
        %1492 = vmatpush1.bf16.msra.mxu0 %v1069
        %1493 = vmatprep.subr.bf16.mxu0 %v1082
        %1494 = vmatpush1.bf16.msra.mxu0 %v1081
        %1495 = vmatprep.subr.bf16.mxu0 %v1094
        %1496 = vmatpush1.bf16.msra.mxu0 %v1093
        %1497 = vmatprep.mubr.bf16.mxu0 %v710
        %1498 = vmatmul.mubr.bf16.gmra.mrb[0].mxu0 %v709
        %v1499 = vpop.f32.mrb[0].mxu0
        %v1500 = vadd.f32 0.0, %v1499
        %v1501 = vpop.f32.mrb[0].mxu0
        %v1502 = vadd.f32 0.0, %v1501
        %v1503 = vpop.f32.mrb[0].mxu0
        %v1504 = vadd.f32 0.0, %v1503
        %v1505 = vpop.f32.mrb[0].mxu0
        %v1506 = vadd.f32 0.0, %v1505
        %1507 = vdwg.mxu0
        %1508 = vmatprep.subr.bf16.mxu0 %v1106
        %1509 = vmatpush1.bf16.msra.mxu0 %v1105
        %1510 = vmatprep.subr.bf16.mxu0 %v1118
        %1511 = vmatpush1.bf16.msra.mxu0 %v1117
        %1512 = vmatprep.subr.bf16.mxu0 %v1130
        %1513 = vmatpush1.bf16.msra.mxu0 %v1129
        %1514 = vmatprep.subr.bf16.mxu0 %v1142
        %1515 = vmatpush1.bf16.msra.mxu0 %v1141
        %1516 = vmatprep.subr.bf16.mxu0 %v1154
        %1517 = vmatpush1.bf16.msra.mxu0 %v1153
        %1518 = vmatprep.subr.bf16.mxu0 %v1166
        %1519 = vmatpush1.bf16.msra.mxu0 %v1165
        %1520 = vmatprep.subr.bf16.mxu0 %v1178
        %1521 = vmatpush1.bf16.msra.mxu0 %v1177
        %1522 = vmatprep.subr.bf16.mxu0 %v1190
        %1523 = vmatpush1.bf16.msra.mxu0 %v1189
        %1524 = vmatprep.subr.bf16.mxu0 %v1202
        %1525 = vmatpush1.bf16.msra.mxu0 %v1201
        %1526 = vmatprep.subr.bf16.mxu0 %v1214
        %1527 = vmatpush1.bf16.msra.mxu0 %v1213
        %1528 = vmatprep.subr.bf16.mxu0 %v1226
        %1529 = vmatpush1.bf16.msra.mxu0 %v1225
        %1530 = vmatprep.subr.bf16.mxu0 %v1238
        %1531 = vmatpush1.bf16.msra.mxu0 %v1237
        %1532 = vmatprep.subr.bf16.mxu0 %v1250
        %1533 = vmatpush1.bf16.msra.mxu0 %v1249
        %1534 = vmatprep.subr.bf16.mxu0 %v1262
        %1535 = vmatpush1.bf16.msra.mxu0 %v1261
        %1536 = vmatprep.subr.bf16.mxu0 %v1274
        %1537 = vmatpush1.bf16.msra.mxu0 %v1273
        %1538 = vmatprep.subr.bf16.mxu0 %v1286
        %1539 = vmatpush1.bf16.msra.mxu0 %v1285
        %1540 = vmatprep.mubr.bf16.mxu0 %v712
        %1541 = vmatmul.mubr.bf16.gmra.mrb[0].mxu0 %v711
        %v1542 = vpop.f32.mrb[0].mxu0
        %v1543 = vadd.f32 %v1500, %v1542
        %v1544 = vpop.f32.mrb[0].mxu0
        %v1545 = vadd.f32 %v1502, %v1544
        %v1546 = vpop.f32.mrb[0].mxu0
        %v1547 = vadd.f32 %v1504, %v1546
        %v1548 = vpop.f32.mrb[0].mxu0
        %v1549 = vadd.f32 %v1506, %v1548
        %1550 = vdwg.mxu0
        %1551 = vmatprep.subr.bf16.mxu0 %v916
        %1552 = vmatpush1.bf16.msra.mxu0 %v915
        %1553 = vmatprep.subr.bf16.mxu0 %v928
        %1554 = vmatpush1.bf16.msra.mxu0 %v927
        %1555 = vmatprep.subr.bf16.mxu0 %v940
        %1556 = vmatpush1.bf16.msra.mxu0 %v939
        %1557 = vmatprep.subr.bf16.mxu0 %v952
        %1558 = vmatpush1.bf16.msra.mxu0 %v951
        %1559 = vmatprep.subr.bf16.mxu0 %v964
        %1560 = vmatpush1.bf16.msra.mxu0 %v963
        %1561 = vmatprep.subr.bf16.mxu0 %v976
        %1562 = vmatpush1.bf16.msra.mxu0 %v975
        %1563 = vmatprep.subr.bf16.mxu0 %v988
        %1564 = vmatpush1.bf16.msra.mxu0 %v987
        %1565 = vmatprep.subr.bf16.mxu0 %v1000
        %1566 = vmatpush1.bf16.msra.mxu0 %v999
        %1567 = vmatprep.subr.bf16.mxu0 %v1012
        %1568 = vmatpush1.bf16.msra.mxu0 %v1011
        %1569 = vmatprep.subr.bf16.mxu0 %v1024
        %1570 = vmatpush1.bf16.msra.mxu0 %v1023
        %1571 = vmatprep.subr.bf16.mxu0 %v1036
        %1572 = vmatpush1.bf16.msra.mxu0 %v1035
        %1573 = vmatprep.subr.bf16.mxu0 %v1048
        %1574 = vmatpush1.bf16.msra.mxu0 %v1047
        %1575 = vmatprep.subr.bf16.mxu0 %v1060
        %1576 = vmatpush1.bf16.msra.mxu0 %v1059
        %1577 = vmatprep.subr.bf16.mxu0 %v1072
        %1578 = vmatpush1.bf16.msra.mxu0 %v1071
        %1579 = vmatprep.subr.bf16.mxu0 %v1084
        %1580 = vmatpush1.bf16.msra.mxu0 %v1083
        %1581 = vmatprep.subr.bf16.mxu0 %v1096
        %1582 = vmatpush1.bf16.msra.mxu0 %v1095
        %1583 = vmatprep.mubr.bf16.mxu0 %v710
        %1584 = vmatmul.mubr.bf16.gmra.mrb[0].mxu0 %v709
        %v1585 = vpop.f32.mrb[0].mxu0
        %v1586 = vadd.f32 0.0, %v1585
        %v1587 = vpop.f32.mrb[0].mxu0
        %v1588 = vadd.f32 0.0, %v1587
        %v1589 = vpop.f32.mrb[0].mxu0
        %v1590 = vadd.f32 0.0, %v1589
        %v1591 = vpop.f32.mrb[0].mxu0
        %v1592 = vadd.f32 0.0, %v1591
        %1593 = vdwg.mxu0
        %1594 = vmatprep.subr.bf16.mxu0 %v1108
        %1595 = vmatpush1.bf16.msra.mxu0 %v1107
        %1596 = vmatprep.subr.bf16.mxu0 %v1120
        %1597 = vmatpush1.bf16.msra.mxu0 %v1119
        %1598 = vmatprep.subr.bf16.mxu0 %v1132
        %1599 = vmatpush1.bf16.msra.mxu0 %v1131
        %1600 = vmatprep.subr.bf16.mxu0 %v1144
        %1601 = vmatpush1.bf16.msra.mxu0 %v1143
        %1602 = vmatprep.subr.bf16.mxu0 %v1156
        %1603 = vmatpush1.bf16.msra.mxu0 %v1155
        %1604 = vmatprep.subr.bf16.mxu0 %v1168
        %1605 = vmatpush1.bf16.msra.mxu0 %v1167
        %1606 = vmatprep.subr.bf16.mxu0 %v1180
        %1607 = vmatpush1.bf16.msra.mxu0 %v1179
        %1608 = vmatprep.subr.bf16.mxu0 %v1192
        %1609 = vmatpush1.bf16.msra.mxu0 %v1191
        %1610 = vmatprep.subr.bf16.mxu0 %v1204
        %1611 = vmatpush1.bf16.msra.mxu0 %v1203
        %1612 = vmatprep.subr.bf16.mxu0 %v1216
        %1613 = vmatpush1.bf16.msra.mxu0 %v1215
        %1614 = vmatprep.subr.bf16.mxu0 %v1228
        %1615 = vmatpush1.bf16.msra.mxu0 %v1227
        %1616 = vmatprep.subr.bf16.mxu0 %v1240
        %1617 = vmatpush1.bf16.msra.mxu0 %v1239
        %1618 = vmatprep.subr.bf16.mxu0 %v1252
        %1619 = vmatpush1.bf16.msra.mxu0 %v1251
        %1620 = vmatprep.subr.bf16.mxu0 %v1264
        %1621 = vmatpush1.bf16.msra.mxu0 %v1263
        %1622 = vmatprep.subr.bf16.mxu0 %v1276
        %1623 = vmatpush1.bf16.msra.mxu0 %v1275
        %1624 = vmatprep.subr.bf16.mxu0 %v1288
        %1625 = vmatpush1.bf16.msra.mxu0 %v1287
        %1626 = vmatprep.mubr.bf16.mxu0 %v712
        %1627 = vmatmul.mubr.bf16.gmra.mrb[0].mxu0 %v711
        %v1628 = vpop.f32.mrb[0].mxu0
        %v1629 = vadd.f32 %v1586, %v1628
        %v1630 = vpop.f32.mrb[0].mxu0
        %v1631 = vadd.f32 %v1588, %v1630
        %v1632 = vpop.f32.mrb[0].mxu0
        %v1633 = vadd.f32 %v1590, %v1632
        %v1634 = vpop.f32.mrb[0].mxu0
        %v1635 = vadd.f32 %v1592, %v1634
        %1636 = vdwg.mxu0
        %1637 = vmatprep.subr.bf16.mxu0 %v918
        %1638 = vmatpush1.bf16.msra.mxu0 %v917
        %1639 = vmatprep.subr.bf16.mxu0 %v930
        %1640 = vmatpush1.bf16.msra.mxu0 %v929
        %1641 = vmatprep.subr.bf16.mxu0 %v942
        %1642 = vmatpush1.bf16.msra.mxu0 %v941
        %1643 = vmatprep.subr.bf16.mxu0 %v954
        %1644 = vmatpush1.bf16.msra.mxu0 %v953
        %1645 = vmatprep.subr.bf16.mxu0 %v966
        %1646 = vmatpush1.bf16.msra.mxu0 %v965
        %1647 = vmatprep.subr.bf16.mxu0 %v978
        %1648 = vmatpush1.bf16.msra.mxu0 %v977
        %1649 = vmatprep.subr.bf16.mxu0 %v990
        %1650 = vmatpush1.bf16.msra.mxu0 %v989
        %1651 = vmatprep.subr.bf16.mxu0 %v1002
        %1652 = vmatpush1.bf16.msra.mxu0 %v1001
        %1653 = vmatprep.subr.bf16.mxu0 %v1014
        %1654 = vmatpush1.bf16.msra.mxu0 %v1013
        %1655 = vmatprep.subr.bf16.mxu0 %v1026
        %1656 = vmatpush1.bf16.msra.mxu0 %v1025
        %1657 = vmatprep.subr.bf16.mxu0 %v1038
        %1658 = vmatpush1.bf16.msra.mxu0 %v1037
        %1659 = vmatprep.subr.bf16.mxu0 %v1050
        %1660 = vmatpush1.bf16.msra.mxu0 %v1049
        %1661 = vmatprep.subr.bf16.mxu0 %v1062
        %1662 = vmatpush1.bf16.msra.mxu0 %v1061
        %1663 = vmatprep.subr.bf16.mxu0 %v1074
        %1664 = vmatpush1.bf16.msra.mxu0 %v1073
        %1665 = vmatprep.subr.bf16.mxu0 %v1086
        %1666 = vmatpush1.bf16.msra.mxu0 %v1085
        %1667 = vmatprep.subr.bf16.mxu0 %v1098
        %1668 = vmatpush1.bf16.msra.mxu0 %v1097
        %1669 = vmatprep.mubr.bf16.mxu0 %v710
        %1670 = vmatmul.mubr.bf16.gmra.mrb[0].mxu0 %v709
        %v1671 = vpop.f32.mrb[0].mxu0
        %v1672 = vadd.f32 0.0, %v1671
        %v1673 = vpop.f32.mrb[0].mxu0
        %v1674 = vadd.f32 0.0, %v1673
        %v1675 = vpop.f32.mrb[0].mxu0
        %v1676 = vadd.f32 0.0, %v1675
        %v1677 = vpop.f32.mrb[0].mxu0
        %v1678 = vadd.f32 0.0, %v1677
        %1679 = vdwg.mxu0
        %1680 = vmatprep.subr.bf16.mxu0 %v1110
        %1681 = vmatpush1.bf16.msra.mxu0 %v1109
        %1682 = vmatprep.subr.bf16.mxu0 %v1122
        %1683 = vmatpush1.bf16.msra.mxu0 %v1121
        %1684 = vmatprep.subr.bf16.mxu0 %v1134
        %1685 = vmatpush1.bf16.msra.mxu0 %v1133
        %1686 = vmatprep.subr.bf16.mxu0 %v1146
        %1687 = vmatpush1.bf16.msra.mxu0 %v1145
        %1688 = vmatprep.subr.bf16.mxu0 %v1158
        %1689 = vmatpush1.bf16.msra.mxu0 %v1157
        %1690 = vmatprep.subr.bf16.mxu0 %v1170
        %1691 = vmatpush1.bf16.msra.mxu0 %v1169
        %1692 = vmatprep.subr.bf16.mxu0 %v1182
        %1693 = vmatpush1.bf16.msra.mxu0 %v1181
        %1694 = vmatprep.subr.bf16.mxu0 %v1194
        %1695 = vmatpush1.bf16.msra.mxu0 %v1193
        %1696 = vmatprep.subr.bf16.mxu0 %v1206
        %1697 = vmatpush1.bf16.msra.mxu0 %v1205
        %1698 = vmatprep.subr.bf16.mxu0 %v1218
        %1699 = vmatpush1.bf16.msra.mxu0 %v1217
        %1700 = vmatprep.subr.bf16.mxu0 %v1230
        %1701 = vmatpush1.bf16.msra.mxu0 %v1229
        %1702 = vmatprep.subr.bf16.mxu0 %v1242
        %1703 = vmatpush1.bf16.msra.mxu0 %v1241
        %1704 = vmatprep.subr.bf16.mxu0 %v1254
        %1705 = vmatpush1.bf16.msra.mxu0 %v1253
        %1706 = vmatprep.subr.bf16.mxu0 %v1266
        %1707 = vmatpush1.bf16.msra.mxu0 %v1265
        %1708 = vmatprep.subr.bf16.mxu0 %v1278
        %1709 = vmatpush1.bf16.msra.mxu0 %v1277
        %1710 = vmatprep.subr.bf16.mxu0 %v1290
        %1711 = vmatpush1.bf16.msra.mxu0 %v1289
        %1712 = vmatprep.mubr.bf16.mxu0 %v712
        %1713 = vmatmul.mubr.bf16.gmra.mrb[0].mxu0 %v711
        %v1714 = vpop.f32.mrb[0].mxu0
        %v1715 = vadd.f32 %v1672, %v1714
        %v1716 = vpop.f32.mrb[0].mxu0
        %v1717 = vadd.f32 %v1674, %v1716
        %v1718 = vpop.f32.mrb[0].mxu0
        %v1719 = vadd.f32 %v1676, %v1718
        %v1720 = vpop.f32.mrb[0].mxu0
        %v1721 = vadd.f32 %v1678, %v1720
        %1722 = vdwg.mxu0
        %1723 = vmatprep.subr.bf16.mxu0 %v920
        %1724 = vmatpush1.bf16.msra.mxu0 %v919
        %1725 = vmatprep.subr.bf16.mxu0 %v932
        %1726 = vmatpush1.bf16.msra.mxu0 %v931
        %1727 = vmatprep.subr.bf16.mxu0 %v944
        %1728 = vmatpush1.bf16.msra.mxu0 %v943
        %1729 = vmatprep.subr.bf16.mxu0 %v956
        %1730 = vmatpush1.bf16.msra.mxu0 %v955
        %1731 = vmatprep.subr.bf16.mxu0 %v968
        %1732 = vmatpush1.bf16.msra.mxu0 %v967
        %1733 = vmatprep.subr.bf16.mxu0 %v980
        %1734 = vmatpush1.bf16.msra.mxu0 %v979
        %1735 = vmatprep.subr.bf16.mxu0 %v992
        %1736 = vmatpush1.bf16.msra.mxu0 %v991
        %1737 = vmatprep.subr.bf16.mxu0 %v1004
        %1738 = vmatpush1.bf16.msra.mxu0 %v1003
        %1739 = vmatprep.subr.bf16.mxu0 %v1016
        %1740 = vmatpush1.bf16.msra.mxu0 %v1015
        %1741 = vmatprep.subr.bf16.mxu0 %v1028
        %1742 = vmatpush1.bf16.msra.mxu0 %v1027
        %1743 = vmatprep.subr.bf16.mxu0 %v1040
        %1744 = vmatpush1.bf16.msra.mxu0 %v1039
        %1745 = vmatprep.subr.bf16.mxu0 %v1052
        %1746 = vmatpush1.bf16.msra.mxu0 %v1051
        %1747 = vmatprep.subr.bf16.mxu0 %v1064
        %1748 = vmatpush1.bf16.msra.mxu0 %v1063
        %1749 = vmatprep.subr.bf16.mxu0 %v1076
        %1750 = vmatpush1.bf16.msra.mxu0 %v1075
        %1751 = vmatprep.subr.bf16.mxu0 %v1088
        %1752 = vmatpush1.bf16.msra.mxu0 %v1087
        %1753 = vmatprep.subr.bf16.mxu0 %v1100
        %1754 = vmatpush1.bf16.msra.mxu0 %v1099
        %1755 = vmatprep.mubr.bf16.mxu0 %v710
        %1756 = vmatmul.mubr.bf16.gmra.mrb[0].mxu0 %v709
        %v1757 = vpop.f32.mrb[0].mxu0
        %v1758 = vadd.f32 0.0, %v1757
        %v1759 = vpop.f32.mrb[0].mxu0
        %v1760 = vadd.f32 0.0, %v1759
        %v1761 = vpop.f32.mrb[0].mxu0
        %v1762 = vadd.f32 0.0, %v1761
        %v1763 = vpop.f32.mrb[0].mxu0
        %v1764 = vadd.f32 0.0, %v1763
        %1765 = vdwg.mxu0
        %1766 = vmatprep.subr.bf16.mxu0 %v1112
        %1767 = vmatpush1.bf16.msra.mxu0 %v1111
        %1768 = vmatprep.subr.bf16.mxu0 %v1124
        %1769 = vmatpush1.bf16.msra.mxu0 %v1123
        %1770 = vmatprep.subr.bf16.mxu0 %v1136
        %1771 = vmatpush1.bf16.msra.mxu0 %v1135
        %1772 = vmatprep.subr.bf16.mxu0 %v1148
        %1773 = vmatpush1.bf16.msra.mxu0 %v1147
        %1774 = vmatprep.subr.bf16.mxu0 %v1160
        %1775 = vmatpush1.bf16.msra.mxu0 %v1159
        %1776 = vmatprep.subr.bf16.mxu0 %v1172
        %1777 = vmatpush1.bf16.msra.mxu0 %v1171
        %1778 = vmatprep.subr.bf16.mxu0 %v1184
        %1779 = vmatpush1.bf16.msra.mxu0 %v1183
        %1780 = vmatprep.subr.bf16.mxu0 %v1196
        %1781 = vmatpush1.bf16.msra.mxu0 %v1195
        %1782 = vmatprep.subr.bf16.mxu0 %v1208
        %1783 = vmatpush1.bf16.msra.mxu0 %v1207
        %1784 = vmatprep.subr.bf16.mxu0 %v1220
        %1785 = vmatpush1.bf16.msra.mxu0 %v1219
        %1786 = vmatprep.subr.bf16.mxu0 %v1232
        %1787 = vmatpush1.bf16.msra.mxu0 %v1231
        %1788 = vmatprep.subr.bf16.mxu0 %v1244
        %1789 = vmatpush1.bf16.msra.mxu0 %v1243
        %1790 = vmatprep.subr.bf16.mxu0 %v1256
        %1791 = vmatpush1.bf16.msra.mxu0 %v1255
        %1792 = vmatprep.subr.bf16.mxu0 %v1268
        %1793 = vmatpush1.bf16.msra.mxu0 %v1267
        %1794 = vmatprep.subr.bf16.mxu0 %v1280
        %1795 = vmatpush1.bf16.msra.mxu0 %v1279
        %1796 = vmatprep.subr.bf16.mxu0 %v1292
        %1797 = vmatpush1.bf16.msra.mxu0 %v1291
        %1798 = vmatprep.mubr.bf16.mxu0 %v712
        %1799 = vmatmul.mubr.bf16.gmra.mrb[0].mxu0 %v711
        %v1800 = vpop.f32.mrb[0].mxu0
        %v1801 = vadd.f32 %v1758, %v1800
        %v1802 = vpop.f32.mrb[0].mxu0
        %v1803 = vadd.f32 %v1760, %v1802
        %v1804 = vpop.f32.mrb[0].mxu0
        %v1805 = vadd.f32 %v1762, %v1804
        %v1806 = vpop.f32.mrb[0].mxu0
        %v1807 = vadd.f32 %v1764, %v1806
        %1808 = vdwg.mxu0
        %v1811 = vlaneseq
        %v1812 = vshrl.u32 %v1811, 7
        %v1813 = vsub.s32 0, %v1812
        %v1814 = vrot.slane %v713, %v1813
        %v1815 = vlaneseq
        %v1816 = vshrl.u32 %v1815, 7
        %v1817 = vsub.s32 1, %v1816
        %v1818 = vrot.slane %v713, %v1817
        %v1819 = vlaneseq
        %v1820 = vshrl.u32 %v1819, 7
        %v1821 = vsub.s32 2, %v1820
        %v1822 = vrot.slane %v713, %v1821
        %v1823 = vlaneseq
        %v1824 = vshrl.u32 %v1823, 7
        %v1825 = vsub.s32 3, %v1824
        %v1826 = vrot.slane %v713, %v1825
        %v1827 = vlaneseq
        %v1828 = vshrl.u32 %v1827, 7
        %v1829 = vsub.s32 4, %v1828
        %v1830 = vrot.slane %v713, %v1829
        %v1831 = vlaneseq
        %v1832 = vshrl.u32 %v1831, 7
        %v1833 = vsub.s32 5, %v1832
        %v1834 = vrot.slane %v713, %v1833
        %v1835 = vlaneseq
        %v1836 = vshrl.u32 %v1835, 7
        %v1837 = vsub.s32 6, %v1836
        %v1838 = vrot.slane %v713, %v1837
        %v1839 = vlaneseq
        %v1840 = vshrl.u32 %v1839, 7
        %v1841 = vsub.s32 7, %v1840
        %v1842 = vrot.slane %v713, %v1841
        %v1843 = vlaneseq
        %v1844 = vshrl.u32 %v1843, 7
        %v1845 = vsub.s32 0, %v1844
        %v1846 = vrot.slane %v714, %v1845
        %v1847 = vlaneseq
        %v1848 = vshrl.u32 %v1847, 7
        %v1849 = vsub.s32 1, %v1848
        %v1850 = vrot.slane %v714, %v1849
        %v1851 = vlaneseq
        %v1852 = vshrl.u32 %v1851, 7
        %v1853 = vsub.s32 2, %v1852
        %v1854 = vrot.slane %v714, %v1853
        %v1855 = vlaneseq
        %v1856 = vshrl.u32 %v1855, 7
        %v1857 = vsub.s32 3, %v1856
        %v1858 = vrot.slane %v714, %v1857
        %v1871 = vmul.f32 %v1371, %v1814
        %v1872 = vmul.f32 %v1373, %v1818
        %v1873 = vmul.f32 %v1457, %v1822
        %v1874 = vmul.f32 %v1459, %v1826
        %v1875 = vmul.f32 %v1543, %v1830
        %v1876 = vmul.f32 %v1545, %v1834
        %v1877 = vmul.f32 %v1629, %v1838
        %v1878 = vmul.f32 %v1631, %v1842
        %v1879 = vmul.f32 %v1715, %v1846
        %v1880 = vmul.f32 %v1717, %v1850
        %v1881 = vmul.f32 %v1801, %v1854
        %v1882 = vmul.f32 %v1803, %v1858
        %v1883 = vmul.f32 %v1375, %v1814
        %v1884 = vmul.f32 %v1377, %v1818
        %v1885 = vmul.f32 %v1461, %v1822
        %v1886 = vmul.f32 %v1463, %v1826
        %v1887 = vmul.f32 %v1547, %v1830
        %v1888 = vmul.f32 %v1549, %v1834
        %v1889 = vmul.f32 %v1633, %v1838
        %v1890 = vmul.f32 %v1635, %v1842
        %v1891 = vmul.f32 %v1719, %v1846
        %v1892 = vmul.f32 %v1721, %v1850
        %v1893 = vmul.f32 %v1805, %v1854
        %v1894 = vmul.f32 %v1807, %v1858
        %v1897 = vlaneseq
        %v1898 = vshrl.u32 %v1897, 7
        %v1899 = vsub.s32 0, %v1898
        %v1900 = vrot.slane %v715, %v1899
        %v1901 = vlaneseq
        %v1902 = vshrl.u32 %v1901, 7
        %v1903 = vsub.s32 1, %v1902
        %v1904 = vrot.slane %v715, %v1903
        %v1905 = vlaneseq
        %v1906 = vshrl.u32 %v1905, 7
        %v1907 = vsub.s32 2, %v1906
        %v1908 = vrot.slane %v715, %v1907
        %v1909 = vlaneseq
        %v1910 = vshrl.u32 %v1909, 7
        %v1911 = vsub.s32 3, %v1910
        %v1912 = vrot.slane %v715, %v1911
        %v1913 = vlaneseq
        %v1914 = vshrl.u32 %v1913, 7
        %v1915 = vsub.s32 4, %v1914
        %v1916 = vrot.slane %v715, %v1915
        %v1917 = vlaneseq
        %v1918 = vshrl.u32 %v1917, 7
        %v1919 = vsub.s32 5, %v1918
        %v1920 = vrot.slane %v715, %v1919
        %v1921 = vlaneseq
        %v1922 = vshrl.u32 %v1921, 7
        %v1923 = vsub.s32 6, %v1922
        %v1924 = vrot.slane %v715, %v1923
        %v1925 = vlaneseq
        %v1926 = vshrl.u32 %v1925, 7
        %v1927 = vsub.s32 7, %v1926
        %v1928 = vrot.slane %v715, %v1927
        %v1929 = vlaneseq
        %v1930 = vshrl.u32 %v1929, 7
        %v1931 = vsub.s32 0, %v1930
        %v1932 = vrot.slane %v716, %v1931
        %v1933 = vlaneseq
        %v1934 = vshrl.u32 %v1933, 7
        %v1935 = vsub.s32 1, %v1934
        %v1936 = vrot.slane %v716, %v1935
        %v1937 = vlaneseq
        %v1938 = vshrl.u32 %v1937, 7
        %v1939 = vsub.s32 2, %v1938
        %v1940 = vrot.slane %v716, %v1939
        %v1941 = vlaneseq
        %v1942 = vshrl.u32 %v1941, 7
        %v1943 = vsub.s32 3, %v1942
        %v1944 = vrot.slane %v716, %v1943
        %v1957 = vadd.f32 %v1871, %v1900
        %v1958 = vadd.f32 %v1872, %v1904
        %v1959 = vadd.f32 %v1873, %v1908
        %v1960 = vadd.f32 %v1874, %v1912
        %v1961 = vadd.f32 %v1875, %v1916
        %v1962 = vadd.f32 %v1876, %v1920
        %v1963 = vadd.f32 %v1877, %v1924
        %v1964 = vadd.f32 %v1878, %v1928
        %v1965 = vadd.f32 %v1879, %v1932
        %v1966 = vadd.f32 %v1880, %v1936
        %v1967 = vadd.f32 %v1881, %v1940
        %v1968 = vadd.f32 %v1882, %v1944
        %v1969 = vadd.f32 %v1883, %v1900
        %v1970 = vadd.f32 %v1884, %v1904
        %v1971 = vadd.f32 %v1885, %v1908
        %v1972 = vadd.f32 %v1886, %v1912
        %v1973 = vadd.f32 %v1887, %v1916
        %v1974 = vadd.f32 %v1888, %v1920
        %v1975 = vadd.f32 %v1889, %v1924
        %v1976 = vadd.f32 %v1890, %v1928
        %v1977 = vadd.f32 %v1891, %v1932
        %v1978 = vadd.f32 %v1892, %v1936
        %v1979 = vadd.f32 %v1893, %v1940
        %v1980 = vadd.f32 %v1894, %v1944
        %v1981 = vmul.f32 %v1957, 0.125
        %v1982 = vmul.f32 %v1958, 0.125
        %v1983 = vmul.f32 %v1959, 0.125
        %v1984 = vmul.f32 %v1960, 0.125
        %v1985 = vmul.f32 %v1969, 0.125
        %v1986 = vmul.f32 %v1970, 0.125
        %v1987 = vmul.f32 %v1971, 0.125
        %v1988 = vmul.f32 %v1972, 0.125
        %v1989 = vpack.c.bf16 %v1981, %v1981
        %v1990 = vpack.c.bf16 %v1982, %v1982
        %v1991 = vpack.c.bf16 %v1983, %v1983
        %v1992 = vpack.c.bf16 %v1984, %v1984
        %v1993 = vpack.c.bf16 %v1961, %v1961
        %v1994 = vpack.c.bf16 %v1962, %v1962
        %v1995 = vpack.c.bf16 %v1963, %v1963
        %v1996 = vpack.c.bf16 %v1964, %v1964
        %v1997 = vpack.c.bf16 %v1965, %v1965
        %v1998 = vpack.c.bf16 %v1966, %v1966
        %v1999 = vpack.c.bf16 %v1967, %v1967
        %v2000 = vpack.c.bf16 %v1968, %v1968
        %vm2001 = vcmask 523264
        %v2003 = vsel %vm2001, %v1989, 0
        %v2006 = vsel %vm2001, %v1993, 0
        %2008 = vmatprep.subr.bf16.mxu0 0
        %2009 = vmatpush1.bf16.xpose.msra.mxu0 %v2006
        %2010 = vmatprep.subr.bf16.mxu0 0
        %2011 = vmatpush1.bf16.xpose.msra.mxu0 0
        %2012 = vmatprep.subr.bf16.mxu0 0
        %2013 = vmatpush1.bf16.xpose.msra.mxu0 0
        %2014 = vmatprep.subr.bf16.mxu0 0
        %2015 = vmatpush1.bf16.xpose.msra.mxu0 0
        %2016 = vmatprep.subr.bf16.mxu0 0
        %2017 = vmatpush1.bf16.xpose.msra.mxu0 0
        %2018 = vmatprep.subr.bf16.mxu0 0
        %2019 = vmatpush1.bf16.xpose.msra.mxu0 0
        %2020 = vmatprep.subr.bf16.mxu0 0
        %2021 = vmatpush1.bf16.xpose.msra.mxu0 0
        %2022 = vmatprep.subr.bf16.mxu0 0
        %2023 = vmatpush1.bf16.xpose.msra.mxu0 0
        %2024 = vmatprep.subr.bf16.mxu0 0
        %2025 = vmatpush1.bf16.xpose.msra.mxu0 0
        %2026 = vmatprep.subr.bf16.mxu0 0
        %2027 = vmatpush1.bf16.xpose.msra.mxu0 0
        %2028 = vmatprep.subr.bf16.mxu0 0
        %2029 = vmatpush1.bf16.xpose.msra.mxu0 0
        %2030 = vmatprep.subr.bf16.mxu0 0
        %2031 = vmatpush1.bf16.xpose.msra.mxu0 0
        %2032 = vmatprep.subr.bf16.mxu0 0
        %2033 = vmatpush1.bf16.xpose.msra.mxu0 0
        %2034 = vmatprep.subr.bf16.mxu0 0
        %2035 = vmatpush1.bf16.xpose.msra.mxu0 0
        %2036 = vmatprep.subr.bf16.mxu0 0
        %2037 = vmatpush1.bf16.xpose.msra.mxu0 0
        %2038 = vmatprep.subr.bf16.mxu0 0
        %2039 = vmatpush1.bf16.xpose.msra.mxu0 0
        %2040 = vmatprep.mubr.bf16.mxu0 0
        %2041 = vmatmul.mubr.bf16.gmra.mrb[0].mxu0 %v2003
        %v2042 = vpop.f32.mrb[0].mxu0
        %v2043 = vadd.f32 0.0, %v2042
        %v2044 = vpop.f32.mrb[0].mxu0
        %v2045 = vpop.f32.mrb[0].mxu0
        %v2046 = vpop.f32.mrb[0].mxu0
        %2047 = vdwg.mxu0
        %vm2048 = vcmask 64512
        %v2049 = vsel %vm2048, %v2043, -inf
        %2050 = vmax.xlane.f32.xlu0 %v2049
        %v2051 = vpop.xlane.xlu0 %2050
        %v2052 = vsub.f32 %v2043, %v2051
        %v2053 = vmul.f32 %v2052, 1.442695
        %v2054 = vpow.pop %v2053
        %v2055 = vsel %vm2048, %v2054, 0.0
        %2056 = vadd.xlane.f32.xlu0 %v2055
        %v2057 = vpop.xlane.xlu0 %2056
        %v2058 = vrcp.pop %v2057
        %v2059 = vmul.f32 %v2054, %v2058
        %v2060 = vpack.c.bf16 %v2059, %v2059
        %v2062 = vsel %vm2048, %v2060, 0
        %vm2064 = vcmask 1043456
        %v2066 = vsel %vm2064, %v1997, 0
        %2068 = vmatprep.subr.bf16.mxu0 0
        %2069 = vmatpush1.bf16.msra.mxu0 %v2066
        %2070 = vmatprep.subr.bf16.mxu0 0
        %2071 = vmatpush1.bf16.msra.mxu0 0
        %2072 = vmatprep.subr.bf16.mxu0 0
        %2073 = vmatpush1.bf16.msra.mxu0 0
        %2074 = vmatprep.subr.bf16.mxu0 0
        %2075 = vmatpush1.bf16.msra.mxu0 0
        %2076 = vmatprep.subr.bf16.mxu0 0
        %2077 = vmatpush1.bf16.msra.mxu0 0
        %2078 = vmatprep.subr.bf16.mxu0 0
        %2079 = vmatpush1.bf16.msra.mxu0 0
        %2080 = vmatprep.subr.bf16.mxu0 0
        %2081 = vmatpush1.bf16.msra.mxu0 0
        %2082 = vmatprep.subr.bf16.mxu0 0
        %2083 = vmatpush1.bf16.msra.mxu0 0
        %2084 = vmatprep.subr.bf16.mxu0 0
        %2085 = vmatpush1.bf16.msra.mxu0 0
        %2086 = vmatprep.subr.bf16.mxu0 0
        %2087 = vmatpush1.bf16.msra.mxu0 0
        %2088 = vmatprep.subr.bf16.mxu0 0
        %2089 = vmatpush1.bf16.msra.mxu0 0
        %2090 = vmatprep.subr.bf16.mxu0 0
        %2091 = vmatpush1.bf16.msra.mxu0 0
        %2092 = vmatprep.subr.bf16.mxu0 0
        %2093 = vmatpush1.bf16.msra.mxu0 0
        %2094 = vmatprep.subr.bf16.mxu0 0
        %2095 = vmatpush1.bf16.msra.mxu0 0
        %2096 = vmatprep.subr.bf16.mxu0 0
        %2097 = vmatpush1.bf16.msra.mxu0 0
        %2098 = vmatprep.subr.bf16.mxu0 0
        %2099 = vmatpush1.bf16.msra.mxu0 0
        %2100 = vmatprep.mubr.bf16.mxu0 0
        %2101 = vmatmul.mubr.bf16.gmra.mrb[0].mxu0 %v2062
        %v2102 = vpop.f32.mrb[0].mxu0
        %v2103 = vadd.f32 0.0, %v2102
        %v2104 = vpop.f32.mrb[0].mxu0
        %v2105 = vpop.f32.mrb[0].mxu0
        %v2106 = vpop.f32.mrb[0].mxu0
        %2107 = vdwg.mxu0
        %2109 = vrot.lane.b32.xlu0 %v1989, 64
        %v2110 = vpop.permute.xlu0 %2109
        %2112 = vrot.lane.b32.xlu0 %v1993, 64
        %v2113 = vpop.permute.xlu0 %2112
        %v2115 = vsel %vm2001, %v2110, 0
        %v2118 = vsel %vm2001, %v2113, 0
        %2120 = vmatprep.subr.bf16.mxu0 0
        %2121 = vmatpush1.bf16.xpose.msra.mxu0 %v2118
        %2122 = vmatprep.subr.bf16.mxu0 0
        %2123 = vmatpush1.bf16.xpose.msra.mxu0 0
        %2124 = vmatprep.subr.bf16.mxu0 0
        %2125 = vmatpush1.bf16.xpose.msra.mxu0 0
        %2126 = vmatprep.subr.bf16.mxu0 0
        %2127 = vmatpush1.bf16.xpose.msra.mxu0 0
        %2128 = vmatprep.subr.bf16.mxu0 0
        %2129 = vmatpush1.bf16.xpose.msra.mxu0 0
        %2130 = vmatprep.subr.bf16.mxu0 0
        %2131 = vmatpush1.bf16.xpose.msra.mxu0 0
        %2132 = vmatprep.subr.bf16.mxu0 0
        %2133 = vmatpush1.bf16.xpose.msra.mxu0 0
        %2134 = vmatprep.subr.bf16.mxu0 0
        %2135 = vmatpush1.bf16.xpose.msra.mxu0 0
        %2136 = vmatprep.subr.bf16.mxu0 0
        %2137 = vmatpush1.bf16.xpose.msra.mxu0 0
        %2138 = vmatprep.subr.bf16.mxu0 0
        %2139 = vmatpush1.bf16.xpose.msra.mxu0 0
        %2140 = vmatprep.subr.bf16.mxu0 0
        %2141 = vmatpush1.bf16.xpose.msra.mxu0 0
        %2142 = vmatprep.subr.bf16.mxu0 0
        %2143 = vmatpush1.bf16.xpose.msra.mxu0 0
        %2144 = vmatprep.subr.bf16.mxu0 0
        %2145 = vmatpush1.bf16.xpose.msra.mxu0 0
        %2146 = vmatprep.subr.bf16.mxu0 0
        %2147 = vmatpush1.bf16.xpose.msra.mxu0 0
        %2148 = vmatprep.subr.bf16.mxu0 0
        %2149 = vmatpush1.bf16.xpose.msra.mxu0 0
        %2150 = vmatprep.subr.bf16.mxu0 0
        %2151 = vmatpush1.bf16.xpose.msra.mxu0 0
        %2152 = vmatprep.mubr.bf16.mxu0 0
        %2153 = vmatmul.mubr.bf16.gmra.mrb[0].mxu0 %v2115
        %v2154 = vpop.f32.mrb[0].mxu0
        %v2155 = vadd.f32 0.0, %v2154
        %v2156 = vpop.f32.mrb[0].mxu0
        %v2157 = vpop.f32.mrb[0].mxu0
        %v2158 = vpop.f32.mrb[0].mxu0
        %2159 = vdwg.mxu0
        %v2160 = vsel %vm2048, %v2155, -inf
        %2161 = vmax.xlane.f32.xlu0 %v2160
        %v2162 = vpop.xlane.xlu0 %2161
        %v2163 = vsub.f32 %v2155, %v2162
        %v2164 = vmul.f32 %v2163, 1.442695
        %v2165 = vpow.pop %v2164
        %v2166 = vsel %vm2048, %v2165, 0.0
        %2167 = vadd.xlane.f32.xlu0 %v2166
        %v2168 = vpop.xlane.xlu0 %2167
        %v2169 = vrcp.pop %v2168
        %v2170 = vmul.f32 %v2165, %v2169
        %v2171 = vpack.c.bf16 %v2170, %v2170
        %2173 = vrot.lane.b32.xlu0 %v1997, 64
        %v2174 = vpop.permute.xlu0 %2173
        %v2176 = vsel %vm2048, %v2171, 0
        %v2179 = vsel %vm2064, %v2174, 0
        %2181 = vmatprep.subr.bf16.mxu0 0
        %2182 = vmatpush1.bf16.msra.mxu0 %v2179
        %2183 = vmatprep.subr.bf16.mxu0 0
        %2184 = vmatpush1.bf16.msra.mxu0 0
        %2185 = vmatprep.subr.bf16.mxu0 0
        %2186 = vmatpush1.bf16.msra.mxu0 0
        %2187 = vmatprep.subr.bf16.mxu0 0
        %2188 = vmatpush1.bf16.msra.mxu0 0
        %2189 = vmatprep.subr.bf16.mxu0 0
        %2190 = vmatpush1.bf16.msra.mxu0 0
        %2191 = vmatprep.subr.bf16.mxu0 0
        %2192 = vmatpush1.bf16.msra.mxu0 0
        %2193 = vmatprep.subr.bf16.mxu0 0
        %2194 = vmatpush1.bf16.msra.mxu0 0
        %2195 = vmatprep.subr.bf16.mxu0 0
        %2196 = vmatpush1.bf16.msra.mxu0 0
        %2197 = vmatprep.subr.bf16.mxu0 0
        %2198 = vmatpush1.bf16.msra.mxu0 0
        %2199 = vmatprep.subr.bf16.mxu0 0
        %2200 = vmatpush1.bf16.msra.mxu0 0
        %2201 = vmatprep.subr.bf16.mxu0 0
        %2202 = vmatpush1.bf16.msra.mxu0 0
        %2203 = vmatprep.subr.bf16.mxu0 0
        %2204 = vmatpush1.bf16.msra.mxu0 0
        %2205 = vmatprep.subr.bf16.mxu0 0
        %2206 = vmatpush1.bf16.msra.mxu0 0
        %2207 = vmatprep.subr.bf16.mxu0 0
        %2208 = vmatpush1.bf16.msra.mxu0 0
        %2209 = vmatprep.subr.bf16.mxu0 0
        %2210 = vmatpush1.bf16.msra.mxu0 0
        %2211 = vmatprep.subr.bf16.mxu0 0
        %2212 = vmatpush1.bf16.msra.mxu0 0
        %2213 = vmatprep.mubr.bf16.mxu0 0
        %2214 = vmatmul.mubr.bf16.gmra.mrb[0].mxu0 %v2176
        %v2215 = vpop.f32.mrb[0].mxu0
        %v2216 = vadd.f32 0.0, %v2215
        %v2217 = vpop.f32.mrb[0].mxu0
        %v2218 = vpop.f32.mrb[0].mxu0
        %v2219 = vpop.f32.mrb[0].mxu0
        %2220 = vdwg.mxu0
        %v2222 = vsel %vm2001, %v1990, 0
        %v2225 = vsel %vm2001, %v1994, 0
        %2227 = vmatprep.subr.bf16.mxu0 0
        %2228 = vmatpush1.bf16.xpose.msra.mxu0 %v2225
        %2229 = vmatprep.subr.bf16.mxu0 0
        %2230 = vmatpush1.bf16.xpose.msra.mxu0 0
        %2231 = vmatprep.subr.bf16.mxu0 0
        %2232 = vmatpush1.bf16.xpose.msra.mxu0 0
        %2233 = vmatprep.subr.bf16.mxu0 0
        %2234 = vmatpush1.bf16.xpose.msra.mxu0 0
        %2235 = vmatprep.subr.bf16.mxu0 0
        %2236 = vmatpush1.bf16.xpose.msra.mxu0 0
        %2237 = vmatprep.subr.bf16.mxu0 0
        %2238 = vmatpush1.bf16.xpose.msra.mxu0 0
        %2239 = vmatprep.subr.bf16.mxu0 0
        %2240 = vmatpush1.bf16.xpose.msra.mxu0 0
        %2241 = vmatprep.subr.bf16.mxu0 0
        %2242 = vmatpush1.bf16.xpose.msra.mxu0 0
        %2243 = vmatprep.subr.bf16.mxu0 0
        %2244 = vmatpush1.bf16.xpose.msra.mxu0 0
        %2245 = vmatprep.subr.bf16.mxu0 0
        %2246 = vmatpush1.bf16.xpose.msra.mxu0 0
        %2247 = vmatprep.subr.bf16.mxu0 0
        %2248 = vmatpush1.bf16.xpose.msra.mxu0 0
        %2249 = vmatprep.subr.bf16.mxu0 0
        %2250 = vmatpush1.bf16.xpose.msra.mxu0 0
        %2251 = vmatprep.subr.bf16.mxu0 0
        %2252 = vmatpush1.bf16.xpose.msra.mxu0 0
        %2253 = vmatprep.subr.bf16.mxu0 0
        %2254 = vmatpush1.bf16.xpose.msra.mxu0 0
        %2255 = vmatprep.subr.bf16.mxu0 0
        %2256 = vmatpush1.bf16.xpose.msra.mxu0 0
        %2257 = vmatprep.subr.bf16.mxu0 0
        %2258 = vmatpush1.bf16.xpose.msra.mxu0 0
        %2259 = vmatprep.mubr.bf16.mxu0 0
        %2260 = vmatmul.mubr.bf16.gmra.mrb[0].mxu0 %v2222
        %v2261 = vpop.f32.mrb[0].mxu0
        %v2262 = vadd.f32 0.0, %v2261
        %v2263 = vpop.f32.mrb[0].mxu0
        %v2264 = vpop.f32.mrb[0].mxu0
        %v2265 = vpop.f32.mrb[0].mxu0
        %2266 = vdwg.mxu0
        %v2267 = vsel %vm2048, %v2262, -inf
        %2268 = vmax.xlane.f32.xlu0 %v2267
        %v2269 = vpop.xlane.xlu0 %2268
        %v2270 = vsub.f32 %v2262, %v2269
        %v2271 = vmul.f32 %v2270, 1.442695
        %v2272 = vpow.pop %v2271
        %v2273 = vsel %vm2048, %v2272, 0.0
        %2274 = vadd.xlane.f32.xlu0 %v2273
        %v2275 = vpop.xlane.xlu0 %2274
        %v2276 = vrcp.pop %v2275
        %v2277 = vmul.f32 %v2272, %v2276
        %v2278 = vpack.c.bf16 %v2277, %v2277
        %v2280 = vsel %vm2048, %v2278, 0
        %v2283 = vsel %vm2064, %v1998, 0
        %2285 = vmatprep.subr.bf16.mxu0 0
        %2286 = vmatpush1.bf16.msra.mxu0 %v2283
        %2287 = vmatprep.subr.bf16.mxu0 0
        %2288 = vmatpush1.bf16.msra.mxu0 0
        %2289 = vmatprep.subr.bf16.mxu0 0
        %2290 = vmatpush1.bf16.msra.mxu0 0
        %2291 = vmatprep.subr.bf16.mxu0 0
        %2292 = vmatpush1.bf16.msra.mxu0 0
        %2293 = vmatprep.subr.bf16.mxu0 0
        %2294 = vmatpush1.bf16.msra.mxu0 0
        %2295 = vmatprep.subr.bf16.mxu0 0
        %2296 = vmatpush1.bf16.msra.mxu0 0
        %2297 = vmatprep.subr.bf16.mxu0 0
        %2298 = vmatpush1.bf16.msra.mxu0 0
        %2299 = vmatprep.subr.bf16.mxu0 0
        %2300 = vmatpush1.bf16.msra.mxu0 0
        %2301 = vmatprep.subr.bf16.mxu0 0
        %2302 = vmatpush1.bf16.msra.mxu0 0
        %2303 = vmatprep.subr.bf16.mxu0 0
        %2304 = vmatpush1.bf16.msra.mxu0 0
        %2305 = vmatprep.subr.bf16.mxu0 0
        %2306 = vmatpush1.bf16.msra.mxu0 0
        %2307 = vmatprep.subr.bf16.mxu0 0
        %2308 = vmatpush1.bf16.msra.mxu0 0
        %2309 = vmatprep.subr.bf16.mxu0 0
        %2310 = vmatpush1.bf16.msra.mxu0 0
        %2311 = vmatprep.subr.bf16.mxu0 0
        %2312 = vmatpush1.bf16.msra.mxu0 0
        %2313 = vmatprep.subr.bf16.mxu0 0
        %2314 = vmatpush1.bf16.msra.mxu0 0
        %2315 = vmatprep.subr.bf16.mxu0 0
        %2316 = vmatpush1.bf16.msra.mxu0 0
        %2317 = vmatprep.mubr.bf16.mxu0 0
        %2318 = vmatmul.mubr.bf16.gmra.mrb[0].mxu0 %v2280
        %v2319 = vpop.f32.mrb[0].mxu0
        %v2320 = vadd.f32 0.0, %v2319
        %v2321 = vpop.f32.mrb[0].mxu0
        %v2322 = vpop.f32.mrb[0].mxu0
        %v2323 = vpop.f32.mrb[0].mxu0
        %2324 = vdwg.mxu0
        %2326 = vrot.lane.b32.xlu0 %v1990, 64
        %v2327 = vpop.permute.xlu0 %2326
        %2329 = vrot.lane.b32.xlu0 %v1994, 64
        %v2330 = vpop.permute.xlu0 %2329
        %v2332 = vsel %vm2001, %v2327, 0
        %v2335 = vsel %vm2001, %v2330, 0
        %2337 = vmatprep.subr.bf16.mxu0 0
        %2338 = vmatpush1.bf16.xpose.msra.mxu0 %v2335
        %2339 = vmatprep.subr.bf16.mxu0 0
        %2340 = vmatpush1.bf16.xpose.msra.mxu0 0
        %2341 = vmatprep.subr.bf16.mxu0 0
        %2342 = vmatpush1.bf16.xpose.msra.mxu0 0
        %2343 = vmatprep.subr.bf16.mxu0 0
        %2344 = vmatpush1.bf16.xpose.msra.mxu0 0
        %2345 = vmatprep.subr.bf16.mxu0 0
        %2346 = vmatpush1.bf16.xpose.msra.mxu0 0
        %2347 = vmatprep.subr.bf16.mxu0 0
        %2348 = vmatpush1.bf16.xpose.msra.mxu0 0
        %2349 = vmatprep.subr.bf16.mxu0 0
        %2350 = vmatpush1.bf16.xpose.msra.mxu0 0
        %2351 = vmatprep.subr.bf16.mxu0 0
        %2352 = vmatpush1.bf16.xpose.msra.mxu0 0
        %2353 = vmatprep.subr.bf16.mxu0 0
        %2354 = vmatpush1.bf16.xpose.msra.mxu0 0
        %2355 = vmatprep.subr.bf16.mxu0 0
        %2356 = vmatpush1.bf16.xpose.msra.mxu0 0
        %2357 = vmatprep.subr.bf16.mxu0 0
        %2358 = vmatpush1.bf16.xpose.msra.mxu0 0
        %2359 = vmatprep.subr.bf16.mxu0 0
        %2360 = vmatpush1.bf16.xpose.msra.mxu0 0
        %2361 = vmatprep.subr.bf16.mxu0 0
        %2362 = vmatpush1.bf16.xpose.msra.mxu0 0
        %2363 = vmatprep.subr.bf16.mxu0 0
        %2364 = vmatpush1.bf16.xpose.msra.mxu0 0
        %2365 = vmatprep.subr.bf16.mxu0 0
        %2366 = vmatpush1.bf16.xpose.msra.mxu0 0
        %2367 = vmatprep.subr.bf16.mxu0 0
        %2368 = vmatpush1.bf16.xpose.msra.mxu0 0
        %2369 = vmatprep.mubr.bf16.mxu0 0
        %2370 = vmatmul.mubr.bf16.gmra.mrb[0].mxu0 %v2332
        %v2371 = vpop.f32.mrb[0].mxu0
        %v2372 = vadd.f32 0.0, %v2371
        %v2373 = vpop.f32.mrb[0].mxu0
        %v2374 = vpop.f32.mrb[0].mxu0
        %v2375 = vpop.f32.mrb[0].mxu0
        %2376 = vdwg.mxu0
        %v2377 = vsel %vm2048, %v2372, -inf
        %2378 = vmax.xlane.f32.xlu0 %v2377
        %v2379 = vpop.xlane.xlu0 %2378
        %v2380 = vsub.f32 %v2372, %v2379
        %v2381 = vmul.f32 %v2380, 1.442695
        %v2382 = vpow.pop %v2381
        %v2383 = vsel %vm2048, %v2382, 0.0
        %2384 = vadd.xlane.f32.xlu0 %v2383
        %v2385 = vpop.xlane.xlu0 %2384
        %v2386 = vrcp.pop %v2385
        %v2387 = vmul.f32 %v2382, %v2386
        %v2388 = vpack.c.bf16 %v2387, %v2387
        %2390 = vrot.lane.b32.xlu0 %v1998, 64
        %v2391 = vpop.permute.xlu0 %2390
        %v2393 = vsel %vm2048, %v2388, 0
        %v2396 = vsel %vm2064, %v2391, 0
        %2398 = vmatprep.subr.bf16.mxu0 0
        %2399 = vmatpush1.bf16.msra.mxu0 %v2396
        %2400 = vmatprep.subr.bf16.mxu0 0
        %2401 = vmatpush1.bf16.msra.mxu0 0
        %2402 = vmatprep.subr.bf16.mxu0 0
        %2403 = vmatpush1.bf16.msra.mxu0 0
        %2404 = vmatprep.subr.bf16.mxu0 0
        %2405 = vmatpush1.bf16.msra.mxu0 0
        %2406 = vmatprep.subr.bf16.mxu0 0
        %2407 = vmatpush1.bf16.msra.mxu0 0
        %2408 = vmatprep.subr.bf16.mxu0 0
        %2409 = vmatpush1.bf16.msra.mxu0 0
        %2410 = vmatprep.subr.bf16.mxu0 0
        %2411 = vmatpush1.bf16.msra.mxu0 0
        %2412 = vmatprep.subr.bf16.mxu0 0
        %2413 = vmatpush1.bf16.msra.mxu0 0
        %2414 = vmatprep.subr.bf16.mxu0 0
        %2415 = vmatpush1.bf16.msra.mxu0 0
        %2416 = vmatprep.subr.bf16.mxu0 0
        %2417 = vmatpush1.bf16.msra.mxu0 0
        %2418 = vmatprep.subr.bf16.mxu0 0
        %2419 = vmatpush1.bf16.msra.mxu0 0
        %2420 = vmatprep.subr.bf16.mxu0 0
        %2421 = vmatpush1.bf16.msra.mxu0 0
        %2422 = vmatprep.subr.bf16.mxu0 0
        %2423 = vmatpush1.bf16.msra.mxu0 0
        %2424 = vmatprep.subr.bf16.mxu0 0
        %2425 = vmatpush1.bf16.msra.mxu0 0
        %2426 = vmatprep.subr.bf16.mxu0 0
        %2427 = vmatpush1.bf16.msra.mxu0 0
        %2428 = vmatprep.subr.bf16.mxu0 0
        %2429 = vmatpush1.bf16.msra.mxu0 0
        %2430 = vmatprep.mubr.bf16.mxu0 0
        %2431 = vmatmul.mubr.bf16.gmra.mrb[0].mxu0 %v2393
        %v2432 = vpop.f32.mrb[0].mxu0
        %v2433 = vadd.f32 0.0, %v2432
        %v2434 = vpop.f32.mrb[0].mxu0
        %v2435 = vpop.f32.mrb[0].mxu0
        %v2436 = vpop.f32.mrb[0].mxu0
        %2437 = vdwg.mxu0
        %v2439 = vsel %vm2001, %v1991, 0
        %v2442 = vsel %vm2001, %v1995, 0
        %2444 = vmatprep.subr.bf16.mxu0 0
        %2445 = vmatpush1.bf16.xpose.msra.mxu0 %v2442
        %2446 = vmatprep.subr.bf16.mxu0 0
        %2447 = vmatpush1.bf16.xpose.msra.mxu0 0
        %2448 = vmatprep.subr.bf16.mxu0 0
        %2449 = vmatpush1.bf16.xpose.msra.mxu0 0
        %2450 = vmatprep.subr.bf16.mxu0 0
        %2451 = vmatpush1.bf16.xpose.msra.mxu0 0
        %2452 = vmatprep.subr.bf16.mxu0 0
        %2453 = vmatpush1.bf16.xpose.msra.mxu0 0
        %2454 = vmatprep.subr.bf16.mxu0 0
        %2455 = vmatpush1.bf16.xpose.msra.mxu0 0
        %2456 = vmatprep.subr.bf16.mxu0 0
        %2457 = vmatpush1.bf16.xpose.msra.mxu0 0
        %2458 = vmatprep.subr.bf16.mxu0 0
        %2459 = vmatpush1.bf16.xpose.msra.mxu0 0
        %2460 = vmatprep.subr.bf16.mxu0 0
        %2461 = vmatpush1.bf16.xpose.msra.mxu0 0
        %2462 = vmatprep.subr.bf16.mxu0 0
        %2463 = vmatpush1.bf16.xpose.msra.mxu0 0
        %2464 = vmatprep.subr.bf16.mxu0 0
        %2465 = vmatpush1.bf16.xpose.msra.mxu0 0
        %2466 = vmatprep.subr.bf16.mxu0 0
        %2467 = vmatpush1.bf16.xpose.msra.mxu0 0
        %2468 = vmatprep.subr.bf16.mxu0 0
        %2469 = vmatpush1.bf16.xpose.msra.mxu0 0
        %2470 = vmatprep.subr.bf16.mxu0 0
        %2471 = vmatpush1.bf16.xpose.msra.mxu0 0
        %2472 = vmatprep.subr.bf16.mxu0 0
        %2473 = vmatpush1.bf16.xpose.msra.mxu0 0
        %2474 = vmatprep.subr.bf16.mxu0 0
        %2475 = vmatpush1.bf16.xpose.msra.mxu0 0
        %2476 = vmatprep.mubr.bf16.mxu0 0
        %2477 = vmatmul.mubr.bf16.gmra.mrb[0].mxu0 %v2439
        %v2478 = vpop.f32.mrb[0].mxu0
        %v2479 = vadd.f32 0.0, %v2478
        %v2480 = vpop.f32.mrb[0].mxu0
        %v2481 = vpop.f32.mrb[0].mxu0
        %v2482 = vpop.f32.mrb[0].mxu0
        %2483 = vdwg.mxu0
        %v2484 = vsel %vm2048, %v2479, -inf
        %2485 = vmax.xlane.f32.xlu0 %v2484
        %v2486 = vpop.xlane.xlu0 %2485
        %v2487 = vsub.f32 %v2479, %v2486
        %v2488 = vmul.f32 %v2487, 1.442695
        %v2489 = vpow.pop %v2488
        %v2490 = vsel %vm2048, %v2489, 0.0
        %2491 = vadd.xlane.f32.xlu0 %v2490
        %v2492 = vpop.xlane.xlu0 %2491
        %v2493 = vrcp.pop %v2492
        %v2494 = vmul.f32 %v2489, %v2493
        %v2495 = vpack.c.bf16 %v2494, %v2494
        %v2497 = vsel %vm2048, %v2495, 0
        %v2500 = vsel %vm2064, %v1999, 0
        %2502 = vmatprep.subr.bf16.mxu0 0
        %2503 = vmatpush1.bf16.msra.mxu0 %v2500
        %2504 = vmatprep.subr.bf16.mxu0 0
        %2505 = vmatpush1.bf16.msra.mxu0 0
        %2506 = vmatprep.subr.bf16.mxu0 0
        %2507 = vmatpush1.bf16.msra.mxu0 0
        %2508 = vmatprep.subr.bf16.mxu0 0
        %2509 = vmatpush1.bf16.msra.mxu0 0
        %2510 = vmatprep.subr.bf16.mxu0 0
        %2511 = vmatpush1.bf16.msra.mxu0 0
        %2512 = vmatprep.subr.bf16.mxu0 0
        %2513 = vmatpush1.bf16.msra.mxu0 0
        %2514 = vmatprep.subr.bf16.mxu0 0
        %2515 = vmatpush1.bf16.msra.mxu0 0
        %2516 = vmatprep.subr.bf16.mxu0 0
        %2517 = vmatpush1.bf16.msra.mxu0 0
        %2518 = vmatprep.subr.bf16.mxu0 0
        %2519 = vmatpush1.bf16.msra.mxu0 0
        %2520 = vmatprep.subr.bf16.mxu0 0
        %2521 = vmatpush1.bf16.msra.mxu0 0
        %2522 = vmatprep.subr.bf16.mxu0 0
        %2523 = vmatpush1.bf16.msra.mxu0 0
        %2524 = vmatprep.subr.bf16.mxu0 0
        %2525 = vmatpush1.bf16.msra.mxu0 0
        %2526 = vmatprep.subr.bf16.mxu0 0
        %2527 = vmatpush1.bf16.msra.mxu0 0
        %2528 = vmatprep.subr.bf16.mxu0 0
        %2529 = vmatpush1.bf16.msra.mxu0 0
        %2530 = vmatprep.subr.bf16.mxu0 0
        %2531 = vmatpush1.bf16.msra.mxu0 0
        %2532 = vmatprep.subr.bf16.mxu0 0
        %2533 = vmatpush1.bf16.msra.mxu0 0
        %2534 = vmatprep.mubr.bf16.mxu0 0
        %2535 = vmatmul.mubr.bf16.gmra.mrb[0].mxu0 %v2497
        %v2536 = vpop.f32.mrb[0].mxu0
        %v2537 = vadd.f32 0.0, %v2536
        %v2538 = vpop.f32.mrb[0].mxu0
        %v2539 = vpop.f32.mrb[0].mxu0
        %v2540 = vpop.f32.mrb[0].mxu0
        %2541 = vdwg.mxu0
        %2543 = vrot.lane.b32.xlu0 %v1991, 64
        %v2544 = vpop.permute.xlu0 %2543
        %2546 = vrot.lane.b32.xlu0 %v1995, 64
        %v2547 = vpop.permute.xlu0 %2546
        %v2549 = vsel %vm2001, %v2544, 0
        %v2552 = vsel %vm2001, %v2547, 0
        %2554 = vmatprep.subr.bf16.mxu0 0
        %2555 = vmatpush1.bf16.xpose.msra.mxu0 %v2552
        %2556 = vmatprep.subr.bf16.mxu0 0
        %2557 = vmatpush1.bf16.xpose.msra.mxu0 0
        %2558 = vmatprep.subr.bf16.mxu0 0
        %2559 = vmatpush1.bf16.xpose.msra.mxu0 0
        %2560 = vmatprep.subr.bf16.mxu0 0
        %2561 = vmatpush1.bf16.xpose.msra.mxu0 0
        %2562 = vmatprep.subr.bf16.mxu0 0
        %2563 = vmatpush1.bf16.xpose.msra.mxu0 0
        %2564 = vmatprep.subr.bf16.mxu0 0
        %2565 = vmatpush1.bf16.xpose.msra.mxu0 0
        %2566 = vmatprep.subr.bf16.mxu0 0
        %2567 = vmatpush1.bf16.xpose.msra.mxu0 0
        %2568 = vmatprep.subr.bf16.mxu0 0
        %2569 = vmatpush1.bf16.xpose.msra.mxu0 0
        %2570 = vmatprep.subr.bf16.mxu0 0
        %2571 = vmatpush1.bf16.xpose.msra.mxu0 0
        %2572 = vmatprep.subr.bf16.mxu0 0
        %2573 = vmatpush1.bf16.xpose.msra.mxu0 0
        %2574 = vmatprep.subr.bf16.mxu0 0
        %2575 = vmatpush1.bf16.xpose.msra.mxu0 0
        %2576 = vmatprep.subr.bf16.mxu0 0
        %2577 = vmatpush1.bf16.xpose.msra.mxu0 0
        %2578 = vmatprep.subr.bf16.mxu0 0
        %2579 = vmatpush1.bf16.xpose.msra.mxu0 0
        %2580 = vmatprep.subr.bf16.mxu0 0
        %2581 = vmatpush1.bf16.xpose.msra.mxu0 0
        %2582 = vmatprep.subr.bf16.mxu0 0
        %2583 = vmatpush1.bf16.xpose.msra.mxu0 0
        %2584 = vmatprep.subr.bf16.mxu0 0
        %2585 = vmatpush1.bf16.xpose.msra.mxu0 0
        %2586 = vmatprep.mubr.bf16.mxu0 0
        %2587 = vmatmul.mubr.bf16.gmra.mrb[0].mxu0 %v2549
        %v2588 = vpop.f32.mrb[0].mxu0
        %v2589 = vadd.f32 0.0, %v2588
        %v2590 = vpop.f32.mrb[0].mxu0
        %v2591 = vpop.f32.mrb[0].mxu0
        %v2592 = vpop.f32.mrb[0].mxu0
        %2593 = vdwg.mxu0
        %v2594 = vsel %vm2048, %v2589, -inf
        %2595 = vmax.xlane.f32.xlu0 %v2594
        %v2596 = vpop.xlane.xlu0 %2595
        %v2597 = vsub.f32 %v2589, %v2596
        %v2598 = vmul.f32 %v2597, 1.442695
        %v2599 = vpow.pop %v2598
        %v2600 = vsel %vm2048, %v2599, 0.0
        %2601 = vadd.xlane.f32.xlu0 %v2600
        %v2602 = vpop.xlane.xlu0 %2601
        %v2603 = vrcp.pop %v2602
        %v2604 = vmul.f32 %v2599, %v2603
        %v2605 = vpack.c.bf16 %v2604, %v2604
        %2607 = vrot.lane.b32.xlu0 %v1999, 64
        %v2608 = vpop.permute.xlu0 %2607
        %v2610 = vsel %vm2048, %v2605, 0
        %v2613 = vsel %vm2064, %v2608, 0
        %2615 = vmatprep.subr.bf16.mxu0 0
        %2616 = vmatpush1.bf16.msra.mxu0 %v2613
        %2617 = vmatprep.subr.bf16.mxu0 0
        %2618 = vmatpush1.bf16.msra.mxu0 0
        %2619 = vmatprep.subr.bf16.mxu0 0
        %2620 = vmatpush1.bf16.msra.mxu0 0
        %2621 = vmatprep.subr.bf16.mxu0 0
        %2622 = vmatpush1.bf16.msra.mxu0 0
        %2623 = vmatprep.subr.bf16.mxu0 0
        %2624 = vmatpush1.bf16.msra.mxu0 0
        %2625 = vmatprep.subr.bf16.mxu0 0
        %2626 = vmatpush1.bf16.msra.mxu0 0
        %2627 = vmatprep.subr.bf16.mxu0 0
        %2628 = vmatpush1.bf16.msra.mxu0 0
        %2629 = vmatprep.subr.bf16.mxu0 0
        %2630 = vmatpush1.bf16.msra.mxu0 0
        %2631 = vmatprep.subr.bf16.mxu0 0
        %2632 = vmatpush1.bf16.msra.mxu0 0
        %2633 = vmatprep.subr.bf16.mxu0 0
        %2634 = vmatpush1.bf16.msra.mxu0 0
        %2635 = vmatprep.subr.bf16.mxu0 0
        %2636 = vmatpush1.bf16.msra.mxu0 0
        %2637 = vmatprep.subr.bf16.mxu0 0
        %2638 = vmatpush1.bf16.msra.mxu0 0
        %2639 = vmatprep.subr.bf16.mxu0 0
        %2640 = vmatpush1.bf16.msra.mxu0 0
        %2641 = vmatprep.subr.bf16.mxu0 0
        %2642 = vmatpush1.bf16.msra.mxu0 0
        %2643 = vmatprep.subr.bf16.mxu0 0
        %2644 = vmatpush1.bf16.msra.mxu0 0
        %2645 = vmatprep.subr.bf16.mxu0 0
        %2646 = vmatpush1.bf16.msra.mxu0 0
        %2647 = vmatprep.mubr.bf16.mxu0 0
        %2648 = vmatmul.mubr.bf16.gmra.mrb[0].mxu0 %v2610
        %v2649 = vpop.f32.mrb[0].mxu0
        %v2650 = vadd.f32 0.0, %v2649
        %v2651 = vpop.f32.mrb[0].mxu0
        %v2652 = vpop.f32.mrb[0].mxu0
        %v2653 = vpop.f32.mrb[0].mxu0
        %2654 = vdwg.mxu0
        %v2656 = vsel %vm2001, %v1992, 0
        %v2659 = vsel %vm2001, %v1996, 0
        %2661 = vmatprep.subr.bf16.mxu0 0
        %2662 = vmatpush1.bf16.xpose.msra.mxu0 %v2659
        %2663 = vmatprep.subr.bf16.mxu0 0
        %2664 = vmatpush1.bf16.xpose.msra.mxu0 0
        %2665 = vmatprep.subr.bf16.mxu0 0
        %2666 = vmatpush1.bf16.xpose.msra.mxu0 0
        %2667 = vmatprep.subr.bf16.mxu0 0
        %2668 = vmatpush1.bf16.xpose.msra.mxu0 0
        %2669 = vmatprep.subr.bf16.mxu0 0
        %2670 = vmatpush1.bf16.xpose.msra.mxu0 0
        %2671 = vmatprep.subr.bf16.mxu0 0
        %2672 = vmatpush1.bf16.xpose.msra.mxu0 0
        %2673 = vmatprep.subr.bf16.mxu0 0
        %2674 = vmatpush1.bf16.xpose.msra.mxu0 0
        %2675 = vmatprep.subr.bf16.mxu0 0
        %2676 = vmatpush1.bf16.xpose.msra.mxu0 0
        %2677 = vmatprep.subr.bf16.mxu0 0
        %2678 = vmatpush1.bf16.xpose.msra.mxu0 0
        %2679 = vmatprep.subr.bf16.mxu0 0
        %2680 = vmatpush1.bf16.xpose.msra.mxu0 0
        %2681 = vmatprep.subr.bf16.mxu0 0
        %2682 = vmatpush1.bf16.xpose.msra.mxu0 0
        %2683 = vmatprep.subr.bf16.mxu0 0
        %2684 = vmatpush1.bf16.xpose.msra.mxu0 0
        %2685 = vmatprep.subr.bf16.mxu0 0
        %2686 = vmatpush1.bf16.xpose.msra.mxu0 0
        %2687 = vmatprep.subr.bf16.mxu0 0
        %2688 = vmatpush1.bf16.xpose.msra.mxu0 0
        %2689 = vmatprep.subr.bf16.mxu0 0
        %2690 = vmatpush1.bf16.xpose.msra.mxu0 0
        %2691 = vmatprep.subr.bf16.mxu0 0
        %2692 = vmatpush1.bf16.xpose.msra.mxu0 0
        %2693 = vmatprep.mubr.bf16.mxu0 0
        %2694 = vmatmul.mubr.bf16.gmra.mrb[0].mxu0 %v2656
        %v2695 = vpop.f32.mrb[0].mxu0
        %v2696 = vadd.f32 0.0, %v2695
        %v2697 = vpop.f32.mrb[0].mxu0
        %v2698 = vpop.f32.mrb[0].mxu0
        %v2699 = vpop.f32.mrb[0].mxu0
        %2700 = vdwg.mxu0
        %v2701 = vsel %vm2048, %v2696, -inf
        %2702 = vmax.xlane.f32.xlu0 %v2701
        %v2703 = vpop.xlane.xlu0 %2702
        %v2704 = vsub.f32 %v2696, %v2703
        %v2705 = vmul.f32 %v2704, 1.442695
        %v2706 = vpow.pop %v2705
        %v2707 = vsel %vm2048, %v2706, 0.0
        %2708 = vadd.xlane.f32.xlu0 %v2707
        %v2709 = vpop.xlane.xlu0 %2708
        %v2710 = vrcp.pop %v2709
        %v2711 = vmul.f32 %v2706, %v2710
        %v2712 = vpack.c.bf16 %v2711, %v2711
        %v2714 = vsel %vm2048, %v2712, 0
        %v2717 = vsel %vm2064, %v2000, 0
        %2719 = vmatprep.subr.bf16.mxu0 0
        %2720 = vmatpush1.bf16.msra.mxu0 %v2717
        %2721 = vmatprep.subr.bf16.mxu0 0
        %2722 = vmatpush1.bf16.msra.mxu0 0
        %2723 = vmatprep.subr.bf16.mxu0 0
        %2724 = vmatpush1.bf16.msra.mxu0 0
        %2725 = vmatprep.subr.bf16.mxu0 0
        %2726 = vmatpush1.bf16.msra.mxu0 0
        %2727 = vmatprep.subr.bf16.mxu0 0
        %2728 = vmatpush1.bf16.msra.mxu0 0
        %2729 = vmatprep.subr.bf16.mxu0 0
        %2730 = vmatpush1.bf16.msra.mxu0 0
        %2731 = vmatprep.subr.bf16.mxu0 0
        %2732 = vmatpush1.bf16.msra.mxu0 0
        %2733 = vmatprep.subr.bf16.mxu0 0
        %2734 = vmatpush1.bf16.msra.mxu0 0
        %2735 = vmatprep.subr.bf16.mxu0 0
        %2736 = vmatpush1.bf16.msra.mxu0 0
        %2737 = vmatprep.subr.bf16.mxu0 0
        %2738 = vmatpush1.bf16.msra.mxu0 0
        %2739 = vmatprep.subr.bf16.mxu0 0
        %2740 = vmatpush1.bf16.msra.mxu0 0
        %2741 = vmatprep.subr.bf16.mxu0 0
        %2742 = vmatpush1.bf16.msra.mxu0 0
        %2743 = vmatprep.subr.bf16.mxu0 0
        %2744 = vmatpush1.bf16.msra.mxu0 0
        %2745 = vmatprep.subr.bf16.mxu0 0
        %2746 = vmatpush1.bf16.msra.mxu0 0
        %2747 = vmatprep.subr.bf16.mxu0 0
        %2748 = vmatpush1.bf16.msra.mxu0 0
        %2749 = vmatprep.subr.bf16.mxu0 0
        %2750 = vmatpush1.bf16.msra.mxu0 0
        %2751 = vmatprep.mubr.bf16.mxu0 0
        %2752 = vmatmul.mubr.bf16.gmra.mrb[0].mxu0 %v2714
        %v2753 = vpop.f32.mrb[0].mxu0
        %v2754 = vadd.f32 0.0, %v2753
        %v2755 = vpop.f32.mrb[0].mxu0
        %v2756 = vpop.f32.mrb[0].mxu0
        %v2757 = vpop.f32.mrb[0].mxu0
        %2758 = vdwg.mxu0
        %2760 = vrot.lane.b32.xlu0 %v1992, 64
        %v2761 = vpop.permute.xlu0 %2760
        %2763 = vrot.lane.b32.xlu0 %v1996, 64
        %v2764 = vpop.permute.xlu0 %2763
        %v2766 = vsel %vm2001, %v2761, 0
        %v2769 = vsel %vm2001, %v2764, 0
        %2771 = vmatprep.subr.bf16.mxu0 0
        %2772 = vmatpush1.bf16.xpose.msra.mxu0 %v2769
        %2773 = vmatprep.subr.bf16.mxu0 0
        %2774 = vmatpush1.bf16.xpose.msra.mxu0 0
        %2775 = vmatprep.subr.bf16.mxu0 0
        %2776 = vmatpush1.bf16.xpose.msra.mxu0 0
        %2777 = vmatprep.subr.bf16.mxu0 0
        %2778 = vmatpush1.bf16.xpose.msra.mxu0 0
        %2779 = vmatprep.subr.bf16.mxu0 0
        %2780 = vmatpush1.bf16.xpose.msra.mxu0 0
        %2781 = vmatprep.subr.bf16.mxu0 0
        %2782 = vmatpush1.bf16.xpose.msra.mxu0 0
        %2783 = vmatprep.subr.bf16.mxu0 0
        %2784 = vmatpush1.bf16.xpose.msra.mxu0 0
        %2785 = vmatprep.subr.bf16.mxu0 0
        %2786 = vmatpush1.bf16.xpose.msra.mxu0 0
        %2787 = vmatprep.subr.bf16.mxu0 0
        %2788 = vmatpush1.bf16.xpose.msra.mxu0 0
        %2789 = vmatprep.subr.bf16.mxu0 0
        %2790 = vmatpush1.bf16.xpose.msra.mxu0 0
        %2791 = vmatprep.subr.bf16.mxu0 0
        %2792 = vmatpush1.bf16.xpose.msra.mxu0 0
        %2793 = vmatprep.subr.bf16.mxu0 0
        %2794 = vmatpush1.bf16.xpose.msra.mxu0 0
        %2795 = vmatprep.subr.bf16.mxu0 0
        %2796 = vmatpush1.bf16.xpose.msra.mxu0 0
        %2797 = vmatprep.subr.bf16.mxu0 0
        %2798 = vmatpush1.bf16.xpose.msra.mxu0 0
        %2799 = vmatprep.subr.bf16.mxu0 0
        %2800 = vmatpush1.bf16.xpose.msra.mxu0 0
        %2801 = vmatprep.subr.bf16.mxu0 0
        %2802 = vmatpush1.bf16.xpose.msra.mxu0 0
        %2803 = vmatprep.mubr.bf16.mxu0 0
        %2804 = vmatmul.mubr.bf16.gmra.mrb[0].mxu0 %v2766
        %v2805 = vpop.f32.mrb[0].mxu0
        %v2806 = vadd.f32 0.0, %v2805
        %v2807 = vpop.f32.mrb[0].mxu0
        %v2808 = vpop.f32.mrb[0].mxu0
        %v2809 = vpop.f32.mrb[0].mxu0
        %2810 = vdwg.mxu0
        %v2811 = vsel %vm2048, %v2806, -inf
        %2812 = vmax.xlane.f32.xlu0 %v2811
        %v2813 = vpop.xlane.xlu0 %2812
        %v2814 = vsub.f32 %v2806, %v2813
        %v2815 = vmul.f32 %v2814, 1.442695
        %v2816 = vpow.pop %v2815
        %v2817 = vsel %vm2048, %v2816, 0.0
        %2818 = vadd.xlane.f32.xlu0 %v2817
        %v2819 = vpop.xlane.xlu0 %2818
        %v2820 = vrcp.pop %v2819
        %v2821 = vmul.f32 %v2816, %v2820
        %v2822 = vpack.c.bf16 %v2821, %v2821
        %2824 = vrot.lane.b32.xlu0 %v2000, 64
        %v2825 = vpop.permute.xlu0 %2824
        %v2827 = vsel %vm2048, %v2822, 0
        %v2830 = vsel %vm2064, %v2825, 0
        %2832 = vmatprep.subr.bf16.mxu0 0
        %2833 = vmatpush1.bf16.msra.mxu0 %v2830
        %2834 = vmatprep.subr.bf16.mxu0 0
        %2835 = vmatpush1.bf16.msra.mxu0 0
        %2836 = vmatprep.subr.bf16.mxu0 0
        %2837 = vmatpush1.bf16.msra.mxu0 0
        %2838 = vmatprep.subr.bf16.mxu0 0
        %2839 = vmatpush1.bf16.msra.mxu0 0
        %2840 = vmatprep.subr.bf16.mxu0 0
        %2841 = vmatpush1.bf16.msra.mxu0 0
        %2842 = vmatprep.subr.bf16.mxu0 0
        %2843 = vmatpush1.bf16.msra.mxu0 0
        %2844 = vmatprep.subr.bf16.mxu0 0
        %2845 = vmatpush1.bf16.msra.mxu0 0
        %2846 = vmatprep.subr.bf16.mxu0 0
        %2847 = vmatpush1.bf16.msra.mxu0 0
        %2848 = vmatprep.subr.bf16.mxu0 0
        %2849 = vmatpush1.bf16.msra.mxu0 0
        %2850 = vmatprep.subr.bf16.mxu0 0
        %2851 = vmatpush1.bf16.msra.mxu0 0
        %2852 = vmatprep.subr.bf16.mxu0 0
        %2853 = vmatpush1.bf16.msra.mxu0 0
        %2854 = vmatprep.subr.bf16.mxu0 0
        %2855 = vmatpush1.bf16.msra.mxu0 0
        %2856 = vmatprep.subr.bf16.mxu0 0
        %2857 = vmatpush1.bf16.msra.mxu0 0
        %2858 = vmatprep.subr.bf16.mxu0 0
        %2859 = vmatpush1.bf16.msra.mxu0 0
        %2860 = vmatprep.subr.bf16.mxu0 0
        %2861 = vmatpush1.bf16.msra.mxu0 0
        %2862 = vmatprep.subr.bf16.mxu0 0
        %2863 = vmatpush1.bf16.msra.mxu0 0
        %2864 = vmatprep.mubr.bf16.mxu0 0
        %2865 = vmatmul.mubr.bf16.gmra.mrb[0].mxu0 %v2827
        %v2866 = vpop.f32.mrb[0].mxu0
        %v2867 = vadd.f32 0.0, %v2866
        %v2868 = vpop.f32.mrb[0].mxu0
        %v2869 = vpop.f32.mrb[0].mxu0
        %v2870 = vpop.f32.mrb[0].mxu0
        %2871 = vdwg.mxu0
        %2873 = vrot.lane.b32.xlu0 %v2216, 64
        %v2874 = vpop.permute.xlu0 %2873
        %2877 = vrot.lane.b32.xlu0 %v2433, 64
        %v2878 = vpop.permute.xlu0 %2877
        %2881 = vrot.lane.b32.xlu0 %v2650, 64
        %v2882 = vpop.permute.xlu0 %2881
        %2885 = vrot.lane.b32.xlu0 %v2867, 64
        %v2886 = vpop.permute.xlu0 %2885
        %v2888 = vsel %vm2001, %v2103, %v2874
        %v2889 = vsel %vm2001, %v2320, %v2878
        %v2890 = vsel %vm2001, %v2537, %v2882
        %v2891 = vsel %vm2001, %v2754, %v2886
        %v2892 = vpack.c.bf16 %v1985, %v1985
        %v2893 = vpack.c.bf16 %v1986, %v1986
        %v2894 = vpack.c.bf16 %v1987, %v1987
        %v2895 = vpack.c.bf16 %v1988, %v1988
        %v2896 = vpack.c.bf16 %v1973, %v1973
        %v2897 = vpack.c.bf16 %v1974, %v1974
        %v2898 = vpack.c.bf16 %v1975, %v1975
        %v2899 = vpack.c.bf16 %v1976, %v1976
        %v2900 = vpack.c.bf16 %v1977, %v1977
        %v2901 = vpack.c.bf16 %v1978, %v1978
        %v2902 = vpack.c.bf16 %v1979, %v1979
        %v2903 = vpack.c.bf16 %v1980, %v1980
        %v2905 = vsel %vm2001, %v2892, 0
        %v2908 = vsel %vm2001, %v2896, 0
        %2910 = vmatprep.subr.bf16.mxu0 0
        %2911 = vmatpush1.bf16.xpose.msra.mxu0 %v2908
        %2912 = vmatprep.subr.bf16.mxu0 0
        %2913 = vmatpush1.bf16.xpose.msra.mxu0 0
        %2914 = vmatprep.subr.bf16.mxu0 0
        %2915 = vmatpush1.bf16.xpose.msra.mxu0 0
        %2916 = vmatprep.subr.bf16.mxu0 0
        %2917 = vmatpush1.bf16.xpose.msra.mxu0 0
        %2918 = vmatprep.subr.bf16.mxu0 0
        %2919 = vmatpush1.bf16.xpose.msra.mxu0 0
        %2920 = vmatprep.subr.bf16.mxu0 0
        %2921 = vmatpush1.bf16.xpose.msra.mxu0 0
        %2922 = vmatprep.subr.bf16.mxu0 0
        %2923 = vmatpush1.bf16.xpose.msra.mxu0 0
        %2924 = vmatprep.subr.bf16.mxu0 0
        %2925 = vmatpush1.bf16.xpose.msra.mxu0 0
        %2926 = vmatprep.subr.bf16.mxu0 0
        %2927 = vmatpush1.bf16.xpose.msra.mxu0 0
        %2928 = vmatprep.subr.bf16.mxu0 0
        %2929 = vmatpush1.bf16.xpose.msra.mxu0 0
        %2930 = vmatprep.subr.bf16.mxu0 0
        %2931 = vmatpush1.bf16.xpose.msra.mxu0 0
        %2932 = vmatprep.subr.bf16.mxu0 0
        %2933 = vmatpush1.bf16.xpose.msra.mxu0 0
        %2934 = vmatprep.subr.bf16.mxu0 0
        %2935 = vmatpush1.bf16.xpose.msra.mxu0 0
        %2936 = vmatprep.subr.bf16.mxu0 0
        %2937 = vmatpush1.bf16.xpose.msra.mxu0 0
        %2938 = vmatprep.subr.bf16.mxu0 0
        %2939 = vmatpush1.bf16.xpose.msra.mxu0 0
        %2940 = vmatprep.subr.bf16.mxu0 0
        %2941 = vmatpush1.bf16.xpose.msra.mxu0 0
        %2942 = vmatprep.mubr.bf16.mxu0 0
        %2943 = vmatmul.mubr.bf16.gmra.mrb[0].mxu0 %v2905
        %v2944 = vpop.f32.mrb[0].mxu0
        %v2945 = vadd.f32 0.0, %v2944
        %v2946 = vpop.f32.mrb[0].mxu0
        %v2947 = vpop.f32.mrb[0].mxu0
        %v2948 = vpop.f32.mrb[0].mxu0
        %2949 = vdwg.mxu0
        %v2950 = vsel %vm2048, %v2945, -inf
        %2951 = vmax.xlane.f32.xlu0 %v2950
        %v2952 = vpop.xlane.xlu0 %2951
        %v2953 = vsub.f32 %v2945, %v2952
        %v2954 = vmul.f32 %v2953, 1.442695
        %v2955 = vpow.pop %v2954
        %v2956 = vsel %vm2048, %v2955, 0.0
        %2957 = vadd.xlane.f32.xlu0 %v2956
        %v2958 = vpop.xlane.xlu0 %2957
        %v2959 = vrcp.pop %v2958
        %v2960 = vmul.f32 %v2955, %v2959
        %v2961 = vpack.c.bf16 %v2960, %v2960
        %v2963 = vsel %vm2048, %v2961, 0
        %v2966 = vsel %vm2064, %v2900, 0
        %2968 = vmatprep.subr.bf16.mxu0 0
        %2969 = vmatpush1.bf16.msra.mxu0 %v2966
        %2970 = vmatprep.subr.bf16.mxu0 0
        %2971 = vmatpush1.bf16.msra.mxu0 0
        %2972 = vmatprep.subr.bf16.mxu0 0
        %2973 = vmatpush1.bf16.msra.mxu0 0
        %2974 = vmatprep.subr.bf16.mxu0 0
        %2975 = vmatpush1.bf16.msra.mxu0 0
        %2976 = vmatprep.subr.bf16.mxu0 0
        %2977 = vmatpush1.bf16.msra.mxu0 0
        %2978 = vmatprep.subr.bf16.mxu0 0
        %2979 = vmatpush1.bf16.msra.mxu0 0
        %2980 = vmatprep.subr.bf16.mxu0 0
        %2981 = vmatpush1.bf16.msra.mxu0 0
        %2982 = vmatprep.subr.bf16.mxu0 0
        %2983 = vmatpush1.bf16.msra.mxu0 0
        %2984 = vmatprep.subr.bf16.mxu0 0
        %2985 = vmatpush1.bf16.msra.mxu0 0
        %2986 = vmatprep.subr.bf16.mxu0 0
        %2987 = vmatpush1.bf16.msra.mxu0 0
        %2988 = vmatprep.subr.bf16.mxu0 0
        %2989 = vmatpush1.bf16.msra.mxu0 0
        %2990 = vmatprep.subr.bf16.mxu0 0
        %2991 = vmatpush1.bf16.msra.mxu0 0
        %2992 = vmatprep.subr.bf16.mxu0 0
        %2993 = vmatpush1.bf16.msra.mxu0 0
        %2994 = vmatprep.subr.bf16.mxu0 0
        %2995 = vmatpush1.bf16.msra.mxu0 0
        %2996 = vmatprep.subr.bf16.mxu0 0
        %2997 = vmatpush1.bf16.msra.mxu0 0
        %2998 = vmatprep.subr.bf16.mxu0 0
        %2999 = vmatpush1.bf16.msra.mxu0 0
        %3000 = vmatprep.mubr.bf16.mxu0 0
        %3001 = vmatmul.mubr.bf16.gmra.mrb[0].mxu0 %v2963
        %v3002 = vpop.f32.mrb[0].mxu0
        %v3003 = vadd.f32 0.0, %v3002
        %v3004 = vpop.f32.mrb[0].mxu0
        %v3005 = vpop.f32.mrb[0].mxu0
        %v3006 = vpop.f32.mrb[0].mxu0
        %3007 = vdwg.mxu0
        %3009 = vrot.lane.b32.xlu0 %v2892, 64
        %v3010 = vpop.permute.xlu0 %3009
        %3012 = vrot.lane.b32.xlu0 %v2896, 64
        %v3013 = vpop.permute.xlu0 %3012
        %v3015 = vsel %vm2001, %v3010, 0
        %v3018 = vsel %vm2001, %v3013, 0
        %3020 = vmatprep.subr.bf16.mxu0 0
        %3021 = vmatpush1.bf16.xpose.msra.mxu0 %v3018
        %3022 = vmatprep.subr.bf16.mxu0 0
        %3023 = vmatpush1.bf16.xpose.msra.mxu0 0
        %3024 = vmatprep.subr.bf16.mxu0 0
        %3025 = vmatpush1.bf16.xpose.msra.mxu0 0
        %3026 = vmatprep.subr.bf16.mxu0 0
        %3027 = vmatpush1.bf16.xpose.msra.mxu0 0
        %3028 = vmatprep.subr.bf16.mxu0 0
        %3029 = vmatpush1.bf16.xpose.msra.mxu0 0
        %3030 = vmatprep.subr.bf16.mxu0 0
        %3031 = vmatpush1.bf16.xpose.msra.mxu0 0
        %3032 = vmatprep.subr.bf16.mxu0 0
        %3033 = vmatpush1.bf16.xpose.msra.mxu0 0
        %3034 = vmatprep.subr.bf16.mxu0 0
        %3035 = vmatpush1.bf16.xpose.msra.mxu0 0
        %3036 = vmatprep.subr.bf16.mxu0 0
        %3037 = vmatpush1.bf16.xpose.msra.mxu0 0
        %3038 = vmatprep.subr.bf16.mxu0 0
        %3039 = vmatpush1.bf16.xpose.msra.mxu0 0
        %3040 = vmatprep.subr.bf16.mxu0 0
        %3041 = vmatpush1.bf16.xpose.msra.mxu0 0
        %3042 = vmatprep.subr.bf16.mxu0 0
        %3043 = vmatpush1.bf16.xpose.msra.mxu0 0
        %3044 = vmatprep.subr.bf16.mxu0 0
        %3045 = vmatpush1.bf16.xpose.msra.mxu0 0
        %3046 = vmatprep.subr.bf16.mxu0 0
        %3047 = vmatpush1.bf16.xpose.msra.mxu0 0
        %3048 = vmatprep.subr.bf16.mxu0 0
        %3049 = vmatpush1.bf16.xpose.msra.mxu0 0
        %3050 = vmatprep.subr.bf16.mxu0 0
        %3051 = vmatpush1.bf16.xpose.msra.mxu0 0
        %3052 = vmatprep.mubr.bf16.mxu0 0
        %3053 = vmatmul.mubr.bf16.gmra.mrb[0].mxu0 %v3015
        %v3054 = vpop.f32.mrb[0].mxu0
        %v3055 = vadd.f32 0.0, %v3054
        %v3056 = vpop.f32.mrb[0].mxu0
        %v3057 = vpop.f32.mrb[0].mxu0
        %v3058 = vpop.f32.mrb[0].mxu0
        %3059 = vdwg.mxu0
        %v3060 = vsel %vm2048, %v3055, -inf
        %3061 = vmax.xlane.f32.xlu0 %v3060
        %v3062 = vpop.xlane.xlu0 %3061
        %v3063 = vsub.f32 %v3055, %v3062
        %v3064 = vmul.f32 %v3063, 1.442695
        %v3065 = vpow.pop %v3064
        %v3066 = vsel %vm2048, %v3065, 0.0
        %3067 = vadd.xlane.f32.xlu0 %v3066
        %v3068 = vpop.xlane.xlu0 %3067
        %v3069 = vrcp.pop %v3068
        %v3070 = vmul.f32 %v3065, %v3069
        %v3071 = vpack.c.bf16 %v3070, %v3070
        %3073 = vrot.lane.b32.xlu0 %v2900, 64
        %v3074 = vpop.permute.xlu0 %3073
        %v3076 = vsel %vm2048, %v3071, 0
        %v3079 = vsel %vm2064, %v3074, 0
        %3081 = vmatprep.subr.bf16.mxu0 0
        %3082 = vmatpush1.bf16.msra.mxu0 %v3079
        %3083 = vmatprep.subr.bf16.mxu0 0
        %3084 = vmatpush1.bf16.msra.mxu0 0
        %3085 = vmatprep.subr.bf16.mxu0 0
        %3086 = vmatpush1.bf16.msra.mxu0 0
        %3087 = vmatprep.subr.bf16.mxu0 0
        %3088 = vmatpush1.bf16.msra.mxu0 0
        %3089 = vmatprep.subr.bf16.mxu0 0
        %3090 = vmatpush1.bf16.msra.mxu0 0
        %3091 = vmatprep.subr.bf16.mxu0 0
        %3092 = vmatpush1.bf16.msra.mxu0 0
        %3093 = vmatprep.subr.bf16.mxu0 0
        %3094 = vmatpush1.bf16.msra.mxu0 0
        %3095 = vmatprep.subr.bf16.mxu0 0
        %3096 = vmatpush1.bf16.msra.mxu0 0
        %3097 = vmatprep.subr.bf16.mxu0 0
        %3098 = vmatpush1.bf16.msra.mxu0 0
        %3099 = vmatprep.subr.bf16.mxu0 0
        %3100 = vmatpush1.bf16.msra.mxu0 0
        %3101 = vmatprep.subr.bf16.mxu0 0
        %3102 = vmatpush1.bf16.msra.mxu0 0
        %3103 = vmatprep.subr.bf16.mxu0 0
        %3104 = vmatpush1.bf16.msra.mxu0 0
        %3105 = vmatprep.subr.bf16.mxu0 0
        %3106 = vmatpush1.bf16.msra.mxu0 0
        %3107 = vmatprep.subr.bf16.mxu0 0
        %3108 = vmatpush1.bf16.msra.mxu0 0
        %3109 = vmatprep.subr.bf16.mxu0 0
        %3110 = vmatpush1.bf16.msra.mxu0 0
        %3111 = vmatprep.subr.bf16.mxu0 0
        %3112 = vmatpush1.bf16.msra.mxu0 0
        %3113 = vmatprep.mubr.bf16.mxu0 0
        %3114 = vmatmul.mubr.bf16.gmra.mrb[0].mxu0 %v3076
        %v3115 = vpop.f32.mrb[0].mxu0
        %v3116 = vadd.f32 0.0, %v3115
        %v3117 = vpop.f32.mrb[0].mxu0
        %v3118 = vpop.f32.mrb[0].mxu0
        %v3119 = vpop.f32.mrb[0].mxu0
        %3120 = vdwg.mxu0
        %v3122 = vsel %vm2001, %v2893, 0
        %v3125 = vsel %vm2001, %v2897, 0
        %3127 = vmatprep.subr.bf16.mxu0 0
        %3128 = vmatpush1.bf16.xpose.msra.mxu0 %v3125
        %3129 = vmatprep.subr.bf16.mxu0 0
        %3130 = vmatpush1.bf16.xpose.msra.mxu0 0
        %3131 = vmatprep.subr.bf16.mxu0 0
        %3132 = vmatpush1.bf16.xpose.msra.mxu0 0
        %3133 = vmatprep.subr.bf16.mxu0 0
        %3134 = vmatpush1.bf16.xpose.msra.mxu0 0
        %3135 = vmatprep.subr.bf16.mxu0 0
        %3136 = vmatpush1.bf16.xpose.msra.mxu0 0
        %3137 = vmatprep.subr.bf16.mxu0 0
        %3138 = vmatpush1.bf16.xpose.msra.mxu0 0
        %3139 = vmatprep.subr.bf16.mxu0 0
        %3140 = vmatpush1.bf16.xpose.msra.mxu0 0
        %3141 = vmatprep.subr.bf16.mxu0 0
        %3142 = vmatpush1.bf16.xpose.msra.mxu0 0
        %3143 = vmatprep.subr.bf16.mxu0 0
        %3144 = vmatpush1.bf16.xpose.msra.mxu0 0
        %3145 = vmatprep.subr.bf16.mxu0 0
        %3146 = vmatpush1.bf16.xpose.msra.mxu0 0
        %3147 = vmatprep.subr.bf16.mxu0 0
        %3148 = vmatpush1.bf16.xpose.msra.mxu0 0
        %3149 = vmatprep.subr.bf16.mxu0 0
        %3150 = vmatpush1.bf16.xpose.msra.mxu0 0
        %3151 = vmatprep.subr.bf16.mxu0 0
        %3152 = vmatpush1.bf16.xpose.msra.mxu0 0
        %3153 = vmatprep.subr.bf16.mxu0 0
        %3154 = vmatpush1.bf16.xpose.msra.mxu0 0
        %3155 = vmatprep.subr.bf16.mxu0 0
        %3156 = vmatpush1.bf16.xpose.msra.mxu0 0
        %3157 = vmatprep.subr.bf16.mxu0 0
        %3158 = vmatpush1.bf16.xpose.msra.mxu0 0
        %3159 = vmatprep.mubr.bf16.mxu0 0
        %3160 = vmatmul.mubr.bf16.gmra.mrb[0].mxu0 %v3122
        %v3161 = vpop.f32.mrb[0].mxu0
        %v3162 = vadd.f32 0.0, %v3161
        %v3163 = vpop.f32.mrb[0].mxu0
        %v3164 = vpop.f32.mrb[0].mxu0
        %v3165 = vpop.f32.mrb[0].mxu0
        %3166 = vdwg.mxu0
        %v3167 = vsel %vm2048, %v3162, -inf
        %3168 = vmax.xlane.f32.xlu0 %v3167
        %v3169 = vpop.xlane.xlu0 %3168
        %v3170 = vsub.f32 %v3162, %v3169
        %v3171 = vmul.f32 %v3170, 1.442695
        %v3172 = vpow.pop %v3171
        %v3173 = vsel %vm2048, %v3172, 0.0
        %3174 = vadd.xlane.f32.xlu0 %v3173
        %v3175 = vpop.xlane.xlu0 %3174
        %v3176 = vrcp.pop %v3175
        %v3177 = vmul.f32 %v3172, %v3176
        %v3178 = vpack.c.bf16 %v3177, %v3177
        %v3180 = vsel %vm2048, %v3178, 0
        %v3183 = vsel %vm2064, %v2901, 0
        %3185 = vmatprep.subr.bf16.mxu0 0
        %3186 = vmatpush1.bf16.msra.mxu0 %v3183
        %3187 = vmatprep.subr.bf16.mxu0 0
        %3188 = vmatpush1.bf16.msra.mxu0 0
        %3189 = vmatprep.subr.bf16.mxu0 0
        %3190 = vmatpush1.bf16.msra.mxu0 0
        %3191 = vmatprep.subr.bf16.mxu0 0
        %3192 = vmatpush1.bf16.msra.mxu0 0
        %3193 = vmatprep.subr.bf16.mxu0 0
        %3194 = vmatpush1.bf16.msra.mxu0 0
        %3195 = vmatprep.subr.bf16.mxu0 0
        %3196 = vmatpush1.bf16.msra.mxu0 0
        %3197 = vmatprep.subr.bf16.mxu0 0
        %3198 = vmatpush1.bf16.msra.mxu0 0
        %3199 = vmatprep.subr.bf16.mxu0 0
        %3200 = vmatpush1.bf16.msra.mxu0 0
        %3201 = vmatprep.subr.bf16.mxu0 0
        %3202 = vmatpush1.bf16.msra.mxu0 0
        %3203 = vmatprep.subr.bf16.mxu0 0
        %3204 = vmatpush1.bf16.msra.mxu0 0
        %3205 = vmatprep.subr.bf16.mxu0 0
        %3206 = vmatpush1.bf16.msra.mxu0 0
        %3207 = vmatprep.subr.bf16.mxu0 0
        %3208 = vmatpush1.bf16.msra.mxu0 0
        %3209 = vmatprep.subr.bf16.mxu0 0
        %3210 = vmatpush1.bf16.msra.mxu0 0
        %3211 = vmatprep.subr.bf16.mxu0 0
        %3212 = vmatpush1.bf16.msra.mxu0 0
        %3213 = vmatprep.subr.bf16.mxu0 0
        %3214 = vmatpush1.bf16.msra.mxu0 0
        %3215 = vmatprep.subr.bf16.mxu0 0
        %3216 = vmatpush1.bf16.msra.mxu0 0
        %3217 = vmatprep.mubr.bf16.mxu0 0
        %3218 = vmatmul.mubr.bf16.gmra.mrb[0].mxu0 %v3180
        %v3219 = vpop.f32.mrb[0].mxu0
        %v3220 = vadd.f32 0.0, %v3219
        %v3221 = vpop.f32.mrb[0].mxu0
        %v3222 = vpop.f32.mrb[0].mxu0
        %v3223 = vpop.f32.mrb[0].mxu0
        %3224 = vdwg.mxu0
        %3226 = vrot.lane.b32.xlu0 %v2893, 64
        %v3227 = vpop.permute.xlu0 %3226
        %3229 = vrot.lane.b32.xlu0 %v2897, 64
        %v3230 = vpop.permute.xlu0 %3229
        %v3232 = vsel %vm2001, %v3227, 0
        %v3235 = vsel %vm2001, %v3230, 0
        %3237 = vmatprep.subr.bf16.mxu0 0
        %3238 = vmatpush1.bf16.xpose.msra.mxu0 %v3235
        %3239 = vmatprep.subr.bf16.mxu0 0
        %3240 = vmatpush1.bf16.xpose.msra.mxu0 0
        %3241 = vmatprep.subr.bf16.mxu0 0
        %3242 = vmatpush1.bf16.xpose.msra.mxu0 0
        %3243 = vmatprep.subr.bf16.mxu0 0
        %3244 = vmatpush1.bf16.xpose.msra.mxu0 0
        %3245 = vmatprep.subr.bf16.mxu0 0
        %3246 = vmatpush1.bf16.xpose.msra.mxu0 0
        %3247 = vmatprep.subr.bf16.mxu0 0
        %3248 = vmatpush1.bf16.xpose.msra.mxu0 0
        %3249 = vmatprep.subr.bf16.mxu0 0
        %3250 = vmatpush1.bf16.xpose.msra.mxu0 0
        %3251 = vmatprep.subr.bf16.mxu0 0
        %3252 = vmatpush1.bf16.xpose.msra.mxu0 0
        %3253 = vmatprep.subr.bf16.mxu0 0
        %3254 = vmatpush1.bf16.xpose.msra.mxu0 0
        %3255 = vmatprep.subr.bf16.mxu0 0
        %3256 = vmatpush1.bf16.xpose.msra.mxu0 0
        %3257 = vmatprep.subr.bf16.mxu0 0
        %3258 = vmatpush1.bf16.xpose.msra.mxu0 0
        %3259 = vmatprep.subr.bf16.mxu0 0
        %3260 = vmatpush1.bf16.xpose.msra.mxu0 0
        %3261 = vmatprep.subr.bf16.mxu0 0
        %3262 = vmatpush1.bf16.xpose.msra.mxu0 0
        %3263 = vmatprep.subr.bf16.mxu0 0
        %3264 = vmatpush1.bf16.xpose.msra.mxu0 0
        %3265 = vmatprep.subr.bf16.mxu0 0
        %3266 = vmatpush1.bf16.xpose.msra.mxu0 0
        %3267 = vmatprep.subr.bf16.mxu0 0
        %3268 = vmatpush1.bf16.xpose.msra.mxu0 0
        %3269 = vmatprep.mubr.bf16.mxu0 0
        %3270 = vmatmul.mubr.bf16.gmra.mrb[0].mxu0 %v3232
        %v3271 = vpop.f32.mrb[0].mxu0
        %v3272 = vadd.f32 0.0, %v3271
        %v3273 = vpop.f32.mrb[0].mxu0
        %v3274 = vpop.f32.mrb[0].mxu0
        %v3275 = vpop.f32.mrb[0].mxu0
        %3276 = vdwg.mxu0
        %v3277 = vsel %vm2048, %v3272, -inf
        %3278 = vmax.xlane.f32.xlu0 %v3277
        %v3279 = vpop.xlane.xlu0 %3278
        %v3280 = vsub.f32 %v3272, %v3279
        %v3281 = vmul.f32 %v3280, 1.442695
        %v3282 = vpow.pop %v3281
        %v3283 = vsel %vm2048, %v3282, 0.0
        %3284 = vadd.xlane.f32.xlu0 %v3283
        %v3285 = vpop.xlane.xlu0 %3284
        %v3286 = vrcp.pop %v3285
        %v3287 = vmul.f32 %v3282, %v3286
        %v3288 = vpack.c.bf16 %v3287, %v3287
        %3290 = vrot.lane.b32.xlu0 %v2901, 64
        %v3291 = vpop.permute.xlu0 %3290
        %v3293 = vsel %vm2048, %v3288, 0
        %v3296 = vsel %vm2064, %v3291, 0
        %3298 = vmatprep.subr.bf16.mxu0 0
        %3299 = vmatpush1.bf16.msra.mxu0 %v3296
        %3300 = vmatprep.subr.bf16.mxu0 0
        %3301 = vmatpush1.bf16.msra.mxu0 0
        %3302 = vmatprep.subr.bf16.mxu0 0
        %3303 = vmatpush1.bf16.msra.mxu0 0
        %3304 = vmatprep.subr.bf16.mxu0 0
        %3305 = vmatpush1.bf16.msra.mxu0 0
        %3306 = vmatprep.subr.bf16.mxu0 0
        %3307 = vmatpush1.bf16.msra.mxu0 0
        %3308 = vmatprep.subr.bf16.mxu0 0
        %3309 = vmatpush1.bf16.msra.mxu0 0
        %3310 = vmatprep.subr.bf16.mxu0 0
        %3311 = vmatpush1.bf16.msra.mxu0 0
        %3312 = vmatprep.subr.bf16.mxu0 0
        %3313 = vmatpush1.bf16.msra.mxu0 0
        %3314 = vmatprep.subr.bf16.mxu0 0
        %3315 = vmatpush1.bf16.msra.mxu0 0
        %3316 = vmatprep.subr.bf16.mxu0 0
        %3317 = vmatpush1.bf16.msra.mxu0 0
        %3318 = vmatprep.subr.bf16.mxu0 0
        %3319 = vmatpush1.bf16.msra.mxu0 0
        %3320 = vmatprep.subr.bf16.mxu0 0
        %3321 = vmatpush1.bf16.msra.mxu0 0
        %3322 = vmatprep.subr.bf16.mxu0 0
        %3323 = vmatpush1.bf16.msra.mxu0 0
        %3324 = vmatprep.subr.bf16.mxu0 0
        %3325 = vmatpush1.bf16.msra.mxu0 0
        %3326 = vmatprep.subr.bf16.mxu0 0
        %3327 = vmatpush1.bf16.msra.mxu0 0
        %3328 = vmatprep.subr.bf16.mxu0 0
        %3329 = vmatpush1.bf16.msra.mxu0 0
        %3330 = vmatprep.mubr.bf16.mxu0 0
        %3331 = vmatmul.mubr.bf16.gmra.mrb[0].mxu0 %v3293
        %v3332 = vpop.f32.mrb[0].mxu0
        %v3333 = vadd.f32 0.0, %v3332
        %v3334 = vpop.f32.mrb[0].mxu0
        %v3335 = vpop.f32.mrb[0].mxu0
        %v3336 = vpop.f32.mrb[0].mxu0
        %3337 = vdwg.mxu0
        %v3339 = vsel %vm2001, %v2894, 0
        %v3342 = vsel %vm2001, %v2898, 0
        %3344 = vmatprep.subr.bf16.mxu0 0
        %3345 = vmatpush1.bf16.xpose.msra.mxu0 %v3342
        %3346 = vmatprep.subr.bf16.mxu0 0
        %3347 = vmatpush1.bf16.xpose.msra.mxu0 0
        %3348 = vmatprep.subr.bf16.mxu0 0
        %3349 = vmatpush1.bf16.xpose.msra.mxu0 0
        %3350 = vmatprep.subr.bf16.mxu0 0
        %3351 = vmatpush1.bf16.xpose.msra.mxu0 0
        %3352 = vmatprep.subr.bf16.mxu0 0
        %3353 = vmatpush1.bf16.xpose.msra.mxu0 0
        %3354 = vmatprep.subr.bf16.mxu0 0
        %3355 = vmatpush1.bf16.xpose.msra.mxu0 0
        %3356 = vmatprep.subr.bf16.mxu0 0
        %3357 = vmatpush1.bf16.xpose.msra.mxu0 0
        %3358 = vmatprep.subr.bf16.mxu0 0
        %3359 = vmatpush1.bf16.xpose.msra.mxu0 0
        %3360 = vmatprep.subr.bf16.mxu0 0
        %3361 = vmatpush1.bf16.xpose.msra.mxu0 0
        %3362 = vmatprep.subr.bf16.mxu0 0
        %3363 = vmatpush1.bf16.xpose.msra.mxu0 0
        %3364 = vmatprep.subr.bf16.mxu0 0
        %3365 = vmatpush1.bf16.xpose.msra.mxu0 0
        %3366 = vmatprep.subr.bf16.mxu0 0
        %3367 = vmatpush1.bf16.xpose.msra.mxu0 0
        %3368 = vmatprep.subr.bf16.mxu0 0
        %3369 = vmatpush1.bf16.xpose.msra.mxu0 0
        %3370 = vmatprep.subr.bf16.mxu0 0
        %3371 = vmatpush1.bf16.xpose.msra.mxu0 0
        %3372 = vmatprep.subr.bf16.mxu0 0
        %3373 = vmatpush1.bf16.xpose.msra.mxu0 0
        %3374 = vmatprep.subr.bf16.mxu0 0
        %3375 = vmatpush1.bf16.xpose.msra.mxu0 0
        %3376 = vmatprep.mubr.bf16.mxu0 0
        %3377 = vmatmul.mubr.bf16.gmra.mrb[0].mxu0 %v3339
        %v3378 = vpop.f32.mrb[0].mxu0
        %v3379 = vadd.f32 0.0, %v3378
        %v3380 = vpop.f32.mrb[0].mxu0
        %v3381 = vpop.f32.mrb[0].mxu0
        %v3382 = vpop.f32.mrb[0].mxu0
        %3383 = vdwg.mxu0
        %v3384 = vsel %vm2048, %v3379, -inf
        %3385 = vmax.xlane.f32.xlu0 %v3384
        %v3386 = vpop.xlane.xlu0 %3385
        %v3387 = vsub.f32 %v3379, %v3386
        %v3388 = vmul.f32 %v3387, 1.442695
        %v3389 = vpow.pop %v3388
        %v3390 = vsel %vm2048, %v3389, 0.0
        %3391 = vadd.xlane.f32.xlu0 %v3390
        %v3392 = vpop.xlane.xlu0 %3391
        %v3393 = vrcp.pop %v3392
        %v3394 = vmul.f32 %v3389, %v3393
        %v3395 = vpack.c.bf16 %v3394, %v3394
        %v3397 = vsel %vm2048, %v3395, 0
        %v3400 = vsel %vm2064, %v2902, 0
        %3402 = vmatprep.subr.bf16.mxu0 0
        %3403 = vmatpush1.bf16.msra.mxu0 %v3400
        %3404 = vmatprep.subr.bf16.mxu0 0
        %3405 = vmatpush1.bf16.msra.mxu0 0
        %3406 = vmatprep.subr.bf16.mxu0 0
        %3407 = vmatpush1.bf16.msra.mxu0 0
        %3408 = vmatprep.subr.bf16.mxu0 0
        %3409 = vmatpush1.bf16.msra.mxu0 0
        %3410 = vmatprep.subr.bf16.mxu0 0
        %3411 = vmatpush1.bf16.msra.mxu0 0
        %3412 = vmatprep.subr.bf16.mxu0 0
        %3413 = vmatpush1.bf16.msra.mxu0 0
        %3414 = vmatprep.subr.bf16.mxu0 0
        %3415 = vmatpush1.bf16.msra.mxu0 0
        %3416 = vmatprep.subr.bf16.mxu0 0
        %3417 = vmatpush1.bf16.msra.mxu0 0
        %3418 = vmatprep.subr.bf16.mxu0 0
        %3419 = vmatpush1.bf16.msra.mxu0 0
        %3420 = vmatprep.subr.bf16.mxu0 0
        %3421 = vmatpush1.bf16.msra.mxu0 0
        %3422 = vmatprep.subr.bf16.mxu0 0
        %3423 = vmatpush1.bf16.msra.mxu0 0
        %3424 = vmatprep.subr.bf16.mxu0 0
        %3425 = vmatpush1.bf16.msra.mxu0 0
        %3426 = vmatprep.subr.bf16.mxu0 0
        %3427 = vmatpush1.bf16.msra.mxu0 0
        %3428 = vmatprep.subr.bf16.mxu0 0
        %3429 = vmatpush1.bf16.msra.mxu0 0
        %3430 = vmatprep.subr.bf16.mxu0 0
        %3431 = vmatpush1.bf16.msra.mxu0 0
        %3432 = vmatprep.subr.bf16.mxu0 0
        %3433 = vmatpush1.bf16.msra.mxu0 0
        %3434 = vmatprep.mubr.bf16.mxu0 0
        %3435 = vmatmul.mubr.bf16.gmra.mrb[0].mxu0 %v3397
        %v3436 = vpop.f32.mrb[0].mxu0
        %v3437 = vadd.f32 0.0, %v3436
        %v3438 = vpop.f32.mrb[0].mxu0
        %v3439 = vpop.f32.mrb[0].mxu0
        %v3440 = vpop.f32.mrb[0].mxu0
        %3441 = vdwg.mxu0
        %3443 = vrot.lane.b32.xlu0 %v2894, 64
        %v3444 = vpop.permute.xlu0 %3443
        %3446 = vrot.lane.b32.xlu0 %v2898, 64
        %v3447 = vpop.permute.xlu0 %3446
        %v3449 = vsel %vm2001, %v3444, 0
        %v3452 = vsel %vm2001, %v3447, 0
        %3454 = vmatprep.subr.bf16.mxu0 0
        %3455 = vmatpush1.bf16.xpose.msra.mxu0 %v3452
        %3456 = vmatprep.subr.bf16.mxu0 0
        %3457 = vmatpush1.bf16.xpose.msra.mxu0 0
        %3458 = vmatprep.subr.bf16.mxu0 0
        %3459 = vmatpush1.bf16.xpose.msra.mxu0 0
        %3460 = vmatprep.subr.bf16.mxu0 0
        %3461 = vmatpush1.bf16.xpose.msra.mxu0 0
        %3462 = vmatprep.subr.bf16.mxu0 0
        %3463 = vmatpush1.bf16.xpose.msra.mxu0 0
        %3464 = vmatprep.subr.bf16.mxu0 0
        %3465 = vmatpush1.bf16.xpose.msra.mxu0 0
        %3466 = vmatprep.subr.bf16.mxu0 0
        %3467 = vmatpush1.bf16.xpose.msra.mxu0 0
        %3468 = vmatprep.subr.bf16.mxu0 0
        %3469 = vmatpush1.bf16.xpose.msra.mxu0 0
        %3470 = vmatprep.subr.bf16.mxu0 0
        %3471 = vmatpush1.bf16.xpose.msra.mxu0 0
        %3472 = vmatprep.subr.bf16.mxu0 0
        %3473 = vmatpush1.bf16.xpose.msra.mxu0 0
        %3474 = vmatprep.subr.bf16.mxu0 0
        %3475 = vmatpush1.bf16.xpose.msra.mxu0 0
        %3476 = vmatprep.subr.bf16.mxu0 0
        %3477 = vmatpush1.bf16.xpose.msra.mxu0 0
        %3478 = vmatprep.subr.bf16.mxu0 0
        %3479 = vmatpush1.bf16.xpose.msra.mxu0 0
        %3480 = vmatprep.subr.bf16.mxu0 0
        %3481 = vmatpush1.bf16.xpose.msra.mxu0 0
        %3482 = vmatprep.subr.bf16.mxu0 0
        %3483 = vmatpush1.bf16.xpose.msra.mxu0 0
        %3484 = vmatprep.subr.bf16.mxu0 0
        %3485 = vmatpush1.bf16.xpose.msra.mxu0 0
        %3486 = vmatprep.mubr.bf16.mxu0 0
        %3487 = vmatmul.mubr.bf16.gmra.mrb[0].mxu0 %v3449
        %v3488 = vpop.f32.mrb[0].mxu0
        %v3489 = vadd.f32 0.0, %v3488
        %v3490 = vpop.f32.mrb[0].mxu0
        %v3491 = vpop.f32.mrb[0].mxu0
        %v3492 = vpop.f32.mrb[0].mxu0
        %3493 = vdwg.mxu0
        %v3494 = vsel %vm2048, %v3489, -inf
        %3495 = vmax.xlane.f32.xlu0 %v3494
        %v3496 = vpop.xlane.xlu0 %3495
        %v3497 = vsub.f32 %v3489, %v3496
        %v3498 = vmul.f32 %v3497, 1.442695
        %v3499 = vpow.pop %v3498
        %v3500 = vsel %vm2048, %v3499, 0.0
        %3501 = vadd.xlane.f32.xlu0 %v3500
        %v3502 = vpop.xlane.xlu0 %3501
        %v3503 = vrcp.pop %v3502
        %v3504 = vmul.f32 %v3499, %v3503
        %v3505 = vpack.c.bf16 %v3504, %v3504
        %3507 = vrot.lane.b32.xlu0 %v2902, 64
        %v3508 = vpop.permute.xlu0 %3507
        %v3510 = vsel %vm2048, %v3505, 0
        %v3513 = vsel %vm2064, %v3508, 0
        %3515 = vmatprep.subr.bf16.mxu0 0
        %3516 = vmatpush1.bf16.msra.mxu0 %v3513
        %3517 = vmatprep.subr.bf16.mxu0 0
        %3518 = vmatpush1.bf16.msra.mxu0 0
        %3519 = vmatprep.subr.bf16.mxu0 0
        %3520 = vmatpush1.bf16.msra.mxu0 0
        %3521 = vmatprep.subr.bf16.mxu0 0
        %3522 = vmatpush1.bf16.msra.mxu0 0
        %3523 = vmatprep.subr.bf16.mxu0 0
        %3524 = vmatpush1.bf16.msra.mxu0 0
        %3525 = vmatprep.subr.bf16.mxu0 0
        %3526 = vmatpush1.bf16.msra.mxu0 0
        %3527 = vmatprep.subr.bf16.mxu0 0
        %3528 = vmatpush1.bf16.msra.mxu0 0
        %3529 = vmatprep.subr.bf16.mxu0 0
        %3530 = vmatpush1.bf16.msra.mxu0 0
        %3531 = vmatprep.subr.bf16.mxu0 0
        %3532 = vmatpush1.bf16.msra.mxu0 0
        %3533 = vmatprep.subr.bf16.mxu0 0
        %3534 = vmatpush1.bf16.msra.mxu0 0
        %3535 = vmatprep.subr.bf16.mxu0 0
        %3536 = vmatpush1.bf16.msra.mxu0 0
        %3537 = vmatprep.subr.bf16.mxu0 0
        %3538 = vmatpush1.bf16.msra.mxu0 0
        %3539 = vmatprep.subr.bf16.mxu0 0
        %3540 = vmatpush1.bf16.msra.mxu0 0
        %3541 = vmatprep.subr.bf16.mxu0 0
        %3542 = vmatpush1.bf16.msra.mxu0 0
        %3543 = vmatprep.subr.bf16.mxu0 0
        %3544 = vmatpush1.bf16.msra.mxu0 0
        %3545 = vmatprep.subr.bf16.mxu0 0
        %3546 = vmatpush1.bf16.msra.mxu0 0
        %3547 = vmatprep.mubr.bf16.mxu0 0
        %3548 = vmatmul.mubr.bf16.gmra.mrb[0].mxu0 %v3510
        %v3549 = vpop.f32.mrb[0].mxu0
        %v3550 = vadd.f32 0.0, %v3549
        %v3551 = vpop.f32.mrb[0].mxu0
        %v3552 = vpop.f32.mrb[0].mxu0
        %v3553 = vpop.f32.mrb[0].mxu0
        %3554 = vdwg.mxu0
        %v3556 = vsel %vm2001, %v2895, 0
        %v3559 = vsel %vm2001, %v2899, 0
        %3561 = vmatprep.subr.bf16.mxu0 0
        %3562 = vmatpush1.bf16.xpose.msra.mxu0 %v3559
        %3563 = vmatprep.subr.bf16.mxu0 0
        %3564 = vmatpush1.bf16.xpose.msra.mxu0 0
        %3565 = vmatprep.subr.bf16.mxu0 0
        %3566 = vmatpush1.bf16.xpose.msra.mxu0 0
        %3567 = vmatprep.subr.bf16.mxu0 0
        %3568 = vmatpush1.bf16.xpose.msra.mxu0 0
        %3569 = vmatprep.subr.bf16.mxu0 0
        %3570 = vmatpush1.bf16.xpose.msra.mxu0 0
        %3571 = vmatprep.subr.bf16.mxu0 0
        %3572 = vmatpush1.bf16.xpose.msra.mxu0 0
        %3573 = vmatprep.subr.bf16.mxu0 0
        %3574 = vmatpush1.bf16.xpose.msra.mxu0 0
        %3575 = vmatprep.subr.bf16.mxu0 0
        %3576 = vmatpush1.bf16.xpose.msra.mxu0 0
        %3577 = vmatprep.subr.bf16.mxu0 0
        %3578 = vmatpush1.bf16.xpose.msra.mxu0 0
        %3579 = vmatprep.subr.bf16.mxu0 0
        %3580 = vmatpush1.bf16.xpose.msra.mxu0 0
        %3581 = vmatprep.subr.bf16.mxu0 0
        %3582 = vmatpush1.bf16.xpose.msra.mxu0 0
        %3583 = vmatprep.subr.bf16.mxu0 0
        %3584 = vmatpush1.bf16.xpose.msra.mxu0 0
        %3585 = vmatprep.subr.bf16.mxu0 0
        %3586 = vmatpush1.bf16.xpose.msra.mxu0 0
        %3587 = vmatprep.subr.bf16.mxu0 0
        %3588 = vmatpush1.bf16.xpose.msra.mxu0 0
        %3589 = vmatprep.subr.bf16.mxu0 0
        %3590 = vmatpush1.bf16.xpose.msra.mxu0 0
        %3591 = vmatprep.subr.bf16.mxu0 0
        %3592 = vmatpush1.bf16.xpose.msra.mxu0 0
        %3593 = vmatprep.mubr.bf16.mxu0 0
        %3594 = vmatmul.mubr.bf16.gmra.mrb[0].mxu0 %v3556
        %v3595 = vpop.f32.mrb[0].mxu0
        %v3596 = vadd.f32 0.0, %v3595
        %v3597 = vpop.f32.mrb[0].mxu0
        %v3598 = vpop.f32.mrb[0].mxu0
        %v3599 = vpop.f32.mrb[0].mxu0
        %3600 = vdwg.mxu0
        %v3601 = vsel %vm2048, %v3596, -inf
        %3602 = vmax.xlane.f32.xlu0 %v3601
        %v3603 = vpop.xlane.xlu0 %3602
        %v3604 = vsub.f32 %v3596, %v3603
        %v3605 = vmul.f32 %v3604, 1.442695
        %v3606 = vpow.pop %v3605
        %v3607 = vsel %vm2048, %v3606, 0.0
        %3608 = vadd.xlane.f32.xlu0 %v3607
        %v3609 = vpop.xlane.xlu0 %3608
        %v3610 = vrcp.pop %v3609
        %v3611 = vmul.f32 %v3606, %v3610
        %v3612 = vpack.c.bf16 %v3611, %v3611
        %v3614 = vsel %vm2048, %v3612, 0
        %v3617 = vsel %vm2064, %v2903, 0
        %3619 = vmatprep.subr.bf16.mxu0 0
        %3620 = vmatpush1.bf16.msra.mxu0 %v3617
        %3621 = vmatprep.subr.bf16.mxu0 0
        %3622 = vmatpush1.bf16.msra.mxu0 0
        %3623 = vmatprep.subr.bf16.mxu0 0
        %3624 = vmatpush1.bf16.msra.mxu0 0
        %3625 = vmatprep.subr.bf16.mxu0 0
        %3626 = vmatpush1.bf16.msra.mxu0 0
        %3627 = vmatprep.subr.bf16.mxu0 0
        %3628 = vmatpush1.bf16.msra.mxu0 0
        %3629 = vmatprep.subr.bf16.mxu0 0
        %3630 = vmatpush1.bf16.msra.mxu0 0
        %3631 = vmatprep.subr.bf16.mxu0 0
        %3632 = vmatpush1.bf16.msra.mxu0 0
        %3633 = vmatprep.subr.bf16.mxu0 0
        %3634 = vmatpush1.bf16.msra.mxu0 0
        %3635 = vmatprep.subr.bf16.mxu0 0
        %3636 = vmatpush1.bf16.msra.mxu0 0
        %3637 = vmatprep.subr.bf16.mxu0 0
        %3638 = vmatpush1.bf16.msra.mxu0 0
        %3639 = vmatprep.subr.bf16.mxu0 0
        %3640 = vmatpush1.bf16.msra.mxu0 0
        %3641 = vmatprep.subr.bf16.mxu0 0
        %3642 = vmatpush1.bf16.msra.mxu0 0
        %3643 = vmatprep.subr.bf16.mxu0 0
        %3644 = vmatpush1.bf16.msra.mxu0 0
        %3645 = vmatprep.subr.bf16.mxu0 0
        %3646 = vmatpush1.bf16.msra.mxu0 0
        %3647 = vmatprep.subr.bf16.mxu0 0
        %3648 = vmatpush1.bf16.msra.mxu0 0
        %3649 = vmatprep.subr.bf16.mxu0 0
        %3650 = vmatpush1.bf16.msra.mxu0 0
        %3651 = vmatprep.mubr.bf16.mxu0 0
        %3652 = vmatmul.mubr.bf16.gmra.mrb[0].mxu0 %v3614
        %v3653 = vpop.f32.mrb[0].mxu0
        %v3654 = vadd.f32 0.0, %v3653
        %v3655 = vpop.f32.mrb[0].mxu0
        %v3656 = vpop.f32.mrb[0].mxu0
        %v3657 = vpop.f32.mrb[0].mxu0
        %3658 = vdwg.mxu0
        %3660 = vrot.lane.b32.xlu0 %v2895, 64
        %v3661 = vpop.permute.xlu0 %3660
        %3663 = vrot.lane.b32.xlu0 %v2899, 64
        %v3664 = vpop.permute.xlu0 %3663
        %v3666 = vsel %vm2001, %v3661, 0
        %v3669 = vsel %vm2001, %v3664, 0
        %3671 = vmatprep.subr.bf16.mxu0 0
        %3672 = vmatpush1.bf16.xpose.msra.mxu0 %v3669
        %3673 = vmatprep.subr.bf16.mxu0 0
        %3674 = vmatpush1.bf16.xpose.msra.mxu0 0
        %3675 = vmatprep.subr.bf16.mxu0 0
        %3676 = vmatpush1.bf16.xpose.msra.mxu0 0
        %3677 = vmatprep.subr.bf16.mxu0 0
        %3678 = vmatpush1.bf16.xpose.msra.mxu0 0
        %3679 = vmatprep.subr.bf16.mxu0 0
        %3680 = vmatpush1.bf16.xpose.msra.mxu0 0
        %3681 = vmatprep.subr.bf16.mxu0 0
        %3682 = vmatpush1.bf16.xpose.msra.mxu0 0
        %3683 = vmatprep.subr.bf16.mxu0 0
        %3684 = vmatpush1.bf16.xpose.msra.mxu0 0
        %3685 = vmatprep.subr.bf16.mxu0 0
        %3686 = vmatpush1.bf16.xpose.msra.mxu0 0
        %3687 = vmatprep.subr.bf16.mxu0 0
        %3688 = vmatpush1.bf16.xpose.msra.mxu0 0
        %3689 = vmatprep.subr.bf16.mxu0 0
        %3690 = vmatpush1.bf16.xpose.msra.mxu0 0
        %3691 = vmatprep.subr.bf16.mxu0 0
        %3692 = vmatpush1.bf16.xpose.msra.mxu0 0
        %3693 = vmatprep.subr.bf16.mxu0 0
        %3694 = vmatpush1.bf16.xpose.msra.mxu0 0
        %3695 = vmatprep.subr.bf16.mxu0 0
        %3696 = vmatpush1.bf16.xpose.msra.mxu0 0
        %3697 = vmatprep.subr.bf16.mxu0 0
        %3698 = vmatpush1.bf16.xpose.msra.mxu0 0
        %3699 = vmatprep.subr.bf16.mxu0 0
        %3700 = vmatpush1.bf16.xpose.msra.mxu0 0
        %3701 = vmatprep.subr.bf16.mxu0 0
        %3702 = vmatpush1.bf16.xpose.msra.mxu0 0
        %3703 = vmatprep.mubr.bf16.mxu0 0
        %3704 = vmatmul.mubr.bf16.gmra.mrb[0].mxu0 %v3666
        %v3705 = vpop.f32.mrb[0].mxu0
        %v3706 = vadd.f32 0.0, %v3705
        %v3707 = vpop.f32.mrb[0].mxu0
        %v3708 = vpop.f32.mrb[0].mxu0
        %v3709 = vpop.f32.mrb[0].mxu0
        %3710 = vdwg.mxu0
        %v3711 = vsel %vm2048, %v3706, -inf
        %3712 = vmax.xlane.f32.xlu0 %v3711
        %v3713 = vpop.xlane.xlu0 %3712
        %v3714 = vsub.f32 %v3706, %v3713
        %v3715 = vmul.f32 %v3714, 1.442695
        %v3716 = vpow.pop %v3715
        %v3717 = vsel %vm2048, %v3716, 0.0
        %3718 = vadd.xlane.f32.xlu0 %v3717
        %v3719 = vpop.xlane.xlu0 %3718
        %v3720 = vrcp.pop %v3719
        %v3721 = vmul.f32 %v3716, %v3720
        %v3722 = vpack.c.bf16 %v3721, %v3721
        %3724 = vrot.lane.b32.xlu0 %v2903, 64
        %v3725 = vpop.permute.xlu0 %3724
        %v3727 = vsel %vm2048, %v3722, 0
        %v3730 = vsel %vm2064, %v3725, 0
        %3732 = vmatprep.subr.bf16.mxu0 0
        %3733 = vmatpush1.bf16.msra.mxu0 %v3730
        %3734 = vmatprep.subr.bf16.mxu0 0
        %3735 = vmatpush1.bf16.msra.mxu0 0
        %3736 = vmatprep.subr.bf16.mxu0 0
        %3737 = vmatpush1.bf16.msra.mxu0 0
        %3738 = vmatprep.subr.bf16.mxu0 0
        %3739 = vmatpush1.bf16.msra.mxu0 0
        %3740 = vmatprep.subr.bf16.mxu0 0
        %3741 = vmatpush1.bf16.msra.mxu0 0
        %3742 = vmatprep.subr.bf16.mxu0 0
        %3743 = vmatpush1.bf16.msra.mxu0 0
        %3744 = vmatprep.subr.bf16.mxu0 0
        %3745 = vmatpush1.bf16.msra.mxu0 0
        %3746 = vmatprep.subr.bf16.mxu0 0
        %3747 = vmatpush1.bf16.msra.mxu0 0
        %3748 = vmatprep.subr.bf16.mxu0 0
        %3749 = vmatpush1.bf16.msra.mxu0 0
        %3750 = vmatprep.subr.bf16.mxu0 0
        %3751 = vmatpush1.bf16.msra.mxu0 0
        %3752 = vmatprep.subr.bf16.mxu0 0
        %3753 = vmatpush1.bf16.msra.mxu0 0
        %3754 = vmatprep.subr.bf16.mxu0 0
        %3755 = vmatpush1.bf16.msra.mxu0 0
        %3756 = vmatprep.subr.bf16.mxu0 0
        %3757 = vmatpush1.bf16.msra.mxu0 0
        %3758 = vmatprep.subr.bf16.mxu0 0
        %3759 = vmatpush1.bf16.msra.mxu0 0
        %3760 = vmatprep.subr.bf16.mxu0 0
        %3761 = vmatpush1.bf16.msra.mxu0 0
        %3762 = vmatprep.subr.bf16.mxu0 0
        %3763 = vmatpush1.bf16.msra.mxu0 0
        %3764 = vmatprep.mubr.bf16.mxu0 0
        %3765 = vmatmul.mubr.bf16.gmra.mrb[0].mxu0 %v3727
        %v3766 = vpop.f32.mrb[0].mxu0
        %v3767 = vadd.f32 0.0, %v3766
        %v3768 = vpop.f32.mrb[0].mxu0
        %v3769 = vpop.f32.mrb[0].mxu0
        %v3770 = vpop.f32.mrb[0].mxu0
        %3771 = vdwg.mxu0
        %3773 = vrot.lane.b32.xlu0 %v3116, 64
        %v3774 = vpop.permute.xlu0 %3773
        %3777 = vrot.lane.b32.xlu0 %v3333, 64
        %v3778 = vpop.permute.xlu0 %3777
        %3781 = vrot.lane.b32.xlu0 %v3550, 64
        %v3782 = vpop.permute.xlu0 %3781
        %3785 = vrot.lane.b32.xlu0 %v3767, 64
        %v3786 = vpop.permute.xlu0 %3785
        %v3788 = vsel %vm2001, %v3003, %v3774
        %v3789 = vsel %vm2001, %v3220, %v3778
        %v3790 = vsel %vm2001, %v3437, %v3782
        %v3791 = vsel %vm2001, %v3654, %v3786
        %v3792 = vpack.c.bf16 %v3788, %v2888
        %v3793 = vpack.c.bf16 %v3789, %v2889
        %v3794 = vpack.c.bf16 %v3790, %v2890
        %v3795 = vpack.c.bf16 %v3791, %v2891
        %v3796 = vld [vmem:[%s493 + $0x1c] sm:$0xf]
        %v3797 = vld [vmem:[%s493 + $0x18] sm:$0xf]
        %v3798 = vld [vmem:[%s466] sm:$0xff]
        %v3799 = vld [vmem:[%s466 + $0x8] sm:$0xff]
        %v3800 = vld [vmem:[%s466 + $0x10] sm:$0xff]
        %v3801 = vld [vmem:[%s466 + $0x18] sm:$0xff]
        %v3802 = vld [vmem:[%s466 + $0x20] sm:$0xff]
        %v3803 = vld [vmem:[%s466 + $0x28] sm:$0xff]
        %v3804 = vld [vmem:[%s466 + $0x30] sm:$0xff]
        %v3805 = vld [vmem:[%s466 + $0x38] sm:$0xff]
        %v3806 = vld [vmem:[%s466 + $0x40] sm:$0xff]
        %v3807 = vld [vmem:[%s466 + $0x48] sm:$0xff]
        %v3808 = vld [vmem:[%s466 + $0x50] sm:$0xff]
        %v3809 = vld [vmem:[%s466 + $0x58] sm:$0xff]
        %v3810 = vld [vmem:[%s466 + $0x60] sm:$0xff]
        %v3811 = vld [vmem:[%s466 + $0x68] sm:$0xff]
        %v3812 = vld [vmem:[%s466 + $0x70] sm:$0xff]
        %v3813 = vld [vmem:[%s466 + $0x78] sm:$0xff]
        %v3814 = vld [vmem:[%s466 + $0x80] sm:$0xff]
        %v3815 = vld [vmem:[%s466 + $0x88] sm:$0xff]
        %v3816 = vld [vmem:[%s466 + $0x90] sm:$0xff]
        %v3817 = vld [vmem:[%s466 + $0x98] sm:$0xff]
        %v3818 = vld [vmem:[%s466 + $0xa0] sm:$0xff]
        %v3819 = vld [vmem:[%s466 + $0xa8] sm:$0xff]
        %v3820 = vld [vmem:[%s466 + $0xb0] sm:$0xff]
        %v3821 = vld [vmem:[%s466 + $0xb8] sm:$0xff]
        %v3822 = vld [vmem:[%s466 + $0xc0] sm:$0xff]
        %v3823 = vld [vmem:[%s466 + $0xc8] sm:$0xff]
        %v3824 = vld [vmem:[%s466 + $0xd0] sm:$0xff]
        %v3825 = vld [vmem:[%s466 + $0xd8] sm:$0xff]
        %v3826 = vld [vmem:[%s466 + $0xe0] sm:$0xff]
        %v3827 = vld [vmem:[%s466 + $0xe8] sm:$0xff]
        %v3828 = vld [vmem:[%s466 + $0xf0] sm:$0xff]
        %v3829 = vld [vmem:[%s466 + $0xf8] sm:$0xff]
        %v3830 = vld [vmem:[%s466 + $0x100] sm:$0xff]
        %v3831 = vld [vmem:[%s466 + $0x108] sm:$0xff]
        %v3832 = vld [vmem:[%s466 + $0x110] sm:$0xff]
        %v3833 = vld [vmem:[%s466 + $0x118] sm:$0xff]
        %v3834 = vld [vmem:[%s466 + $0x120] sm:$0xff]
        %v3835 = vld [vmem:[%s466 + $0x128] sm:$0xff]
        %v3836 = vld [vmem:[%s466 + $0x130] sm:$0xff]
        %v3837 = vld [vmem:[%s466 + $0x138] sm:$0xff]
        %v3838 = vld [vmem:[%s466 + $0x140] sm:$0xff]
        %v3839 = vld [vmem:[%s466 + $0x148] sm:$0xff]
        %v3840 = vld [vmem:[%s466 + $0x150] sm:$0xff]
        %v3841 = vld [vmem:[%s466 + $0x158] sm:$0xff]
        %v3842 = vld [vmem:[%s466 + $0x160] sm:$0xff]
        %v3843 = vld [vmem:[%s466 + $0x168] sm:$0xff]
        %v3844 = vld [vmem:[%s466 + $0x170] sm:$0xff]
        %v3845 = vld [vmem:[%s466 + $0x178] sm:$0xff]
        %v3846 = vld [vmem:[%s466 + $0x180] sm:$0xff]
        %v3847 = vld [vmem:[%s466 + $0x188] sm:$0xff]
        %v3848 = vld [vmem:[%s466 + $0x190] sm:$0xff]
        %v3849 = vld [vmem:[%s466 + $0x198] sm:$0xff]
        %v3850 = vld [vmem:[%s466 + $0x1a0] sm:$0xff]
        %v3851 = vld [vmem:[%s466 + $0x1a8] sm:$0xff]
        %v3852 = vld [vmem:[%s466 + $0x1b0] sm:$0xff]
        %v3853 = vld [vmem:[%s466 + $0x1b8] sm:$0xff]
        %v3854 = vld [vmem:[%s466 + $0x1c0] sm:$0xff]
        %v3855 = vld [vmem:[%s466 + $0x1c8] sm:$0xff]
        %v3856 = vld [vmem:[%s466 + $0x1d0] sm:$0xff]
        %v3857 = vld [vmem:[%s466 + $0x1d8] sm:$0xff]
        %v3858 = vld [vmem:[%s466 + $0x1e0] sm:$0xff]
        %v3859 = vld [vmem:[%s466 + $0x1e8] sm:$0xff]
        %v3860 = vld [vmem:[%s466 + $0x1f0] sm:$0xff]
        %v3861 = vld [vmem:[%s466 + $0x1f8] sm:$0xff]
        %v3862 = vunpack.c.l.s8.bf16 %v3798
        %v3863 = vunpack.c.l.s8.bf16 %v3799
        %v3864 = vunpack.c.l.s8.bf16 %v3800
        %v3865 = vunpack.c.l.s8.bf16 %v3801
        %v3866 = vunpack.c.h.s8.bf16 %v3798
        %v3867 = vunpack.c.h.s8.bf16 %v3799
        %v3868 = vunpack.c.h.s8.bf16 %v3800
        %v3869 = vunpack.c.h.s8.bf16 %v3801
        %v3870 = vunpack.c.l.s8.bf16 %v3802
        %v3871 = vunpack.c.l.s8.bf16 %v3803
        %v3872 = vunpack.c.l.s8.bf16 %v3804
        %v3873 = vunpack.c.l.s8.bf16 %v3805
        %v3874 = vunpack.c.h.s8.bf16 %v3802
        %v3875 = vunpack.c.h.s8.bf16 %v3803
        %v3876 = vunpack.c.h.s8.bf16 %v3804
        %v3877 = vunpack.c.h.s8.bf16 %v3805
        %v3878 = vunpack.c.l.s8.bf16 %v3806
        %v3879 = vunpack.c.l.s8.bf16 %v3807
        %v3880 = vunpack.c.l.s8.bf16 %v3808
        %v3881 = vunpack.c.l.s8.bf16 %v3809
        %v3882 = vunpack.c.h.s8.bf16 %v3806
        %v3883 = vunpack.c.h.s8.bf16 %v3807
        %v3884 = vunpack.c.h.s8.bf16 %v3808
        %v3885 = vunpack.c.h.s8.bf16 %v3809
        %v3886 = vunpack.c.l.s8.bf16 %v3810
        %v3887 = vunpack.c.l.s8.bf16 %v3811
        %v3888 = vunpack.c.l.s8.bf16 %v3812
        %v3889 = vunpack.c.l.s8.bf16 %v3813
        %v3890 = vunpack.c.h.s8.bf16 %v3810
        %v3891 = vunpack.c.h.s8.bf16 %v3811
        %v3892 = vunpack.c.h.s8.bf16 %v3812
        %v3893 = vunpack.c.h.s8.bf16 %v3813
        %v3894 = vunpack.c.l.s8.bf16 %v3814
        %v3895 = vunpack.c.l.s8.bf16 %v3815
        %v3896 = vunpack.c.l.s8.bf16 %v3816
        %v3897 = vunpack.c.l.s8.bf16 %v3817
        %v3898 = vunpack.c.h.s8.bf16 %v3814
        %v3899 = vunpack.c.h.s8.bf16 %v3815
        %v3900 = vunpack.c.h.s8.bf16 %v3816
        %v3901 = vunpack.c.h.s8.bf16 %v3817
        %v3902 = vunpack.c.l.s8.bf16 %v3818
        %v3903 = vunpack.c.l.s8.bf16 %v3819
        %v3904 = vunpack.c.l.s8.bf16 %v3820
        %v3905 = vunpack.c.l.s8.bf16 %v3821
        %v3906 = vunpack.c.h.s8.bf16 %v3818
        %v3907 = vunpack.c.h.s8.bf16 %v3819
        %v3908 = vunpack.c.h.s8.bf16 %v3820
        %v3909 = vunpack.c.h.s8.bf16 %v3821
        %v3910 = vunpack.c.l.s8.bf16 %v3822
        %v3911 = vunpack.c.l.s8.bf16 %v3823
        %v3912 = vunpack.c.l.s8.bf16 %v3824
        %v3913 = vunpack.c.l.s8.bf16 %v3825
        %v3914 = vunpack.c.h.s8.bf16 %v3822
        %v3915 = vunpack.c.h.s8.bf16 %v3823
        %v3916 = vunpack.c.h.s8.bf16 %v3824
        %v3917 = vunpack.c.h.s8.bf16 %v3825
        %v3918 = vunpack.c.l.s8.bf16 %v3826
        %v3919 = vunpack.c.l.s8.bf16 %v3827
        %v3920 = vunpack.c.l.s8.bf16 %v3828
        %v3921 = vunpack.c.l.s8.bf16 %v3829
        %v3922 = vunpack.c.h.s8.bf16 %v3826
        %v3923 = vunpack.c.h.s8.bf16 %v3827
        %v3924 = vunpack.c.h.s8.bf16 %v3828
        %v3925 = vunpack.c.h.s8.bf16 %v3829
        %v3926 = vunpack.c.l.s8.bf16 %v3830
        %v3927 = vunpack.c.l.s8.bf16 %v3831
        %v3928 = vunpack.c.l.s8.bf16 %v3832
        %v3929 = vunpack.c.l.s8.bf16 %v3833
        %v3930 = vunpack.c.h.s8.bf16 %v3830
        %v3931 = vunpack.c.h.s8.bf16 %v3831
        %v3932 = vunpack.c.h.s8.bf16 %v3832
        %v3933 = vunpack.c.h.s8.bf16 %v3833
        %v3934 = vunpack.c.l.s8.bf16 %v3834
        %v3935 = vunpack.c.l.s8.bf16 %v3835
        %v3936 = vunpack.c.l.s8.bf16 %v3836
        %v3937 = vunpack.c.l.s8.bf16 %v3837
        %v3938 = vunpack.c.h.s8.bf16 %v3834
        %v3939 = vunpack.c.h.s8.bf16 %v3835
        %v3940 = vunpack.c.h.s8.bf16 %v3836
        %v3941 = vunpack.c.h.s8.bf16 %v3837
        %v3942 = vunpack.c.l.s8.bf16 %v3838
        %v3943 = vunpack.c.l.s8.bf16 %v3839
        %v3944 = vunpack.c.l.s8.bf16 %v3840
        %v3945 = vunpack.c.l.s8.bf16 %v3841
        %v3946 = vunpack.c.h.s8.bf16 %v3838
        %v3947 = vunpack.c.h.s8.bf16 %v3839
        %v3948 = vunpack.c.h.s8.bf16 %v3840
        %v3949 = vunpack.c.h.s8.bf16 %v3841
        %v3950 = vunpack.c.l.s8.bf16 %v3842
        %v3951 = vunpack.c.l.s8.bf16 %v3843
        %v3952 = vunpack.c.l.s8.bf16 %v3844
        %v3953 = vunpack.c.l.s8.bf16 %v3845
        %v3954 = vunpack.c.h.s8.bf16 %v3842
        %v3955 = vunpack.c.h.s8.bf16 %v3843
        %v3956 = vunpack.c.h.s8.bf16 %v3844
        %v3957 = vunpack.c.h.s8.bf16 %v3845
        %v3958 = vunpack.c.l.s8.bf16 %v3846
        %v3959 = vunpack.c.l.s8.bf16 %v3847
        %v3960 = vunpack.c.l.s8.bf16 %v3848
        %v3961 = vunpack.c.l.s8.bf16 %v3849
        %v3962 = vunpack.c.h.s8.bf16 %v3846
        %v3963 = vunpack.c.h.s8.bf16 %v3847
        %v3964 = vunpack.c.h.s8.bf16 %v3848
        %v3965 = vunpack.c.h.s8.bf16 %v3849
        %v3966 = vunpack.c.l.s8.bf16 %v3850
        %v3967 = vunpack.c.l.s8.bf16 %v3851
        %v3968 = vunpack.c.l.s8.bf16 %v3852
        %v3969 = vunpack.c.l.s8.bf16 %v3853
        %v3970 = vunpack.c.h.s8.bf16 %v3850
        %v3971 = vunpack.c.h.s8.bf16 %v3851
        %v3972 = vunpack.c.h.s8.bf16 %v3852
        %v3973 = vunpack.c.h.s8.bf16 %v3853
        %v3974 = vunpack.c.l.s8.bf16 %v3854
        %v3975 = vunpack.c.l.s8.bf16 %v3855
        %v3976 = vunpack.c.l.s8.bf16 %v3856
        %v3977 = vunpack.c.l.s8.bf16 %v3857
        %v3978 = vunpack.c.h.s8.bf16 %v3854
        %v3979 = vunpack.c.h.s8.bf16 %v3855
        %v3980 = vunpack.c.h.s8.bf16 %v3856
        %v3981 = vunpack.c.h.s8.bf16 %v3857
        %v3982 = vunpack.c.l.s8.bf16 %v3858
        %v3983 = vunpack.c.l.s8.bf16 %v3859
        %v3984 = vunpack.c.l.s8.bf16 %v3860
        %v3985 = vunpack.c.l.s8.bf16 %v3861
        %v3986 = vunpack.c.h.s8.bf16 %v3858
        %v3987 = vunpack.c.h.s8.bf16 %v3859
        %v3988 = vunpack.c.h.s8.bf16 %v3860
        %v3989 = vunpack.c.h.s8.bf16 %v3861
        %3990 = vmatprep.subr.bf16.mxu0 %v3863
        %3991 = vmatpush1.bf16.msra.mxu0 %v3862
        %3992 = vmatprep.subr.bf16.mxu0 %v3867
        %3993 = vmatpush1.bf16.msra.mxu0 %v3866
        %3994 = vmatprep.subr.bf16.mxu0 %v3871
        %3995 = vmatpush1.bf16.msra.mxu0 %v3870
        %3996 = vmatprep.subr.bf16.mxu0 %v3875
        %3997 = vmatpush1.bf16.msra.mxu0 %v3874
        %3998 = vmatprep.subr.bf16.mxu0 %v3879
        %3999 = vmatpush1.bf16.msra.mxu0 %v3878
        %4000 = vmatprep.subr.bf16.mxu0 %v3883
        %4001 = vmatpush1.bf16.msra.mxu0 %v3882
        %4002 = vmatprep.subr.bf16.mxu0 %v3887
        %4003 = vmatpush1.bf16.msra.mxu0 %v3886
        %4004 = vmatprep.subr.bf16.mxu0 %v3891
        %4005 = vmatpush1.bf16.msra.mxu0 %v3890
        %4006 = vmatprep.subr.bf16.mxu0 %v3895
        %4007 = vmatpush1.bf16.msra.mxu0 %v3894
        %4008 = vmatprep.subr.bf16.mxu0 %v3899
        %4009 = vmatpush1.bf16.msra.mxu0 %v3898
        %4010 = vmatprep.subr.bf16.mxu0 %v3903
        %4011 = vmatpush1.bf16.msra.mxu0 %v3902
        %4012 = vmatprep.subr.bf16.mxu0 %v3907
        %4013 = vmatpush1.bf16.msra.mxu0 %v3906
        %4014 = vmatprep.subr.bf16.mxu0 %v3911
        %4015 = vmatpush1.bf16.msra.mxu0 %v3910
        %4016 = vmatprep.subr.bf16.mxu0 %v3915
        %4017 = vmatpush1.bf16.msra.mxu0 %v3914
        %4018 = vmatprep.subr.bf16.mxu0 %v3919
        %4019 = vmatpush1.bf16.msra.mxu0 %v3918
        %4020 = vmatprep.subr.bf16.mxu0 %v3923
        %4021 = vmatpush1.bf16.msra.mxu0 %v3922
        %4022 = vmatprep.mubr.bf16.mxu0 %v3793
        %4023 = vmatmul.mubr.bf16.gmra.mrb[0].mxu0 %v3792
        %v4024 = vpop.f32.mrb[0].mxu0
        %v4025 = vadd.f32 0.0, %v4024
        %v4026 = vpop.f32.mrb[0].mxu0
        %v4027 = vadd.f32 0.0, %v4026
        %v4028 = vpop.f32.mrb[0].mxu0
        %v4029 = vadd.f32 0.0, %v4028
        %v4030 = vpop.f32.mrb[0].mxu0
        %v4031 = vadd.f32 0.0, %v4030
        %4032 = vdwg.mxu0
        %4033 = vmatprep.subr.bf16.mxu0 %v3927
        %4034 = vmatpush1.bf16.msra.mxu0 %v3926
        %4035 = vmatprep.subr.bf16.mxu0 %v3931
        %4036 = vmatpush1.bf16.msra.mxu0 %v3930
        %4037 = vmatprep.subr.bf16.mxu0 %v3935
        %4038 = vmatpush1.bf16.msra.mxu0 %v3934
        %4039 = vmatprep.subr.bf16.mxu0 %v3939
        %4040 = vmatpush1.bf16.msra.mxu0 %v3938
        %4041 = vmatprep.subr.bf16.mxu0 %v3943
        %4042 = vmatpush1.bf16.msra.mxu0 %v3942
        %4043 = vmatprep.subr.bf16.mxu0 %v3947
        %4044 = vmatpush1.bf16.msra.mxu0 %v3946
        %4045 = vmatprep.subr.bf16.mxu0 %v3951
        %4046 = vmatpush1.bf16.msra.mxu0 %v3950
        %4047 = vmatprep.subr.bf16.mxu0 %v3955
        %4048 = vmatpush1.bf16.msra.mxu0 %v3954
        %4049 = vmatprep.subr.bf16.mxu0 %v3959
        %4050 = vmatpush1.bf16.msra.mxu0 %v3958
        %4051 = vmatprep.subr.bf16.mxu0 %v3963
        %4052 = vmatpush1.bf16.msra.mxu0 %v3962
        %4053 = vmatprep.subr.bf16.mxu0 %v3967
        %4054 = vmatpush1.bf16.msra.mxu0 %v3966
        %4055 = vmatprep.subr.bf16.mxu0 %v3971
        %4056 = vmatpush1.bf16.msra.mxu0 %v3970
        %4057 = vmatprep.subr.bf16.mxu0 %v3975
        %4058 = vmatpush1.bf16.msra.mxu0 %v3974
        %4059 = vmatprep.subr.bf16.mxu0 %v3979
        %4060 = vmatpush1.bf16.msra.mxu0 %v3978
        %4061 = vmatprep.subr.bf16.mxu0 %v3983
        %4062 = vmatpush1.bf16.msra.mxu0 %v3982
        %4063 = vmatprep.subr.bf16.mxu0 %v3987
        %4064 = vmatpush1.bf16.msra.mxu0 %v3986
        %4065 = vmatprep.mubr.bf16.mxu0 %v3795
        %4066 = vmatmul.mubr.bf16.gmra.mrb[0].mxu0 %v3794
        %v4067 = vpop.f32.mrb[0].mxu0
        %v4068 = vadd.f32 %v4025, %v4067
        %v4069 = vpop.f32.mrb[0].mxu0
        %v4070 = vadd.f32 %v4027, %v4069
        %v4071 = vpop.f32.mrb[0].mxu0
        %v4072 = vadd.f32 %v4029, %v4071
        %v4073 = vpop.f32.mrb[0].mxu0
        %v4074 = vadd.f32 %v4031, %v4073
        %4075 = vdwg.mxu0
        %4076 = vmatprep.subr.bf16.mxu0 %v3865
        %4077 = vmatpush1.bf16.msra.mxu0 %v3864
        %4078 = vmatprep.subr.bf16.mxu0 %v3869
        %4079 = vmatpush1.bf16.msra.mxu0 %v3868
        %4080 = vmatprep.subr.bf16.mxu0 %v3873
        %4081 = vmatpush1.bf16.msra.mxu0 %v3872
        %4082 = vmatprep.subr.bf16.mxu0 %v3877
        %4083 = vmatpush1.bf16.msra.mxu0 %v3876
        %4084 = vmatprep.subr.bf16.mxu0 %v3881
        %4085 = vmatpush1.bf16.msra.mxu0 %v3880
        %4086 = vmatprep.subr.bf16.mxu0 %v3885
        %4087 = vmatpush1.bf16.msra.mxu0 %v3884
        %4088 = vmatprep.subr.bf16.mxu0 %v3889
        %4089 = vmatpush1.bf16.msra.mxu0 %v3888
        %4090 = vmatprep.subr.bf16.mxu0 %v3893
        %4091 = vmatpush1.bf16.msra.mxu0 %v3892
        %4092 = vmatprep.subr.bf16.mxu0 %v3897
        %4093 = vmatpush1.bf16.msra.mxu0 %v3896
        %4094 = vmatprep.subr.bf16.mxu0 %v3901
        %4095 = vmatpush1.bf16.msra.mxu0 %v3900
        %4096 = vmatprep.subr.bf16.mxu0 %v3905
        %4097 = vmatpush1.bf16.msra.mxu0 %v3904
        %4098 = vmatprep.subr.bf16.mxu0 %v3909
        %4099 = vmatpush1.bf16.msra.mxu0 %v3908
        %4100 = vmatprep.subr.bf16.mxu0 %v3913
        %4101 = vmatpush1.bf16.msra.mxu0 %v3912
        %4102 = vmatprep.subr.bf16.mxu0 %v3917
        %4103 = vmatpush1.bf16.msra.mxu0 %v3916
        %4104 = vmatprep.subr.bf16.mxu0 %v3921
        %4105 = vmatpush1.bf16.msra.mxu0 %v3920
        %4106 = vmatprep.subr.bf16.mxu0 %v3925
        %4107 = vmatpush1.bf16.msra.mxu0 %v3924
        %4108 = vmatprep.mubr.bf16.mxu0 %v3793
        %4109 = vmatmul.mubr.bf16.gmra.mrb[0].mxu0 %v3792
        %v4110 = vpop.f32.mrb[0].mxu0
        %v4111 = vadd.f32 0.0, %v4110
        %v4112 = vpop.f32.mrb[0].mxu0
        %v4113 = vadd.f32 0.0, %v4112
        %v4114 = vpop.f32.mrb[0].mxu0
        %v4115 = vadd.f32 0.0, %v4114
        %v4116 = vpop.f32.mrb[0].mxu0
        %v4117 = vadd.f32 0.0, %v4116
        %4118 = vdwg.mxu0
        %4119 = vmatprep.subr.bf16.mxu0 %v3929
        %4120 = vmatpush1.bf16.msra.mxu0 %v3928
        %4121 = vmatprep.subr.bf16.mxu0 %v3933
        %4122 = vmatpush1.bf16.msra.mxu0 %v3932
        %4123 = vmatprep.subr.bf16.mxu0 %v3937
        %4124 = vmatpush1.bf16.msra.mxu0 %v3936
        %4125 = vmatprep.subr.bf16.mxu0 %v3941
        %4126 = vmatpush1.bf16.msra.mxu0 %v3940
        %4127 = vmatprep.subr.bf16.mxu0 %v3945
        %4128 = vmatpush1.bf16.msra.mxu0 %v3944
        %4129 = vmatprep.subr.bf16.mxu0 %v3949
        %4130 = vmatpush1.bf16.msra.mxu0 %v3948
        %4131 = vmatprep.subr.bf16.mxu0 %v3953
        %4132 = vmatpush1.bf16.msra.mxu0 %v3952
        %4133 = vmatprep.subr.bf16.mxu0 %v3957
        %4134 = vmatpush1.bf16.msra.mxu0 %v3956
        %4135 = vmatprep.subr.bf16.mxu0 %v3961
        %4136 = vmatpush1.bf16.msra.mxu0 %v3960
        %4137 = vmatprep.subr.bf16.mxu0 %v3965
        %4138 = vmatpush1.bf16.msra.mxu0 %v3964
        %4139 = vmatprep.subr.bf16.mxu0 %v3969
        %4140 = vmatpush1.bf16.msra.mxu0 %v3968
        %4141 = vmatprep.subr.bf16.mxu0 %v3973
        %4142 = vmatpush1.bf16.msra.mxu0 %v3972
        %4143 = vmatprep.subr.bf16.mxu0 %v3977
        %4144 = vmatpush1.bf16.msra.mxu0 %v3976
        %4145 = vmatprep.subr.bf16.mxu0 %v3981
        %4146 = vmatpush1.bf16.msra.mxu0 %v3980
        %4147 = vmatprep.subr.bf16.mxu0 %v3985
        %4148 = vmatpush1.bf16.msra.mxu0 %v3984
        %4149 = vmatprep.subr.bf16.mxu0 %v3989
        %4150 = vmatpush1.bf16.msra.mxu0 %v3988
        %4151 = vmatprep.mubr.bf16.mxu0 %v3795
        %4152 = vmatmul.mubr.bf16.gmra.mrb[0].mxu0 %v3794
        %v4153 = vpop.f32.mrb[0].mxu0
        %v4154 = vadd.f32 %v4111, %v4153
        %v4155 = vpop.f32.mrb[0].mxu0
        %v4156 = vadd.f32 %v4113, %v4155
        %v4157 = vpop.f32.mrb[0].mxu0
        %v4158 = vadd.f32 %v4115, %v4157
        %v4159 = vpop.f32.mrb[0].mxu0
        %v4160 = vadd.f32 %v4117, %v4159
        %4161 = vdwg.mxu0
        %v4163 = vlaneseq
        %v4164 = vshrl.u32 %v4163, 7
        %v4165 = vsub.s32 0, %v4164
        %v4166 = vrot.slane %v3796, %v4165
        %v4167 = vlaneseq
        %v4168 = vshrl.u32 %v4167, 7
        %v4169 = vsub.s32 1, %v4168
        %v4170 = vrot.slane %v3796, %v4169
        %v4171 = vlaneseq
        %v4172 = vshrl.u32 %v4171, 7
        %v4173 = vsub.s32 2, %v4172
        %v4174 = vrot.slane %v3796, %v4173
        %v4175 = vlaneseq
        %v4176 = vshrl.u32 %v4175, 7
        %v4177 = vsub.s32 3, %v4176
        %v4178 = vrot.slane %v3796, %v4177
        %v4183 = vmul.f32 %v4068, %v4166
        %v4184 = vmul.f32 %v4070, %v4170
        %v4185 = vmul.f32 %v4154, %v4174
        %v4186 = vmul.f32 %v4156, %v4178
        %v4187 = vmul.f32 %v4072, %v4166
        %v4188 = vmul.f32 %v4074, %v4170
        %v4189 = vmul.f32 %v4158, %v4174
        %v4190 = vmul.f32 %v4160, %v4178
        %v4192 = vlaneseq
        %v4193 = vshrl.u32 %v4192, 7
        %v4194 = vsub.s32 0, %v4193
        %v4195 = vrot.slane %v3797, %v4194
        %v4196 = vlaneseq
        %v4197 = vshrl.u32 %v4196, 7
        %v4198 = vsub.s32 1, %v4197
        %v4199 = vrot.slane %v3797, %v4198
        %v4200 = vlaneseq
        %v4201 = vshrl.u32 %v4200, 7
        %v4202 = vsub.s32 2, %v4201
        %v4203 = vrot.slane %v3797, %v4202
        %v4204 = vlaneseq
        %v4205 = vshrl.u32 %v4204, 7
        %v4206 = vsub.s32 3, %v4205
        %v4207 = vrot.slane %v3797, %v4206
        %v4212 = vadd.f32 %v4183, %v4195
        %v4213 = vadd.f32 %v4184, %v4199
        %v4214 = vadd.f32 %v4185, %v4203
        %v4215 = vadd.f32 %v4186, %v4207
        %v4216 = vadd.f32 %v4187, %v4195
        %v4217 = vadd.f32 %v4188, %v4199
        %v4218 = vadd.f32 %v4189, %v4203
        %v4219 = vadd.f32 %v4190, %v4207
        %v4220 = vadd.f32 %v4212, %v701
        %v4221 = vadd.f32 %v4213, %v702
        %v4222 = vadd.f32 %v4214, %v703
        %v4223 = vadd.f32 %v4215, %v704
        %v4224 = vadd.f32 %v4216, %v705
        %v4225 = vadd.f32 %v4217, %v706
        %v4226 = vadd.f32 %v4218, %v707
        %v4227 = vadd.f32 %v4219, %v708
        %v4228 = vld [vmem:[%s493 + $0x20] sm:$0xf]
        %v4229 = vld [vmem:[%s493 + $0x24] sm:$0xf]
        %v4230 = vadd.f32 %v4220, %v4221
        %v4231 = vadd.f32 %v4230, %v4222
        %v4232 = vadd.f32 %v4231, %v4223
        %4233 = vadd.xlane.f32.xlu0 %v4232
        %v4234 = vpop.xlane.xlu0 %4233
        %v4235 = vadd.f32 %v4224, %v4225
        %v4236 = vadd.f32 %v4235, %v4226
        %v4237 = vadd.f32 %v4236, %v4227
        %4238 = vadd.xlane.f32.xlu0 %v4237
        %v4239 = vpop.xlane.xlu0 %4238
        %v4240 = vrcp.pop 512.0
        %v4241 = vmul.f32 %v4234, %v4240
        %v4242 = vmul.f32 %v4239, %v4240
        %v4243 = vsub.f32 %v4220, %v4241
        %v4244 = vsub.f32 %v4221, %v4241
        %v4245 = vsub.f32 %v4222, %v4241
        %v4246 = vsub.f32 %v4223, %v4241
        %v4247 = vsub.f32 %v4224, %v4242
        %v4248 = vsub.f32 %v4225, %v4242
        %v4249 = vsub.f32 %v4226, %v4242
        %v4250 = vsub.f32 %v4227, %v4242
        %v4251 = vmul.f32 %v4243, %v4243
        %v4252 = vmul.f32 %v4244, %v4244
        %v4253 = vmul.f32 %v4245, %v4245
        %v4254 = vmul.f32 %v4246, %v4246
        %v4255 = vmul.f32 %v4247, %v4247
        %v4256 = vmul.f32 %v4248, %v4248
        %v4257 = vmul.f32 %v4249, %v4249
        %v4258 = vmul.f32 %v4250, %v4250
        %v4259 = vadd.f32 %v4251, %v4252
        %v4260 = vadd.f32 %v4259, %v4253
        %v4261 = vadd.f32 %v4260, %v4254
        %4262 = vadd.xlane.f32.xlu0 %v4261
        %v4263 = vpop.xlane.xlu0 %4262
        %v4264 = vadd.f32 %v4255, %v4256
        %v4265 = vadd.f32 %v4264, %v4257
        %v4266 = vadd.f32 %v4265, %v4258
        %4267 = vadd.xlane.f32.xlu0 %v4266
        %v4268 = vpop.xlane.xlu0 %4267
        %v4269 = vmul.f32 %v4263, %v4240
        %v4270 = vmul.f32 %v4268, %v4240
        %v4271 = vadd.f32 %v4269, 1e-05
        %v4272 = vadd.f32 %v4270, 1e-05
        %v4273 = vrsqrt.pop %v4271
        %v4274 = vrsqrt.pop %v4272
        %v4275 = vmul.f32 %v4243, %v4273
        %v4276 = vmul.f32 %v4244, %v4273
        %v4277 = vmul.f32 %v4245, %v4273
        %v4278 = vmul.f32 %v4246, %v4273
        %v4279 = vmul.f32 %v4247, %v4274
        %v4280 = vmul.f32 %v4248, %v4274
        %v4281 = vmul.f32 %v4249, %v4274
        %v4282 = vmul.f32 %v4250, %v4274
        %v4284 = vlaneseq
        %v4285 = vshrl.u32 %v4284, 7
        %v4286 = vsub.s32 0, %v4285
        %v4287 = vrot.slane %v4228, %v4286
        %v4288 = vlaneseq
        %v4289 = vshrl.u32 %v4288, 7
        %v4290 = vsub.s32 1, %v4289
        %v4291 = vrot.slane %v4228, %v4290
        %v4292 = vlaneseq
        %v4293 = vshrl.u32 %v4292, 7
        %v4294 = vsub.s32 2, %v4293
        %v4295 = vrot.slane %v4228, %v4294
        %v4296 = vlaneseq
        %v4297 = vshrl.u32 %v4296, 7
        %v4298 = vsub.s32 3, %v4297
        %v4299 = vrot.slane %v4228, %v4298
        %v4304 = vmul.f32 %v4275, %v4287
        %v4305 = vmul.f32 %v4276, %v4291
        %v4306 = vmul.f32 %v4277, %v4295
        %v4307 = vmul.f32 %v4278, %v4299
        %v4308 = vmul.f32 %v4279, %v4287
        %v4309 = vmul.f32 %v4280, %v4291
        %v4310 = vmul.f32 %v4281, %v4295
        %v4311 = vmul.f32 %v4282, %v4299
        %v4313 = vlaneseq
        %v4314 = vshrl.u32 %v4313, 7
        %v4315 = vsub.s32 0, %v4314
        %v4316 = vrot.slane %v4229, %v4315
        %v4317 = vlaneseq
        %v4318 = vshrl.u32 %v4317, 7
        %v4319 = vsub.s32 1, %v4318
        %v4320 = vrot.slane %v4229, %v4319
        %v4321 = vlaneseq
        %v4322 = vshrl.u32 %v4321, 7
        %v4323 = vsub.s32 2, %v4322
        %v4324 = vrot.slane %v4229, %v4323
        %v4325 = vlaneseq
        %v4326 = vshrl.u32 %v4325, 7
        %v4327 = vsub.s32 3, %v4326
        %v4328 = vrot.slane %v4229, %v4327
        %v4333 = vadd.f32 %v4304, %v4316
        %v4334 = vadd.f32 %v4305, %v4320
        %v4335 = vadd.f32 %v4306, %v4324
        %v4336 = vadd.f32 %v4307, %v4328
        %v4337 = vadd.f32 %v4308, %v4316
        %v4338 = vadd.f32 %v4309, %v4320
        %v4339 = vadd.f32 %v4310, %v4324
        %v4340 = vadd.f32 %v4311, %v4328
        %v4341 = vpack.c.bf16 %v4337, %v4333
        %v4342 = vpack.c.bf16 %v4338, %v4334
        %v4343 = vpack.c.bf16 %v4339, %v4335
        %v4344 = vpack.c.bf16 %v4340, %v4336
        %v4345 = vld [vmem:[%s493 + $0x38] sm:$0xff]
        %v4346 = vld [vmem:[%s493 + $0x40] sm:$0xff]
        %v4347 = vld [vmem:[%s493 + $0x28] sm:$0xff]
        %v4348 = vld [vmem:[%s493 + $0x30] sm:$0xff]
        %v4349 = vld [vmem:[%s475] sm:$0xff]
        %v4350 = vld [vmem:[%s475 + $0x8] sm:$0xff]
        %v4351 = vld [vmem:[%s475 + $0x10] sm:$0xff]
        %v4352 = vld [vmem:[%s475 + $0x18] sm:$0xff]
        %v4353 = vld [vmem:[%s475 + $0x20] sm:$0xff]
        %v4354 = vld [vmem:[%s475 + $0x28] sm:$0xff]
        %v4355 = vld [vmem:[%s475 + $0x30] sm:$0xff]
        %v4356 = vld [vmem:[%s475 + $0x38] sm:$0xff]
        %v4357 = vld [vmem:[%s475 + $0x40] sm:$0xff]
        %v4358 = vld [vmem:[%s475 + $0x48] sm:$0xff]
        %v4359 = vld [vmem:[%s475 + $0x50] sm:$0xff]
        %v4360 = vld [vmem:[%s475 + $0x58] sm:$0xff]
        %v4361 = vld [vmem:[%s475 + $0x60] sm:$0xff]
        %v4362 = vld [vmem:[%s475 + $0x68] sm:$0xff]
        %v4363 = vld [vmem:[%s475 + $0x70] sm:$0xff]
        %v4364 = vld [vmem:[%s475 + $0x78] sm:$0xff]
        %v4365 = vld [vmem:[%s475 + $0x80] sm:$0xff]
        %v4366 = vld [vmem:[%s475 + $0x88] sm:$0xff]
        %v4367 = vld [vmem:[%s475 + $0x90] sm:$0xff]
        %v4368 = vld [vmem:[%s475 + $0x98] sm:$0xff]
        %v4369 = vld [vmem:[%s475 + $0xa0] sm:$0xff]
        %v4370 = vld [vmem:[%s475 + $0xa8] sm:$0xff]
        %v4371 = vld [vmem:[%s475 + $0xb0] sm:$0xff]
        %v4372 = vld [vmem:[%s475 + $0xb8] sm:$0xff]
        %v4373 = vld [vmem:[%s475 + $0xc0] sm:$0xff]
        %v4374 = vld [vmem:[%s475 + $0xc8] sm:$0xff]
        %v4375 = vld [vmem:[%s475 + $0xd0] sm:$0xff]
        %v4376 = vld [vmem:[%s475 + $0xd8] sm:$0xff]
        %v4377 = vld [vmem:[%s475 + $0xe0] sm:$0xff]
        %v4378 = vld [vmem:[%s475 + $0xe8] sm:$0xff]
        %v4379 = vld [vmem:[%s475 + $0xf0] sm:$0xff]
        %v4380 = vld [vmem:[%s475 + $0xf8] sm:$0xff]
        %v4381 = vld [vmem:[%s475 + $0x100] sm:$0xff]
        %v4382 = vld [vmem:[%s475 + $0x108] sm:$0xff]
        %v4383 = vld [vmem:[%s475 + $0x110] sm:$0xff]
        %v4384 = vld [vmem:[%s475 + $0x118] sm:$0xff]
        %v4385 = vld [vmem:[%s475 + $0x120] sm:$0xff]
        %v4386 = vld [vmem:[%s475 + $0x128] sm:$0xff]
        %v4387 = vld [vmem:[%s475 + $0x130] sm:$0xff]
        %v4388 = vld [vmem:[%s475 + $0x138] sm:$0xff]
        %v4389 = vld [vmem:[%s475 + $0x140] sm:$0xff]
        %v4390 = vld [vmem:[%s475 + $0x148] sm:$0xff]
        %v4391 = vld [vmem:[%s475 + $0x150] sm:$0xff]
        %v4392 = vld [vmem:[%s475 + $0x158] sm:$0xff]
        %v4393 = vld [vmem:[%s475 + $0x160] sm:$0xff]
        %v4394 = vld [vmem:[%s475 + $0x168] sm:$0xff]
        %v4395 = vld [vmem:[%s475 + $0x170] sm:$0xff]
        %v4396 = vld [vmem:[%s475 + $0x178] sm:$0xff]
        %v4397 = vld [vmem:[%s475 + $0x180] sm:$0xff]
        %v4398 = vld [vmem:[%s475 + $0x188] sm:$0xff]
        %v4399 = vld [vmem:[%s475 + $0x190] sm:$0xff]
        %v4400 = vld [vmem:[%s475 + $0x198] sm:$0xff]
        %v4401 = vld [vmem:[%s475 + $0x1a0] sm:$0xff]
        %v4402 = vld [vmem:[%s475 + $0x1a8] sm:$0xff]
        %v4403 = vld [vmem:[%s475 + $0x1b0] sm:$0xff]
        %v4404 = vld [vmem:[%s475 + $0x1b8] sm:$0xff]
        %v4405 = vld [vmem:[%s475 + $0x1c0] sm:$0xff]
        %v4406 = vld [vmem:[%s475 + $0x1c8] sm:$0xff]
        %v4407 = vld [vmem:[%s475 + $0x1d0] sm:$0xff]
        %v4408 = vld [vmem:[%s475 + $0x1d8] sm:$0xff]
        %v4409 = vld [vmem:[%s475 + $0x1e0] sm:$0xff]
        %v4410 = vld [vmem:[%s475 + $0x1e8] sm:$0xff]
        %v4411 = vld [vmem:[%s475 + $0x1f0] sm:$0xff]
        %v4412 = vld [vmem:[%s475 + $0x1f8] sm:$0xff]
        %v4413 = vld [vmem:[%s475 + $0x200] sm:$0xff]
        %v4414 = vld [vmem:[%s475 + $0x208] sm:$0xff]
        %v4415 = vld [vmem:[%s475 + $0x210] sm:$0xff]
        %v4416 = vld [vmem:[%s475 + $0x218] sm:$0xff]
        %v4417 = vld [vmem:[%s475 + $0x220] sm:$0xff]
        %v4418 = vld [vmem:[%s475 + $0x228] sm:$0xff]
        %v4419 = vld [vmem:[%s475 + $0x230] sm:$0xff]
        %v4420 = vld [vmem:[%s475 + $0x238] sm:$0xff]
        %v4421 = vld [vmem:[%s475 + $0x240] sm:$0xff]
        %v4422 = vld [vmem:[%s475 + $0x248] sm:$0xff]
        %v4423 = vld [vmem:[%s475 + $0x250] sm:$0xff]
        %v4424 = vld [vmem:[%s475 + $0x258] sm:$0xff]
        %v4425 = vld [vmem:[%s475 + $0x260] sm:$0xff]
        %v4426 = vld [vmem:[%s475 + $0x268] sm:$0xff]
        %v4427 = vld [vmem:[%s475 + $0x270] sm:$0xff]
        %v4428 = vld [vmem:[%s475 + $0x278] sm:$0xff]
        %v4429 = vld [vmem:[%s475 + $0x280] sm:$0xff]
        %v4430 = vld [vmem:[%s475 + $0x288] sm:$0xff]
        %v4431 = vld [vmem:[%s475 + $0x290] sm:$0xff]
        %v4432 = vld [vmem:[%s475 + $0x298] sm:$0xff]
        %v4433 = vld [vmem:[%s475 + $0x2a0] sm:$0xff]
        %v4434 = vld [vmem:[%s475 + $0x2a8] sm:$0xff]
        %v4435 = vld [vmem:[%s475 + $0x2b0] sm:$0xff]
        %v4436 = vld [vmem:[%s475 + $0x2b8] sm:$0xff]
        %v4437 = vld [vmem:[%s475 + $0x2c0] sm:$0xff]
        %v4438 = vld [vmem:[%s475 + $0x2c8] sm:$0xff]
        %v4439 = vld [vmem:[%s475 + $0x2d0] sm:$0xff]
        %v4440 = vld [vmem:[%s475 + $0x2d8] sm:$0xff]
        %v4441 = vld [vmem:[%s475 + $0x2e0] sm:$0xff]
        %v4442 = vld [vmem:[%s475 + $0x2e8] sm:$0xff]
        %v4443 = vld [vmem:[%s475 + $0x2f0] sm:$0xff]
        %v4444 = vld [vmem:[%s475 + $0x2f8] sm:$0xff]
        %v4445 = vld [vmem:[%s475 + $0x300] sm:$0xff]
        %v4446 = vld [vmem:[%s475 + $0x308] sm:$0xff]
        %v4447 = vld [vmem:[%s475 + $0x310] sm:$0xff]
        %v4448 = vld [vmem:[%s475 + $0x318] sm:$0xff]
        %v4449 = vld [vmem:[%s475 + $0x320] sm:$0xff]
        %v4450 = vld [vmem:[%s475 + $0x328] sm:$0xff]
        %v4451 = vld [vmem:[%s475 + $0x330] sm:$0xff]
        %v4452 = vld [vmem:[%s475 + $0x338] sm:$0xff]
        %v4453 = vld [vmem:[%s475 + $0x340] sm:$0xff]
        %v4454 = vld [vmem:[%s475 + $0x348] sm:$0xff]
        %v4455 = vld [vmem:[%s475 + $0x350] sm:$0xff]
        %v4456 = vld [vmem:[%s475 + $0x358] sm:$0xff]
        %v4457 = vld [vmem:[%s475 + $0x360] sm:$0xff]
        %v4458 = vld [vmem:[%s475 + $0x368] sm:$0xff]
        %v4459 = vld [vmem:[%s475 + $0x370] sm:$0xff]
        %v4460 = vld [vmem:[%s475 + $0x378] sm:$0xff]
        %v4461 = vld [vmem:[%s475 + $0x380] sm:$0xff]
        %v4462 = vld [vmem:[%s475 + $0x388] sm:$0xff]
        %v4463 = vld [vmem:[%s475 + $0x390] sm:$0xff]
        %v4464 = vld [vmem:[%s475 + $0x398] sm:$0xff]
        %v4465 = vld [vmem:[%s475 + $0x3a0] sm:$0xff]
        %v4466 = vld [vmem:[%s475 + $0x3a8] sm:$0xff]
        %v4467 = vld [vmem:[%s475 + $0x3b0] sm:$0xff]
        %v4468 = vld [vmem:[%s475 + $0x3b8] sm:$0xff]
        %v4469 = vld [vmem:[%s475 + $0x3c0] sm:$0xff]
        %v4470 = vld [vmem:[%s475 + $0x3c8] sm:$0xff]
        %v4471 = vld [vmem:[%s475 + $0x3d0] sm:$0xff]
        %v4472 = vld [vmem:[%s475 + $0x3d8] sm:$0xff]
        %v4473 = vld [vmem:[%s475 + $0x3e0] sm:$0xff]
        %v4474 = vld [vmem:[%s475 + $0x3e8] sm:$0xff]
        %v4475 = vld [vmem:[%s475 + $0x3f0] sm:$0xff]
        %v4476 = vld [vmem:[%s475 + $0x3f8] sm:$0xff]
        %v4477 = vld [vmem:[%s475 + $0x400] sm:$0xff]
        %v4478 = vld [vmem:[%s475 + $0x408] sm:$0xff]
        %v4479 = vld [vmem:[%s475 + $0x410] sm:$0xff]
        %v4480 = vld [vmem:[%s475 + $0x418] sm:$0xff]
        %v4481 = vld [vmem:[%s475 + $0x420] sm:$0xff]
        %v4482 = vld [vmem:[%s475 + $0x428] sm:$0xff]
        %v4483 = vld [vmem:[%s475 + $0x430] sm:$0xff]
        %v4484 = vld [vmem:[%s475 + $0x438] sm:$0xff]
        %v4485 = vld [vmem:[%s475 + $0x440] sm:$0xff]
        %v4486 = vld [vmem:[%s475 + $0x448] sm:$0xff]
        %v4487 = vld [vmem:[%s475 + $0x450] sm:$0xff]
        %v4488 = vld [vmem:[%s475 + $0x458] sm:$0xff]
        %v4489 = vld [vmem:[%s475 + $0x460] sm:$0xff]
        %v4490 = vld [vmem:[%s475 + $0x468] sm:$0xff]
        %v4491 = vld [vmem:[%s475 + $0x470] sm:$0xff]
        %v4492 = vld [vmem:[%s475 + $0x478] sm:$0xff]
        %v4493 = vld [vmem:[%s475 + $0x480] sm:$0xff]
        %v4494 = vld [vmem:[%s475 + $0x488] sm:$0xff]
        %v4495 = vld [vmem:[%s475 + $0x490] sm:$0xff]
        %v4496 = vld [vmem:[%s475 + $0x498] sm:$0xff]
        %v4497 = vld [vmem:[%s475 + $0x4a0] sm:$0xff]
        %v4498 = vld [vmem:[%s475 + $0x4a8] sm:$0xff]
        %v4499 = vld [vmem:[%s475 + $0x4b0] sm:$0xff]
        %v4500 = vld [vmem:[%s475 + $0x4b8] sm:$0xff]
        %v4501 = vld [vmem:[%s475 + $0x4c0] sm:$0xff]
        %v4502 = vld [vmem:[%s475 + $0x4c8] sm:$0xff]
        %v4503 = vld [vmem:[%s475 + $0x4d0] sm:$0xff]
        %v4504 = vld [vmem:[%s475 + $0x4d8] sm:$0xff]
        %v4505 = vld [vmem:[%s475 + $0x4e0] sm:$0xff]
        %v4506 = vld [vmem:[%s475 + $0x4e8] sm:$0xff]
        %v4507 = vld [vmem:[%s475 + $0x4f0] sm:$0xff]
        %v4508 = vld [vmem:[%s475 + $0x4f8] sm:$0xff]
        %v4509 = vld [vmem:[%s475 + $0x500] sm:$0xff]
        %v4510 = vld [vmem:[%s475 + $0x508] sm:$0xff]
        %v4511 = vld [vmem:[%s475 + $0x510] sm:$0xff]
        %v4512 = vld [vmem:[%s475 + $0x518] sm:$0xff]
        %v4513 = vld [vmem:[%s475 + $0x520] sm:$0xff]
        %v4514 = vld [vmem:[%s475 + $0x528] sm:$0xff]
        %v4515 = vld [vmem:[%s475 + $0x530] sm:$0xff]
        %v4516 = vld [vmem:[%s475 + $0x538] sm:$0xff]
        %v4517 = vld [vmem:[%s475 + $0x540] sm:$0xff]
        %v4518 = vld [vmem:[%s475 + $0x548] sm:$0xff]
        %v4519 = vld [vmem:[%s475 + $0x550] sm:$0xff]
        %v4520 = vld [vmem:[%s475 + $0x558] sm:$0xff]
        %v4521 = vld [vmem:[%s475 + $0x560] sm:$0xff]
        %v4522 = vld [vmem:[%s475 + $0x568] sm:$0xff]
        %v4523 = vld [vmem:[%s475 + $0x570] sm:$0xff]
        %v4524 = vld [vmem:[%s475 + $0x578] sm:$0xff]
        %v4525 = vld [vmem:[%s475 + $0x580] sm:$0xff]
        %v4526 = vld [vmem:[%s475 + $0x588] sm:$0xff]
        %v4527 = vld [vmem:[%s475 + $0x590] sm:$0xff]
        %v4528 = vld [vmem:[%s475 + $0x598] sm:$0xff]
        %v4529 = vld [vmem:[%s475 + $0x5a0] sm:$0xff]
        %v4530 = vld [vmem:[%s475 + $0x5a8] sm:$0xff]
        %v4531 = vld [vmem:[%s475 + $0x5b0] sm:$0xff]
        %v4532 = vld [vmem:[%s475 + $0x5b8] sm:$0xff]
        %v4533 = vld [vmem:[%s475 + $0x5c0] sm:$0xff]
        %v4534 = vld [vmem:[%s475 + $0x5c8] sm:$0xff]
        %v4535 = vld [vmem:[%s475 + $0x5d0] sm:$0xff]
        %v4536 = vld [vmem:[%s475 + $0x5d8] sm:$0xff]
        %v4537 = vld [vmem:[%s475 + $0x5e0] sm:$0xff]
        %v4538 = vld [vmem:[%s475 + $0x5e8] sm:$0xff]
        %v4539 = vld [vmem:[%s475 + $0x5f0] sm:$0xff]
        %v4540 = vld [vmem:[%s475 + $0x5f8] sm:$0xff]
        %v4541 = vld [vmem:[%s475 + $0x600] sm:$0xff]
        %v4542 = vld [vmem:[%s475 + $0x608] sm:$0xff]
        %v4543 = vld [vmem:[%s475 + $0x610] sm:$0xff]
        %v4544 = vld [vmem:[%s475 + $0x618] sm:$0xff]
        %v4545 = vld [vmem:[%s475 + $0x620] sm:$0xff]
        %v4546 = vld [vmem:[%s475 + $0x628] sm:$0xff]
        %v4547 = vld [vmem:[%s475 + $0x630] sm:$0xff]
        %v4548 = vld [vmem:[%s475 + $0x638] sm:$0xff]
        %v4549 = vld [vmem:[%s475 + $0x640] sm:$0xff]
        %v4550 = vld [vmem:[%s475 + $0x648] sm:$0xff]
        %v4551 = vld [vmem:[%s475 + $0x650] sm:$0xff]
        %v4552 = vld [vmem:[%s475 + $0x658] sm:$0xff]
        %v4553 = vld [vmem:[%s475 + $0x660] sm:$0xff]
        %v4554 = vld [vmem:[%s475 + $0x668] sm:$0xff]
        %v4555 = vld [vmem:[%s475 + $0x670] sm:$0xff]
        %v4556 = vld [vmem:[%s475 + $0x678] sm:$0xff]
        %v4557 = vld [vmem:[%s475 + $0x680] sm:$0xff]
        %v4558 = vld [vmem:[%s475 + $0x688] sm:$0xff]
        %v4559 = vld [vmem:[%s475 + $0x690] sm:$0xff]
        %v4560 = vld [vmem:[%s475 + $0x698] sm:$0xff]
        %v4561 = vld [vmem:[%s475 + $0x6a0] sm:$0xff]
        %v4562 = vld [vmem:[%s475 + $0x6a8] sm:$0xff]
        %v4563 = vld [vmem:[%s475 + $0x6b0] sm:$0xff]
        %v4564 = vld [vmem:[%s475 + $0x6b8] sm:$0xff]
        %v4565 = vld [vmem:[%s475 + $0x6c0] sm:$0xff]
        %v4566 = vld [vmem:[%s475 + $0x6c8] sm:$0xff]
        %v4567 = vld [vmem:[%s475 + $0x6d0] sm:$0xff]
        %v4568 = vld [vmem:[%s475 + $0x6d8] sm:$0xff]
        %v4569 = vld [vmem:[%s475 + $0x6e0] sm:$0xff]
        %v4570 = vld [vmem:[%s475 + $0x6e8] sm:$0xff]
        %v4571 = vld [vmem:[%s475 + $0x6f0] sm:$0xff]
        %v4572 = vld [vmem:[%s475 + $0x6f8] sm:$0xff]
        %v4573 = vld [vmem:[%s475 + $0x700] sm:$0xff]
        %v4574 = vld [vmem:[%s475 + $0x708] sm:$0xff]
        %v4575 = vld [vmem:[%s475 + $0x710] sm:$0xff]
        %v4576 = vld [vmem:[%s475 + $0x718] sm:$0xff]
        %v4577 = vld [vmem:[%s475 + $0x720] sm:$0xff]
        %v4578 = vld [vmem:[%s475 + $0x728] sm:$0xff]
        %v4579 = vld [vmem:[%s475 + $0x730] sm:$0xff]
        %v4580 = vld [vmem:[%s475 + $0x738] sm:$0xff]
        %v4581 = vld [vmem:[%s475 + $0x740] sm:$0xff]
        %v4582 = vld [vmem:[%s475 + $0x748] sm:$0xff]
        %v4583 = vld [vmem:[%s475 + $0x750] sm:$0xff]
        %v4584 = vld [vmem:[%s475 + $0x758] sm:$0xff]
        %v4585 = vld [vmem:[%s475 + $0x760] sm:$0xff]
        %v4586 = vld [vmem:[%s475 + $0x768] sm:$0xff]
        %v4587 = vld [vmem:[%s475 + $0x770] sm:$0xff]
        %v4588 = vld [vmem:[%s475 + $0x778] sm:$0xff]
        %v4589 = vld [vmem:[%s475 + $0x780] sm:$0xff]
        %v4590 = vld [vmem:[%s475 + $0x788] sm:$0xff]
        %v4591 = vld [vmem:[%s475 + $0x790] sm:$0xff]
        %v4592 = vld [vmem:[%s475 + $0x798] sm:$0xff]
        %v4593 = vld [vmem:[%s475 + $0x7a0] sm:$0xff]
        %v4594 = vld [vmem:[%s475 + $0x7a8] sm:$0xff]
        %v4595 = vld [vmem:[%s475 + $0x7b0] sm:$0xff]
        %v4596 = vld [vmem:[%s475 + $0x7b8] sm:$0xff]
        %v4597 = vld [vmem:[%s475 + $0x7c0] sm:$0xff]
        %v4598 = vld [vmem:[%s475 + $0x7c8] sm:$0xff]
        %v4599 = vld [vmem:[%s475 + $0x7d0] sm:$0xff]
        %v4600 = vld [vmem:[%s475 + $0x7d8] sm:$0xff]
        %v4601 = vld [vmem:[%s475 + $0x7e0] sm:$0xff]
        %v4602 = vld [vmem:[%s475 + $0x7e8] sm:$0xff]
        %v4603 = vld [vmem:[%s475 + $0x7f0] sm:$0xff]
        %v4604 = vld [vmem:[%s475 + $0x7f8] sm:$0xff]
        %v4605 = vunpack.c.l.s8.bf16 %v4349
        %v4606 = vunpack.c.l.s8.bf16 %v4350
        %v4607 = vunpack.c.l.s8.bf16 %v4351
        %v4608 = vunpack.c.l.s8.bf16 %v4352
        %v4609 = vunpack.c.l.s8.bf16 %v4353
        %v4610 = vunpack.c.l.s8.bf16 %v4354
        %v4611 = vunpack.c.l.s8.bf16 %v4355
        %v4612 = vunpack.c.l.s8.bf16 %v4356
        %v4613 = vunpack.c.l.s8.bf16 %v4357
        %v4614 = vunpack.c.l.s8.bf16 %v4358
        %v4615 = vunpack.c.l.s8.bf16 %v4359
        %v4616 = vunpack.c.l.s8.bf16 %v4360
        %v4617 = vunpack.c.l.s8.bf16 %v4361
        %v4618 = vunpack.c.l.s8.bf16 %v4362
        %v4619 = vunpack.c.l.s8.bf16 %v4363
        %v4620 = vunpack.c.l.s8.bf16 %v4364
        %v4621 = vunpack.c.h.s8.bf16 %v4349
        %v4622 = vunpack.c.h.s8.bf16 %v4350
        %v4623 = vunpack.c.h.s8.bf16 %v4351
        %v4624 = vunpack.c.h.s8.bf16 %v4352
        %v4625 = vunpack.c.h.s8.bf16 %v4353
        %v4626 = vunpack.c.h.s8.bf16 %v4354
        %v4627 = vunpack.c.h.s8.bf16 %v4355
        %v4628 = vunpack.c.h.s8.bf16 %v4356
        %v4629 = vunpack.c.h.s8.bf16 %v4357
        %v4630 = vunpack.c.h.s8.bf16 %v4358
        %v4631 = vunpack.c.h.s8.bf16 %v4359
        %v4632 = vunpack.c.h.s8.bf16 %v4360
        %v4633 = vunpack.c.h.s8.bf16 %v4361
        %v4634 = vunpack.c.h.s8.bf16 %v4362
        %v4635 = vunpack.c.h.s8.bf16 %v4363
        %v4636 = vunpack.c.h.s8.bf16 %v4364
        %v4637 = vunpack.c.l.s8.bf16 %v4365
        %v4638 = vunpack.c.l.s8.bf16 %v4366
        %v4639 = vunpack.c.l.s8.bf16 %v4367
        %v4640 = vunpack.c.l.s8.bf16 %v4368
        %v4641 = vunpack.c.l.s8.bf16 %v4369
        %v4642 = vunpack.c.l.s8.bf16 %v4370
        %v4643 = vunpack.c.l.s8.bf16 %v4371
        %v4644 = vunpack.c.l.s8.bf16 %v4372
        %v4645 = vunpack.c.l.s8.bf16 %v4373
        %v4646 = vunpack.c.l.s8.bf16 %v4374
        %v4647 = vunpack.c.l.s8.bf16 %v4375
        %v4648 = vunpack.c.l.s8.bf16 %v4376
        %v4649 = vunpack.c.l.s8.bf16 %v4377
        %v4650 = vunpack.c.l.s8.bf16 %v4378
        %v4651 = vunpack.c.l.s8.bf16 %v4379
        %v4652 = vunpack.c.l.s8.bf16 %v4380
        %v4653 = vunpack.c.h.s8.bf16 %v4365
        %v4654 = vunpack.c.h.s8.bf16 %v4366
        %v4655 = vunpack.c.h.s8.bf16 %v4367
        %v4656 = vunpack.c.h.s8.bf16 %v4368
        %v4657 = vunpack.c.h.s8.bf16 %v4369
        %v4658 = vunpack.c.h.s8.bf16 %v4370
        %v4659 = vunpack.c.h.s8.bf16 %v4371
        %v4660 = vunpack.c.h.s8.bf16 %v4372
        %v4661 = vunpack.c.h.s8.bf16 %v4373
        %v4662 = vunpack.c.h.s8.bf16 %v4374
        %v4663 = vunpack.c.h.s8.bf16 %v4375
        %v4664 = vunpack.c.h.s8.bf16 %v4376
        %v4665 = vunpack.c.h.s8.bf16 %v4377
        %v4666 = vunpack.c.h.s8.bf16 %v4378
        %v4667 = vunpack.c.h.s8.bf16 %v4379
        %v4668 = vunpack.c.h.s8.bf16 %v4380
        %v4669 = vunpack.c.l.s8.bf16 %v4381
        %v4670 = vunpack.c.l.s8.bf16 %v4382
        %v4671 = vunpack.c.l.s8.bf16 %v4383
        %v4672 = vunpack.c.l.s8.bf16 %v4384
        %v4673 = vunpack.c.l.s8.bf16 %v4385
        %v4674 = vunpack.c.l.s8.bf16 %v4386
        %v4675 = vunpack.c.l.s8.bf16 %v4387
        %v4676 = vunpack.c.l.s8.bf16 %v4388
        %v4677 = vunpack.c.l.s8.bf16 %v4389
        %v4678 = vunpack.c.l.s8.bf16 %v4390
        %v4679 = vunpack.c.l.s8.bf16 %v4391
        %v4680 = vunpack.c.l.s8.bf16 %v4392
        %v4681 = vunpack.c.l.s8.bf16 %v4393
        %v4682 = vunpack.c.l.s8.bf16 %v4394
        %v4683 = vunpack.c.l.s8.bf16 %v4395
        %v4684 = vunpack.c.l.s8.bf16 %v4396
        %v4685 = vunpack.c.h.s8.bf16 %v4381
        %v4686 = vunpack.c.h.s8.bf16 %v4382
        %v4687 = vunpack.c.h.s8.bf16 %v4383
        %v4688 = vunpack.c.h.s8.bf16 %v4384
        %v4689 = vunpack.c.h.s8.bf16 %v4385
        %v4690 = vunpack.c.h.s8.bf16 %v4386
        %v4691 = vunpack.c.h.s8.bf16 %v4387
        %v4692 = vunpack.c.h.s8.bf16 %v4388
        %v4693 = vunpack.c.h.s8.bf16 %v4389
        %v4694 = vunpack.c.h.s8.bf16 %v4390
        %v4695 = vunpack.c.h.s8.bf16 %v4391
        %v4696 = vunpack.c.h.s8.bf16 %v4392
        %v4697 = vunpack.c.h.s8.bf16 %v4393
        %v4698 = vunpack.c.h.s8.bf16 %v4394
        %v4699 = vunpack.c.h.s8.bf16 %v4395
        %v4700 = vunpack.c.h.s8.bf16 %v4396
        %v4701 = vunpack.c.l.s8.bf16 %v4397
        %v4702 = vunpack.c.l.s8.bf16 %v4398
        %v4703 = vunpack.c.l.s8.bf16 %v4399
        %v4704 = vunpack.c.l.s8.bf16 %v4400
        %v4705 = vunpack.c.l.s8.bf16 %v4401
        %v4706 = vunpack.c.l.s8.bf16 %v4402
        %v4707 = vunpack.c.l.s8.bf16 %v4403
        %v4708 = vunpack.c.l.s8.bf16 %v4404
        %v4709 = vunpack.c.l.s8.bf16 %v4405
        %v4710 = vunpack.c.l.s8.bf16 %v4406
        %v4711 = vunpack.c.l.s8.bf16 %v4407
        %v4712 = vunpack.c.l.s8.bf16 %v4408
        %v4713 = vunpack.c.l.s8.bf16 %v4409
        %v4714 = vunpack.c.l.s8.bf16 %v4410
        %v4715 = vunpack.c.l.s8.bf16 %v4411
        %v4716 = vunpack.c.l.s8.bf16 %v4412
        %v4717 = vunpack.c.h.s8.bf16 %v4397
        %v4718 = vunpack.c.h.s8.bf16 %v4398
        %v4719 = vunpack.c.h.s8.bf16 %v4399
        %v4720 = vunpack.c.h.s8.bf16 %v4400
        %v4721 = vunpack.c.h.s8.bf16 %v4401
        %v4722 = vunpack.c.h.s8.bf16 %v4402
        %v4723 = vunpack.c.h.s8.bf16 %v4403
        %v4724 = vunpack.c.h.s8.bf16 %v4404
        %v4725 = vunpack.c.h.s8.bf16 %v4405
        %v4726 = vunpack.c.h.s8.bf16 %v4406
        %v4727 = vunpack.c.h.s8.bf16 %v4407
        %v4728 = vunpack.c.h.s8.bf16 %v4408
        %v4729 = vunpack.c.h.s8.bf16 %v4409
        %v4730 = vunpack.c.h.s8.bf16 %v4410
        %v4731 = vunpack.c.h.s8.bf16 %v4411
        %v4732 = vunpack.c.h.s8.bf16 %v4412
        %v4733 = vunpack.c.l.s8.bf16 %v4413
        %v4734 = vunpack.c.l.s8.bf16 %v4414
        %v4735 = vunpack.c.l.s8.bf16 %v4415
        %v4736 = vunpack.c.l.s8.bf16 %v4416
        %v4737 = vunpack.c.l.s8.bf16 %v4417
        %v4738 = vunpack.c.l.s8.bf16 %v4418
        %v4739 = vunpack.c.l.s8.bf16 %v4419
        %v4740 = vunpack.c.l.s8.bf16 %v4420
        %v4741 = vunpack.c.l.s8.bf16 %v4421
        %v4742 = vunpack.c.l.s8.bf16 %v4422
        %v4743 = vunpack.c.l.s8.bf16 %v4423
        %v4744 = vunpack.c.l.s8.bf16 %v4424
        %v4745 = vunpack.c.l.s8.bf16 %v4425
        %v4746 = vunpack.c.l.s8.bf16 %v4426
        %v4747 = vunpack.c.l.s8.bf16 %v4427
        %v4748 = vunpack.c.l.s8.bf16 %v4428
        %v4749 = vunpack.c.h.s8.bf16 %v4413
        %v4750 = vunpack.c.h.s8.bf16 %v4414
        %v4751 = vunpack.c.h.s8.bf16 %v4415
        %v4752 = vunpack.c.h.s8.bf16 %v4416
        %v4753 = vunpack.c.h.s8.bf16 %v4417
        %v4754 = vunpack.c.h.s8.bf16 %v4418
        %v4755 = vunpack.c.h.s8.bf16 %v4419
        %v4756 = vunpack.c.h.s8.bf16 %v4420
        %v4757 = vunpack.c.h.s8.bf16 %v4421
        %v4758 = vunpack.c.h.s8.bf16 %v4422
        %v4759 = vunpack.c.h.s8.bf16 %v4423
        %v4760 = vunpack.c.h.s8.bf16 %v4424
        %v4761 = vunpack.c.h.s8.bf16 %v4425
        %v4762 = vunpack.c.h.s8.bf16 %v4426
        %v4763 = vunpack.c.h.s8.bf16 %v4427
        %v4764 = vunpack.c.h.s8.bf16 %v4428
        %v4765 = vunpack.c.l.s8.bf16 %v4429
        %v4766 = vunpack.c.l.s8.bf16 %v4430
        %v4767 = vunpack.c.l.s8.bf16 %v4431
        %v4768 = vunpack.c.l.s8.bf16 %v4432
        %v4769 = vunpack.c.l.s8.bf16 %v4433
        %v4770 = vunpack.c.l.s8.bf16 %v4434
        %v4771 = vunpack.c.l.s8.bf16 %v4435
        %v4772 = vunpack.c.l.s8.bf16 %v4436
        %v4773 = vunpack.c.l.s8.bf16 %v4437
        %v4774 = vunpack.c.l.s8.bf16 %v4438
        %v4775 = vunpack.c.l.s8.bf16 %v4439
        %v4776 = vunpack.c.l.s8.bf16 %v4440
        %v4777 = vunpack.c.l.s8.bf16 %v4441
        %v4778 = vunpack.c.l.s8.bf16 %v4442
        %v4779 = vunpack.c.l.s8.bf16 %v4443
        %v4780 = vunpack.c.l.s8.bf16 %v4444
        %v4781 = vunpack.c.h.s8.bf16 %v4429
        %v4782 = vunpack.c.h.s8.bf16 %v4430
        %v4783 = vunpack.c.h.s8.bf16 %v4431
        %v4784 = vunpack.c.h.s8.bf16 %v4432
        %v4785 = vunpack.c.h.s8.bf16 %v4433
        %v4786 = vunpack.c.h.s8.bf16 %v4434
        %v4787 = vunpack.c.h.s8.bf16 %v4435
        %v4788 = vunpack.c.h.s8.bf16 %v4436
        %v4789 = vunpack.c.h.s8.bf16 %v4437
        %v4790 = vunpack.c.h.s8.bf16 %v4438
        %v4791 = vunpack.c.h.s8.bf16 %v4439
        %v4792 = vunpack.c.h.s8.bf16 %v4440
        %v4793 = vunpack.c.h.s8.bf16 %v4441
        %v4794 = vunpack.c.h.s8.bf16 %v4442
        %v4795 = vunpack.c.h.s8.bf16 %v4443
        %v4796 = vunpack.c.h.s8.bf16 %v4444
        %v4797 = vunpack.c.l.s8.bf16 %v4445
        %v4798 = vunpack.c.l.s8.bf16 %v4446
        %v4799 = vunpack.c.l.s8.bf16 %v4447
        %v4800 = vunpack.c.l.s8.bf16 %v4448
        %v4801 = vunpack.c.l.s8.bf16 %v4449
        %v4802 = vunpack.c.l.s8.bf16 %v4450
        %v4803 = vunpack.c.l.s8.bf16 %v4451
        %v4804 = vunpack.c.l.s8.bf16 %v4452
        %v4805 = vunpack.c.l.s8.bf16 %v4453
        %v4806 = vunpack.c.l.s8.bf16 %v4454
        %v4807 = vunpack.c.l.s8.bf16 %v4455
        %v4808 = vunpack.c.l.s8.bf16 %v4456
        %v4809 = vunpack.c.l.s8.bf16 %v4457
        %v4810 = vunpack.c.l.s8.bf16 %v4458
        %v4811 = vunpack.c.l.s8.bf16 %v4459
        %v4812 = vunpack.c.l.s8.bf16 %v4460
        %v4813 = vunpack.c.h.s8.bf16 %v4445
        %v4814 = vunpack.c.h.s8.bf16 %v4446
        %v4815 = vunpack.c.h.s8.bf16 %v4447
        %v4816 = vunpack.c.h.s8.bf16 %v4448
        %v4817 = vunpack.c.h.s8.bf16 %v4449
        %v4818 = vunpack.c.h.s8.bf16 %v4450
        %v4819 = vunpack.c.h.s8.bf16 %v4451
        %v4820 = vunpack.c.h.s8.bf16 %v4452
        %v4821 = vunpack.c.h.s8.bf16 %v4453
        %v4822 = vunpack.c.h.s8.bf16 %v4454
        %v4823 = vunpack.c.h.s8.bf16 %v4455
        %v4824 = vunpack.c.h.s8.bf16 %v4456
        %v4825 = vunpack.c.h.s8.bf16 %v4457
        %v4826 = vunpack.c.h.s8.bf16 %v4458
        %v4827 = vunpack.c.h.s8.bf16 %v4459
        %v4828 = vunpack.c.h.s8.bf16 %v4460
        %v4829 = vunpack.c.l.s8.bf16 %v4461
        %v4830 = vunpack.c.l.s8.bf16 %v4462
        %v4831 = vunpack.c.l.s8.bf16 %v4463
        %v4832 = vunpack.c.l.s8.bf16 %v4464
        %v4833 = vunpack.c.l.s8.bf16 %v4465
        %v4834 = vunpack.c.l.s8.bf16 %v4466
        %v4835 = vunpack.c.l.s8.bf16 %v4467
        %v4836 = vunpack.c.l.s8.bf16 %v4468
        %v4837 = vunpack.c.l.s8.bf16 %v4469
        %v4838 = vunpack.c.l.s8.bf16 %v4470
        %v4839 = vunpack.c.l.s8.bf16 %v4471
        %v4840 = vunpack.c.l.s8.bf16 %v4472
        %v4841 = vunpack.c.l.s8.bf16 %v4473
        %v4842 = vunpack.c.l.s8.bf16 %v4474
        %v4843 = vunpack.c.l.s8.bf16 %v4475
        %v4844 = vunpack.c.l.s8.bf16 %v4476
        %v4845 = vunpack.c.h.s8.bf16 %v4461
        %v4846 = vunpack.c.h.s8.bf16 %v4462
        %v4847 = vunpack.c.h.s8.bf16 %v4463
        %v4848 = vunpack.c.h.s8.bf16 %v4464
        %v4849 = vunpack.c.h.s8.bf16 %v4465
        %v4850 = vunpack.c.h.s8.bf16 %v4466
        %v4851 = vunpack.c.h.s8.bf16 %v4467
        %v4852 = vunpack.c.h.s8.bf16 %v4468
        %v4853 = vunpack.c.h.s8.bf16 %v4469
        %v4854 = vunpack.c.h.s8.bf16 %v4470
        %v4855 = vunpack.c.h.s8.bf16 %v4471
        %v4856 = vunpack.c.h.s8.bf16 %v4472
        %v4857 = vunpack.c.h.s8.bf16 %v4473
        %v4858 = vunpack.c.h.s8.bf16 %v4474
        %v4859 = vunpack.c.h.s8.bf16 %v4475
        %v4860 = vunpack.c.h.s8.bf16 %v4476
        %v4861 = vunpack.c.l.s8.bf16 %v4477
        %v4862 = vunpack.c.l.s8.bf16 %v4478
        %v4863 = vunpack.c.l.s8.bf16 %v4479
        %v4864 = vunpack.c.l.s8.bf16 %v4480
        %v4865 = vunpack.c.l.s8.bf16 %v4481
        %v4866 = vunpack.c.l.s8.bf16 %v4482
        %v4867 = vunpack.c.l.s8.bf16 %v4483
        %v4868 = vunpack.c.l.s8.bf16 %v4484
        %v4869 = vunpack.c.l.s8.bf16 %v4485
        %v4870 = vunpack.c.l.s8.bf16 %v4486
        %v4871 = vunpack.c.l.s8.bf16 %v4487
        %v4872 = vunpack.c.l.s8.bf16 %v4488
        %v4873 = vunpack.c.l.s8.bf16 %v4489
        %v4874 = vunpack.c.l.s8.bf16 %v4490
        %v4875 = vunpack.c.l.s8.bf16 %v4491
        %v4876 = vunpack.c.l.s8.bf16 %v4492
        %v4877 = vunpack.c.h.s8.bf16 %v4477
        %v4878 = vunpack.c.h.s8.bf16 %v4478
        %v4879 = vunpack.c.h.s8.bf16 %v4479
        %v4880 = vunpack.c.h.s8.bf16 %v4480
        %v4881 = vunpack.c.h.s8.bf16 %v4481
        %v4882 = vunpack.c.h.s8.bf16 %v4482
        %v4883 = vunpack.c.h.s8.bf16 %v4483
        %v4884 = vunpack.c.h.s8.bf16 %v4484
        %v4885 = vunpack.c.h.s8.bf16 %v4485
        %v4886 = vunpack.c.h.s8.bf16 %v4486
        %v4887 = vunpack.c.h.s8.bf16 %v4487
        %v4888 = vunpack.c.h.s8.bf16 %v4488
        %v4889 = vunpack.c.h.s8.bf16 %v4489
        %v4890 = vunpack.c.h.s8.bf16 %v4490
        %v4891 = vunpack.c.h.s8.bf16 %v4491
        %v4892 = vunpack.c.h.s8.bf16 %v4492
        %v4893 = vunpack.c.l.s8.bf16 %v4493
        %v4894 = vunpack.c.l.s8.bf16 %v4494
        %v4895 = vunpack.c.l.s8.bf16 %v4495
        %v4896 = vunpack.c.l.s8.bf16 %v4496
        %v4897 = vunpack.c.l.s8.bf16 %v4497
        %v4898 = vunpack.c.l.s8.bf16 %v4498
        %v4899 = vunpack.c.l.s8.bf16 %v4499
        %v4900 = vunpack.c.l.s8.bf16 %v4500
        %v4901 = vunpack.c.l.s8.bf16 %v4501
        %v4902 = vunpack.c.l.s8.bf16 %v4502
        %v4903 = vunpack.c.l.s8.bf16 %v4503
        %v4904 = vunpack.c.l.s8.bf16 %v4504
        %v4905 = vunpack.c.l.s8.bf16 %v4505
        %v4906 = vunpack.c.l.s8.bf16 %v4506
        %v4907 = vunpack.c.l.s8.bf16 %v4507
        %v4908 = vunpack.c.l.s8.bf16 %v4508
        %v4909 = vunpack.c.h.s8.bf16 %v4493
        %v4910 = vunpack.c.h.s8.bf16 %v4494
        %v4911 = vunpack.c.h.s8.bf16 %v4495
        %v4912 = vunpack.c.h.s8.bf16 %v4496
        %v4913 = vunpack.c.h.s8.bf16 %v4497
        %v4914 = vunpack.c.h.s8.bf16 %v4498
        %v4915 = vunpack.c.h.s8.bf16 %v4499
        %v4916 = vunpack.c.h.s8.bf16 %v4500
        %v4917 = vunpack.c.h.s8.bf16 %v4501
        %v4918 = vunpack.c.h.s8.bf16 %v4502
        %v4919 = vunpack.c.h.s8.bf16 %v4503
        %v4920 = vunpack.c.h.s8.bf16 %v4504
        %v4921 = vunpack.c.h.s8.bf16 %v4505
        %v4922 = vunpack.c.h.s8.bf16 %v4506
        %v4923 = vunpack.c.h.s8.bf16 %v4507
        %v4924 = vunpack.c.h.s8.bf16 %v4508
        %v4925 = vunpack.c.l.s8.bf16 %v4509
        %v4926 = vunpack.c.l.s8.bf16 %v4510
        %v4927 = vunpack.c.l.s8.bf16 %v4511
        %v4928 = vunpack.c.l.s8.bf16 %v4512
        %v4929 = vunpack.c.l.s8.bf16 %v4513
        %v4930 = vunpack.c.l.s8.bf16 %v4514
        %v4931 = vunpack.c.l.s8.bf16 %v4515
        %v4932 = vunpack.c.l.s8.bf16 %v4516
        %v4933 = vunpack.c.l.s8.bf16 %v4517
        %v4934 = vunpack.c.l.s8.bf16 %v4518
        %v4935 = vunpack.c.l.s8.bf16 %v4519
        %v4936 = vunpack.c.l.s8.bf16 %v4520
        %v4937 = vunpack.c.l.s8.bf16 %v4521
        %v4938 = vunpack.c.l.s8.bf16 %v4522
        %v4939 = vunpack.c.l.s8.bf16 %v4523
        %v4940 = vunpack.c.l.s8.bf16 %v4524
        %v4941 = vunpack.c.h.s8.bf16 %v4509
        %v4942 = vunpack.c.h.s8.bf16 %v4510
        %v4943 = vunpack.c.h.s8.bf16 %v4511
        %v4944 = vunpack.c.h.s8.bf16 %v4512
        %v4945 = vunpack.c.h.s8.bf16 %v4513
        %v4946 = vunpack.c.h.s8.bf16 %v4514
        %v4947 = vunpack.c.h.s8.bf16 %v4515
        %v4948 = vunpack.c.h.s8.bf16 %v4516
        %v4949 = vunpack.c.h.s8.bf16 %v4517
        %v4950 = vunpack.c.h.s8.bf16 %v4518
        %v4951 = vunpack.c.h.s8.bf16 %v4519
        %v4952 = vunpack.c.h.s8.bf16 %v4520
        %v4953 = vunpack.c.h.s8.bf16 %v4521
        %v4954 = vunpack.c.h.s8.bf16 %v4522
        %v4955 = vunpack.c.h.s8.bf16 %v4523
        %v4956 = vunpack.c.h.s8.bf16 %v4524
        %v4957 = vunpack.c.l.s8.bf16 %v4525
        %v4958 = vunpack.c.l.s8.bf16 %v4526
        %v4959 = vunpack.c.l.s8.bf16 %v4527
        %v4960 = vunpack.c.l.s8.bf16 %v4528
        %v4961 = vunpack.c.l.s8.bf16 %v4529
        %v4962 = vunpack.c.l.s8.bf16 %v4530
        %v4963 = vunpack.c.l.s8.bf16 %v4531
        %v4964 = vunpack.c.l.s8.bf16 %v4532
        %v4965 = vunpack.c.l.s8.bf16 %v4533
        %v4966 = vunpack.c.l.s8.bf16 %v4534
        %v4967 = vunpack.c.l.s8.bf16 %v4535
        %v4968 = vunpack.c.l.s8.bf16 %v4536
        %v4969 = vunpack.c.l.s8.bf16 %v4537
        %v4970 = vunpack.c.l.s8.bf16 %v4538
        %v4971 = vunpack.c.l.s8.bf16 %v4539
        %v4972 = vunpack.c.l.s8.bf16 %v4540
        %v4973 = vunpack.c.h.s8.bf16 %v4525
        %v4974 = vunpack.c.h.s8.bf16 %v4526
        %v4975 = vunpack.c.h.s8.bf16 %v4527
        %v4976 = vunpack.c.h.s8.bf16 %v4528
        %v4977 = vunpack.c.h.s8.bf16 %v4529
        %v4978 = vunpack.c.h.s8.bf16 %v4530
        %v4979 = vunpack.c.h.s8.bf16 %v4531
        %v4980 = vunpack.c.h.s8.bf16 %v4532
        %v4981 = vunpack.c.h.s8.bf16 %v4533
        %v4982 = vunpack.c.h.s8.bf16 %v4534
        %v4983 = vunpack.c.h.s8.bf16 %v4535
        %v4984 = vunpack.c.h.s8.bf16 %v4536
        %v4985 = vunpack.c.h.s8.bf16 %v4537
        %v4986 = vunpack.c.h.s8.bf16 %v4538
        %v4987 = vunpack.c.h.s8.bf16 %v4539
        %v4988 = vunpack.c.h.s8.bf16 %v4540
        %v4989 = vunpack.c.l.s8.bf16 %v4541
        %v4990 = vunpack.c.l.s8.bf16 %v4542
        %v4991 = vunpack.c.l.s8.bf16 %v4543
        %v4992 = vunpack.c.l.s8.bf16 %v4544
        %v4993 = vunpack.c.l.s8.bf16 %v4545
        %v4994 = vunpack.c.l.s8.bf16 %v4546
        %v4995 = vunpack.c.l.s8.bf16 %v4547
        %v4996 = vunpack.c.l.s8.bf16 %v4548
        %v4997 = vunpack.c.l.s8.bf16 %v4549
        %v4998 = vunpack.c.l.s8.bf16 %v4550
        %v4999 = vunpack.c.l.s8.bf16 %v4551
        %v5000 = vunpack.c.l.s8.bf16 %v4552
        %v5001 = vunpack.c.l.s8.bf16 %v4553
        %v5002 = vunpack.c.l.s8.bf16 %v4554
        %v5003 = vunpack.c.l.s8.bf16 %v4555
        %v5004 = vunpack.c.l.s8.bf16 %v4556
        %v5005 = vunpack.c.h.s8.bf16 %v4541
        %v5006 = vunpack.c.h.s8.bf16 %v4542
        %v5007 = vunpack.c.h.s8.bf16 %v4543
        %v5008 = vunpack.c.h.s8.bf16 %v4544
        %v5009 = vunpack.c.h.s8.bf16 %v4545
        %v5010 = vunpack.c.h.s8.bf16 %v4546
        %v5011 = vunpack.c.h.s8.bf16 %v4547
        %v5012 = vunpack.c.h.s8.bf16 %v4548
        %v5013 = vunpack.c.h.s8.bf16 %v4549
        %v5014 = vunpack.c.h.s8.bf16 %v4550
        %v5015 = vunpack.c.h.s8.bf16 %v4551
        %v5016 = vunpack.c.h.s8.bf16 %v4552
        %v5017 = vunpack.c.h.s8.bf16 %v4553
        %v5018 = vunpack.c.h.s8.bf16 %v4554
        %v5019 = vunpack.c.h.s8.bf16 %v4555
        %v5020 = vunpack.c.h.s8.bf16 %v4556
        %v5021 = vunpack.c.l.s8.bf16 %v4557
        %v5022 = vunpack.c.l.s8.bf16 %v4558
        %v5023 = vunpack.c.l.s8.bf16 %v4559
        %v5024 = vunpack.c.l.s8.bf16 %v4560
        %v5025 = vunpack.c.l.s8.bf16 %v4561
        %v5026 = vunpack.c.l.s8.bf16 %v4562
        %v5027 = vunpack.c.l.s8.bf16 %v4563
        %v5028 = vunpack.c.l.s8.bf16 %v4564
        %v5029 = vunpack.c.l.s8.bf16 %v4565
        %v5030 = vunpack.c.l.s8.bf16 %v4566
        %v5031 = vunpack.c.l.s8.bf16 %v4567
        %v5032 = vunpack.c.l.s8.bf16 %v4568
        %v5033 = vunpack.c.l.s8.bf16 %v4569
        %v5034 = vunpack.c.l.s8.bf16 %v4570
        %v5035 = vunpack.c.l.s8.bf16 %v4571
        %v5036 = vunpack.c.l.s8.bf16 %v4572
        %v5037 = vunpack.c.h.s8.bf16 %v4557
        %v5038 = vunpack.c.h.s8.bf16 %v4558
        %v5039 = vunpack.c.h.s8.bf16 %v4559
        %v5040 = vunpack.c.h.s8.bf16 %v4560
        %v5041 = vunpack.c.h.s8.bf16 %v4561
        %v5042 = vunpack.c.h.s8.bf16 %v4562
        %v5043 = vunpack.c.h.s8.bf16 %v4563
        %v5044 = vunpack.c.h.s8.bf16 %v4564
        %v5045 = vunpack.c.h.s8.bf16 %v4565
        %v5046 = vunpack.c.h.s8.bf16 %v4566
        %v5047 = vunpack.c.h.s8.bf16 %v4567
        %v5048 = vunpack.c.h.s8.bf16 %v4568
        %v5049 = vunpack.c.h.s8.bf16 %v4569
        %v5050 = vunpack.c.h.s8.bf16 %v4570
        %v5051 = vunpack.c.h.s8.bf16 %v4571
        %v5052 = vunpack.c.h.s8.bf16 %v4572
        %v5053 = vunpack.c.l.s8.bf16 %v4573
        %v5054 = vunpack.c.l.s8.bf16 %v4574
        %v5055 = vunpack.c.l.s8.bf16 %v4575
        %v5056 = vunpack.c.l.s8.bf16 %v4576
        %v5057 = vunpack.c.l.s8.bf16 %v4577
        %v5058 = vunpack.c.l.s8.bf16 %v4578
        %v5059 = vunpack.c.l.s8.bf16 %v4579
        %v5060 = vunpack.c.l.s8.bf16 %v4580
        %v5061 = vunpack.c.l.s8.bf16 %v4581
        %v5062 = vunpack.c.l.s8.bf16 %v4582
        %v5063 = vunpack.c.l.s8.bf16 %v4583
        %v5064 = vunpack.c.l.s8.bf16 %v4584
        %v5065 = vunpack.c.l.s8.bf16 %v4585
        %v5066 = vunpack.c.l.s8.bf16 %v4586
        %v5067 = vunpack.c.l.s8.bf16 %v4587
        %v5068 = vunpack.c.l.s8.bf16 %v4588
        %v5069 = vunpack.c.h.s8.bf16 %v4573
        %v5070 = vunpack.c.h.s8.bf16 %v4574
        %v5071 = vunpack.c.h.s8.bf16 %v4575
        %v5072 = vunpack.c.h.s8.bf16 %v4576
        %v5073 = vunpack.c.h.s8.bf16 %v4577
        %v5074 = vunpack.c.h.s8.bf16 %v4578
        %v5075 = vunpack.c.h.s8.bf16 %v4579
        %v5076 = vunpack.c.h.s8.bf16 %v4580
        %v5077 = vunpack.c.h.s8.bf16 %v4581
        %v5078 = vunpack.c.h.s8.bf16 %v4582
        %v5079 = vunpack.c.h.s8.bf16 %v4583
        %v5080 = vunpack.c.h.s8.bf16 %v4584
        %v5081 = vunpack.c.h.s8.bf16 %v4585
        %v5082 = vunpack.c.h.s8.bf16 %v4586
        %v5083 = vunpack.c.h.s8.bf16 %v4587
        %v5084 = vunpack.c.h.s8.bf16 %v4588
        %v5085 = vunpack.c.l.s8.bf16 %v4589
        %v5086 = vunpack.c.l.s8.bf16 %v4590
        %v5087 = vunpack.c.l.s8.bf16 %v4591
        %v5088 = vunpack.c.l.s8.bf16 %v4592
        %v5089 = vunpack.c.l.s8.bf16 %v4593
        %v5090 = vunpack.c.l.s8.bf16 %v4594
        %v5091 = vunpack.c.l.s8.bf16 %v4595
        %v5092 = vunpack.c.l.s8.bf16 %v4596
        %v5093 = vunpack.c.l.s8.bf16 %v4597
        %v5094 = vunpack.c.l.s8.bf16 %v4598
        %v5095 = vunpack.c.l.s8.bf16 %v4599
        %v5096 = vunpack.c.l.s8.bf16 %v4600
        %v5097 = vunpack.c.l.s8.bf16 %v4601
        %v5098 = vunpack.c.l.s8.bf16 %v4602
        %v5099 = vunpack.c.l.s8.bf16 %v4603
        %v5100 = vunpack.c.l.s8.bf16 %v4604
        %v5101 = vunpack.c.h.s8.bf16 %v4589
        %v5102 = vunpack.c.h.s8.bf16 %v4590
        %v5103 = vunpack.c.h.s8.bf16 %v4591
        %v5104 = vunpack.c.h.s8.bf16 %v4592
        %v5105 = vunpack.c.h.s8.bf16 %v4593
        %v5106 = vunpack.c.h.s8.bf16 %v4594
        %v5107 = vunpack.c.h.s8.bf16 %v4595
        %v5108 = vunpack.c.h.s8.bf16 %v4596
        %v5109 = vunpack.c.h.s8.bf16 %v4597
        %v5110 = vunpack.c.h.s8.bf16 %v4598
        %v5111 = vunpack.c.h.s8.bf16 %v4599
        %v5112 = vunpack.c.h.s8.bf16 %v4600
        %v5113 = vunpack.c.h.s8.bf16 %v4601
        %v5114 = vunpack.c.h.s8.bf16 %v4602
        %v5115 = vunpack.c.h.s8.bf16 %v4603
        %v5116 = vunpack.c.h.s8.bf16 %v4604
        %5117 = vmatprep.subr.bf16.mxu0 %v4606
        %5118 = vmatpush1.bf16.msra.mxu0 %v4605
        %5119 = vmatprep.subr.bf16.mxu0 %v4622
        %5120 = vmatpush1.bf16.msra.mxu0 %v4621
        %5121 = vmatprep.subr.bf16.mxu0 %v4638
        %5122 = vmatpush1.bf16.msra.mxu0 %v4637
        %5123 = vmatprep.subr.bf16.mxu0 %v4654
        %5124 = vmatpush1.bf16.msra.mxu0 %v4653
        %5125 = vmatprep.subr.bf16.mxu0 %v4670
        %5126 = vmatpush1.bf16.msra.mxu0 %v4669
        %5127 = vmatprep.subr.bf16.mxu0 %v4686
        %5128 = vmatpush1.bf16.msra.mxu0 %v4685
        %5129 = vmatprep.subr.bf16.mxu0 %v4702
        %5130 = vmatpush1.bf16.msra.mxu0 %v4701
        %5131 = vmatprep.subr.bf16.mxu0 %v4718
        %5132 = vmatpush1.bf16.msra.mxu0 %v4717
        %5133 = vmatprep.subr.bf16.mxu0 %v4734
        %5134 = vmatpush1.bf16.msra.mxu0 %v4733
        %5135 = vmatprep.subr.bf16.mxu0 %v4750
        %5136 = vmatpush1.bf16.msra.mxu0 %v4749
        %5137 = vmatprep.subr.bf16.mxu0 %v4766
        %5138 = vmatpush1.bf16.msra.mxu0 %v4765
        %5139 = vmatprep.subr.bf16.mxu0 %v4782
        %5140 = vmatpush1.bf16.msra.mxu0 %v4781
        %5141 = vmatprep.subr.bf16.mxu0 %v4798
        %5142 = vmatpush1.bf16.msra.mxu0 %v4797
        %5143 = vmatprep.subr.bf16.mxu0 %v4814
        %5144 = vmatpush1.bf16.msra.mxu0 %v4813
        %5145 = vmatprep.subr.bf16.mxu0 %v4830
        %5146 = vmatpush1.bf16.msra.mxu0 %v4829
        %5147 = vmatprep.subr.bf16.mxu0 %v4846
        %5148 = vmatpush1.bf16.msra.mxu0 %v4845
        %5149 = vmatprep.mubr.bf16.mxu0 %v4342
        %5150 = vmatmul.mubr.bf16.gmra.mrb[0].mxu0 %v4341
        %v5151 = vpop.f32.mrb[0].mxu0
        %v5152 = vadd.f32 0.0, %v5151
        %v5153 = vpop.f32.mrb[0].mxu0
        %v5154 = vadd.f32 0.0, %v5153
        %v5155 = vpop.f32.mrb[0].mxu0
        %v5156 = vadd.f32 0.0, %v5155
        %v5157 = vpop.f32.mrb[0].mxu0
        %v5158 = vadd.f32 0.0, %v5157
        %5159 = vdwg.mxu0
        %5160 = vmatprep.subr.bf16.mxu0 %v4862
        %5161 = vmatpush1.bf16.msra.mxu0 %v4861
        %5162 = vmatprep.subr.bf16.mxu0 %v4878
        %5163 = vmatpush1.bf16.msra.mxu0 %v4877
        %5164 = vmatprep.subr.bf16.mxu0 %v4894
        %5165 = vmatpush1.bf16.msra.mxu0 %v4893
        %5166 = vmatprep.subr.bf16.mxu0 %v4910
        %5167 = vmatpush1.bf16.msra.mxu0 %v4909
        %5168 = vmatprep.subr.bf16.mxu0 %v4926
        %5169 = vmatpush1.bf16.msra.mxu0 %v4925
        %5170 = vmatprep.subr.bf16.mxu0 %v4942
        %5171 = vmatpush1.bf16.msra.mxu0 %v4941
        %5172 = vmatprep.subr.bf16.mxu0 %v4958
        %5173 = vmatpush1.bf16.msra.mxu0 %v4957
        %5174 = vmatprep.subr.bf16.mxu0 %v4974
        %5175 = vmatpush1.bf16.msra.mxu0 %v4973
        %5176 = vmatprep.subr.bf16.mxu0 %v4990
        %5177 = vmatpush1.bf16.msra.mxu0 %v4989
        %5178 = vmatprep.subr.bf16.mxu0 %v5006
        %5179 = vmatpush1.bf16.msra.mxu0 %v5005
        %5180 = vmatprep.subr.bf16.mxu0 %v5022
        %5181 = vmatpush1.bf16.msra.mxu0 %v5021
        %5182 = vmatprep.subr.bf16.mxu0 %v5038
        %5183 = vmatpush1.bf16.msra.mxu0 %v5037
        %5184 = vmatprep.subr.bf16.mxu0 %v5054
        %5185 = vmatpush1.bf16.msra.mxu0 %v5053
        %5186 = vmatprep.subr.bf16.mxu0 %v5070
        %5187 = vmatpush1.bf16.msra.mxu0 %v5069
        %5188 = vmatprep.subr.bf16.mxu0 %v5086
        %5189 = vmatpush1.bf16.msra.mxu0 %v5085
        %5190 = vmatprep.subr.bf16.mxu0 %v5102
        %5191 = vmatpush1.bf16.msra.mxu0 %v5101
        %5192 = vmatprep.mubr.bf16.mxu0 %v4344
        %5193 = vmatmul.mubr.bf16.gmra.mrb[0].mxu0 %v4343
        %v5194 = vpop.f32.mrb[0].mxu0
        %v5195 = vadd.f32 %v5152, %v5194
        %v5196 = vpop.f32.mrb[0].mxu0
        %v5197 = vadd.f32 %v5154, %v5196
        %v5198 = vpop.f32.mrb[0].mxu0
        %v5199 = vadd.f32 %v5156, %v5198
        %v5200 = vpop.f32.mrb[0].mxu0
        %v5201 = vadd.f32 %v5158, %v5200
        %5202 = vdwg.mxu0
        %5203 = vmatprep.subr.bf16.mxu0 %v4608
        %5204 = vmatpush1.bf16.msra.mxu0 %v4607
        %5205 = vmatprep.subr.bf16.mxu0 %v4624
        %5206 = vmatpush1.bf16.msra.mxu0 %v4623
        %5207 = vmatprep.subr.bf16.mxu0 %v4640
        %5208 = vmatpush1.bf16.msra.mxu0 %v4639
        %5209 = vmatprep.subr.bf16.mxu0 %v4656
        %5210 = vmatpush1.bf16.msra.mxu0 %v4655
        %5211 = vmatprep.subr.bf16.mxu0 %v4672
        %5212 = vmatpush1.bf16.msra.mxu0 %v4671
        %5213 = vmatprep.subr.bf16.mxu0 %v4688
        %5214 = vmatpush1.bf16.msra.mxu0 %v4687
        %5215 = vmatprep.subr.bf16.mxu0 %v4704
        %5216 = vmatpush1.bf16.msra.mxu0 %v4703
        %5217 = vmatprep.subr.bf16.mxu0 %v4720
        %5218 = vmatpush1.bf16.msra.mxu0 %v4719
        %5219 = vmatprep.subr.bf16.mxu0 %v4736
        %5220 = vmatpush1.bf16.msra.mxu0 %v4735
        %5221 = vmatprep.subr.bf16.mxu0 %v4752
        %5222 = vmatpush1.bf16.msra.mxu0 %v4751
        %5223 = vmatprep.subr.bf16.mxu0 %v4768
        %5224 = vmatpush1.bf16.msra.mxu0 %v4767
        %5225 = vmatprep.subr.bf16.mxu0 %v4784
        %5226 = vmatpush1.bf16.msra.mxu0 %v4783
        %5227 = vmatprep.subr.bf16.mxu0 %v4800
        %5228 = vmatpush1.bf16.msra.mxu0 %v4799
        %5229 = vmatprep.subr.bf16.mxu0 %v4816
        %5230 = vmatpush1.bf16.msra.mxu0 %v4815
        %5231 = vmatprep.subr.bf16.mxu0 %v4832
        %5232 = vmatpush1.bf16.msra.mxu0 %v4831
        %5233 = vmatprep.subr.bf16.mxu0 %v4848
        %5234 = vmatpush1.bf16.msra.mxu0 %v4847
        %5235 = vmatprep.mubr.bf16.mxu0 %v4342
        %5236 = vmatmul.mubr.bf16.gmra.mrb[0].mxu0 %v4341
        %v5237 = vpop.f32.mrb[0].mxu0
        %v5238 = vadd.f32 0.0, %v5237
        %v5239 = vpop.f32.mrb[0].mxu0
        %v5240 = vadd.f32 0.0, %v5239
        %v5241 = vpop.f32.mrb[0].mxu0
        %v5242 = vadd.f32 0.0, %v5241
        %v5243 = vpop.f32.mrb[0].mxu0
        %v5244 = vadd.f32 0.0, %v5243
        %5245 = vdwg.mxu0
        %5246 = vmatprep.subr.bf16.mxu0 %v4864
        %5247 = vmatpush1.bf16.msra.mxu0 %v4863
        %5248 = vmatprep.subr.bf16.mxu0 %v4880
        %5249 = vmatpush1.bf16.msra.mxu0 %v4879
        %5250 = vmatprep.subr.bf16.mxu0 %v4896
        %5251 = vmatpush1.bf16.msra.mxu0 %v4895
        %5252 = vmatprep.subr.bf16.mxu0 %v4912
        %5253 = vmatpush1.bf16.msra.mxu0 %v4911
        %5254 = vmatprep.subr.bf16.mxu0 %v4928
        %5255 = vmatpush1.bf16.msra.mxu0 %v4927
        %5256 = vmatprep.subr.bf16.mxu0 %v4944
        %5257 = vmatpush1.bf16.msra.mxu0 %v4943
        %5258 = vmatprep.subr.bf16.mxu0 %v4960
        %5259 = vmatpush1.bf16.msra.mxu0 %v4959
        %5260 = vmatprep.subr.bf16.mxu0 %v4976
        %5261 = vmatpush1.bf16.msra.mxu0 %v4975
        %5262 = vmatprep.subr.bf16.mxu0 %v4992
        %5263 = vmatpush1.bf16.msra.mxu0 %v4991
        %5264 = vmatprep.subr.bf16.mxu0 %v5008
        %5265 = vmatpush1.bf16.msra.mxu0 %v5007
        %5266 = vmatprep.subr.bf16.mxu0 %v5024
        %5267 = vmatpush1.bf16.msra.mxu0 %v5023
        %5268 = vmatprep.subr.bf16.mxu0 %v5040
        %5269 = vmatpush1.bf16.msra.mxu0 %v5039
        %5270 = vmatprep.subr.bf16.mxu0 %v5056
        %5271 = vmatpush1.bf16.msra.mxu0 %v5055
        %5272 = vmatprep.subr.bf16.mxu0 %v5072
        %5273 = vmatpush1.bf16.msra.mxu0 %v5071
        %5274 = vmatprep.subr.bf16.mxu0 %v5088
        %5275 = vmatpush1.bf16.msra.mxu0 %v5087
        %5276 = vmatprep.subr.bf16.mxu0 %v5104
        %5277 = vmatpush1.bf16.msra.mxu0 %v5103
        %5278 = vmatprep.mubr.bf16.mxu0 %v4344
        %5279 = vmatmul.mubr.bf16.gmra.mrb[0].mxu0 %v4343
        %v5280 = vpop.f32.mrb[0].mxu0
        %v5281 = vadd.f32 %v5238, %v5280
        %v5282 = vpop.f32.mrb[0].mxu0
        %v5283 = vadd.f32 %v5240, %v5282
        %v5284 = vpop.f32.mrb[0].mxu0
        %v5285 = vadd.f32 %v5242, %v5284
        %v5286 = vpop.f32.mrb[0].mxu0
        %v5287 = vadd.f32 %v5244, %v5286
        %5288 = vdwg.mxu0
        %5289 = vmatprep.subr.bf16.mxu0 %v4610
        %5290 = vmatpush1.bf16.msra.mxu0 %v4609
        %5291 = vmatprep.subr.bf16.mxu0 %v4626
        %5292 = vmatpush1.bf16.msra.mxu0 %v4625
        %5293 = vmatprep.subr.bf16.mxu0 %v4642
        %5294 = vmatpush1.bf16.msra.mxu0 %v4641
        %5295 = vmatprep.subr.bf16.mxu0 %v4658
        %5296 = vmatpush1.bf16.msra.mxu0 %v4657
        %5297 = vmatprep.subr.bf16.mxu0 %v4674
        %5298 = vmatpush1.bf16.msra.mxu0 %v4673
        %5299 = vmatprep.subr.bf16.mxu0 %v4690
        %5300 = vmatpush1.bf16.msra.mxu0 %v4689
        %5301 = vmatprep.subr.bf16.mxu0 %v4706
        %5302 = vmatpush1.bf16.msra.mxu0 %v4705
        %5303 = vmatprep.subr.bf16.mxu0 %v4722
        %5304 = vmatpush1.bf16.msra.mxu0 %v4721
        %5305 = vmatprep.subr.bf16.mxu0 %v4738
        %5306 = vmatpush1.bf16.msra.mxu0 %v4737
        %5307 = vmatprep.subr.bf16.mxu0 %v4754
        %5308 = vmatpush1.bf16.msra.mxu0 %v4753
        %5309 = vmatprep.subr.bf16.mxu0 %v4770
        %5310 = vmatpush1.bf16.msra.mxu0 %v4769
        %5311 = vmatprep.subr.bf16.mxu0 %v4786
        %5312 = vmatpush1.bf16.msra.mxu0 %v4785
        %5313 = vmatprep.subr.bf16.mxu0 %v4802
        %5314 = vmatpush1.bf16.msra.mxu0 %v4801
        %5315 = vmatprep.subr.bf16.mxu0 %v4818
        %5316 = vmatpush1.bf16.msra.mxu0 %v4817
        %5317 = vmatprep.subr.bf16.mxu0 %v4834
        %5318 = vmatpush1.bf16.msra.mxu0 %v4833
        %5319 = vmatprep.subr.bf16.mxu0 %v4850
        %5320 = vmatpush1.bf16.msra.mxu0 %v4849
        %5321 = vmatprep.mubr.bf16.mxu0 %v4342
        %5322 = vmatmul.mubr.bf16.gmra.mrb[0].mxu0 %v4341
        %v5323 = vpop.f32.mrb[0].mxu0
        %v5324 = vadd.f32 0.0, %v5323
        %v5325 = vpop.f32.mrb[0].mxu0
        %v5326 = vadd.f32 0.0, %v5325
        %v5327 = vpop.f32.mrb[0].mxu0
        %v5328 = vadd.f32 0.0, %v5327
        %v5329 = vpop.f32.mrb[0].mxu0
        %v5330 = vadd.f32 0.0, %v5329
        %5331 = vdwg.mxu0
        %5332 = vmatprep.subr.bf16.mxu0 %v4866
        %5333 = vmatpush1.bf16.msra.mxu0 %v4865
        %5334 = vmatprep.subr.bf16.mxu0 %v4882
        %5335 = vmatpush1.bf16.msra.mxu0 %v4881
        %5336 = vmatprep.subr.bf16.mxu0 %v4898
        %5337 = vmatpush1.bf16.msra.mxu0 %v4897
        %5338 = vmatprep.subr.bf16.mxu0 %v4914
        %5339 = vmatpush1.bf16.msra.mxu0 %v4913
        %5340 = vmatprep.subr.bf16.mxu0 %v4930
        %5341 = vmatpush1.bf16.msra.mxu0 %v4929
        %5342 = vmatprep.subr.bf16.mxu0 %v4946
        %5343 = vmatpush1.bf16.msra.mxu0 %v4945
        %5344 = vmatprep.subr.bf16.mxu0 %v4962
        %5345 = vmatpush1.bf16.msra.mxu0 %v4961
        %5346 = vmatprep.subr.bf16.mxu0 %v4978
        %5347 = vmatpush1.bf16.msra.mxu0 %v4977
        %5348 = vmatprep.subr.bf16.mxu0 %v4994
        %5349 = vmatpush1.bf16.msra.mxu0 %v4993
        %5350 = vmatprep.subr.bf16.mxu0 %v5010
        %5351 = vmatpush1.bf16.msra.mxu0 %v5009
        %5352 = vmatprep.subr.bf16.mxu0 %v5026
        %5353 = vmatpush1.bf16.msra.mxu0 %v5025
        %5354 = vmatprep.subr.bf16.mxu0 %v5042
        %5355 = vmatpush1.bf16.msra.mxu0 %v5041
        %5356 = vmatprep.subr.bf16.mxu0 %v5058
        %5357 = vmatpush1.bf16.msra.mxu0 %v5057
        %5358 = vmatprep.subr.bf16.mxu0 %v5074
        %5359 = vmatpush1.bf16.msra.mxu0 %v5073
        %5360 = vmatprep.subr.bf16.mxu0 %v5090
        %5361 = vmatpush1.bf16.msra.mxu0 %v5089
        %5362 = vmatprep.subr.bf16.mxu0 %v5106
        %5363 = vmatpush1.bf16.msra.mxu0 %v5105
        %5364 = vmatprep.mubr.bf16.mxu0 %v4344
        %5365 = vmatmul.mubr.bf16.gmra.mrb[0].mxu0 %v4343
        %v5366 = vpop.f32.mrb[0].mxu0
        %v5367 = vadd.f32 %v5324, %v5366
        %v5368 = vpop.f32.mrb[0].mxu0
        %v5369 = vadd.f32 %v5326, %v5368
        %v5370 = vpop.f32.mrb[0].mxu0
        %v5371 = vadd.f32 %v5328, %v5370
        %v5372 = vpop.f32.mrb[0].mxu0
        %v5373 = vadd.f32 %v5330, %v5372
        %5374 = vdwg.mxu0
        %5375 = vmatprep.subr.bf16.mxu0 %v4612
        %5376 = vmatpush1.bf16.msra.mxu0 %v4611
        %5377 = vmatprep.subr.bf16.mxu0 %v4628
        %5378 = vmatpush1.bf16.msra.mxu0 %v4627
        %5379 = vmatprep.subr.bf16.mxu0 %v4644
        %5380 = vmatpush1.bf16.msra.mxu0 %v4643
        %5381 = vmatprep.subr.bf16.mxu0 %v4660
        %5382 = vmatpush1.bf16.msra.mxu0 %v4659
        %5383 = vmatprep.subr.bf16.mxu0 %v4676
        %5384 = vmatpush1.bf16.msra.mxu0 %v4675
        %5385 = vmatprep.subr.bf16.mxu0 %v4692
        %5386 = vmatpush1.bf16.msra.mxu0 %v4691
        %5387 = vmatprep.subr.bf16.mxu0 %v4708
        %5388 = vmatpush1.bf16.msra.mxu0 %v4707
        %5389 = vmatprep.subr.bf16.mxu0 %v4724
        %5390 = vmatpush1.bf16.msra.mxu0 %v4723
        %5391 = vmatprep.subr.bf16.mxu0 %v4740
        %5392 = vmatpush1.bf16.msra.mxu0 %v4739
        %5393 = vmatprep.subr.bf16.mxu0 %v4756
        %5394 = vmatpush1.bf16.msra.mxu0 %v4755
        %5395 = vmatprep.subr.bf16.mxu0 %v4772
        %5396 = vmatpush1.bf16.msra.mxu0 %v4771
        %5397 = vmatprep.subr.bf16.mxu0 %v4788
        %5398 = vmatpush1.bf16.msra.mxu0 %v4787
        %5399 = vmatprep.subr.bf16.mxu0 %v4804
        %5400 = vmatpush1.bf16.msra.mxu0 %v4803
        %5401 = vmatprep.subr.bf16.mxu0 %v4820
        %5402 = vmatpush1.bf16.msra.mxu0 %v4819
        %5403 = vmatprep.subr.bf16.mxu0 %v4836
        %5404 = vmatpush1.bf16.msra.mxu0 %v4835
        %5405 = vmatprep.subr.bf16.mxu0 %v4852
        %5406 = vmatpush1.bf16.msra.mxu0 %v4851
        %5407 = vmatprep.mubr.bf16.mxu0 %v4342
        %5408 = vmatmul.mubr.bf16.gmra.mrb[0].mxu0 %v4341
        %v5409 = vpop.f32.mrb[0].mxu0
        %v5410 = vadd.f32 0.0, %v5409
        %v5411 = vpop.f32.mrb[0].mxu0
        %v5412 = vadd.f32 0.0, %v5411
        %v5413 = vpop.f32.mrb[0].mxu0
        %v5414 = vadd.f32 0.0, %v5413
        %v5415 = vpop.f32.mrb[0].mxu0
        %v5416 = vadd.f32 0.0, %v5415
        %5417 = vdwg.mxu0
        %5418 = vmatprep.subr.bf16.mxu0 %v4868
        %5419 = vmatpush1.bf16.msra.mxu0 %v4867
        %5420 = vmatprep.subr.bf16.mxu0 %v4884
        %5421 = vmatpush1.bf16.msra.mxu0 %v4883
        %5422 = vmatprep.subr.bf16.mxu0 %v4900
        %5423 = vmatpush1.bf16.msra.mxu0 %v4899
        %5424 = vmatprep.subr.bf16.mxu0 %v4916
        %5425 = vmatpush1.bf16.msra.mxu0 %v4915
        %5426 = vmatprep.subr.bf16.mxu0 %v4932
        %5427 = vmatpush1.bf16.msra.mxu0 %v4931
        %5428 = vmatprep.subr.bf16.mxu0 %v4948
        %5429 = vmatpush1.bf16.msra.mxu0 %v4947
        %5430 = vmatprep.subr.bf16.mxu0 %v4964
        %5431 = vmatpush1.bf16.msra.mxu0 %v4963
        %5432 = vmatprep.subr.bf16.mxu0 %v4980
        %5433 = vmatpush1.bf16.msra.mxu0 %v4979
        %5434 = vmatprep.subr.bf16.mxu0 %v4996
        %5435 = vmatpush1.bf16.msra.mxu0 %v4995
        %5436 = vmatprep.subr.bf16.mxu0 %v5012
        %5437 = vmatpush1.bf16.msra.mxu0 %v5011
        %5438 = vmatprep.subr.bf16.mxu0 %v5028
        %5439 = vmatpush1.bf16.msra.mxu0 %v5027
        %5440 = vmatprep.subr.bf16.mxu0 %v5044
        %5441 = vmatpush1.bf16.msra.mxu0 %v5043
        %5442 = vmatprep.subr.bf16.mxu0 %v5060
        %5443 = vmatpush1.bf16.msra.mxu0 %v5059
        %5444 = vmatprep.subr.bf16.mxu0 %v5076
        %5445 = vmatpush1.bf16.msra.mxu0 %v5075
        %5446 = vmatprep.subr.bf16.mxu0 %v5092
        %5447 = vmatpush1.bf16.msra.mxu0 %v5091
        %5448 = vmatprep.subr.bf16.mxu0 %v5108
        %5449 = vmatpush1.bf16.msra.mxu0 %v5107
        %5450 = vmatprep.mubr.bf16.mxu0 %v4344
        %5451 = vmatmul.mubr.bf16.gmra.mrb[0].mxu0 %v4343
        %v5452 = vpop.f32.mrb[0].mxu0
        %v5453 = vadd.f32 %v5410, %v5452
        %v5454 = vpop.f32.mrb[0].mxu0
        %v5455 = vadd.f32 %v5412, %v5454
        %v5456 = vpop.f32.mrb[0].mxu0
        %v5457 = vadd.f32 %v5414, %v5456
        %v5458 = vpop.f32.mrb[0].mxu0
        %v5459 = vadd.f32 %v5416, %v5458
        %5460 = vdwg.mxu0
        %5461 = vmatprep.subr.bf16.mxu0 %v4614
        %5462 = vmatpush1.bf16.msra.mxu0 %v4613
        %5463 = vmatprep.subr.bf16.mxu0 %v4630
        %5464 = vmatpush1.bf16.msra.mxu0 %v4629
        %5465 = vmatprep.subr.bf16.mxu0 %v4646
        %5466 = vmatpush1.bf16.msra.mxu0 %v4645
        %5467 = vmatprep.subr.bf16.mxu0 %v4662
        %5468 = vmatpush1.bf16.msra.mxu0 %v4661
        %5469 = vmatprep.subr.bf16.mxu0 %v4678
        %5470 = vmatpush1.bf16.msra.mxu0 %v4677
        %5471 = vmatprep.subr.bf16.mxu0 %v4694
        %5472 = vmatpush1.bf16.msra.mxu0 %v4693
        %5473 = vmatprep.subr.bf16.mxu0 %v4710
        %5474 = vmatpush1.bf16.msra.mxu0 %v4709
        %5475 = vmatprep.subr.bf16.mxu0 %v4726
        %5476 = vmatpush1.bf16.msra.mxu0 %v4725
        %5477 = vmatprep.subr.bf16.mxu0 %v4742
        %5478 = vmatpush1.bf16.msra.mxu0 %v4741
        %5479 = vmatprep.subr.bf16.mxu0 %v4758
        %5480 = vmatpush1.bf16.msra.mxu0 %v4757
        %5481 = vmatprep.subr.bf16.mxu0 %v4774
        %5482 = vmatpush1.bf16.msra.mxu0 %v4773
        %5483 = vmatprep.subr.bf16.mxu0 %v4790
        %5484 = vmatpush1.bf16.msra.mxu0 %v4789
        %5485 = vmatprep.subr.bf16.mxu0 %v4806
        %5486 = vmatpush1.bf16.msra.mxu0 %v4805
        %5487 = vmatprep.subr.bf16.mxu0 %v4822
        %5488 = vmatpush1.bf16.msra.mxu0 %v4821
        %5489 = vmatprep.subr.bf16.mxu0 %v4838
        %5490 = vmatpush1.bf16.msra.mxu0 %v4837
        %5491 = vmatprep.subr.bf16.mxu0 %v4854
        %5492 = vmatpush1.bf16.msra.mxu0 %v4853
        %5493 = vmatprep.mubr.bf16.mxu0 %v4342
        %5494 = vmatmul.mubr.bf16.gmra.mrb[0].mxu0 %v4341
        %v5495 = vpop.f32.mrb[0].mxu0
        %v5496 = vadd.f32 0.0, %v5495
        %v5497 = vpop.f32.mrb[0].mxu0
        %v5498 = vadd.f32 0.0, %v5497
        %v5499 = vpop.f32.mrb[0].mxu0
        %v5500 = vadd.f32 0.0, %v5499
        %v5501 = vpop.f32.mrb[0].mxu0
        %v5502 = vadd.f32 0.0, %v5501
        %5503 = vdwg.mxu0
        %5504 = vmatprep.subr.bf16.mxu0 %v4870
        %5505 = vmatpush1.bf16.msra.mxu0 %v4869
        %5506 = vmatprep.subr.bf16.mxu0 %v4886
        %5507 = vmatpush1.bf16.msra.mxu0 %v4885
        %5508 = vmatprep.subr.bf16.mxu0 %v4902
        %5509 = vmatpush1.bf16.msra.mxu0 %v4901
        %5510 = vmatprep.subr.bf16.mxu0 %v4918
        %5511 = vmatpush1.bf16.msra.mxu0 %v4917
        %5512 = vmatprep.subr.bf16.mxu0 %v4934
        %5513 = vmatpush1.bf16.msra.mxu0 %v4933
        %5514 = vmatprep.subr.bf16.mxu0 %v4950
        %5515 = vmatpush1.bf16.msra.mxu0 %v4949
        %5516 = vmatprep.subr.bf16.mxu0 %v4966
        %5517 = vmatpush1.bf16.msra.mxu0 %v4965
        %5518 = vmatprep.subr.bf16.mxu0 %v4982
        %5519 = vmatpush1.bf16.msra.mxu0 %v4981
        %5520 = vmatprep.subr.bf16.mxu0 %v4998
        %5521 = vmatpush1.bf16.msra.mxu0 %v4997
        %5522 = vmatprep.subr.bf16.mxu0 %v5014
        %5523 = vmatpush1.bf16.msra.mxu0 %v5013
        %5524 = vmatprep.subr.bf16.mxu0 %v5030
        %5525 = vmatpush1.bf16.msra.mxu0 %v5029
        %5526 = vmatprep.subr.bf16.mxu0 %v5046
        %5527 = vmatpush1.bf16.msra.mxu0 %v5045
        %5528 = vmatprep.subr.bf16.mxu0 %v5062
        %5529 = vmatpush1.bf16.msra.mxu0 %v5061
        %5530 = vmatprep.subr.bf16.mxu0 %v5078
        %5531 = vmatpush1.bf16.msra.mxu0 %v5077
        %5532 = vmatprep.subr.bf16.mxu0 %v5094
        %5533 = vmatpush1.bf16.msra.mxu0 %v5093
        %5534 = vmatprep.subr.bf16.mxu0 %v5110
        %5535 = vmatpush1.bf16.msra.mxu0 %v5109
        %5536 = vmatprep.mubr.bf16.mxu0 %v4344
        %5537 = vmatmul.mubr.bf16.gmra.mrb[0].mxu0 %v4343
        %v5538 = vpop.f32.mrb[0].mxu0
        %v5539 = vadd.f32 %v5496, %v5538
        %v5540 = vpop.f32.mrb[0].mxu0
        %v5541 = vadd.f32 %v5498, %v5540
        %v5542 = vpop.f32.mrb[0].mxu0
        %v5543 = vadd.f32 %v5500, %v5542
        %v5544 = vpop.f32.mrb[0].mxu0
        %v5545 = vadd.f32 %v5502, %v5544
        %5546 = vdwg.mxu0
        %5547 = vmatprep.subr.bf16.mxu0 %v4616
        %5548 = vmatpush1.bf16.msra.mxu0 %v4615
        %5549 = vmatprep.subr.bf16.mxu0 %v4632
        %5550 = vmatpush1.bf16.msra.mxu0 %v4631
        %5551 = vmatprep.subr.bf16.mxu0 %v4648
        %5552 = vmatpush1.bf16.msra.mxu0 %v4647
        %5553 = vmatprep.subr.bf16.mxu0 %v4664
        %5554 = vmatpush1.bf16.msra.mxu0 %v4663
        %5555 = vmatprep.subr.bf16.mxu0 %v4680
        %5556 = vmatpush1.bf16.msra.mxu0 %v4679
        %5557 = vmatprep.subr.bf16.mxu0 %v4696
        %5558 = vmatpush1.bf16.msra.mxu0 %v4695
        %5559 = vmatprep.subr.bf16.mxu0 %v4712
        %5560 = vmatpush1.bf16.msra.mxu0 %v4711
        %5561 = vmatprep.subr.bf16.mxu0 %v4728
        %5562 = vmatpush1.bf16.msra.mxu0 %v4727
        %5563 = vmatprep.subr.bf16.mxu0 %v4744
        %5564 = vmatpush1.bf16.msra.mxu0 %v4743
        %5565 = vmatprep.subr.bf16.mxu0 %v4760
        %5566 = vmatpush1.bf16.msra.mxu0 %v4759
        %5567 = vmatprep.subr.bf16.mxu0 %v4776
        %5568 = vmatpush1.bf16.msra.mxu0 %v4775
        %5569 = vmatprep.subr.bf16.mxu0 %v4792
        %5570 = vmatpush1.bf16.msra.mxu0 %v4791
        %5571 = vmatprep.subr.bf16.mxu0 %v4808
        %5572 = vmatpush1.bf16.msra.mxu0 %v4807
        %5573 = vmatprep.subr.bf16.mxu0 %v4824
        %5574 = vmatpush1.bf16.msra.mxu0 %v4823
        %5575 = vmatprep.subr.bf16.mxu0 %v4840
        %5576 = vmatpush1.bf16.msra.mxu0 %v4839
        %5577 = vmatprep.subr.bf16.mxu0 %v4856
        %5578 = vmatpush1.bf16.msra.mxu0 %v4855
        %5579 = vmatprep.mubr.bf16.mxu0 %v4342
        %5580 = vmatmul.mubr.bf16.gmra.mrb[0].mxu0 %v4341
        %v5581 = vpop.f32.mrb[0].mxu0
        %v5582 = vadd.f32 0.0, %v5581
        %v5583 = vpop.f32.mrb[0].mxu0
        %v5584 = vadd.f32 0.0, %v5583
        %v5585 = vpop.f32.mrb[0].mxu0
        %v5586 = vadd.f32 0.0, %v5585
        %v5587 = vpop.f32.mrb[0].mxu0
        %v5588 = vadd.f32 0.0, %v5587
        %5589 = vdwg.mxu0
        %5590 = vmatprep.subr.bf16.mxu0 %v4872
        %5591 = vmatpush1.bf16.msra.mxu0 %v4871
        %5592 = vmatprep.subr.bf16.mxu0 %v4888
        %5593 = vmatpush1.bf16.msra.mxu0 %v4887
        %5594 = vmatprep.subr.bf16.mxu0 %v4904
        %5595 = vmatpush1.bf16.msra.mxu0 %v4903
        %5596 = vmatprep.subr.bf16.mxu0 %v4920
        %5597 = vmatpush1.bf16.msra.mxu0 %v4919
        %5598 = vmatprep.subr.bf16.mxu0 %v4936
        %5599 = vmatpush1.bf16.msra.mxu0 %v4935
        %5600 = vmatprep.subr.bf16.mxu0 %v4952
        %5601 = vmatpush1.bf16.msra.mxu0 %v4951
        %5602 = vmatprep.subr.bf16.mxu0 %v4968
        %5603 = vmatpush1.bf16.msra.mxu0 %v4967
        %5604 = vmatprep.subr.bf16.mxu0 %v4984
        %5605 = vmatpush1.bf16.msra.mxu0 %v4983
        %5606 = vmatprep.subr.bf16.mxu0 %v5000
        %5607 = vmatpush1.bf16.msra.mxu0 %v4999
        %5608 = vmatprep.subr.bf16.mxu0 %v5016
        %5609 = vmatpush1.bf16.msra.mxu0 %v5015
        %5610 = vmatprep.subr.bf16.mxu0 %v5032
        %5611 = vmatpush1.bf16.msra.mxu0 %v5031
        %5612 = vmatprep.subr.bf16.mxu0 %v5048
        %5613 = vmatpush1.bf16.msra.mxu0 %v5047
        %5614 = vmatprep.subr.bf16.mxu0 %v5064
        %5615 = vmatpush1.bf16.msra.mxu0 %v5063
        %5616 = vmatprep.subr.bf16.mxu0 %v5080
        %5617 = vmatpush1.bf16.msra.mxu0 %v5079
        %5618 = vmatprep.subr.bf16.mxu0 %v5096
        %5619 = vmatpush1.bf16.msra.mxu0 %v5095
        %5620 = vmatprep.subr.bf16.mxu0 %v5112
        %5621 = vmatpush1.bf16.msra.mxu0 %v5111
        %5622 = vmatprep.mubr.bf16.mxu0 %v4344
        %5623 = vmatmul.mubr.bf16.gmra.mrb[0].mxu0 %v4343
        %v5624 = vpop.f32.mrb[0].mxu0
        %v5625 = vadd.f32 %v5582, %v5624
        %v5626 = vpop.f32.mrb[0].mxu0
        %v5627 = vadd.f32 %v5584, %v5626
        %v5628 = vpop.f32.mrb[0].mxu0
        %v5629 = vadd.f32 %v5586, %v5628
        %v5630 = vpop.f32.mrb[0].mxu0
        %v5631 = vadd.f32 %v5588, %v5630
        %5632 = vdwg.mxu0
        %5633 = vmatprep.subr.bf16.mxu0 %v4618
        %5634 = vmatpush1.bf16.msra.mxu0 %v4617
        %5635 = vmatprep.subr.bf16.mxu0 %v4634
        %5636 = vmatpush1.bf16.msra.mxu0 %v4633
        %5637 = vmatprep.subr.bf16.mxu0 %v4650
        %5638 = vmatpush1.bf16.msra.mxu0 %v4649
        %5639 = vmatprep.subr.bf16.mxu0 %v4666
        %5640 = vmatpush1.bf16.msra.mxu0 %v4665
        %5641 = vmatprep.subr.bf16.mxu0 %v4682
        %5642 = vmatpush1.bf16.msra.mxu0 %v4681
        %5643 = vmatprep.subr.bf16.mxu0 %v4698
        %5644 = vmatpush1.bf16.msra.mxu0 %v4697
        %5645 = vmatprep.subr.bf16.mxu0 %v4714
        %5646 = vmatpush1.bf16.msra.mxu0 %v4713
        %5647 = vmatprep.subr.bf16.mxu0 %v4730
        %5648 = vmatpush1.bf16.msra.mxu0 %v4729
        %5649 = vmatprep.subr.bf16.mxu0 %v4746
        %5650 = vmatpush1.bf16.msra.mxu0 %v4745
        %5651 = vmatprep.subr.bf16.mxu0 %v4762
        %5652 = vmatpush1.bf16.msra.mxu0 %v4761
        %5653 = vmatprep.subr.bf16.mxu0 %v4778
        %5654 = vmatpush1.bf16.msra.mxu0 %v4777
        %5655 = vmatprep.subr.bf16.mxu0 %v4794
        %5656 = vmatpush1.bf16.msra.mxu0 %v4793
        %5657 = vmatprep.subr.bf16.mxu0 %v4810
        %5658 = vmatpush1.bf16.msra.mxu0 %v4809
        %5659 = vmatprep.subr.bf16.mxu0 %v4826
        %5660 = vmatpush1.bf16.msra.mxu0 %v4825
        %5661 = vmatprep.subr.bf16.mxu0 %v4842
        %5662 = vmatpush1.bf16.msra.mxu0 %v4841
        %5663 = vmatprep.subr.bf16.mxu0 %v4858
        %5664 = vmatpush1.bf16.msra.mxu0 %v4857
        %5665 = vmatprep.mubr.bf16.mxu0 %v4342
        %5666 = vmatmul.mubr.bf16.gmra.mrb[0].mxu0 %v4341
        %v5667 = vpop.f32.mrb[0].mxu0
        %v5668 = vadd.f32 0.0, %v5667
        %v5669 = vpop.f32.mrb[0].mxu0
        %v5670 = vadd.f32 0.0, %v5669
        %v5671 = vpop.f32.mrb[0].mxu0
        %v5672 = vadd.f32 0.0, %v5671
        %v5673 = vpop.f32.mrb[0].mxu0
        %v5674 = vadd.f32 0.0, %v5673
        %5675 = vdwg.mxu0
        %5676 = vmatprep.subr.bf16.mxu0 %v4874
        %5677 = vmatpush1.bf16.msra.mxu0 %v4873
        %5678 = vmatprep.subr.bf16.mxu0 %v4890
        %5679 = vmatpush1.bf16.msra.mxu0 %v4889
        %5680 = vmatprep.subr.bf16.mxu0 %v4906
        %5681 = vmatpush1.bf16.msra.mxu0 %v4905
        %5682 = vmatprep.subr.bf16.mxu0 %v4922
        %5683 = vmatpush1.bf16.msra.mxu0 %v4921
        %5684 = vmatprep.subr.bf16.mxu0 %v4938
        %5685 = vmatpush1.bf16.msra.mxu0 %v4937
        %5686 = vmatprep.subr.bf16.mxu0 %v4954
        %5687 = vmatpush1.bf16.msra.mxu0 %v4953
        %5688 = vmatprep.subr.bf16.mxu0 %v4970
        %5689 = vmatpush1.bf16.msra.mxu0 %v4969
        %5690 = vmatprep.subr.bf16.mxu0 %v4986
        %5691 = vmatpush1.bf16.msra.mxu0 %v4985
        %5692 = vmatprep.subr.bf16.mxu0 %v5002
        %5693 = vmatpush1.bf16.msra.mxu0 %v5001
        %5694 = vmatprep.subr.bf16.mxu0 %v5018
        %5695 = vmatpush1.bf16.msra.mxu0 %v5017
        %5696 = vmatprep.subr.bf16.mxu0 %v5034
        %5697 = vmatpush1.bf16.msra.mxu0 %v5033
        %5698 = vmatprep.subr.bf16.mxu0 %v5050
        %5699 = vmatpush1.bf16.msra.mxu0 %v5049
        %5700 = vmatprep.subr.bf16.mxu0 %v5066
        %5701 = vmatpush1.bf16.msra.mxu0 %v5065
        %5702 = vmatprep.subr.bf16.mxu0 %v5082
        %5703 = vmatpush1.bf16.msra.mxu0 %v5081
        %5704 = vmatprep.subr.bf16.mxu0 %v5098
        %5705 = vmatpush1.bf16.msra.mxu0 %v5097
        %5706 = vmatprep.subr.bf16.mxu0 %v5114
        %5707 = vmatpush1.bf16.msra.mxu0 %v5113
        %5708 = vmatprep.mubr.bf16.mxu0 %v4344
        %5709 = vmatmul.mubr.bf16.gmra.mrb[0].mxu0 %v4343
        %v5710 = vpop.f32.mrb[0].mxu0
        %v5711 = vadd.f32 %v5668, %v5710
        %v5712 = vpop.f32.mrb[0].mxu0
        %v5713 = vadd.f32 %v5670, %v5712
        %v5714 = vpop.f32.mrb[0].mxu0
        %v5715 = vadd.f32 %v5672, %v5714
        %v5716 = vpop.f32.mrb[0].mxu0
        %v5717 = vadd.f32 %v5674, %v5716
        %5718 = vdwg.mxu0
        %5719 = vmatprep.subr.bf16.mxu0 %v4620
        %5720 = vmatpush1.bf16.msra.mxu0 %v4619
        %5721 = vmatprep.subr.bf16.mxu0 %v4636
        %5722 = vmatpush1.bf16.msra.mxu0 %v4635
        %5723 = vmatprep.subr.bf16.mxu0 %v4652
        %5724 = vmatpush1.bf16.msra.mxu0 %v4651
        %5725 = vmatprep.subr.bf16.mxu0 %v4668
        %5726 = vmatpush1.bf16.msra.mxu0 %v4667
        %5727 = vmatprep.subr.bf16.mxu0 %v4684
        %5728 = vmatpush1.bf16.msra.mxu0 %v4683
        %5729 = vmatprep.subr.bf16.mxu0 %v4700
        %5730 = vmatpush1.bf16.msra.mxu0 %v4699
        %5731 = vmatprep.subr.bf16.mxu0 %v4716
        %5732 = vmatpush1.bf16.msra.mxu0 %v4715
        %5733 = vmatprep.subr.bf16.mxu0 %v4732
        %5734 = vmatpush1.bf16.msra.mxu0 %v4731
        %5735 = vmatprep.subr.bf16.mxu0 %v4748
        %5736 = vmatpush1.bf16.msra.mxu0 %v4747
        %5737 = vmatprep.subr.bf16.mxu0 %v4764
        %5738 = vmatpush1.bf16.msra.mxu0 %v4763
        %5739 = vmatprep.subr.bf16.mxu0 %v4780
        %5740 = vmatpush1.bf16.msra.mxu0 %v4779
        %5741 = vmatprep.subr.bf16.mxu0 %v4796
        %5742 = vmatpush1.bf16.msra.mxu0 %v4795
        %5743 = vmatprep.subr.bf16.mxu0 %v4812
        %5744 = vmatpush1.bf16.msra.mxu0 %v4811
        %5745 = vmatprep.subr.bf16.mxu0 %v4828
        %5746 = vmatpush1.bf16.msra.mxu0 %v4827
        %5747 = vmatprep.subr.bf16.mxu0 %v4844
        %5748 = vmatpush1.bf16.msra.mxu0 %v4843
        %5749 = vmatprep.subr.bf16.mxu0 %v4860
        %5750 = vmatpush1.bf16.msra.mxu0 %v4859
        %5751 = vmatprep.mubr.bf16.mxu0 %v4342
        %5752 = vmatmul.mubr.bf16.gmra.mrb[0].mxu0 %v4341
        %v5753 = vpop.f32.mrb[0].mxu0
        %v5754 = vadd.f32 0.0, %v5753
        %v5755 = vpop.f32.mrb[0].mxu0
        %v5756 = vadd.f32 0.0, %v5755
        %v5757 = vpop.f32.mrb[0].mxu0
        %v5758 = vadd.f32 0.0, %v5757
        %v5759 = vpop.f32.mrb[0].mxu0
        %v5760 = vadd.f32 0.0, %v5759
        %5761 = vdwg.mxu0
        %5762 = vmatprep.subr.bf16.mxu0 %v4876
        %5763 = vmatpush1.bf16.msra.mxu0 %v4875
        %5764 = vmatprep.subr.bf16.mxu0 %v4892
        %5765 = vmatpush1.bf16.msra.mxu0 %v4891
        %5766 = vmatprep.subr.bf16.mxu0 %v4908
        %5767 = vmatpush1.bf16.msra.mxu0 %v4907
        %5768 = vmatprep.subr.bf16.mxu0 %v4924
        %5769 = vmatpush1.bf16.msra.mxu0 %v4923
        %5770 = vmatprep.subr.bf16.mxu0 %v4940
        %5771 = vmatpush1.bf16.msra.mxu0 %v4939
        %5772 = vmatprep.subr.bf16.mxu0 %v4956
        %5773 = vmatpush1.bf16.msra.mxu0 %v4955
        %5774 = vmatprep.subr.bf16.mxu0 %v4972
        %5775 = vmatpush1.bf16.msra.mxu0 %v4971
        %5776 = vmatprep.subr.bf16.mxu0 %v4988
        %5777 = vmatpush1.bf16.msra.mxu0 %v4987
        %5778 = vmatprep.subr.bf16.mxu0 %v5004
        %5779 = vmatpush1.bf16.msra.mxu0 %v5003
        %5780 = vmatprep.subr.bf16.mxu0 %v5020
        %5781 = vmatpush1.bf16.msra.mxu0 %v5019
        %5782 = vmatprep.subr.bf16.mxu0 %v5036
        %5783 = vmatpush1.bf16.msra.mxu0 %v5035
        %5784 = vmatprep.subr.bf16.mxu0 %v5052
        %5785 = vmatpush1.bf16.msra.mxu0 %v5051
        %5786 = vmatprep.subr.bf16.mxu0 %v5068
        %5787 = vmatpush1.bf16.msra.mxu0 %v5067
        %5788 = vmatprep.subr.bf16.mxu0 %v5084
        %5789 = vmatpush1.bf16.msra.mxu0 %v5083
        %5790 = vmatprep.subr.bf16.mxu0 %v5100
        %5791 = vmatpush1.bf16.msra.mxu0 %v5099
        %5792 = vmatprep.subr.bf16.mxu0 %v5116
        %5793 = vmatpush1.bf16.msra.mxu0 %v5115
        %5794 = vmatprep.mubr.bf16.mxu0 %v4344
        %5795 = vmatmul.mubr.bf16.gmra.mrb[0].mxu0 %v4343
        %v5796 = vpop.f32.mrb[0].mxu0
        %v5797 = vadd.f32 %v5754, %v5796
        %v5798 = vpop.f32.mrb[0].mxu0
        %v5799 = vadd.f32 %v5756, %v5798
        %v5800 = vpop.f32.mrb[0].mxu0
        %v5801 = vadd.f32 %v5758, %v5800
        %v5802 = vpop.f32.mrb[0].mxu0
        %v5803 = vadd.f32 %v5760, %v5802
        %5804 = vdwg.mxu0
        %v5807 = vlaneseq
        %v5808 = vshrl.u32 %v5807, 7
        %v5809 = vsub.s32 0, %v5808
        %v5810 = vrot.slane %v4345, %v5809
        %v5811 = vlaneseq
        %v5812 = vshrl.u32 %v5811, 7
        %v5813 = vsub.s32 1, %v5812
        %v5814 = vrot.slane %v4345, %v5813
        %v5815 = vlaneseq
        %v5816 = vshrl.u32 %v5815, 7
        %v5817 = vsub.s32 2, %v5816
        %v5818 = vrot.slane %v4345, %v5817
        %v5819 = vlaneseq
        %v5820 = vshrl.u32 %v5819, 7
        %v5821 = vsub.s32 3, %v5820
        %v5822 = vrot.slane %v4345, %v5821
        %v5823 = vlaneseq
        %v5824 = vshrl.u32 %v5823, 7
        %v5825 = vsub.s32 4, %v5824
        %v5826 = vrot.slane %v4345, %v5825
        %v5827 = vlaneseq
        %v5828 = vshrl.u32 %v5827, 7
        %v5829 = vsub.s32 5, %v5828
        %v5830 = vrot.slane %v4345, %v5829
        %v5831 = vlaneseq
        %v5832 = vshrl.u32 %v5831, 7
        %v5833 = vsub.s32 6, %v5832
        %v5834 = vrot.slane %v4345, %v5833
        %v5835 = vlaneseq
        %v5836 = vshrl.u32 %v5835, 7
        %v5837 = vsub.s32 7, %v5836
        %v5838 = vrot.slane %v4345, %v5837
        %v5839 = vlaneseq
        %v5840 = vshrl.u32 %v5839, 7
        %v5841 = vsub.s32 0, %v5840
        %v5842 = vrot.slane %v4346, %v5841
        %v5843 = vlaneseq
        %v5844 = vshrl.u32 %v5843, 7
        %v5845 = vsub.s32 1, %v5844
        %v5846 = vrot.slane %v4346, %v5845
        %v5847 = vlaneseq
        %v5848 = vshrl.u32 %v5847, 7
        %v5849 = vsub.s32 2, %v5848
        %v5850 = vrot.slane %v4346, %v5849
        %v5851 = vlaneseq
        %v5852 = vshrl.u32 %v5851, 7
        %v5853 = vsub.s32 3, %v5852
        %v5854 = vrot.slane %v4346, %v5853
        %v5855 = vlaneseq
        %v5856 = vshrl.u32 %v5855, 7
        %v5857 = vsub.s32 4, %v5856
        %v5858 = vrot.slane %v4346, %v5857
        %v5859 = vlaneseq
        %v5860 = vshrl.u32 %v5859, 7
        %v5861 = vsub.s32 5, %v5860
        %v5862 = vrot.slane %v4346, %v5861
        %v5863 = vlaneseq
        %v5864 = vshrl.u32 %v5863, 7
        %v5865 = vsub.s32 6, %v5864
        %v5866 = vrot.slane %v4346, %v5865
        %v5867 = vlaneseq
        %v5868 = vshrl.u32 %v5867, 7
        %v5869 = vsub.s32 7, %v5868
        %v5870 = vrot.slane %v4346, %v5869
        %v5887 = vmul.f32 %v5195, %v5810
        %v5888 = vmul.f32 %v5197, %v5814
        %v5889 = vmul.f32 %v5281, %v5818
        %v5890 = vmul.f32 %v5283, %v5822
        %v5891 = vmul.f32 %v5367, %v5826
        %v5892 = vmul.f32 %v5369, %v5830
        %v5893 = vmul.f32 %v5453, %v5834
        %v5894 = vmul.f32 %v5455, %v5838
        %v5895 = vmul.f32 %v5539, %v5842
        %v5896 = vmul.f32 %v5541, %v5846
        %v5897 = vmul.f32 %v5625, %v5850
        %v5898 = vmul.f32 %v5627, %v5854
        %v5899 = vmul.f32 %v5711, %v5858
        %v5900 = vmul.f32 %v5713, %v5862
        %v5901 = vmul.f32 %v5797, %v5866
        %v5902 = vmul.f32 %v5799, %v5870
        %v5903 = vmul.f32 %v5199, %v5810
        %v5904 = vmul.f32 %v5201, %v5814
        %v5905 = vmul.f32 %v5285, %v5818
        %v5906 = vmul.f32 %v5287, %v5822
        %v5907 = vmul.f32 %v5371, %v5826
        %v5908 = vmul.f32 %v5373, %v5830
        %v5909 = vmul.f32 %v5457, %v5834
        %v5910 = vmul.f32 %v5459, %v5838
        %v5911 = vmul.f32 %v5543, %v5842
        %v5912 = vmul.f32 %v5545, %v5846
        %v5913 = vmul.f32 %v5629, %v5850
        %v5914 = vmul.f32 %v5631, %v5854
        %v5915 = vmul.f32 %v5715, %v5858
        %v5916 = vmul.f32 %v5717, %v5862
        %v5917 = vmul.f32 %v5801, %v5866
        %v5918 = vmul.f32 %v5803, %v5870
        %v5921 = vlaneseq
        %v5922 = vshrl.u32 %v5921, 7
        %v5923 = vsub.s32 0, %v5922
        %v5924 = vrot.slane %v4347, %v5923
        %v5925 = vlaneseq
        %v5926 = vshrl.u32 %v5925, 7
        %v5927 = vsub.s32 1, %v5926
        %v5928 = vrot.slane %v4347, %v5927
        %v5929 = vlaneseq
        %v5930 = vshrl.u32 %v5929, 7
        %v5931 = vsub.s32 2, %v5930
        %v5932 = vrot.slane %v4347, %v5931
        %v5933 = vlaneseq
        %v5934 = vshrl.u32 %v5933, 7
        %v5935 = vsub.s32 3, %v5934
        %v5936 = vrot.slane %v4347, %v5935
        %v5937 = vlaneseq
        %v5938 = vshrl.u32 %v5937, 7
        %v5939 = vsub.s32 4, %v5938
        %v5940 = vrot.slane %v4347, %v5939
        %v5941 = vlaneseq
        %v5942 = vshrl.u32 %v5941, 7
        %v5943 = vsub.s32 5, %v5942
        %v5944 = vrot.slane %v4347, %v5943
        %v5945 = vlaneseq
        %v5946 = vshrl.u32 %v5945, 7
        %v5947 = vsub.s32 6, %v5946
        %v5948 = vrot.slane %v4347, %v5947
        %v5949 = vlaneseq
        %v5950 = vshrl.u32 %v5949, 7
        %v5951 = vsub.s32 7, %v5950
        %v5952 = vrot.slane %v4347, %v5951
        %v5953 = vlaneseq
        %v5954 = vshrl.u32 %v5953, 7
        %v5955 = vsub.s32 0, %v5954
        %v5956 = vrot.slane %v4348, %v5955
        %v5957 = vlaneseq
        %v5958 = vshrl.u32 %v5957, 7
        %v5959 = vsub.s32 1, %v5958
        %v5960 = vrot.slane %v4348, %v5959
        %v5961 = vlaneseq
        %v5962 = vshrl.u32 %v5961, 7
        %v5963 = vsub.s32 2, %v5962
        %v5964 = vrot.slane %v4348, %v5963
        %v5965 = vlaneseq
        %v5966 = vshrl.u32 %v5965, 7
        %v5967 = vsub.s32 3, %v5966
        %v5968 = vrot.slane %v4348, %v5967
        %v5969 = vlaneseq
        %v5970 = vshrl.u32 %v5969, 7
        %v5971 = vsub.s32 4, %v5970
        %v5972 = vrot.slane %v4348, %v5971
        %v5973 = vlaneseq
        %v5974 = vshrl.u32 %v5973, 7
        %v5975 = vsub.s32 5, %v5974
        %v5976 = vrot.slane %v4348, %v5975
        %v5977 = vlaneseq
        %v5978 = vshrl.u32 %v5977, 7
        %v5979 = vsub.s32 6, %v5978
        %v5980 = vrot.slane %v4348, %v5979
        %v5981 = vlaneseq
        %v5982 = vshrl.u32 %v5981, 7
        %v5983 = vsub.s32 7, %v5982
        %v5984 = vrot.slane %v4348, %v5983
        %v6001 = vadd.f32 %v5887, %v5924
        %v6002 = vadd.f32 %v5888, %v5928
        %v6003 = vadd.f32 %v5889, %v5932
        %v6004 = vadd.f32 %v5890, %v5936
        %v6005 = vadd.f32 %v5891, %v5940
        %v6006 = vadd.f32 %v5892, %v5944
        %v6007 = vadd.f32 %v5893, %v5948
        %v6008 = vadd.f32 %v5894, %v5952
        %v6009 = vadd.f32 %v5895, %v5956
        %v6010 = vadd.f32 %v5896, %v5960
        %v6011 = vadd.f32 %v5897, %v5964
        %v6012 = vadd.f32 %v5898, %v5968
        %v6013 = vadd.f32 %v5899, %v5972
        %v6014 = vadd.f32 %v5900, %v5976
        %v6015 = vadd.f32 %v5901, %v5980
        %v6016 = vadd.f32 %v5902, %v5984
        %v6017 = vadd.f32 %v5903, %v5924
        %v6018 = vadd.f32 %v5904, %v5928
        %v6019 = vadd.f32 %v5905, %v5932
        %v6020 = vadd.f32 %v5906, %v5936
        %v6021 = vadd.f32 %v5907, %v5940
        %v6022 = vadd.f32 %v5908, %v5944
        %v6023 = vadd.f32 %v5909, %v5948
        %v6024 = vadd.f32 %v5910, %v5952
        %v6025 = vadd.f32 %v5911, %v5956
        %v6026 = vadd.f32 %v5912, %v5960
        %v6027 = vadd.f32 %v5913, %v5964
        %v6028 = vadd.f32 %v5914, %v5968
        %v6029 = vadd.f32 %v5915, %v5972
        %v6030 = vadd.f32 %v5916, %v5976
        %v6031 = vadd.f32 %v5917, %v5980
        %v6032 = vadd.f32 %v5918, %v5984
        %v6033 = vmax.f32 %v6001, 0.0
        %v6034 = vmax.f32 %v6002, 0.0
        %v6035 = vmax.f32 %v6003, 0.0
        %v6036 = vmax.f32 %v6004, 0.0
        %v6037 = vmax.f32 %v6005, 0.0
        %v6038 = vmax.f32 %v6006, 0.0
        %v6039 = vmax.f32 %v6007, 0.0
        %v6040 = vmax.f32 %v6008, 0.0
        %v6041 = vmax.f32 %v6009, 0.0
        %v6042 = vmax.f32 %v6010, 0.0
        %v6043 = vmax.f32 %v6011, 0.0
        %v6044 = vmax.f32 %v6012, 0.0
        %v6045 = vmax.f32 %v6013, 0.0
        %v6046 = vmax.f32 %v6014, 0.0
        %v6047 = vmax.f32 %v6015, 0.0
        %v6048 = vmax.f32 %v6016, 0.0
        %v6049 = vmax.f32 %v6017, 0.0
        %v6050 = vmax.f32 %v6018, 0.0
        %v6051 = vmax.f32 %v6019, 0.0
        %v6052 = vmax.f32 %v6020, 0.0
        %v6053 = vmax.f32 %v6021, 0.0
        %v6054 = vmax.f32 %v6022, 0.0
        %v6055 = vmax.f32 %v6023, 0.0
        %v6056 = vmax.f32 %v6024, 0.0
        %v6057 = vmax.f32 %v6025, 0.0
        %v6058 = vmax.f32 %v6026, 0.0
        %v6059 = vmax.f32 %v6027, 0.0
        %v6060 = vmax.f32 %v6028, 0.0
        %v6061 = vmax.f32 %v6029, 0.0
        %v6062 = vmax.f32 %v6030, 0.0
        %v6063 = vmax.f32 %v6031, 0.0
        %v6064 = vmax.f32 %v6032, 0.0
        %v6065 = vpack.c.bf16 %v6049, %v6033
        %v6066 = vpack.c.bf16 %v6050, %v6034
        %v6067 = vpack.c.bf16 %v6051, %v6035
        %v6068 = vpack.c.bf16 %v6052, %v6036
        %v6069 = vpack.c.bf16 %v6053, %v6037
        %v6070 = vpack.c.bf16 %v6054, %v6038
        %v6071 = vpack.c.bf16 %v6055, %v6039
        %v6072 = vpack.c.bf16 %v6056, %v6040
        %v6073 = vpack.c.bf16 %v6057, %v6041
        %v6074 = vpack.c.bf16 %v6058, %v6042
        %v6075 = vpack.c.bf16 %v6059, %v6043
        %v6076 = vpack.c.bf16 %v6060, %v6044
        %v6077 = vpack.c.bf16 %v6061, %v6045
        %v6078 = vpack.c.bf16 %v6062, %v6046
        %v6079 = vpack.c.bf16 %v6063, %v6047
        %v6080 = vpack.c.bf16 %v6064, %v6048
        %v6081 = vld [vmem:[%s493 + $0x4c] sm:$0xf]
        %v6082 = vld [vmem:[%s493 + $0x48] sm:$0xf]
        %v6083 = vld [vmem:[%s484] sm:$0xff]
        %v6084 = vld [vmem:[%s484 + $0x8] sm:$0xff]
        %v6085 = vld [vmem:[%s484 + $0x10] sm:$0xff]
        %v6086 = vld [vmem:[%s484 + $0x18] sm:$0xff]
        %v6087 = vld [vmem:[%s484 + $0x20] sm:$0xff]
        %v6088 = vld [vmem:[%s484 + $0x28] sm:$0xff]
        %v6089 = vld [vmem:[%s484 + $0x30] sm:$0xff]
        %v6090 = vld [vmem:[%s484 + $0x38] sm:$0xff]
        %v6091 = vld [vmem:[%s484 + $0x40] sm:$0xff]
        %v6092 = vld [vmem:[%s484 + $0x48] sm:$0xff]
        %v6093 = vld [vmem:[%s484 + $0x50] sm:$0xff]
        %v6094 = vld [vmem:[%s484 + $0x58] sm:$0xff]
        %v6095 = vld [vmem:[%s484 + $0x60] sm:$0xff]
        %v6096 = vld [vmem:[%s484 + $0x68] sm:$0xff]
        %v6097 = vld [vmem:[%s484 + $0x70] sm:$0xff]
        %v6098 = vld [vmem:[%s484 + $0x78] sm:$0xff]
        %v6099 = vld [vmem:[%s484 + $0x80] sm:$0xff]
        %v6100 = vld [vmem:[%s484 + $0x88] sm:$0xff]
        %v6101 = vld [vmem:[%s484 + $0x90] sm:$0xff]
        %v6102 = vld [vmem:[%s484 + $0x98] sm:$0xff]
        %v6103 = vld [vmem:[%s484 + $0xa0] sm:$0xff]
        %v6104 = vld [vmem:[%s484 + $0xa8] sm:$0xff]
        %v6105 = vld [vmem:[%s484 + $0xb0] sm:$0xff]
        %v6106 = vld [vmem:[%s484 + $0xb8] sm:$0xff]
        %v6107 = vld [vmem:[%s484 + $0xc0] sm:$0xff]
        %v6108 = vld [vmem:[%s484 + $0xc8] sm:$0xff]
        %v6109 = vld [vmem:[%s484 + $0xd0] sm:$0xff]
        %v6110 = vld [vmem:[%s484 + $0xd8] sm:$0xff]
        %v6111 = vld [vmem:[%s484 + $0xe0] sm:$0xff]
        %v6112 = vld [vmem:[%s484 + $0xe8] sm:$0xff]
        %v6113 = vld [vmem:[%s484 + $0xf0] sm:$0xff]
        %v6114 = vld [vmem:[%s484 + $0xf8] sm:$0xff]
        %v6115 = vld [vmem:[%s484 + $0x100] sm:$0xff]
        %v6116 = vld [vmem:[%s484 + $0x108] sm:$0xff]
        %v6117 = vld [vmem:[%s484 + $0x110] sm:$0xff]
        %v6118 = vld [vmem:[%s484 + $0x118] sm:$0xff]
        %v6119 = vld [vmem:[%s484 + $0x120] sm:$0xff]
        %v6120 = vld [vmem:[%s484 + $0x128] sm:$0xff]
        %v6121 = vld [vmem:[%s484 + $0x130] sm:$0xff]
        %v6122 = vld [vmem:[%s484 + $0x138] sm:$0xff]
        %v6123 = vld [vmem:[%s484 + $0x140] sm:$0xff]
        %v6124 = vld [vmem:[%s484 + $0x148] sm:$0xff]
        %v6125 = vld [vmem:[%s484 + $0x150] sm:$0xff]
        %v6126 = vld [vmem:[%s484 + $0x158] sm:$0xff]
        %v6127 = vld [vmem:[%s484 + $0x160] sm:$0xff]
        %v6128 = vld [vmem:[%s484 + $0x168] sm:$0xff]
        %v6129 = vld [vmem:[%s484 + $0x170] sm:$0xff]
        %v6130 = vld [vmem:[%s484 + $0x178] sm:$0xff]
        %v6131 = vld [vmem:[%s484 + $0x180] sm:$0xff]
        %v6132 = vld [vmem:[%s484 + $0x188] sm:$0xff]
        %v6133 = vld [vmem:[%s484 + $0x190] sm:$0xff]
        %v6134 = vld [vmem:[%s484 + $0x198] sm:$0xff]
        %v6135 = vld [vmem:[%s484 + $0x1a0] sm:$0xff]
        %v6136 = vld [vmem:[%s484 + $0x1a8] sm:$0xff]
        %v6137 = vld [vmem:[%s484 + $0x1b0] sm:$0xff]
        %v6138 = vld [vmem:[%s484 + $0x1b8] sm:$0xff]
        %v6139 = vld [vmem:[%s484 + $0x1c0] sm:$0xff]
        %v6140 = vld [vmem:[%s484 + $0x1c8] sm:$0xff]
        %v6141 = vld [vmem:[%s484 + $0x1d0] sm:$0xff]
        %v6142 = vld [vmem:[%s484 + $0x1d8] sm:$0xff]
        %v6143 = vld [vmem:[%s484 + $0x1e0] sm:$0xff]
        %v6144 = vld [vmem:[%s484 + $0x1e8] sm:$0xff]
        %v6145 = vld [vmem:[%s484 + $0x1f0] sm:$0xff]
        %v6146 = vld [vmem:[%s484 + $0x1f8] sm:$0xff]
        %v6147 = vld [vmem:[%s484 + $0x200] sm:$0xff]
        %v6148 = vld [vmem:[%s484 + $0x208] sm:$0xff]
        %v6149 = vld [vmem:[%s484 + $0x210] sm:$0xff]
        %v6150 = vld [vmem:[%s484 + $0x218] sm:$0xff]
        %v6151 = vld [vmem:[%s484 + $0x220] sm:$0xff]
        %v6152 = vld [vmem:[%s484 + $0x228] sm:$0xff]
        %v6153 = vld [vmem:[%s484 + $0x230] sm:$0xff]
        %v6154 = vld [vmem:[%s484 + $0x238] sm:$0xff]
        %v6155 = vld [vmem:[%s484 + $0x240] sm:$0xff]
        %v6156 = vld [vmem:[%s484 + $0x248] sm:$0xff]
        %v6157 = vld [vmem:[%s484 + $0x250] sm:$0xff]
        %v6158 = vld [vmem:[%s484 + $0x258] sm:$0xff]
        %v6159 = vld [vmem:[%s484 + $0x260] sm:$0xff]
        %v6160 = vld [vmem:[%s484 + $0x268] sm:$0xff]
        %v6161 = vld [vmem:[%s484 + $0x270] sm:$0xff]
        %v6162 = vld [vmem:[%s484 + $0x278] sm:$0xff]
        %v6163 = vld [vmem:[%s484 + $0x280] sm:$0xff]
        %v6164 = vld [vmem:[%s484 + $0x288] sm:$0xff]
        %v6165 = vld [vmem:[%s484 + $0x290] sm:$0xff]
        %v6166 = vld [vmem:[%s484 + $0x298] sm:$0xff]
        %v6167 = vld [vmem:[%s484 + $0x2a0] sm:$0xff]
        %v6168 = vld [vmem:[%s484 + $0x2a8] sm:$0xff]
        %v6169 = vld [vmem:[%s484 + $0x2b0] sm:$0xff]
        %v6170 = vld [vmem:[%s484 + $0x2b8] sm:$0xff]
        %v6171 = vld [vmem:[%s484 + $0x2c0] sm:$0xff]
        %v6172 = vld [vmem:[%s484 + $0x2c8] sm:$0xff]
        %v6173 = vld [vmem:[%s484 + $0x2d0] sm:$0xff]
        %v6174 = vld [vmem:[%s484 + $0x2d8] sm:$0xff]
        %v6175 = vld [vmem:[%s484 + $0x2e0] sm:$0xff]
        %v6176 = vld [vmem:[%s484 + $0x2e8] sm:$0xff]
        %v6177 = vld [vmem:[%s484 + $0x2f0] sm:$0xff]
        %v6178 = vld [vmem:[%s484 + $0x2f8] sm:$0xff]
        %v6179 = vld [vmem:[%s484 + $0x300] sm:$0xff]
        %v6180 = vld [vmem:[%s484 + $0x308] sm:$0xff]
        %v6181 = vld [vmem:[%s484 + $0x310] sm:$0xff]
        %v6182 = vld [vmem:[%s484 + $0x318] sm:$0xff]
        %v6183 = vld [vmem:[%s484 + $0x320] sm:$0xff]
        %v6184 = vld [vmem:[%s484 + $0x328] sm:$0xff]
        %v6185 = vld [vmem:[%s484 + $0x330] sm:$0xff]
        %v6186 = vld [vmem:[%s484 + $0x338] sm:$0xff]
        %v6187 = vld [vmem:[%s484 + $0x340] sm:$0xff]
        %v6188 = vld [vmem:[%s484 + $0x348] sm:$0xff]
        %v6189 = vld [vmem:[%s484 + $0x350] sm:$0xff]
        %v6190 = vld [vmem:[%s484 + $0x358] sm:$0xff]
        %v6191 = vld [vmem:[%s484 + $0x360] sm:$0xff]
        %v6192 = vld [vmem:[%s484 + $0x368] sm:$0xff]
        %v6193 = vld [vmem:[%s484 + $0x370] sm:$0xff]
        %v6194 = vld [vmem:[%s484 + $0x378] sm:$0xff]
        %v6195 = vld [vmem:[%s484 + $0x380] sm:$0xff]
        %v6196 = vld [vmem:[%s484 + $0x388] sm:$0xff]
        %v6197 = vld [vmem:[%s484 + $0x390] sm:$0xff]
        %v6198 = vld [vmem:[%s484 + $0x398] sm:$0xff]
        %v6199 = vld [vmem:[%s484 + $0x3a0] sm:$0xff]
        %v6200 = vld [vmem:[%s484 + $0x3a8] sm:$0xff]
        %v6201 = vld [vmem:[%s484 + $0x3b0] sm:$0xff]
        %v6202 = vld [vmem:[%s484 + $0x3b8] sm:$0xff]
        %v6203 = vld [vmem:[%s484 + $0x3c0] sm:$0xff]
        %v6204 = vld [vmem:[%s484 + $0x3c8] sm:$0xff]
        %v6205 = vld [vmem:[%s484 + $0x3d0] sm:$0xff]
        %v6206 = vld [vmem:[%s484 + $0x3d8] sm:$0xff]
        %v6207 = vld [vmem:[%s484 + $0x3e0] sm:$0xff]
        %v6208 = vld [vmem:[%s484 + $0x3e8] sm:$0xff]
        %v6209 = vld [vmem:[%s484 + $0x3f0] sm:$0xff]
        %v6210 = vld [vmem:[%s484 + $0x3f8] sm:$0xff]
        %v6211 = vld [vmem:[%s484 + $0x400] sm:$0xff]
        %v6212 = vld [vmem:[%s484 + $0x408] sm:$0xff]
        %v6213 = vld [vmem:[%s484 + $0x410] sm:$0xff]
        %v6214 = vld [vmem:[%s484 + $0x418] sm:$0xff]
        %v6215 = vld [vmem:[%s484 + $0x420] sm:$0xff]
        %v6216 = vld [vmem:[%s484 + $0x428] sm:$0xff]
        %v6217 = vld [vmem:[%s484 + $0x430] sm:$0xff]
        %v6218 = vld [vmem:[%s484 + $0x438] sm:$0xff]
        %v6219 = vld [vmem:[%s484 + $0x440] sm:$0xff]
        %v6220 = vld [vmem:[%s484 + $0x448] sm:$0xff]
        %v6221 = vld [vmem:[%s484 + $0x450] sm:$0xff]
        %v6222 = vld [vmem:[%s484 + $0x458] sm:$0xff]
        %v6223 = vld [vmem:[%s484 + $0x460] sm:$0xff]
        %v6224 = vld [vmem:[%s484 + $0x468] sm:$0xff]
        %v6225 = vld [vmem:[%s484 + $0x470] sm:$0xff]
        %v6226 = vld [vmem:[%s484 + $0x478] sm:$0xff]
        %v6227 = vld [vmem:[%s484 + $0x480] sm:$0xff]
        %v6228 = vld [vmem:[%s484 + $0x488] sm:$0xff]
        %v6229 = vld [vmem:[%s484 + $0x490] sm:$0xff]
        %v6230 = vld [vmem:[%s484 + $0x498] sm:$0xff]
        %v6231 = vld [vmem:[%s484 + $0x4a0] sm:$0xff]
        %v6232 = vld [vmem:[%s484 + $0x4a8] sm:$0xff]
        %v6233 = vld [vmem:[%s484 + $0x4b0] sm:$0xff]
        %v6234 = vld [vmem:[%s484 + $0x4b8] sm:$0xff]
        %v6235 = vld [vmem:[%s484 + $0x4c0] sm:$0xff]
        %v6236 = vld [vmem:[%s484 + $0x4c8] sm:$0xff]
        %v6237 = vld [vmem:[%s484 + $0x4d0] sm:$0xff]
        %v6238 = vld [vmem:[%s484 + $0x4d8] sm:$0xff]
        %v6239 = vld [vmem:[%s484 + $0x4e0] sm:$0xff]
        %v6240 = vld [vmem:[%s484 + $0x4e8] sm:$0xff]
        %v6241 = vld [vmem:[%s484 + $0x4f0] sm:$0xff]
        %v6242 = vld [vmem:[%s484 + $0x4f8] sm:$0xff]
        %v6243 = vld [vmem:[%s484 + $0x500] sm:$0xff]
        %v6244 = vld [vmem:[%s484 + $0x508] sm:$0xff]
        %v6245 = vld [vmem:[%s484 + $0x510] sm:$0xff]
        %v6246 = vld [vmem:[%s484 + $0x518] sm:$0xff]
        %v6247 = vld [vmem:[%s484 + $0x520] sm:$0xff]
        %v6248 = vld [vmem:[%s484 + $0x528] sm:$0xff]
        %v6249 = vld [vmem:[%s484 + $0x530] sm:$0xff]
        %v6250 = vld [vmem:[%s484 + $0x538] sm:$0xff]
        %v6251 = vld [vmem:[%s484 + $0x540] sm:$0xff]
        %v6252 = vld [vmem:[%s484 + $0x548] sm:$0xff]
        %v6253 = vld [vmem:[%s484 + $0x550] sm:$0xff]
        %v6254 = vld [vmem:[%s484 + $0x558] sm:$0xff]
        %v6255 = vld [vmem:[%s484 + $0x560] sm:$0xff]
        %v6256 = vld [vmem:[%s484 + $0x568] sm:$0xff]
        %v6257 = vld [vmem:[%s484 + $0x570] sm:$0xff]
        %v6258 = vld [vmem:[%s484 + $0x578] sm:$0xff]
        %v6259 = vld [vmem:[%s484 + $0x580] sm:$0xff]
        %v6260 = vld [vmem:[%s484 + $0x588] sm:$0xff]
        %v6261 = vld [vmem:[%s484 + $0x590] sm:$0xff]
        %v6262 = vld [vmem:[%s484 + $0x598] sm:$0xff]
        %v6263 = vld [vmem:[%s484 + $0x5a0] sm:$0xff]
        %v6264 = vld [vmem:[%s484 + $0x5a8] sm:$0xff]
        %v6265 = vld [vmem:[%s484 + $0x5b0] sm:$0xff]
        %v6266 = vld [vmem:[%s484 + $0x5b8] sm:$0xff]
        %v6267 = vld [vmem:[%s484 + $0x5c0] sm:$0xff]
        %v6268 = vld [vmem:[%s484 + $0x5c8] sm:$0xff]
        %v6269 = vld [vmem:[%s484 + $0x5d0] sm:$0xff]
        %v6270 = vld [vmem:[%s484 + $0x5d8] sm:$0xff]
        %v6271 = vld [vmem:[%s484 + $0x5e0] sm:$0xff]
        %v6272 = vld [vmem:[%s484 + $0x5e8] sm:$0xff]
        %v6273 = vld [vmem:[%s484 + $0x5f0] sm:$0xff]
        %v6274 = vld [vmem:[%s484 + $0x5f8] sm:$0xff]
        %v6275 = vld [vmem:[%s484 + $0x600] sm:$0xff]
        %v6276 = vld [vmem:[%s484 + $0x608] sm:$0xff]
        %v6277 = vld [vmem:[%s484 + $0x610] sm:$0xff]
        %v6278 = vld [vmem:[%s484 + $0x618] sm:$0xff]
        %v6279 = vld [vmem:[%s484 + $0x620] sm:$0xff]
        %v6280 = vld [vmem:[%s484 + $0x628] sm:$0xff]
        %v6281 = vld [vmem:[%s484 + $0x630] sm:$0xff]
        %v6282 = vld [vmem:[%s484 + $0x638] sm:$0xff]
        %v6283 = vld [vmem:[%s484 + $0x640] sm:$0xff]
        %v6284 = vld [vmem:[%s484 + $0x648] sm:$0xff]
        %v6285 = vld [vmem:[%s484 + $0x650] sm:$0xff]
        %v6286 = vld [vmem:[%s484 + $0x658] sm:$0xff]
        %v6287 = vld [vmem:[%s484 + $0x660] sm:$0xff]
        %v6288 = vld [vmem:[%s484 + $0x668] sm:$0xff]
        %v6289 = vld [vmem:[%s484 + $0x670] sm:$0xff]
        %v6290 = vld [vmem:[%s484 + $0x678] sm:$0xff]
        %v6291 = vld [vmem:[%s484 + $0x680] sm:$0xff]
        %v6292 = vld [vmem:[%s484 + $0x688] sm:$0xff]
        %v6293 = vld [vmem:[%s484 + $0x690] sm:$0xff]
        %v6294 = vld [vmem:[%s484 + $0x698] sm:$0xff]
        %v6295 = vld [vmem:[%s484 + $0x6a0] sm:$0xff]
        %v6296 = vld [vmem:[%s484 + $0x6a8] sm:$0xff]
        %v6297 = vld [vmem:[%s484 + $0x6b0] sm:$0xff]
        %v6298 = vld [vmem:[%s484 + $0x6b8] sm:$0xff]
        %v6299 = vld [vmem:[%s484 + $0x6c0] sm:$0xff]
        %v6300 = vld [vmem:[%s484 + $0x6c8] sm:$0xff]
        %v6301 = vld [vmem:[%s484 + $0x6d0] sm:$0xff]
        %v6302 = vld [vmem:[%s484 + $0x6d8] sm:$0xff]
        %v6303 = vld [vmem:[%s484 + $0x6e0] sm:$0xff]
        %v6304 = vld [vmem:[%s484 + $0x6e8] sm:$0xff]
        %v6305 = vld [vmem:[%s484 + $0x6f0] sm:$0xff]
        %v6306 = vld [vmem:[%s484 + $0x6f8] sm:$0xff]
        %v6307 = vld [vmem:[%s484 + $0x700] sm:$0xff]
        %v6308 = vld [vmem:[%s484 + $0x708] sm:$0xff]
        %v6309 = vld [vmem:[%s484 + $0x710] sm:$0xff]
        %v6310 = vld [vmem:[%s484 + $0x718] sm:$0xff]
        %v6311 = vld [vmem:[%s484 + $0x720] sm:$0xff]
        %v6312 = vld [vmem:[%s484 + $0x728] sm:$0xff]
        %v6313 = vld [vmem:[%s484 + $0x730] sm:$0xff]
        %v6314 = vld [vmem:[%s484 + $0x738] sm:$0xff]
        %v6315 = vld [vmem:[%s484 + $0x740] sm:$0xff]
        %v6316 = vld [vmem:[%s484 + $0x748] sm:$0xff]
        %v6317 = vld [vmem:[%s484 + $0x750] sm:$0xff]
        %v6318 = vld [vmem:[%s484 + $0x758] sm:$0xff]
        %v6319 = vld [vmem:[%s484 + $0x760] sm:$0xff]
        %v6320 = vld [vmem:[%s484 + $0x768] sm:$0xff]
        %v6321 = vld [vmem:[%s484 + $0x770] sm:$0xff]
        %v6322 = vld [vmem:[%s484 + $0x778] sm:$0xff]
        %v6323 = vld [vmem:[%s484 + $0x780] sm:$0xff]
        %v6324 = vld [vmem:[%s484 + $0x788] sm:$0xff]
        %v6325 = vld [vmem:[%s484 + $0x790] sm:$0xff]
        %v6326 = vld [vmem:[%s484 + $0x798] sm:$0xff]
        %v6327 = vld [vmem:[%s484 + $0x7a0] sm:$0xff]
        %v6328 = vld [vmem:[%s484 + $0x7a8] sm:$0xff]
        %v6329 = vld [vmem:[%s484 + $0x7b0] sm:$0xff]
        %v6330 = vld [vmem:[%s484 + $0x7b8] sm:$0xff]
        %v6331 = vld [vmem:[%s484 + $0x7c0] sm:$0xff]
        %v6332 = vld [vmem:[%s484 + $0x7c8] sm:$0xff]
        %v6333 = vld [vmem:[%s484 + $0x7d0] sm:$0xff]
        %v6334 = vld [vmem:[%s484 + $0x7d8] sm:$0xff]
        %v6335 = vld [vmem:[%s484 + $0x7e0] sm:$0xff]
        %v6336 = vld [vmem:[%s484 + $0x7e8] sm:$0xff]
        %v6337 = vld [vmem:[%s484 + $0x7f0] sm:$0xff]
        %v6338 = vld [vmem:[%s484 + $0x7f8] sm:$0xff]
        %v6339 = vunpack.c.l.s8.bf16 %v6083
        %v6340 = vunpack.c.l.s8.bf16 %v6084
        %v6341 = vunpack.c.l.s8.bf16 %v6085
        %v6342 = vunpack.c.l.s8.bf16 %v6086
        %v6343 = vunpack.c.h.s8.bf16 %v6083
        %v6344 = vunpack.c.h.s8.bf16 %v6084
        %v6345 = vunpack.c.h.s8.bf16 %v6085
        %v6346 = vunpack.c.h.s8.bf16 %v6086
        %v6347 = vunpack.c.l.s8.bf16 %v6087
        %v6348 = vunpack.c.l.s8.bf16 %v6088
        %v6349 = vunpack.c.l.s8.bf16 %v6089
        %v6350 = vunpack.c.l.s8.bf16 %v6090
        %v6351 = vunpack.c.h.s8.bf16 %v6087
        %v6352 = vunpack.c.h.s8.bf16 %v6088
        %v6353 = vunpack.c.h.s8.bf16 %v6089
        %v6354 = vunpack.c.h.s8.bf16 %v6090
        %v6355 = vunpack.c.l.s8.bf16 %v6091
        %v6356 = vunpack.c.l.s8.bf16 %v6092
        %v6357 = vunpack.c.l.s8.bf16 %v6093
        %v6358 = vunpack.c.l.s8.bf16 %v6094
        %v6359 = vunpack.c.h.s8.bf16 %v6091
        %v6360 = vunpack.c.h.s8.bf16 %v6092
        %v6361 = vunpack.c.h.s8.bf16 %v6093
        %v6362 = vunpack.c.h.s8.bf16 %v6094
        %v6363 = vunpack.c.l.s8.bf16 %v6095
        %v6364 = vunpack.c.l.s8.bf16 %v6096
        %v6365 = vunpack.c.l.s8.bf16 %v6097
        %v6366 = vunpack.c.l.s8.bf16 %v6098
        %v6367 = vunpack.c.h.s8.bf16 %v6095
        %v6368 = vunpack.c.h.s8.bf16 %v6096
        %v6369 = vunpack.c.h.s8.bf16 %v6097
        %v6370 = vunpack.c.h.s8.bf16 %v6098
        %v6371 = vunpack.c.l.s8.bf16 %v6099
        %v6372 = vunpack.c.l.s8.bf16 %v6100
        %v6373 = vunpack.c.l.s8.bf16 %v6101
        %v6374 = vunpack.c.l.s8.bf16 %v6102
        %v6375 = vunpack.c.h.s8.bf16 %v6099
        %v6376 = vunpack.c.h.s8.bf16 %v6100
        %v6377 = vunpack.c.h.s8.bf16 %v6101
        %v6378 = vunpack.c.h.s8.bf16 %v6102
        %v6379 = vunpack.c.l.s8.bf16 %v6103
        %v6380 = vunpack.c.l.s8.bf16 %v6104
        %v6381 = vunpack.c.l.s8.bf16 %v6105
        %v6382 = vunpack.c.l.s8.bf16 %v6106
        %v6383 = vunpack.c.h.s8.bf16 %v6103
        %v6384 = vunpack.c.h.s8.bf16 %v6104
        %v6385 = vunpack.c.h.s8.bf16 %v6105
        %v6386 = vunpack.c.h.s8.bf16 %v6106
        %v6387 = vunpack.c.l.s8.bf16 %v6107
        %v6388 = vunpack.c.l.s8.bf16 %v6108
        %v6389 = vunpack.c.l.s8.bf16 %v6109
        %v6390 = vunpack.c.l.s8.bf16 %v6110
        %v6391 = vunpack.c.h.s8.bf16 %v6107
        %v6392 = vunpack.c.h.s8.bf16 %v6108
        %v6393 = vunpack.c.h.s8.bf16 %v6109
        %v6394 = vunpack.c.h.s8.bf16 %v6110
        %v6395 = vunpack.c.l.s8.bf16 %v6111
        %v6396 = vunpack.c.l.s8.bf16 %v6112
        %v6397 = vunpack.c.l.s8.bf16 %v6113
        %v6398 = vunpack.c.l.s8.bf16 %v6114
        %v6399 = vunpack.c.h.s8.bf16 %v6111
        %v6400 = vunpack.c.h.s8.bf16 %v6112
        %v6401 = vunpack.c.h.s8.bf16 %v6113
        %v6402 = vunpack.c.h.s8.bf16 %v6114
        %v6403 = vunpack.c.l.s8.bf16 %v6115
        %v6404 = vunpack.c.l.s8.bf16 %v6116
        %v6405 = vunpack.c.l.s8.bf16 %v6117
        %v6406 = vunpack.c.l.s8.bf16 %v6118
        %v6407 = vunpack.c.h.s8.bf16 %v6115
        %v6408 = vunpack.c.h.s8.bf16 %v6116
        %v6409 = vunpack.c.h.s8.bf16 %v6117
        %v6410 = vunpack.c.h.s8.bf16 %v6118
        %v6411 = vunpack.c.l.s8.bf16 %v6119
        %v6412 = vunpack.c.l.s8.bf16 %v6120
        %v6413 = vunpack.c.l.s8.bf16 %v6121
        %v6414 = vunpack.c.l.s8.bf16 %v6122
        %v6415 = vunpack.c.h.s8.bf16 %v6119
        %v6416 = vunpack.c.h.s8.bf16 %v6120
        %v6417 = vunpack.c.h.s8.bf16 %v6121
        %v6418 = vunpack.c.h.s8.bf16 %v6122
        %v6419 = vunpack.c.l.s8.bf16 %v6123
        %v6420 = vunpack.c.l.s8.bf16 %v6124
        %v6421 = vunpack.c.l.s8.bf16 %v6125
        %v6422 = vunpack.c.l.s8.bf16 %v6126
        %v6423 = vunpack.c.h.s8.bf16 %v6123
        %v6424 = vunpack.c.h.s8.bf16 %v6124
        %v6425 = vunpack.c.h.s8.bf16 %v6125
        %v6426 = vunpack.c.h.s8.bf16 %v6126
        %v6427 = vunpack.c.l.s8.bf16 %v6127
        %v6428 = vunpack.c.l.s8.bf16 %v6128
        %v6429 = vunpack.c.l.s8.bf16 %v6129
        %v6430 = vunpack.c.l.s8.bf16 %v6130
        %v6431 = vunpack.c.h.s8.bf16 %v6127
        %v6432 = vunpack.c.h.s8.bf16 %v6128
        %v6433 = vunpack.c.h.s8.bf16 %v6129
        %v6434 = vunpack.c.h.s8.bf16 %v6130
        %v6435 = vunpack.c.l.s8.bf16 %v6131
        %v6436 = vunpack.c.l.s8.bf16 %v6132
        %v6437 = vunpack.c.l.s8.bf16 %v6133
        %v6438 = vunpack.c.l.s8.bf16 %v6134
        %v6439 = vunpack.c.h.s8.bf16 %v6131
        %v6440 = vunpack.c.h.s8.bf16 %v6132
        %v6441 = vunpack.c.h.s8.bf16 %v6133
        %v6442 = vunpack.c.h.s8.bf16 %v6134
        %v6443 = vunpack.c.l.s8.bf16 %v6135
        %v6444 = vunpack.c.l.s8.bf16 %v6136
        %v6445 = vunpack.c.l.s8.bf16 %v6137
        %v6446 = vunpack.c.l.s8.bf16 %v6138
        %v6447 = vunpack.c.h.s8.bf16 %v6135
        %v6448 = vunpack.c.h.s8.bf16 %v6136
        %v6449 = vunpack.c.h.s8.bf16 %v6137
        %v6450 = vunpack.c.h.s8.bf16 %v6138
        %v6451 = vunpack.c.l.s8.bf16 %v6139
        %v6452 = vunpack.c.l.s8.bf16 %v6140
        %v6453 = vunpack.c.l.s8.bf16 %v6141
        %v6454 = vunpack.c.l.s8.bf16 %v6142
        %v6455 = vunpack.c.h.s8.bf16 %v6139
        %v6456 = vunpack.c.h.s8.bf16 %v6140
        %v6457 = vunpack.c.h.s8.bf16 %v6141
        %v6458 = vunpack.c.h.s8.bf16 %v6142
        %v6459 = vunpack.c.l.s8.bf16 %v6143
        %v6460 = vunpack.c.l.s8.bf16 %v6144
        %v6461 = vunpack.c.l.s8.bf16 %v6145
        %v6462 = vunpack.c.l.s8.bf16 %v6146
        %v6463 = vunpack.c.h.s8.bf16 %v6143
        %v6464 = vunpack.c.h.s8.bf16 %v6144
        %v6465 = vunpack.c.h.s8.bf16 %v6145
        %v6466 = vunpack.c.h.s8.bf16 %v6146
        %v6467 = vunpack.c.l.s8.bf16 %v6147
        %v6468 = vunpack.c.l.s8.bf16 %v6148
        %v6469 = vunpack.c.l.s8.bf16 %v6149
        %v6470 = vunpack.c.l.s8.bf16 %v6150
        %v6471 = vunpack.c.h.s8.bf16 %v6147
        %v6472 = vunpack.c.h.s8.bf16 %v6148
        %v6473 = vunpack.c.h.s8.bf16 %v6149
        %v6474 = vunpack.c.h.s8.bf16 %v6150
        %v6475 = vunpack.c.l.s8.bf16 %v6151
        %v6476 = vunpack.c.l.s8.bf16 %v6152
        %v6477 = vunpack.c.l.s8.bf16 %v6153
        %v6478 = vunpack.c.l.s8.bf16 %v6154
        %v6479 = vunpack.c.h.s8.bf16 %v6151
        %v6480 = vunpack.c.h.s8.bf16 %v6152
        %v6481 = vunpack.c.h.s8.bf16 %v6153
        %v6482 = vunpack.c.h.s8.bf16 %v6154
        %v6483 = vunpack.c.l.s8.bf16 %v6155
        %v6484 = vunpack.c.l.s8.bf16 %v6156
        %v6485 = vunpack.c.l.s8.bf16 %v6157
        %v6486 = vunpack.c.l.s8.bf16 %v6158
        %v6487 = vunpack.c.h.s8.bf16 %v6155
        %v6488 = vunpack.c.h.s8.bf16 %v6156
        %v6489 = vunpack.c.h.s8.bf16 %v6157
        %v6490 = vunpack.c.h.s8.bf16 %v6158
        %v6491 = vunpack.c.l.s8.bf16 %v6159
        %v6492 = vunpack.c.l.s8.bf16 %v6160
        %v6493 = vunpack.c.l.s8.bf16 %v6161
        %v6494 = vunpack.c.l.s8.bf16 %v6162
        %v6495 = vunpack.c.h.s8.bf16 %v6159
        %v6496 = vunpack.c.h.s8.bf16 %v6160
        %v6497 = vunpack.c.h.s8.bf16 %v6161
        %v6498 = vunpack.c.h.s8.bf16 %v6162
        %v6499 = vunpack.c.l.s8.bf16 %v6163
        %v6500 = vunpack.c.l.s8.bf16 %v6164
        %v6501 = vunpack.c.l.s8.bf16 %v6165
        %v6502 = vunpack.c.l.s8.bf16 %v6166
        %v6503 = vunpack.c.h.s8.bf16 %v6163
        %v6504 = vunpack.c.h.s8.bf16 %v6164
        %v6505 = vunpack.c.h.s8.bf16 %v6165
        %v6506 = vunpack.c.h.s8.bf16 %v6166
        %v6507 = vunpack.c.l.s8.bf16 %v6167
        %v6508 = vunpack.c.l.s8.bf16 %v6168
        %v6509 = vunpack.c.l.s8.bf16 %v6169
        %v6510 = vunpack.c.l.s8.bf16 %v6170
        %v6511 = vunpack.c.h.s8.bf16 %v6167
        %v6512 = vunpack.c.h.s8.bf16 %v6168
        %v6513 = vunpack.c.h.s8.bf16 %v6169
        %v6514 = vunpack.c.h.s8.bf16 %v6170
        %v6515 = vunpack.c.l.s8.bf16 %v6171
        %v6516 = vunpack.c.l.s8.bf16 %v6172
        %v6517 = vunpack.c.l.s8.bf16 %v6173
        %v6518 = vunpack.c.l.s8.bf16 %v6174
        %v6519 = vunpack.c.h.s8.bf16 %v6171
        %v6520 = vunpack.c.h.s8.bf16 %v6172
        %v6521 = vunpack.c.h.s8.bf16 %v6173
        %v6522 = vunpack.c.h.s8.bf16 %v6174
        %v6523 = vunpack.c.l.s8.bf16 %v6175
        %v6524 = vunpack.c.l.s8.bf16 %v6176
        %v6525 = vunpack.c.l.s8.bf16 %v6177
        %v6526 = vunpack.c.l.s8.bf16 %v6178
        %v6527 = vunpack.c.h.s8.bf16 %v6175
        %v6528 = vunpack.c.h.s8.bf16 %v6176
        %v6529 = vunpack.c.h.s8.bf16 %v6177
        %v6530 = vunpack.c.h.s8.bf16 %v6178
        %v6531 = vunpack.c.l.s8.bf16 %v6179
        %v6532 = vunpack.c.l.s8.bf16 %v6180
        %v6533 = vunpack.c.l.s8.bf16 %v6181
        %v6534 = vunpack.c.l.s8.bf16 %v6182
        %v6535 = vunpack.c.h.s8.bf16 %v6179
        %v6536 = vunpack.c.h.s8.bf16 %v6180
        %v6537 = vunpack.c.h.s8.bf16 %v6181
        %v6538 = vunpack.c.h.s8.bf16 %v6182
        %v6539 = vunpack.c.l.s8.bf16 %v6183
        %v6540 = vunpack.c.l.s8.bf16 %v6184
        %v6541 = vunpack.c.l.s8.bf16 %v6185
        %v6542 = vunpack.c.l.s8.bf16 %v6186
        %v6543 = vunpack.c.h.s8.bf16 %v6183
        %v6544 = vunpack.c.h.s8.bf16 %v6184
        %v6545 = vunpack.c.h.s8.bf16 %v6185
        %v6546 = vunpack.c.h.s8.bf16 %v6186
        %v6547 = vunpack.c.l.s8.bf16 %v6187
        %v6548 = vunpack.c.l.s8.bf16 %v6188
        %v6549 = vunpack.c.l.s8.bf16 %v6189
        %v6550 = vunpack.c.l.s8.bf16 %v6190
        %v6551 = vunpack.c.h.s8.bf16 %v6187
        %v6552 = vunpack.c.h.s8.bf16 %v6188
        %v6553 = vunpack.c.h.s8.bf16 %v6189
        %v6554 = vunpack.c.h.s8.bf16 %v6190
        %v6555 = vunpack.c.l.s8.bf16 %v6191
        %v6556 = vunpack.c.l.s8.bf16 %v6192
        %v6557 = vunpack.c.l.s8.bf16 %v6193
        %v6558 = vunpack.c.l.s8.bf16 %v6194
        %v6559 = vunpack.c.h.s8.bf16 %v6191
        %v6560 = vunpack.c.h.s8.bf16 %v6192
        %v6561 = vunpack.c.h.s8.bf16 %v6193
        %v6562 = vunpack.c.h.s8.bf16 %v6194
        %v6563 = vunpack.c.l.s8.bf16 %v6195
        %v6564 = vunpack.c.l.s8.bf16 %v6196
        %v6565 = vunpack.c.l.s8.bf16 %v6197
        %v6566 = vunpack.c.l.s8.bf16 %v6198
        %v6567 = vunpack.c.h.s8.bf16 %v6195
        %v6568 = vunpack.c.h.s8.bf16 %v6196
        %v6569 = vunpack.c.h.s8.bf16 %v6197
        %v6570 = vunpack.c.h.s8.bf16 %v6198
        %v6571 = vunpack.c.l.s8.bf16 %v6199
        %v6572 = vunpack.c.l.s8.bf16 %v6200
        %v6573 = vunpack.c.l.s8.bf16 %v6201
        %v6574 = vunpack.c.l.s8.bf16 %v6202
        %v6575 = vunpack.c.h.s8.bf16 %v6199
        %v6576 = vunpack.c.h.s8.bf16 %v6200
        %v6577 = vunpack.c.h.s8.bf16 %v6201
        %v6578 = vunpack.c.h.s8.bf16 %v6202
        %v6579 = vunpack.c.l.s8.bf16 %v6203
        %v6580 = vunpack.c.l.s8.bf16 %v6204
        %v6581 = vunpack.c.l.s8.bf16 %v6205
        %v6582 = vunpack.c.l.s8.bf16 %v6206
        %v6583 = vunpack.c.h.s8.bf16 %v6203
        %v6584 = vunpack.c.h.s8.bf16 %v6204
        %v6585 = vunpack.c.h.s8.bf16 %v6205
        %v6586 = vunpack.c.h.s8.bf16 %v6206
        %v6587 = vunpack.c.l.s8.bf16 %v6207
        %v6588 = vunpack.c.l.s8.bf16 %v6208
        %v6589 = vunpack.c.l.s8.bf16 %v6209
        %v6590 = vunpack.c.l.s8.bf16 %v6210
        %v6591 = vunpack.c.h.s8.bf16 %v6207
        %v6592 = vunpack.c.h.s8.bf16 %v6208
        %v6593 = vunpack.c.h.s8.bf16 %v6209
        %v6594 = vunpack.c.h.s8.bf16 %v6210
        %v6595 = vunpack.c.l.s8.bf16 %v6211
        %v6596 = vunpack.c.l.s8.bf16 %v6212
        %v6597 = vunpack.c.l.s8.bf16 %v6213
        %v6598 = vunpack.c.l.s8.bf16 %v6214
        %v6599 = vunpack.c.h.s8.bf16 %v6211
        %v6600 = vunpack.c.h.s8.bf16 %v6212
        %v6601 = vunpack.c.h.s8.bf16 %v6213
        %v6602 = vunpack.c.h.s8.bf16 %v6214
        %v6603 = vunpack.c.l.s8.bf16 %v6215
        %v6604 = vunpack.c.l.s8.bf16 %v6216
        %v6605 = vunpack.c.l.s8.bf16 %v6217
        %v6606 = vunpack.c.l.s8.bf16 %v6218
        %v6607 = vunpack.c.h.s8.bf16 %v6215
        %v6608 = vunpack.c.h.s8.bf16 %v6216
        %v6609 = vunpack.c.h.s8.bf16 %v6217
        %v6610 = vunpack.c.h.s8.bf16 %v6218
        %v6611 = vunpack.c.l.s8.bf16 %v6219
        %v6612 = vunpack.c.l.s8.bf16 %v6220
        %v6613 = vunpack.c.l.s8.bf16 %v6221
        %v6614 = vunpack.c.l.s8.bf16 %v6222
        %v6615 = vunpack.c.h.s8.bf16 %v6219
        %v6616 = vunpack.c.h.s8.bf16 %v6220
        %v6617 = vunpack.c.h.s8.bf16 %v6221
        %v6618 = vunpack.c.h.s8.bf16 %v6222
        %v6619 = vunpack.c.l.s8.bf16 %v6223
        %v6620 = vunpack.c.l.s8.bf16 %v6224
        %v6621 = vunpack.c.l.s8.bf16 %v6225
        %v6622 = vunpack.c.l.s8.bf16 %v6226
        %v6623 = vunpack.c.h.s8.bf16 %v6223
        %v6624 = vunpack.c.h.s8.bf16 %v6224
        %v6625 = vunpack.c.h.s8.bf16 %v6225
        %v6626 = vunpack.c.h.s8.bf16 %v6226
        %v6627 = vunpack.c.l.s8.bf16 %v6227
        %v6628 = vunpack.c.l.s8.bf16 %v6228
        %v6629 = vunpack.c.l.s8.bf16 %v6229
        %v6630 = vunpack.c.l.s8.bf16 %v6230
        %v6631 = vunpack.c.h.s8.bf16 %v6227
        %v6632 = vunpack.c.h.s8.bf16 %v6228
        %v6633 = vunpack.c.h.s8.bf16 %v6229
        %v6634 = vunpack.c.h.s8.bf16 %v6230
        %v6635 = vunpack.c.l.s8.bf16 %v6231
        %v6636 = vunpack.c.l.s8.bf16 %v6232
        %v6637 = vunpack.c.l.s8.bf16 %v6233
        %v6638 = vunpack.c.l.s8.bf16 %v6234
        %v6639 = vunpack.c.h.s8.bf16 %v6231
        %v6640 = vunpack.c.h.s8.bf16 %v6232
        %v6641 = vunpack.c.h.s8.bf16 %v6233
        %v6642 = vunpack.c.h.s8.bf16 %v6234
        %v6643 = vunpack.c.l.s8.bf16 %v6235
        %v6644 = vunpack.c.l.s8.bf16 %v6236
        %v6645 = vunpack.c.l.s8.bf16 %v6237
        %v6646 = vunpack.c.l.s8.bf16 %v6238
        %v6647 = vunpack.c.h.s8.bf16 %v6235
        %v6648 = vunpack.c.h.s8.bf16 %v6236
        %v6649 = vunpack.c.h.s8.bf16 %v6237
        %v6650 = vunpack.c.h.s8.bf16 %v6238
        %v6651 = vunpack.c.l.s8.bf16 %v6239
        %v6652 = vunpack.c.l.s8.bf16 %v6240
        %v6653 = vunpack.c.l.s8.bf16 %v6241
        %v6654 = vunpack.c.l.s8.bf16 %v6242
        %v6655 = vunpack.c.h.s8.bf16 %v6239
        %v6656 = vunpack.c.h.s8.bf16 %v6240
        %v6657 = vunpack.c.h.s8.bf16 %v6241
        %v6658 = vunpack.c.h.s8.bf16 %v6242
        %v6659 = vunpack.c.l.s8.bf16 %v6243
        %v6660 = vunpack.c.l.s8.bf16 %v6244
        %v6661 = vunpack.c.l.s8.bf16 %v6245
        %v6662 = vunpack.c.l.s8.bf16 %v6246
        %v6663 = vunpack.c.h.s8.bf16 %v6243
        %v6664 = vunpack.c.h.s8.bf16 %v6244
        %v6665 = vunpack.c.h.s8.bf16 %v6245
        %v6666 = vunpack.c.h.s8.bf16 %v6246
        %v6667 = vunpack.c.l.s8.bf16 %v6247
        %v6668 = vunpack.c.l.s8.bf16 %v6248
        %v6669 = vunpack.c.l.s8.bf16 %v6249
        %v6670 = vunpack.c.l.s8.bf16 %v6250
        %v6671 = vunpack.c.h.s8.bf16 %v6247
        %v6672 = vunpack.c.h.s8.bf16 %v6248
        %v6673 = vunpack.c.h.s8.bf16 %v6249
        %v6674 = vunpack.c.h.s8.bf16 %v6250
        %v6675 = vunpack.c.l.s8.bf16 %v6251
        %v6676 = vunpack.c.l.s8.bf16 %v6252
        %v6677 = vunpack.c.l.s8.bf16 %v6253
        %v6678 = vunpack.c.l.s8.bf16 %v6254
        %v6679 = vunpack.c.h.s8.bf16 %v6251
        %v6680 = vunpack.c.h.s8.bf16 %v6252
        %v6681 = vunpack.c.h.s8.bf16 %v6253
        %v6682 = vunpack.c.h.s8.bf16 %v6254
        %v6683 = vunpack.c.l.s8.bf16 %v6255
        %v6684 = vunpack.c.l.s8.bf16 %v6256
        %v6685 = vunpack.c.l.s8.bf16 %v6257
        %v6686 = vunpack.c.l.s8.bf16 %v6258
        %v6687 = vunpack.c.h.s8.bf16 %v6255
        %v6688 = vunpack.c.h.s8.bf16 %v6256
        %v6689 = vunpack.c.h.s8.bf16 %v6257
        %v6690 = vunpack.c.h.s8.bf16 %v6258
        %v6691 = vunpack.c.l.s8.bf16 %v6259
        %v6692 = vunpack.c.l.s8.bf16 %v6260
        %v6693 = vunpack.c.l.s8.bf16 %v6261
        %v6694 = vunpack.c.l.s8.bf16 %v6262
        %v6695 = vunpack.c.h.s8.bf16 %v6259
        %v6696 = vunpack.c.h.s8.bf16 %v6260
        %v6697 = vunpack.c.h.s8.bf16 %v6261
        %v6698 = vunpack.c.h.s8.bf16 %v6262
        %v6699 = vunpack.c.l.s8.bf16 %v6263
        %v6700 = vunpack.c.l.s8.bf16 %v6264
        %v6701 = vunpack.c.l.s8.bf16 %v6265
        %v6702 = vunpack.c.l.s8.bf16 %v6266
        %v6703 = vunpack.c.h.s8.bf16 %v6263
        %v6704 = vunpack.c.h.s8.bf16 %v6264
        %v6705 = vunpack.c.h.s8.bf16 %v6265
        %v6706 = vunpack.c.h.s8.bf16 %v6266
        %v6707 = vunpack.c.l.s8.bf16 %v6267
        %v6708 = vunpack.c.l.s8.bf16 %v6268
        %v6709 = vunpack.c.l.s8.bf16 %v6269
        %v6710 = vunpack.c.l.s8.bf16 %v6270
        %v6711 = vunpack.c.h.s8.bf16 %v6267
        %v6712 = vunpack.c.h.s8.bf16 %v6268
        %v6713 = vunpack.c.h.s8.bf16 %v6269
        %v6714 = vunpack.c.h.s8.bf16 %v6270
        %v6715 = vunpack.c.l.s8.bf16 %v6271
        %v6716 = vunpack.c.l.s8.bf16 %v6272
        %v6717 = vunpack.c.l.s8.bf16 %v6273
        %v6718 = vunpack.c.l.s8.bf16 %v6274
        %v6719 = vunpack.c.h.s8.bf16 %v6271
        %v6720 = vunpack.c.h.s8.bf16 %v6272
        %v6721 = vunpack.c.h.s8.bf16 %v6273
        %v6722 = vunpack.c.h.s8.bf16 %v6274
        %v6723 = vunpack.c.l.s8.bf16 %v6275
        %v6724 = vunpack.c.l.s8.bf16 %v6276
        %v6725 = vunpack.c.l.s8.bf16 %v6277
        %v6726 = vunpack.c.l.s8.bf16 %v6278
        %v6727 = vunpack.c.h.s8.bf16 %v6275
        %v6728 = vunpack.c.h.s8.bf16 %v6276
        %v6729 = vunpack.c.h.s8.bf16 %v6277
        %v6730 = vunpack.c.h.s8.bf16 %v6278
        %v6731 = vunpack.c.l.s8.bf16 %v6279
        %v6732 = vunpack.c.l.s8.bf16 %v6280
        %v6733 = vunpack.c.l.s8.bf16 %v6281
        %v6734 = vunpack.c.l.s8.bf16 %v6282
        %v6735 = vunpack.c.h.s8.bf16 %v6279
        %v6736 = vunpack.c.h.s8.bf16 %v6280
        %v6737 = vunpack.c.h.s8.bf16 %v6281
        %v6738 = vunpack.c.h.s8.bf16 %v6282
        %v6739 = vunpack.c.l.s8.bf16 %v6283
        %v6740 = vunpack.c.l.s8.bf16 %v6284
        %v6741 = vunpack.c.l.s8.bf16 %v6285
        %v6742 = vunpack.c.l.s8.bf16 %v6286
        %v6743 = vunpack.c.h.s8.bf16 %v6283
        %v6744 = vunpack.c.h.s8.bf16 %v6284
        %v6745 = vunpack.c.h.s8.bf16 %v6285
        %v6746 = vunpack.c.h.s8.bf16 %v6286
        %v6747 = vunpack.c.l.s8.bf16 %v6287
        %v6748 = vunpack.c.l.s8.bf16 %v6288
        %v6749 = vunpack.c.l.s8.bf16 %v6289
        %v6750 = vunpack.c.l.s8.bf16 %v6290
        %v6751 = vunpack.c.h.s8.bf16 %v6287
        %v6752 = vunpack.c.h.s8.bf16 %v6288
        %v6753 = vunpack.c.h.s8.bf16 %v6289
        %v6754 = vunpack.c.h.s8.bf16 %v6290
        %v6755 = vunpack.c.l.s8.bf16 %v6291
        %v6756 = vunpack.c.l.s8.bf16 %v6292
        %v6757 = vunpack.c.l.s8.bf16 %v6293
        %v6758 = vunpack.c.l.s8.bf16 %v6294
        %v6759 = vunpack.c.h.s8.bf16 %v6291
        %v6760 = vunpack.c.h.s8.bf16 %v6292
        %v6761 = vunpack.c.h.s8.bf16 %v6293
        %v6762 = vunpack.c.h.s8.bf16 %v6294
        %v6763 = vunpack.c.l.s8.bf16 %v6295
        %v6764 = vunpack.c.l.s8.bf16 %v6296
        %v6765 = vunpack.c.l.s8.bf16 %v6297
        %v6766 = vunpack.c.l.s8.bf16 %v6298
        %v6767 = vunpack.c.h.s8.bf16 %v6295
        %v6768 = vunpack.c.h.s8.bf16 %v6296
        %v6769 = vunpack.c.h.s8.bf16 %v6297
        %v6770 = vunpack.c.h.s8.bf16 %v6298
        %v6771 = vunpack.c.l.s8.bf16 %v6299
        %v6772 = vunpack.c.l.s8.bf16 %v6300
        %v6773 = vunpack.c.l.s8.bf16 %v6301
        %v6774 = vunpack.c.l.s8.bf16 %v6302
        %v6775 = vunpack.c.h.s8.bf16 %v6299
        %v6776 = vunpack.c.h.s8.bf16 %v6300
        %v6777 = vunpack.c.h.s8.bf16 %v6301
        %v6778 = vunpack.c.h.s8.bf16 %v6302
        %v6779 = vunpack.c.l.s8.bf16 %v6303
        %v6780 = vunpack.c.l.s8.bf16 %v6304
        %v6781 = vunpack.c.l.s8.bf16 %v6305
        %v6782 = vunpack.c.l.s8.bf16 %v6306
        %v6783 = vunpack.c.h.s8.bf16 %v6303
        %v6784 = vunpack.c.h.s8.bf16 %v6304
        %v6785 = vunpack.c.h.s8.bf16 %v6305
        %v6786 = vunpack.c.h.s8.bf16 %v6306
        %v6787 = vunpack.c.l.s8.bf16 %v6307
        %v6788 = vunpack.c.l.s8.bf16 %v6308
        %v6789 = vunpack.c.l.s8.bf16 %v6309
        %v6790 = vunpack.c.l.s8.bf16 %v6310
        %v6791 = vunpack.c.h.s8.bf16 %v6307
        %v6792 = vunpack.c.h.s8.bf16 %v6308
        %v6793 = vunpack.c.h.s8.bf16 %v6309
        %v6794 = vunpack.c.h.s8.bf16 %v6310
        %v6795 = vunpack.c.l.s8.bf16 %v6311
        %v6796 = vunpack.c.l.s8.bf16 %v6312
        %v6797 = vunpack.c.l.s8.bf16 %v6313
        %v6798 = vunpack.c.l.s8.bf16 %v6314
        %v6799 = vunpack.c.h.s8.bf16 %v6311
        %v6800 = vunpack.c.h.s8.bf16 %v6312
        %v6801 = vunpack.c.h.s8.bf16 %v6313
        %v6802 = vunpack.c.h.s8.bf16 %v6314
        %v6803 = vunpack.c.l.s8.bf16 %v6315
        %v6804 = vunpack.c.l.s8.bf16 %v6316
        %v6805 = vunpack.c.l.s8.bf16 %v6317
        %v6806 = vunpack.c.l.s8.bf16 %v6318
        %v6807 = vunpack.c.h.s8.bf16 %v6315
        %v6808 = vunpack.c.h.s8.bf16 %v6316
        %v6809 = vunpack.c.h.s8.bf16 %v6317
        %v6810 = vunpack.c.h.s8.bf16 %v6318
        %v6811 = vunpack.c.l.s8.bf16 %v6319
        %v6812 = vunpack.c.l.s8.bf16 %v6320
        %v6813 = vunpack.c.l.s8.bf16 %v6321
        %v6814 = vunpack.c.l.s8.bf16 %v6322
        %v6815 = vunpack.c.h.s8.bf16 %v6319
        %v6816 = vunpack.c.h.s8.bf16 %v6320
        %v6817 = vunpack.c.h.s8.bf16 %v6321
        %v6818 = vunpack.c.h.s8.bf16 %v6322
        %v6819 = vunpack.c.l.s8.bf16 %v6323
        %v6820 = vunpack.c.l.s8.bf16 %v6324
        %v6821 = vunpack.c.l.s8.bf16 %v6325
        %v6822 = vunpack.c.l.s8.bf16 %v6326
        %v6823 = vunpack.c.h.s8.bf16 %v6323
        %v6824 = vunpack.c.h.s8.bf16 %v6324
        %v6825 = vunpack.c.h.s8.bf16 %v6325
        %v6826 = vunpack.c.h.s8.bf16 %v6326
        %v6827 = vunpack.c.l.s8.bf16 %v6327
        %v6828 = vunpack.c.l.s8.bf16 %v6328
        %v6829 = vunpack.c.l.s8.bf16 %v6329
        %v6830 = vunpack.c.l.s8.bf16 %v6330
        %v6831 = vunpack.c.h.s8.bf16 %v6327
        %v6832 = vunpack.c.h.s8.bf16 %v6328
        %v6833 = vunpack.c.h.s8.bf16 %v6329
        %v6834 = vunpack.c.h.s8.bf16 %v6330
        %v6835 = vunpack.c.l.s8.bf16 %v6331
        %v6836 = vunpack.c.l.s8.bf16 %v6332
        %v6837 = vunpack.c.l.s8.bf16 %v6333
        %v6838 = vunpack.c.l.s8.bf16 %v6334
        %v6839 = vunpack.c.h.s8.bf16 %v6331
        %v6840 = vunpack.c.h.s8.bf16 %v6332
        %v6841 = vunpack.c.h.s8.bf16 %v6333
        %v6842 = vunpack.c.h.s8.bf16 %v6334
        %v6843 = vunpack.c.l.s8.bf16 %v6335
        %v6844 = vunpack.c.l.s8.bf16 %v6336
        %v6845 = vunpack.c.l.s8.bf16 %v6337
        %v6846 = vunpack.c.l.s8.bf16 %v6338
        %v6847 = vunpack.c.h.s8.bf16 %v6335
        %v6848 = vunpack.c.h.s8.bf16 %v6336
        %v6849 = vunpack.c.h.s8.bf16 %v6337
        %v6850 = vunpack.c.h.s8.bf16 %v6338
        %6851 = vmatprep.subr.bf16.mxu0 %v6340
        %6852 = vmatpush1.bf16.msra.mxu0 %v6339
        %6853 = vmatprep.subr.bf16.mxu0 %v6344
        %6854 = vmatpush1.bf16.msra.mxu0 %v6343
        %6855 = vmatprep.subr.bf16.mxu0 %v6348
        %6856 = vmatpush1.bf16.msra.mxu0 %v6347
        %6857 = vmatprep.subr.bf16.mxu0 %v6352
        %6858 = vmatpush1.bf16.msra.mxu0 %v6351
        %6859 = vmatprep.subr.bf16.mxu0 %v6356
        %6860 = vmatpush1.bf16.msra.mxu0 %v6355
        %6861 = vmatprep.subr.bf16.mxu0 %v6360
        %6862 = vmatpush1.bf16.msra.mxu0 %v6359
        %6863 = vmatprep.subr.bf16.mxu0 %v6364
        %6864 = vmatpush1.bf16.msra.mxu0 %v6363
        %6865 = vmatprep.subr.bf16.mxu0 %v6368
        %6866 = vmatpush1.bf16.msra.mxu0 %v6367
        %6867 = vmatprep.subr.bf16.mxu0 %v6372
        %6868 = vmatpush1.bf16.msra.mxu0 %v6371
        %6869 = vmatprep.subr.bf16.mxu0 %v6376
        %6870 = vmatpush1.bf16.msra.mxu0 %v6375
        %6871 = vmatprep.subr.bf16.mxu0 %v6380
        %6872 = vmatpush1.bf16.msra.mxu0 %v6379
        %6873 = vmatprep.subr.bf16.mxu0 %v6384
        %6874 = vmatpush1.bf16.msra.mxu0 %v6383
        %6875 = vmatprep.subr.bf16.mxu0 %v6388
        %6876 = vmatpush1.bf16.msra.mxu0 %v6387
        %6877 = vmatprep.subr.bf16.mxu0 %v6392
        %6878 = vmatpush1.bf16.msra.mxu0 %v6391
        %6879 = vmatprep.subr.bf16.mxu0 %v6396
        %6880 = vmatpush1.bf16.msra.mxu0 %v6395
        %6881 = vmatprep.subr.bf16.mxu0 %v6400
        %6882 = vmatpush1.bf16.msra.mxu0 %v6399
        %6883 = vmatprep.mubr.bf16.mxu0 %v6066
        %6884 = vmatmul.mubr.bf16.gmra.mrb[0].mxu0 %v6065
        %v6885 = vpop.f32.mrb[0].mxu0
        %v6886 = vadd.f32 0.0, %v6885
        %v6887 = vpop.f32.mrb[0].mxu0
        %v6888 = vadd.f32 0.0, %v6887
        %v6889 = vpop.f32.mrb[0].mxu0
        %v6890 = vadd.f32 0.0, %v6889
        %v6891 = vpop.f32.mrb[0].mxu0
        %v6892 = vadd.f32 0.0, %v6891
        %6893 = vdwg.mxu0
        %6894 = vmatprep.subr.bf16.mxu0 %v6404
        %6895 = vmatpush1.bf16.msra.mxu0 %v6403
        %6896 = vmatprep.subr.bf16.mxu0 %v6408
        %6897 = vmatpush1.bf16.msra.mxu0 %v6407
        %6898 = vmatprep.subr.bf16.mxu0 %v6412
        %6899 = vmatpush1.bf16.msra.mxu0 %v6411
        %6900 = vmatprep.subr.bf16.mxu0 %v6416
        %6901 = vmatpush1.bf16.msra.mxu0 %v6415
        %6902 = vmatprep.subr.bf16.mxu0 %v6420
        %6903 = vmatpush1.bf16.msra.mxu0 %v6419
        %6904 = vmatprep.subr.bf16.mxu0 %v6424
        %6905 = vmatpush1.bf16.msra.mxu0 %v6423
        %6906 = vmatprep.subr.bf16.mxu0 %v6428
        %6907 = vmatpush1.bf16.msra.mxu0 %v6427
        %6908 = vmatprep.subr.bf16.mxu0 %v6432
        %6909 = vmatpush1.bf16.msra.mxu0 %v6431
        %6910 = vmatprep.subr.bf16.mxu0 %v6436
        %6911 = vmatpush1.bf16.msra.mxu0 %v6435
        %6912 = vmatprep.subr.bf16.mxu0 %v6440
        %6913 = vmatpush1.bf16.msra.mxu0 %v6439
        %6914 = vmatprep.subr.bf16.mxu0 %v6444
        %6915 = vmatpush1.bf16.msra.mxu0 %v6443
        %6916 = vmatprep.subr.bf16.mxu0 %v6448
        %6917 = vmatpush1.bf16.msra.mxu0 %v6447
        %6918 = vmatprep.subr.bf16.mxu0 %v6452
        %6919 = vmatpush1.bf16.msra.mxu0 %v6451
        %6920 = vmatprep.subr.bf16.mxu0 %v6456
        %6921 = vmatpush1.bf16.msra.mxu0 %v6455
        %6922 = vmatprep.subr.bf16.mxu0 %v6460
        %6923 = vmatpush1.bf16.msra.mxu0 %v6459
        %6924 = vmatprep.subr.bf16.mxu0 %v6464
        %6925 = vmatpush1.bf16.msra.mxu0 %v6463
        %6926 = vmatprep.mubr.bf16.mxu0 %v6068
        %6927 = vmatmul.mubr.bf16.gmra.mrb[0].mxu0 %v6067
        %v6928 = vpop.f32.mrb[0].mxu0
        %v6929 = vadd.f32 %v6886, %v6928
        %v6930 = vpop.f32.mrb[0].mxu0
        %v6931 = vadd.f32 %v6888, %v6930
        %v6932 = vpop.f32.mrb[0].mxu0
        %v6933 = vadd.f32 %v6890, %v6932
        %v6934 = vpop.f32.mrb[0].mxu0
        %v6935 = vadd.f32 %v6892, %v6934
        %6936 = vdwg.mxu0
        %6937 = vmatprep.subr.bf16.mxu0 %v6468
        %6938 = vmatpush1.bf16.msra.mxu0 %v6467
        %6939 = vmatprep.subr.bf16.mxu0 %v6472
        %6940 = vmatpush1.bf16.msra.mxu0 %v6471
        %6941 = vmatprep.subr.bf16.mxu0 %v6476
        %6942 = vmatpush1.bf16.msra.mxu0 %v6475
        %6943 = vmatprep.subr.bf16.mxu0 %v6480
        %6944 = vmatpush1.bf16.msra.mxu0 %v6479
        %6945 = vmatprep.subr.bf16.mxu0 %v6484
        %6946 = vmatpush1.bf16.msra.mxu0 %v6483
        %6947 = vmatprep.subr.bf16.mxu0 %v6488
        %6948 = vmatpush1.bf16.msra.mxu0 %v6487
        %6949 = vmatprep.subr.bf16.mxu0 %v6492
        %6950 = vmatpush1.bf16.msra.mxu0 %v6491
        %6951 = vmatprep.subr.bf16.mxu0 %v6496
        %6952 = vmatpush1.bf16.msra.mxu0 %v6495
        %6953 = vmatprep.subr.bf16.mxu0 %v6500
        %6954 = vmatpush1.bf16.msra.mxu0 %v6499
        %6955 = vmatprep.subr.bf16.mxu0 %v6504
        %6956 = vmatpush1.bf16.msra.mxu0 %v6503
        %6957 = vmatprep.subr.bf16.mxu0 %v6508
        %6958 = vmatpush1.bf16.msra.mxu0 %v6507
        %6959 = vmatprep.subr.bf16.mxu0 %v6512
        %6960 = vmatpush1.bf16.msra.mxu0 %v6511
        %6961 = vmatprep.subr.bf16.mxu0 %v6516
        %6962 = vmatpush1.bf16.msra.mxu0 %v6515
        %6963 = vmatprep.subr.bf16.mxu0 %v6520
        %6964 = vmatpush1.bf16.msra.mxu0 %v6519
        %6965 = vmatprep.subr.bf16.mxu0 %v6524
        %6966 = vmatpush1.bf16.msra.mxu0 %v6523
        %6967 = vmatprep.subr.bf16.mxu0 %v6528
        %6968 = vmatpush1.bf16.msra.mxu0 %v6527
        %6969 = vmatprep.mubr.bf16.mxu0 %v6070
        %6970 = vmatmul.mubr.bf16.gmra.mrb[0].mxu0 %v6069
        %v6971 = vpop.f32.mrb[0].mxu0
        %v6972 = vadd.f32 %v6929, %v6971
        %v6973 = vpop.f32.mrb[0].mxu0
        %v6974 = vadd.f32 %v6931, %v6973
        %v6975 = vpop.f32.mrb[0].mxu0
        %v6976 = vadd.f32 %v6933, %v6975
        %v6977 = vpop.f32.mrb[0].mxu0
        %v6978 = vadd.f32 %v6935, %v6977
        %6979 = vdwg.mxu0
        %6980 = vmatprep.subr.bf16.mxu0 %v6532
        %6981 = vmatpush1.bf16.msra.mxu0 %v6531
        %6982 = vmatprep.subr.bf16.mxu0 %v6536
        %6983 = vmatpush1.bf16.msra.mxu0 %v6535
        %6984 = vmatprep.subr.bf16.mxu0 %v6540
        %6985 = vmatpush1.bf16.msra.mxu0 %v6539
        %6986 = vmatprep.subr.bf16.mxu0 %v6544
        %6987 = vmatpush1.bf16.msra.mxu0 %v6543
        %6988 = vmatprep.subr.bf16.mxu0 %v6548
        %6989 = vmatpush1.bf16.msra.mxu0 %v6547
        %6990 = vmatprep.subr.bf16.mxu0 %v6552
        %6991 = vmatpush1.bf16.msra.mxu0 %v6551
        %6992 = vmatprep.subr.bf16.mxu0 %v6556
        %6993 = vmatpush1.bf16.msra.mxu0 %v6555
        %6994 = vmatprep.subr.bf16.mxu0 %v6560
        %6995 = vmatpush1.bf16.msra.mxu0 %v6559
        %6996 = vmatprep.subr.bf16.mxu0 %v6564
        %6997 = vmatpush1.bf16.msra.mxu0 %v6563
        %6998 = vmatprep.subr.bf16.mxu0 %v6568
        %6999 = vmatpush1.bf16.msra.mxu0 %v6567
        %7000 = vmatprep.subr.bf16.mxu0 %v6572
        %7001 = vmatpush1.bf16.msra.mxu0 %v6571
        %7002 = vmatprep.subr.bf16.mxu0 %v6576
        %7003 = vmatpush1.bf16.msra.mxu0 %v6575
        %7004 = vmatprep.subr.bf16.mxu0 %v6580
        %7005 = vmatpush1.bf16.msra.mxu0 %v6579
        %7006 = vmatprep.subr.bf16.mxu0 %v6584
        %7007 = vmatpush1.bf16.msra.mxu0 %v6583
        %7008 = vmatprep.subr.bf16.mxu0 %v6588
        %7009 = vmatpush1.bf16.msra.mxu0 %v6587
        %7010 = vmatprep.subr.bf16.mxu0 %v6592
        %7011 = vmatpush1.bf16.msra.mxu0 %v6591
        %7012 = vmatprep.mubr.bf16.mxu0 %v6072
        %7013 = vmatmul.mubr.bf16.gmra.mrb[0].mxu0 %v6071
        %v7014 = vpop.f32.mrb[0].mxu0
        %v7015 = vadd.f32 %v6972, %v7014
        %v7016 = vpop.f32.mrb[0].mxu0
        %v7017 = vadd.f32 %v6974, %v7016
        %v7018 = vpop.f32.mrb[0].mxu0
        %v7019 = vadd.f32 %v6976, %v7018
        %v7020 = vpop.f32.mrb[0].mxu0
        %v7021 = vadd.f32 %v6978, %v7020
        %7022 = vdwg.mxu0
        %7023 = vmatprep.subr.bf16.mxu0 %v6596
        %7024 = vmatpush1.bf16.msra.mxu0 %v6595
        %7025 = vmatprep.subr.bf16.mxu0 %v6600
        %7026 = vmatpush1.bf16.msra.mxu0 %v6599
        %7027 = vmatprep.subr.bf16.mxu0 %v6604
        %7028 = vmatpush1.bf16.msra.mxu0 %v6603
        %7029 = vmatprep.subr.bf16.mxu0 %v6608
        %7030 = vmatpush1.bf16.msra.mxu0 %v6607
        %7031 = vmatprep.subr.bf16.mxu0 %v6612
        %7032 = vmatpush1.bf16.msra.mxu0 %v6611
        %7033 = vmatprep.subr.bf16.mxu0 %v6616
        %7034 = vmatpush1.bf16.msra.mxu0 %v6615
        %7035 = vmatprep.subr.bf16.mxu0 %v6620
        %7036 = vmatpush1.bf16.msra.mxu0 %v6619
        %7037 = vmatprep.subr.bf16.mxu0 %v6624
        %7038 = vmatpush1.bf16.msra.mxu0 %v6623
        %7039 = vmatprep.subr.bf16.mxu0 %v6628
        %7040 = vmatpush1.bf16.msra.mxu0 %v6627
        %7041 = vmatprep.subr.bf16.mxu0 %v6632
        %7042 = vmatpush1.bf16.msra.mxu0 %v6631
        %7043 = vmatprep.subr.bf16.mxu0 %v6636
        %7044 = vmatpush1.bf16.msra.mxu0 %v6635
        %7045 = vmatprep.subr.bf16.mxu0 %v6640
        %7046 = vmatpush1.bf16.msra.mxu0 %v6639
        %7047 = vmatprep.subr.bf16.mxu0 %v6644
        %7048 = vmatpush1.bf16.msra.mxu0 %v6643
        %7049 = vmatprep.subr.bf16.mxu0 %v6648
        %7050 = vmatpush1.bf16.msra.mxu0 %v6647
        %7051 = vmatprep.subr.bf16.mxu0 %v6652
        %7052 = vmatpush1.bf16.msra.mxu0 %v6651
        %7053 = vmatprep.subr.bf16.mxu0 %v6656
        %7054 = vmatpush1.bf16.msra.mxu0 %v6655
        %7055 = vmatprep.mubr.bf16.mxu0 %v6074
        %7056 = vmatmul.mubr.bf16.gmra.mrb[0].mxu0 %v6073
        %v7057 = vpop.f32.mrb[0].mxu0
        %v7058 = vadd.f32 %v7015, %v7057
        %v7059 = vpop.f32.mrb[0].mxu0
        %v7060 = vadd.f32 %v7017, %v7059
        %v7061 = vpop.f32.mrb[0].mxu0
        %v7062 = vadd.f32 %v7019, %v7061
        %v7063 = vpop.f32.mrb[0].mxu0
        %v7064 = vadd.f32 %v7021, %v7063
        %7065 = vdwg.mxu0
        %7066 = vmatprep.subr.bf16.mxu0 %v6660
        %7067 = vmatpush1.bf16.msra.mxu0 %v6659
        %7068 = vmatprep.subr.bf16.mxu0 %v6664
        %7069 = vmatpush1.bf16.msra.mxu0 %v6663
        %7070 = vmatprep.subr.bf16.mxu0 %v6668
        %7071 = vmatpush1.bf16.msra.mxu0 %v6667
        %7072 = vmatprep.subr.bf16.mxu0 %v6672
        %7073 = vmatpush1.bf16.msra.mxu0 %v6671
        %7074 = vmatprep.subr.bf16.mxu0 %v6676
        %7075 = vmatpush1.bf16.msra.mxu0 %v6675
        %7076 = vmatprep.subr.bf16.mxu0 %v6680
        %7077 = vmatpush1.bf16.msra.mxu0 %v6679
        %7078 = vmatprep.subr.bf16.mxu0 %v6684
        %7079 = vmatpush1.bf16.msra.mxu0 %v6683
        %7080 = vmatprep.subr.bf16.mxu0 %v6688
        %7081 = vmatpush1.bf16.msra.mxu0 %v6687
        %7082 = vmatprep.subr.bf16.mxu0 %v6692
        %7083 = vmatpush1.bf16.msra.mxu0 %v6691
        %7084 = vmatprep.subr.bf16.mxu0 %v6696
        %7085 = vmatpush1.bf16.msra.mxu0 %v6695
        %7086 = vmatprep.subr.bf16.mxu0 %v6700
        %7087 = vmatpush1.bf16.msra.mxu0 %v6699
        %7088 = vmatprep.subr.bf16.mxu0 %v6704
        %7089 = vmatpush1.bf16.msra.mxu0 %v6703
        %7090 = vmatprep.subr.bf16.mxu0 %v6708
        %7091 = vmatpush1.bf16.msra.mxu0 %v6707
        %7092 = vmatprep.subr.bf16.mxu0 %v6712
        %7093 = vmatpush1.bf16.msra.mxu0 %v6711
        %7094 = vmatprep.subr.bf16.mxu0 %v6716
        %7095 = vmatpush1.bf16.msra.mxu0 %v6715
        %7096 = vmatprep.subr.bf16.mxu0 %v6720
        %7097 = vmatpush1.bf16.msra.mxu0 %v6719
        %7098 = vmatprep.mubr.bf16.mxu0 %v6076
        %7099 = vmatmul.mubr.bf16.gmra.mrb[0].mxu0 %v6075
        %v7100 = vpop.f32.mrb[0].mxu0
        %v7101 = vadd.f32 %v7058, %v7100
        %v7102 = vpop.f32.mrb[0].mxu0
        %v7103 = vadd.f32 %v7060, %v7102
        %v7104 = vpop.f32.mrb[0].mxu0
        %v7105 = vadd.f32 %v7062, %v7104
        %v7106 = vpop.f32.mrb[0].mxu0
        %v7107 = vadd.f32 %v7064, %v7106
        %7108 = vdwg.mxu0
        %7109 = vmatprep.subr.bf16.mxu0 %v6724
        %7110 = vmatpush1.bf16.msra.mxu0 %v6723
        %7111 = vmatprep.subr.bf16.mxu0 %v6728
        %7112 = vmatpush1.bf16.msra.mxu0 %v6727
        %7113 = vmatprep.subr.bf16.mxu0 %v6732
        %7114 = vmatpush1.bf16.msra.mxu0 %v6731
        %7115 = vmatprep.subr.bf16.mxu0 %v6736
        %7116 = vmatpush1.bf16.msra.mxu0 %v6735
        %7117 = vmatprep.subr.bf16.mxu0 %v6740
        %7118 = vmatpush1.bf16.msra.mxu0 %v6739
        %7119 = vmatprep.subr.bf16.mxu0 %v6744
        %7120 = vmatpush1.bf16.msra.mxu0 %v6743
        %7121 = vmatprep.subr.bf16.mxu0 %v6748
        %7122 = vmatpush1.bf16.msra.mxu0 %v6747
        %7123 = vmatprep.subr.bf16.mxu0 %v6752
        %7124 = vmatpush1.bf16.msra.mxu0 %v6751
        %7125 = vmatprep.subr.bf16.mxu0 %v6756
        %7126 = vmatpush1.bf16.msra.mxu0 %v6755
        %7127 = vmatprep.subr.bf16.mxu0 %v6760
        %7128 = vmatpush1.bf16.msra.mxu0 %v6759
        %7129 = vmatprep.subr.bf16.mxu0 %v6764
        %7130 = vmatpush1.bf16.msra.mxu0 %v6763
        %7131 = vmatprep.subr.bf16.mxu0 %v6768
        %7132 = vmatpush1.bf16.msra.mxu0 %v6767
        %7133 = vmatprep.subr.bf16.mxu0 %v6772
        %7134 = vmatpush1.bf16.msra.mxu0 %v6771
        %7135 = vmatprep.subr.bf16.mxu0 %v6776
        %7136 = vmatpush1.bf16.msra.mxu0 %v6775
        %7137 = vmatprep.subr.bf16.mxu0 %v6780
        %7138 = vmatpush1.bf16.msra.mxu0 %v6779
        %7139 = vmatprep.subr.bf16.mxu0 %v6784
        %7140 = vmatpush1.bf16.msra.mxu0 %v6783
        %7141 = vmatprep.mubr.bf16.mxu0 %v6078
        %7142 = vmatmul.mubr.bf16.gmra.mrb[0].mxu0 %v6077
        %v7143 = vpop.f32.mrb[0].mxu0
        %v7144 = vadd.f32 %v7101, %v7143
        %v7145 = vpop.f32.mrb[0].mxu0
        %v7146 = vadd.f32 %v7103, %v7145
        %v7147 = vpop.f32.mrb[0].mxu0
        %v7148 = vadd.f32 %v7105, %v7147
        %v7149 = vpop.f32.mrb[0].mxu0
        %v7150 = vadd.f32 %v7107, %v7149
        %7151 = vdwg.mxu0
        %7152 = vmatprep.subr.bf16.mxu0 %v6788
        %7153 = vmatpush1.bf16.msra.mxu0 %v6787
        %7154 = vmatprep.subr.bf16.mxu0 %v6792
        %7155 = vmatpush1.bf16.msra.mxu0 %v6791
        %7156 = vmatprep.subr.bf16.mxu0 %v6796
        %7157 = vmatpush1.bf16.msra.mxu0 %v6795
        %7158 = vmatprep.subr.bf16.mxu0 %v6800
        %7159 = vmatpush1.bf16.msra.mxu0 %v6799
        %7160 = vmatprep.subr.bf16.mxu0 %v6804
        %7161 = vmatpush1.bf16.msra.mxu0 %v6803
        %7162 = vmatprep.subr.bf16.mxu0 %v6808
        %7163 = vmatpush1.bf16.msra.mxu0 %v6807
        %7164 = vmatprep.subr.bf16.mxu0 %v6812
        %7165 = vmatpush1.bf16.msra.mxu0 %v6811
        %7166 = vmatprep.subr.bf16.mxu0 %v6816
        %7167 = vmatpush1.bf16.msra.mxu0 %v6815
        %7168 = vmatprep.subr.bf16.mxu0 %v6820
        %7169 = vmatpush1.bf16.msra.mxu0 %v6819
        %7170 = vmatprep.subr.bf16.mxu0 %v6824
        %7171 = vmatpush1.bf16.msra.mxu0 %v6823
        %7172 = vmatprep.subr.bf16.mxu0 %v6828
        %7173 = vmatpush1.bf16.msra.mxu0 %v6827
        %7174 = vmatprep.subr.bf16.mxu0 %v6832
        %7175 = vmatpush1.bf16.msra.mxu0 %v6831
        %7176 = vmatprep.subr.bf16.mxu0 %v6836
        %7177 = vmatpush1.bf16.msra.mxu0 %v6835
        %7178 = vmatprep.subr.bf16.mxu0 %v6840
        %7179 = vmatpush1.bf16.msra.mxu0 %v6839
        %7180 = vmatprep.subr.bf16.mxu0 %v6844
        %7181 = vmatpush1.bf16.msra.mxu0 %v6843
        %7182 = vmatprep.subr.bf16.mxu0 %v6848
        %7183 = vmatpush1.bf16.msra.mxu0 %v6847
        %7184 = vmatprep.mubr.bf16.mxu0 %v6080
        %7185 = vmatmul.mubr.bf16.gmra.mrb[0].mxu0 %v6079
        %v7186 = vpop.f32.mrb[0].mxu0
        %v7187 = vadd.f32 %v7144, %v7186
        %v7188 = vpop.f32.mrb[0].mxu0
        %v7189 = vadd.f32 %v7146, %v7188
        %v7190 = vpop.f32.mrb[0].mxu0
        %v7191 = vadd.f32 %v7148, %v7190
        %v7192 = vpop.f32.mrb[0].mxu0
        %v7193 = vadd.f32 %v7150, %v7192
        %7194 = vdwg.mxu0
        %7195 = vmatprep.subr.bf16.mxu0 %v6342
        %7196 = vmatpush1.bf16.msra.mxu0 %v6341
        %7197 = vmatprep.subr.bf16.mxu0 %v6346
        %7198 = vmatpush1.bf16.msra.mxu0 %v6345
        %7199 = vmatprep.subr.bf16.mxu0 %v6350
        %7200 = vmatpush1.bf16.msra.mxu0 %v6349
        %7201 = vmatprep.subr.bf16.mxu0 %v6354
        %7202 = vmatpush1.bf16.msra.mxu0 %v6353
        %7203 = vmatprep.subr.bf16.mxu0 %v6358
        %7204 = vmatpush1.bf16.msra.mxu0 %v6357
        %7205 = vmatprep.subr.bf16.mxu0 %v6362
        %7206 = vmatpush1.bf16.msra.mxu0 %v6361
        %7207 = vmatprep.subr.bf16.mxu0 %v6366
        %7208 = vmatpush1.bf16.msra.mxu0 %v6365
        %7209 = vmatprep.subr.bf16.mxu0 %v6370
        %7210 = vmatpush1.bf16.msra.mxu0 %v6369
        %7211 = vmatprep.subr.bf16.mxu0 %v6374
        %7212 = vmatpush1.bf16.msra.mxu0 %v6373
        %7213 = vmatprep.subr.bf16.mxu0 %v6378
        %7214 = vmatpush1.bf16.msra.mxu0 %v6377
        %7215 = vmatprep.subr.bf16.mxu0 %v6382
        %7216 = vmatpush1.bf16.msra.mxu0 %v6381
        %7217 = vmatprep.subr.bf16.mxu0 %v6386
        %7218 = vmatpush1.bf16.msra.mxu0 %v6385
        %7219 = vmatprep.subr.bf16.mxu0 %v6390
        %7220 = vmatpush1.bf16.msra.mxu0 %v6389
        %7221 = vmatprep.subr.bf16.mxu0 %v6394
        %7222 = vmatpush1.bf16.msra.mxu0 %v6393
        %7223 = vmatprep.subr.bf16.mxu0 %v6398
        %7224 = vmatpush1.bf16.msra.mxu0 %v6397
        %7225 = vmatprep.subr.bf16.mxu0 %v6402
        %7226 = vmatpush1.bf16.msra.mxu0 %v6401
        %7227 = vmatprep.mubr.bf16.mxu0 %v6066
        %7228 = vmatmul.mubr.bf16.gmra.mrb[0].mxu0 %v6065
        %v7229 = vpop.f32.mrb[0].mxu0
        %v7230 = vadd.f32 0.0, %v7229
        %v7231 = vpop.f32.mrb[0].mxu0
        %v7232 = vadd.f32 0.0, %v7231
        %v7233 = vpop.f32.mrb[0].mxu0
        %v7234 = vadd.f32 0.0, %v7233
        %v7235 = vpop.f32.mrb[0].mxu0
        %v7236 = vadd.f32 0.0, %v7235
        %7237 = vdwg.mxu0
        %7238 = vmatprep.subr.bf16.mxu0 %v6406
        %7239 = vmatpush1.bf16.msra.mxu0 %v6405
        %7240 = vmatprep.subr.bf16.mxu0 %v6410
        %7241 = vmatpush1.bf16.msra.mxu0 %v6409
        %7242 = vmatprep.subr.bf16.mxu0 %v6414
        %7243 = vmatpush1.bf16.msra.mxu0 %v6413
        %7244 = vmatprep.subr.bf16.mxu0 %v6418
        %7245 = vmatpush1.bf16.msra.mxu0 %v6417
        %7246 = vmatprep.subr.bf16.mxu0 %v6422
        %7247 = vmatpush1.bf16.msra.mxu0 %v6421
        %7248 = vmatprep.subr.bf16.mxu0 %v6426
        %7249 = vmatpush1.bf16.msra.mxu0 %v6425
        %7250 = vmatprep.subr.bf16.mxu0 %v6430
        %7251 = vmatpush1.bf16.msra.mxu0 %v6429
        %7252 = vmatprep.subr.bf16.mxu0 %v6434
        %7253 = vmatpush1.bf16.msra.mxu0 %v6433
        %7254 = vmatprep.subr.bf16.mxu0 %v6438
        %7255 = vmatpush1.bf16.msra.mxu0 %v6437
        %7256 = vmatprep.subr.bf16.mxu0 %v6442
        %7257 = vmatpush1.bf16.msra.mxu0 %v6441
        %7258 = vmatprep.subr.bf16.mxu0 %v6446
        %7259 = vmatpush1.bf16.msra.mxu0 %v6445
        %7260 = vmatprep.subr.bf16.mxu0 %v6450
        %7261 = vmatpush1.bf16.msra.mxu0 %v6449
        %7262 = vmatprep.subr.bf16.mxu0 %v6454
        %7263 = vmatpush1.bf16.msra.mxu0 %v6453
        %7264 = vmatprep.subr.bf16.mxu0 %v6458
        %7265 = vmatpush1.bf16.msra.mxu0 %v6457
        %7266 = vmatprep.subr.bf16.mxu0 %v6462
        %7267 = vmatpush1.bf16.msra.mxu0 %v6461
        %7268 = vmatprep.subr.bf16.mxu0 %v6466
        %7269 = vmatpush1.bf16.msra.mxu0 %v6465
        %7270 = vmatprep.mubr.bf16.mxu0 %v6068
        %7271 = vmatmul.mubr.bf16.gmra.mrb[0].mxu0 %v6067
        %v7272 = vpop.f32.mrb[0].mxu0
        %v7273 = vadd.f32 %v7230, %v7272
        %v7274 = vpop.f32.mrb[0].mxu0
        %v7275 = vadd.f32 %v7232, %v7274
        %v7276 = vpop.f32.mrb[0].mxu0
        %v7277 = vadd.f32 %v7234, %v7276
        %v7278 = vpop.f32.mrb[0].mxu0
        %v7279 = vadd.f32 %v7236, %v7278
        %7280 = vdwg.mxu0
        %7281 = vmatprep.subr.bf16.mxu0 %v6470
        %7282 = vmatpush1.bf16.msra.mxu0 %v6469
        %7283 = vmatprep.subr.bf16.mxu0 %v6474
        %7284 = vmatpush1.bf16.msra.mxu0 %v6473
        %7285 = vmatprep.subr.bf16.mxu0 %v6478
        %7286 = vmatpush1.bf16.msra.mxu0 %v6477
        %7287 = vmatprep.subr.bf16.mxu0 %v6482
        %7288 = vmatpush1.bf16.msra.mxu0 %v6481
        %7289 = vmatprep.subr.bf16.mxu0 %v6486
        %7290 = vmatpush1.bf16.msra.mxu0 %v6485
        %7291 = vmatprep.subr.bf16.mxu0 %v6490
        %7292 = vmatpush1.bf16.msra.mxu0 %v6489
        %7293 = vmatprep.subr.bf16.mxu0 %v6494
        %7294 = vmatpush1.bf16.msra.mxu0 %v6493
        %7295 = vmatprep.subr.bf16.mxu0 %v6498
        %7296 = vmatpush1.bf16.msra.mxu0 %v6497
        %7297 = vmatprep.subr.bf16.mxu0 %v6502
        %7298 = vmatpush1.bf16.msra.mxu0 %v6501
        %7299 = vmatprep.subr.bf16.mxu0 %v6506
        %7300 = vmatpush1.bf16.msra.mxu0 %v6505
        %7301 = vmatprep.subr.bf16.mxu0 %v6510
        %7302 = vmatpush1.bf16.msra.mxu0 %v6509
        %7303 = vmatprep.subr.bf16.mxu0 %v6514
        %7304 = vmatpush1.bf16.msra.mxu0 %v6513
        %7305 = vmatprep.subr.bf16.mxu0 %v6518
        %7306 = vmatpush1.bf16.msra.mxu0 %v6517
        %7307 = vmatprep.subr.bf16.mxu0 %v6522
        %7308 = vmatpush1.bf16.msra.mxu0 %v6521
        %7309 = vmatprep.subr.bf16.mxu0 %v6526
        %7310 = vmatpush1.bf16.msra.mxu0 %v6525
        %7311 = vmatprep.subr.bf16.mxu0 %v6530
        %7312 = vmatpush1.bf16.msra.mxu0 %v6529
        %7313 = vmatprep.mubr.bf16.mxu0 %v6070
        %7314 = vmatmul.mubr.bf16.gmra.mrb[0].mxu0 %v6069
        %v7315 = vpop.f32.mrb[0].mxu0
        %v7316 = vadd.f32 %v7273, %v7315
        %v7317 = vpop.f32.mrb[0].mxu0
        %v7318 = vadd.f32 %v7275, %v7317
        %v7319 = vpop.f32.mrb[0].mxu0
        %v7320 = vadd.f32 %v7277, %v7319
        %v7321 = vpop.f32.mrb[0].mxu0
        %v7322 = vadd.f32 %v7279, %v7321
        %7323 = vdwg.mxu0
        %7324 = vmatprep.subr.bf16.mxu0 %v6534
        %7325 = vmatpush1.bf16.msra.mxu0 %v6533
        %7326 = vmatprep.subr.bf16.mxu0 %v6538
        %7327 = vmatpush1.bf16.msra.mxu0 %v6537
        %7328 = vmatprep.subr.bf16.mxu0 %v6542
        %7329 = vmatpush1.bf16.msra.mxu0 %v6541
        %7330 = vmatprep.subr.bf16.mxu0 %v6546
        %7331 = vmatpush1.bf16.msra.mxu0 %v6545
        %7332 = vmatprep.subr.bf16.mxu0 %v6550
        %7333 = vmatpush1.bf16.msra.mxu0 %v6549
        %7334 = vmatprep.subr.bf16.mxu0 %v6554
        %7335 = vmatpush1.bf16.msra.mxu0 %v6553
        %7336 = vmatprep.subr.bf16.mxu0 %v6558
        %7337 = vmatpush1.bf16.msra.mxu0 %v6557
        %7338 = vmatprep.subr.bf16.mxu0 %v6562
        %7339 = vmatpush1.bf16.msra.mxu0 %v6561
        %7340 = vmatprep.subr.bf16.mxu0 %v6566
        %7341 = vmatpush1.bf16.msra.mxu0 %v6565
        %7342 = vmatprep.subr.bf16.mxu0 %v6570
        %7343 = vmatpush1.bf16.msra.mxu0 %v6569
        %7344 = vmatprep.subr.bf16.mxu0 %v6574
        %7345 = vmatpush1.bf16.msra.mxu0 %v6573
        %7346 = vmatprep.subr.bf16.mxu0 %v6578
        %7347 = vmatpush1.bf16.msra.mxu0 %v6577
        %7348 = vmatprep.subr.bf16.mxu0 %v6582
        %7349 = vmatpush1.bf16.msra.mxu0 %v6581
        %7350 = vmatprep.subr.bf16.mxu0 %v6586
        %7351 = vmatpush1.bf16.msra.mxu0 %v6585
        %7352 = vmatprep.subr.bf16.mxu0 %v6590
        %7353 = vmatpush1.bf16.msra.mxu0 %v6589
        %7354 = vmatprep.subr.bf16.mxu0 %v6594
        %7355 = vmatpush1.bf16.msra.mxu0 %v6593
        %7356 = vmatprep.mubr.bf16.mxu0 %v6072
        %7357 = vmatmul.mubr.bf16.gmra.mrb[0].mxu0 %v6071
        %v7358 = vpop.f32.mrb[0].mxu0
        %v7359 = vadd.f32 %v7316, %v7358
        %v7360 = vpop.f32.mrb[0].mxu0
        %v7361 = vadd.f32 %v7318, %v7360
        %v7362 = vpop.f32.mrb[0].mxu0
        %v7363 = vadd.f32 %v7320, %v7362
        %v7364 = vpop.f32.mrb[0].mxu0
        %v7365 = vadd.f32 %v7322, %v7364
        %7366 = vdwg.mxu0
        %7367 = vmatprep.subr.bf16.mxu0 %v6598
        %7368 = vmatpush1.bf16.msra.mxu0 %v6597
        %7369 = vmatprep.subr.bf16.mxu0 %v6602
        %7370 = vmatpush1.bf16.msra.mxu0 %v6601
        %7371 = vmatprep.subr.bf16.mxu0 %v6606
        %7372 = vmatpush1.bf16.msra.mxu0 %v6605
        %7373 = vmatprep.subr.bf16.mxu0 %v6610
        %7374 = vmatpush1.bf16.msra.mxu0 %v6609
        %7375 = vmatprep.subr.bf16.mxu0 %v6614
        %7376 = vmatpush1.bf16.msra.mxu0 %v6613
        %7377 = vmatprep.subr.bf16.mxu0 %v6618
        %7378 = vmatpush1.bf16.msra.mxu0 %v6617
        %7379 = vmatprep.subr.bf16.mxu0 %v6622
        %7380 = vmatpush1.bf16.msra.mxu0 %v6621
        %7381 = vmatprep.subr.bf16.mxu0 %v6626
        %7382 = vmatpush1.bf16.msra.mxu0 %v6625
        %7383 = vmatprep.subr.bf16.mxu0 %v6630
        %7384 = vmatpush1.bf16.msra.mxu0 %v6629
        %7385 = vmatprep.subr.bf16.mxu0 %v6634
        %7386 = vmatpush1.bf16.msra.mxu0 %v6633
        %7387 = vmatprep.subr.bf16.mxu0 %v6638
        %7388 = vmatpush1.bf16.msra.mxu0 %v6637
        %7389 = vmatprep.subr.bf16.mxu0 %v6642
        %7390 = vmatpush1.bf16.msra.mxu0 %v6641
        %7391 = vmatprep.subr.bf16.mxu0 %v6646
        %7392 = vmatpush1.bf16.msra.mxu0 %v6645
        %7393 = vmatprep.subr.bf16.mxu0 %v6650
        %7394 = vmatpush1.bf16.msra.mxu0 %v6649
        %7395 = vmatprep.subr.bf16.mxu0 %v6654
        %7396 = vmatpush1.bf16.msra.mxu0 %v6653
        %7397 = vmatprep.subr.bf16.mxu0 %v6658
        %7398 = vmatpush1.bf16.msra.mxu0 %v6657
        %7399 = vmatprep.mubr.bf16.mxu0 %v6074
        %7400 = vmatmul.mubr.bf16.gmra.mrb[0].mxu0 %v6073
        %v7401 = vpop.f32.mrb[0].mxu0
        %v7402 = vadd.f32 %v7359, %v7401
        %v7403 = vpop.f32.mrb[0].mxu0
        %v7404 = vadd.f32 %v7361, %v7403
        %v7405 = vpop.f32.mrb[0].mxu0
        %v7406 = vadd.f32 %v7363, %v7405
        %v7407 = vpop.f32.mrb[0].mxu0
        %v7408 = vadd.f32 %v7365, %v7407
        %7409 = vdwg.mxu0
        %7410 = vmatprep.subr.bf16.mxu0 %v6662
        %7411 = vmatpush1.bf16.msra.mxu0 %v6661
        %7412 = vmatprep.subr.bf16.mxu0 %v6666
        %7413 = vmatpush1.bf16.msra.mxu0 %v6665
        %7414 = vmatprep.subr.bf16.mxu0 %v6670
        %7415 = vmatpush1.bf16.msra.mxu0 %v6669
        %7416 = vmatprep.subr.bf16.mxu0 %v6674
        %7417 = vmatpush1.bf16.msra.mxu0 %v6673
        %7418 = vmatprep.subr.bf16.mxu0 %v6678
        %7419 = vmatpush1.bf16.msra.mxu0 %v6677
        %7420 = vmatprep.subr.bf16.mxu0 %v6682
        %7421 = vmatpush1.bf16.msra.mxu0 %v6681
        %7422 = vmatprep.subr.bf16.mxu0 %v6686
        %7423 = vmatpush1.bf16.msra.mxu0 %v6685
        %7424 = vmatprep.subr.bf16.mxu0 %v6690
        %7425 = vmatpush1.bf16.msra.mxu0 %v6689
        %7426 = vmatprep.subr.bf16.mxu0 %v6694
        %7427 = vmatpush1.bf16.msra.mxu0 %v6693
        %7428 = vmatprep.subr.bf16.mxu0 %v6698
        %7429 = vmatpush1.bf16.msra.mxu0 %v6697
        %7430 = vmatprep.subr.bf16.mxu0 %v6702
        %7431 = vmatpush1.bf16.msra.mxu0 %v6701
        %7432 = vmatprep.subr.bf16.mxu0 %v6706
        %7433 = vmatpush1.bf16.msra.mxu0 %v6705
        %7434 = vmatprep.subr.bf16.mxu0 %v6710
        %7435 = vmatpush1.bf16.msra.mxu0 %v6709
        %7436 = vmatprep.subr.bf16.mxu0 %v6714
        %7437 = vmatpush1.bf16.msra.mxu0 %v6713
        %7438 = vmatprep.subr.bf16.mxu0 %v6718
        %7439 = vmatpush1.bf16.msra.mxu0 %v6717
        %7440 = vmatprep.subr.bf16.mxu0 %v6722
        %7441 = vmatpush1.bf16.msra.mxu0 %v6721
        %7442 = vmatprep.mubr.bf16.mxu0 %v6076
        %7443 = vmatmul.mubr.bf16.gmra.mrb[0].mxu0 %v6075
        %v7444 = vpop.f32.mrb[0].mxu0
        %v7445 = vadd.f32 %v7402, %v7444
        %v7446 = vpop.f32.mrb[0].mxu0
        %v7447 = vadd.f32 %v7404, %v7446
        %v7448 = vpop.f32.mrb[0].mxu0
        %v7449 = vadd.f32 %v7406, %v7448
        %v7450 = vpop.f32.mrb[0].mxu0
        %v7451 = vadd.f32 %v7408, %v7450
        %7452 = vdwg.mxu0
        %7453 = vmatprep.subr.bf16.mxu0 %v6726
        %7454 = vmatpush1.bf16.msra.mxu0 %v6725
        %7455 = vmatprep.subr.bf16.mxu0 %v6730
        %7456 = vmatpush1.bf16.msra.mxu0 %v6729
        %7457 = vmatprep.subr.bf16.mxu0 %v6734
        %7458 = vmatpush1.bf16.msra.mxu0 %v6733
        %7459 = vmatprep.subr.bf16.mxu0 %v6738
        %7460 = vmatpush1.bf16.msra.mxu0 %v6737
        %7461 = vmatprep.subr.bf16.mxu0 %v6742
        %7462 = vmatpush1.bf16.msra.mxu0 %v6741
        %7463 = vmatprep.subr.bf16.mxu0 %v6746
        %7464 = vmatpush1.bf16.msra.mxu0 %v6745
        %7465 = vmatprep.subr.bf16.mxu0 %v6750
        %7466 = vmatpush1.bf16.msra.mxu0 %v6749
        %7467 = vmatprep.subr.bf16.mxu0 %v6754
        %7468 = vmatpush1.bf16.msra.mxu0 %v6753
        %7469 = vmatprep.subr.bf16.mxu0 %v6758
        %7470 = vmatpush1.bf16.msra.mxu0 %v6757
        %7471 = vmatprep.subr.bf16.mxu0 %v6762
        %7472 = vmatpush1.bf16.msra.mxu0 %v6761
        %7473 = vmatprep.subr.bf16.mxu0 %v6766
        %7474 = vmatpush1.bf16.msra.mxu0 %v6765
        %7475 = vmatprep.subr.bf16.mxu0 %v6770
        %7476 = vmatpush1.bf16.msra.mxu0 %v6769
        %7477 = vmatprep.subr.bf16.mxu0 %v6774
        %7478 = vmatpush1.bf16.msra.mxu0 %v6773
        %7479 = vmatprep.subr.bf16.mxu0 %v6778
        %7480 = vmatpush1.bf16.msra.mxu0 %v6777
        %7481 = vmatprep.subr.bf16.mxu0 %v6782
        %7482 = vmatpush1.bf16.msra.mxu0 %v6781
        %7483 = vmatprep.subr.bf16.mxu0 %v6786
        %7484 = vmatpush1.bf16.msra.mxu0 %v6785
        %7485 = vmatprep.mubr.bf16.mxu0 %v6078
        %7486 = vmatmul.mubr.bf16.gmra.mrb[0].mxu0 %v6077
        %v7487 = vpop.f32.mrb[0].mxu0
        %v7488 = vadd.f32 %v7445, %v7487
        %v7489 = vpop.f32.mrb[0].mxu0
        %v7490 = vadd.f32 %v7447, %v7489
        %v7491 = vpop.f32.mrb[0].mxu0
        %v7492 = vadd.f32 %v7449, %v7491
        %v7493 = vpop.f32.mrb[0].mxu0
        %v7494 = vadd.f32 %v7451, %v7493
        %7495 = vdwg.mxu0
        %7496 = vmatprep.subr.bf16.mxu0 %v6790
        %7497 = vmatpush1.bf16.msra.mxu0 %v6789
        %7498 = vmatprep.subr.bf16.mxu0 %v6794
        %7499 = vmatpush1.bf16.msra.mxu0 %v6793
        %7500 = vmatprep.subr.bf16.mxu0 %v6798
        %7501 = vmatpush1.bf16.msra.mxu0 %v6797
        %7502 = vmatprep.subr.bf16.mxu0 %v6802
        %7503 = vmatpush1.bf16.msra.mxu0 %v6801
        %7504 = vmatprep.subr.bf16.mxu0 %v6806
        %7505 = vmatpush1.bf16.msra.mxu0 %v6805
        %7506 = vmatprep.subr.bf16.mxu0 %v6810
        %7507 = vmatpush1.bf16.msra.mxu0 %v6809
        %7508 = vmatprep.subr.bf16.mxu0 %v6814
        %7509 = vmatpush1.bf16.msra.mxu0 %v6813
        %7510 = vmatprep.subr.bf16.mxu0 %v6818
        %7511 = vmatpush1.bf16.msra.mxu0 %v6817
        %7512 = vmatprep.subr.bf16.mxu0 %v6822
        %7513 = vmatpush1.bf16.msra.mxu0 %v6821
        %7514 = vmatprep.subr.bf16.mxu0 %v6826
        %7515 = vmatpush1.bf16.msra.mxu0 %v6825
        %7516 = vmatprep.subr.bf16.mxu0 %v6830
        %7517 = vmatpush1.bf16.msra.mxu0 %v6829
        %7518 = vmatprep.subr.bf16.mxu0 %v6834
        %7519 = vmatpush1.bf16.msra.mxu0 %v6833
        %7520 = vmatprep.subr.bf16.mxu0 %v6838
        %7521 = vmatpush1.bf16.msra.mxu0 %v6837
        %7522 = vmatprep.subr.bf16.mxu0 %v6842
        %7523 = vmatpush1.bf16.msra.mxu0 %v6841
        %7524 = vmatprep.subr.bf16.mxu0 %v6846
        %7525 = vmatpush1.bf16.msra.mxu0 %v6845
        %7526 = vmatprep.subr.bf16.mxu0 %v6850
        %7527 = vmatpush1.bf16.msra.mxu0 %v6849
        %7528 = vmatprep.mubr.bf16.mxu0 %v6080
        %7529 = vmatmul.mubr.bf16.gmra.mrb[0].mxu0 %v6079
        %v7530 = vpop.f32.mrb[0].mxu0
        %v7531 = vadd.f32 %v7488, %v7530
        %v7532 = vpop.f32.mrb[0].mxu0
        %v7533 = vadd.f32 %v7490, %v7532
        %v7534 = vpop.f32.mrb[0].mxu0
        %v7535 = vadd.f32 %v7492, %v7534
        %v7536 = vpop.f32.mrb[0].mxu0
        %v7537 = vadd.f32 %v7494, %v7536
        %7538 = vdwg.mxu0
        %v7540 = vlaneseq
        %v7541 = vshrl.u32 %v7540, 7
        %v7542 = vsub.s32 0, %v7541
        %v7543 = vrot.slane %v6081, %v7542
        %v7544 = vlaneseq
        %v7545 = vshrl.u32 %v7544, 7
        %v7546 = vsub.s32 1, %v7545
        %v7547 = vrot.slane %v6081, %v7546
        %v7548 = vlaneseq
        %v7549 = vshrl.u32 %v7548, 7
        %v7550 = vsub.s32 2, %v7549
        %v7551 = vrot.slane %v6081, %v7550
        %v7552 = vlaneseq
        %v7553 = vshrl.u32 %v7552, 7
        %v7554 = vsub.s32 3, %v7553
        %v7555 = vrot.slane %v6081, %v7554
        %v7560 = vmul.f32 %v7187, %v7543
        %v7561 = vmul.f32 %v7189, %v7547
        %v7562 = vmul.f32 %v7531, %v7551
        %v7563 = vmul.f32 %v7533, %v7555
        %v7564 = vmul.f32 %v7191, %v7543
        %v7565 = vmul.f32 %v7193, %v7547
        %v7566 = vmul.f32 %v7535, %v7551
        %v7567 = vmul.f32 %v7537, %v7555
        %v7569 = vlaneseq
        %v7570 = vshrl.u32 %v7569, 7
        %v7571 = vsub.s32 0, %v7570
        %v7572 = vrot.slane %v6082, %v7571
        %v7573 = vlaneseq
        %v7574 = vshrl.u32 %v7573, 7
        %v7575 = vsub.s32 1, %v7574
        %v7576 = vrot.slane %v6082, %v7575
        %v7577 = vlaneseq
        %v7578 = vshrl.u32 %v7577, 7
        %v7579 = vsub.s32 2, %v7578
        %v7580 = vrot.slane %v6082, %v7579
        %v7581 = vlaneseq
        %v7582 = vshrl.u32 %v7581, 7
        %v7583 = vsub.s32 3, %v7582
        %v7584 = vrot.slane %v6082, %v7583
        %v7589 = vadd.f32 %v7560, %v7572
        %v7590 = vadd.f32 %v7561, %v7576
        %v7591 = vadd.f32 %v7562, %v7580
        %v7592 = vadd.f32 %v7563, %v7584
        %v7593 = vadd.f32 %v7564, %v7572
        %v7594 = vadd.f32 %v7565, %v7576
        %v7595 = vadd.f32 %v7566, %v7580
        %v7596 = vadd.f32 %v7567, %v7584
        %v7597 = vadd.f32 %v7589, %v4333
        %v7598 = vadd.f32 %v7590, %v4334
        %v7599 = vadd.f32 %v7591, %v4335
        %v7600 = vadd.f32 %v7592, %v4336
        %v7601 = vadd.f32 %v7593, %v4337
        %v7602 = vadd.f32 %v7594, %v4338
        %v7603 = vadd.f32 %v7595, %v4339
        %v7604 = vadd.f32 %v7596, %v4340
        %v7605 = vld [vmem:[%s493 + $0x50] sm:$0xf]
        %v7606 = vld [vmem:[%s493 + $0x54] sm:$0xf]
        %v7607 = vadd.f32 %v7597, %v7598
        %v7608 = vadd.f32 %v7607, %v7599
        %v7609 = vadd.f32 %v7608, %v7600
        %7610 = vadd.xlane.f32.xlu0 %v7609
        %v7611 = vpop.xlane.xlu0 %7610
        %v7612 = vadd.f32 %v7601, %v7602
        %v7613 = vadd.f32 %v7612, %v7603
        %v7614 = vadd.f32 %v7613, %v7604
        %7615 = vadd.xlane.f32.xlu0 %v7614
        %v7616 = vpop.xlane.xlu0 %7615
        %v7617 = vmul.f32 %v7611, %v4240
        %v7618 = vmul.f32 %v7616, %v4240
        %v7619 = vsub.f32 %v7597, %v7617
        %v7620 = vsub.f32 %v7598, %v7617
        %v7621 = vsub.f32 %v7599, %v7617
        %v7622 = vsub.f32 %v7600, %v7617
        %v7623 = vsub.f32 %v7601, %v7618
        %v7624 = vsub.f32 %v7602, %v7618
        %v7625 = vsub.f32 %v7603, %v7618
        %v7626 = vsub.f32 %v7604, %v7618
        %v7627 = vmul.f32 %v7619, %v7619
        %v7628 = vmul.f32 %v7620, %v7620
        %v7629 = vmul.f32 %v7621, %v7621
        %v7630 = vmul.f32 %v7622, %v7622
        %v7631 = vmul.f32 %v7623, %v7623
        %v7632 = vmul.f32 %v7624, %v7624
        %v7633 = vmul.f32 %v7625, %v7625
        %v7634 = vmul.f32 %v7626, %v7626
        %v7635 = vadd.f32 %v7627, %v7628
        %v7636 = vadd.f32 %v7635, %v7629
        %v7637 = vadd.f32 %v7636, %v7630
        %7638 = vadd.xlane.f32.xlu0 %v7637
        %v7639 = vpop.xlane.xlu0 %7638
        %v7640 = vadd.f32 %v7631, %v7632
        %v7641 = vadd.f32 %v7640, %v7633
        %v7642 = vadd.f32 %v7641, %v7634
        %7643 = vadd.xlane.f32.xlu0 %v7642
        %v7644 = vpop.xlane.xlu0 %7643
        %v7645 = vmul.f32 %v7639, %v4240
        %v7646 = vmul.f32 %v7644, %v4240
        %v7647 = vadd.f32 %v7645, 1e-05
        %v7648 = vadd.f32 %v7646, 1e-05
        %v7649 = vrsqrt.pop %v7647
        %v7650 = vrsqrt.pop %v7648
        %v7651 = vmul.f32 %v7619, %v7649
        %v7652 = vmul.f32 %v7620, %v7649
        %v7653 = vmul.f32 %v7621, %v7649
        %v7654 = vmul.f32 %v7622, %v7649
        %v7655 = vmul.f32 %v7623, %v7650
        %v7656 = vmul.f32 %v7624, %v7650
        %v7657 = vmul.f32 %v7625, %v7650
        %v7658 = vmul.f32 %v7626, %v7650
        %v7660 = vlaneseq
        %v7661 = vshrl.u32 %v7660, 7
        %v7662 = vsub.s32 0, %v7661
        %v7663 = vrot.slane %v7605, %v7662
        %v7664 = vlaneseq
        %v7665 = vshrl.u32 %v7664, 7
        %v7666 = vsub.s32 1, %v7665
        %v7667 = vrot.slane %v7605, %v7666
        %v7668 = vlaneseq
        %v7669 = vshrl.u32 %v7668, 7
        %v7670 = vsub.s32 2, %v7669
        %v7671 = vrot.slane %v7605, %v7670
        %v7672 = vlaneseq
        %v7673 = vshrl.u32 %v7672, 7
        %v7674 = vsub.s32 3, %v7673
        %v7675 = vrot.slane %v7605, %v7674
        %v7680 = vmul.f32 %v7651, %v7663
        %v7681 = vmul.f32 %v7652, %v7667
        %v7682 = vmul.f32 %v7653, %v7671
        %v7683 = vmul.f32 %v7654, %v7675
        %v7684 = vmul.f32 %v7655, %v7663
        %v7685 = vmul.f32 %v7656, %v7667
        %v7686 = vmul.f32 %v7657, %v7671
        %v7687 = vmul.f32 %v7658, %v7675
        %v7689 = vlaneseq
        %v7690 = vshrl.u32 %v7689, 7
        %v7691 = vsub.s32 0, %v7690
        %v7692 = vrot.slane %v7606, %v7691
        %v7693 = vlaneseq
        %v7694 = vshrl.u32 %v7693, 7
        %v7695 = vsub.s32 1, %v7694
        %v7696 = vrot.slane %v7606, %v7695
        %v7697 = vlaneseq
        %v7698 = vshrl.u32 %v7697, 7
        %v7699 = vsub.s32 2, %v7698
        %v7700 = vrot.slane %v7606, %v7699
        %v7701 = vlaneseq
        %v7702 = vshrl.u32 %v7701, 7
        %v7703 = vsub.s32 3, %v7702
        %v7704 = vrot.slane %v7606, %v7703
        %v7709 = vadd.f32 %v7680, %v7692
        %v7710 = vadd.f32 %v7681, %v7696
        %v7711 = vadd.f32 %v7682, %v7700
        %v7712 = vadd.f32 %v7683, %v7704
        %v7713 = vadd.f32 %v7684, %v7692
        %v7714 = vadd.f32 %v7685, %v7696
        %v7715 = vadd.f32 %v7686, %v7700
        %v7716 = vadd.f32 %v7687, %v7704
        %7717 = vst [vmem:[#allocation2] sm:$0xff] %v7709
        %7718 = vst [vmem:[#allocation2 + $0x8] sm:$0xff] %v7710
        %7719 = vst [vmem:[#allocation2 + $0x10] sm:$0xff] %v7711
        %7720 = vst [vmem:[#allocation2 + $0x18] sm:$0xff] %v7712
        %7721 = vst [vmem:[#allocation2 + $0x20] sm:$0xff] %v7713
        %7722 = vst [vmem:[#allocation2 + $0x28] sm:$0xff] %v7714
        %7723 = vst [vmem:[#allocation2 + $0x30] sm:$0xff] %v7715
        %7724 = vst [vmem:[#allocation2 + $0x38] sm:$0xff] %v7716
        %p7725 = scmp.eq.s32.totalorder %s24, 5
        // Predicated region
        $region97: #{transformer_forward.1} parent=59 // pred_check
          %p7726 = pneg %p7725
        $region98: #{transformer_forward.1} parent=59 // pred_check_branch
          %7728 = sbr.rel (%p7726) target = $region100
        $region99: #{transformer_forward.1} parent=59 // pred_region
          %v7729 = vadd.f32 %v7709, %v7713
          %v7730 = vadd.f32 %v7710, %v7714
          %v7731 = vadd.f32 %v7711, %v7715
          %v7732 = vadd.f32 %v7712, %v7716
          %v7733 = vmul.f32 %v7729, 0.5
          %v7734 = vmul.f32 %v7730, 0.5
          %v7735 = vmul.f32 %v7731, 0.5
          %v7736 = vmul.f32 %v7732, 0.5
          %v7737 = vpack.c.bf16 %v7733, %v7733
          %v7738 = vpack.c.bf16 %v7734, %v7734
          %v7739 = vpack.c.bf16 %v7735, %v7735
          %v7740 = vpack.c.bf16 %v7736, %v7736
          %v7741 = vld [vmem:[%s8] sm:$0xf]
          %v7742 = vld [vmem:[%s8 + $0x4] sm:$0xf]
          %v7743 = vld [vmem:[%s8 + $0x8] sm:$0xf]
          %v7744 = vld [vmem:[%s8 + $0xc] sm:$0xf]
          %v7745 = vld [vmem:[%s8 + $0x10] sm:$0xf]
          %v7746 = vld [vmem:[%s8 + $0x14] sm:$0xf]
          %v7747 = vld [vmem:[%s8 + $0x18] sm:$0xf]
          %v7748 = vld [vmem:[%s8 + $0x1c] sm:$0xf]
          %v7749 = vld [vmem:[%s8 + $0x20] sm:$0xf]
          %v7750 = vld [vmem:[%s8 + $0x24] sm:$0xf]
          %v7751 = vld [vmem:[%s8 + $0x28] sm:$0xf]
          %v7752 = vld [vmem:[%s8 + $0x2c] sm:$0xf]
          %v7753 = vld [vmem:[%s8 + $0x30] sm:$0xf]
          %v7754 = vld [vmem:[%s8 + $0x34] sm:$0xf]
          %v7755 = vld [vmem:[%s8 + $0x38] sm:$0xf]
          %v7756 = vld [vmem:[%s8 + $0x3c] sm:$0xf]
          %v7757 = vld [vmem:[%s8 + $0x40] sm:$0xf]
          %v7758 = vld [vmem:[%s8 + $0x44] sm:$0xf]
          %v7759 = vld [vmem:[%s8 + $0x48] sm:$0xf]
          %v7760 = vld [vmem:[%s8 + $0x4c] sm:$0xf]
          %v7761 = vld [vmem:[%s8 + $0x50] sm:$0xf]
          %v7762 = vld [vmem:[%s8 + $0x54] sm:$0xf]
          %v7763 = vld [vmem:[%s8 + $0x58] sm:$0xf]
          %v7764 = vld [vmem:[%s8 + $0x5c] sm:$0xf]
          %v7765 = vld [vmem:[%s8 + $0x60] sm:$0xf]
          %v7766 = vld [vmem:[%s8 + $0x64] sm:$0xf]
          %v7767 = vld [vmem:[%s8 + $0x68] sm:$0xf]
          %v7768 = vld [vmem:[%s8 + $0x6c] sm:$0xf]
          %v7769 = vld [vmem:[%s8 + $0x70] sm:$0xf]
          %v7770 = vld [vmem:[%s8 + $0x74] sm:$0xf]
          %v7771 = vld [vmem:[%s8 + $0x78] sm:$0xf]
          %v7772 = vld [vmem:[%s8 + $0x7c] sm:$0xf]
          %v7773 = vld [vmem:[%s8 + $0x80] sm:$0xf]
          %v7774 = vld [vmem:[%s8 + $0x84] sm:$0xf]
          %v7775 = vld [vmem:[%s8 + $0x88] sm:$0xf]
          %v7776 = vld [vmem:[%s8 + $0x8c] sm:$0xf]
          %v7777 = vld [vmem:[%s8 + $0x90] sm:$0xf]
          %v7778 = vld [vmem:[%s8 + $0x94] sm:$0xf]
          %v7779 = vld [vmem:[%s8 + $0x98] sm:$0xf]
          %v7780 = vld [vmem:[%s8 + $0x9c] sm:$0xf]
          %v7781 = vld [vmem:[%s8 + $0xa0] sm:$0xf]
          %v7782 = vld [vmem:[%s8 + $0xa4] sm:$0xf]
          %v7783 = vld [vmem:[%s8 + $0xa8] sm:$0xf]
          %v7784 = vld [vmem:[%s8 + $0xac] sm:$0xf]
          %v7785 = vld [vmem:[%s8 + $0xb0] sm:$0xf]
          %v7786 = vld [vmem:[%s8 + $0xb4] sm:$0xf]
          %v7787 = vld [vmem:[%s8 + $0xb8] sm:$0xf]
          %v7788 = vld [vmem:[%s8 + $0xbc] sm:$0xf]
          %v7789 = vld [vmem:[%s8 + $0xc0] sm:$0xf]
          %v7790 = vld [vmem:[%s8 + $0xc4] sm:$0xf]
          %v7791 = vld [vmem:[%s8 + $0xc8] sm:$0xf]
          %v7792 = vld [vmem:[%s8 + $0xcc] sm:$0xf]
          %v7793 = vld [vmem:[%s8 + $0xd0] sm:$0xf]
          %v7794 = vld [vmem:[%s8 + $0xd4] sm:$0xf]
          %v7795 = vld [vmem:[%s8 + $0xd8] sm:$0xf]
          %v7796 = vld [vmem:[%s8 + $0xdc] sm:$0xf]
          %v7797 = vld [vmem:[%s8 + $0xe0] sm:$0xf]
          %v7798 = vld [vmem:[%s8 + $0xe4] sm:$0xf]
          %v7799 = vld [vmem:[%s8 + $0xe8] sm:$0xf]
          %v7800 = vld [vmem:[%s8 + $0xec] sm:$0xf]
          %v7801 = vld [vmem:[%s8 + $0xf0] sm:$0xf]
          %v7802 = vld [vmem:[%s8 + $0xf4] sm:$0xf]
          %v7803 = vld [vmem:[%s8 + $0xf8] sm:$0xf]
          %v7804 = vld [vmem:[%s8 + $0xfc] sm:$0xf]
          %v7805 = vld [vmem:[#allocation13] sm:$0x1]
          %v7807 = vlaneseq
          %v7808 = vshrl.u32 %v7807, 7
          %v7809 = vsub.s32 0, %v7808
          %v7810 = vrot.slane %v7805, %v7809
          %v7876 = vunpack.c.l.b16 %v7741
          %v7877 = vunpack.c.l.b16 %v7742
          %v7878 = vunpack.c.l.b16 %v7743
          %v7879 = vunpack.c.l.b16 %v7744
          %v7880 = vunpack.c.l.b16 %v7745
          %v7881 = vunpack.c.l.b16 %v7746
          %v7882 = vunpack.c.l.b16 %v7747
          %v7883 = vunpack.c.l.b16 %v7748
          %v7884 = vunpack.c.l.b16 %v7749
          %v7885 = vunpack.c.l.b16 %v7750
          %v7886 = vunpack.c.l.b16 %v7751
          %v7887 = vunpack.c.l.b16 %v7752
          %v7888 = vunpack.c.l.b16 %v7753
          %v7889 = vunpack.c.l.b16 %v7754
          %v7890 = vunpack.c.l.b16 %v7755
          %v7891 = vunpack.c.l.b16 %v7756
          %v7892 = vunpack.c.l.b16 %v7757
          %v7893 = vunpack.c.l.b16 %v7758
          %v7894 = vunpack.c.l.b16 %v7759
          %v7895 = vunpack.c.l.b16 %v7760
          %v7896 = vunpack.c.l.b16 %v7761
          %v7897 = vunpack.c.l.b16 %v7762
          %v7898 = vunpack.c.l.b16 %v7763
          %v7899 = vunpack.c.l.b16 %v7764
          %v7900 = vunpack.c.l.b16 %v7765
          %v7901 = vunpack.c.l.b16 %v7766
          %v7902 = vunpack.c.l.b16 %v7767
          %v7903 = vunpack.c.l.b16 %v7768
          %v7904 = vunpack.c.l.b16 %v7769
          %v7905 = vunpack.c.l.b16 %v7770
          %v7906 = vunpack.c.l.b16 %v7771
          %v7907 = vunpack.c.l.b16 %v7772
          %v7908 = vunpack.c.l.b16 %v7773
          %v7909 = vunpack.c.l.b16 %v7774
          %v7910 = vunpack.c.l.b16 %v7775
          %v7911 = vunpack.c.l.b16 %v7776
          %v7912 = vunpack.c.l.b16 %v7777
          %v7913 = vunpack.c.l.b16 %v7778
          %v7914 = vunpack.c.l.b16 %v7779
          %v7915 = vunpack.c.l.b16 %v7780
          %v7916 = vunpack.c.l.b16 %v7781
          %v7917 = vunpack.c.l.b16 %v7782
          %v7918 = vunpack.c.l.b16 %v7783
          %v7919 = vunpack.c.l.b16 %v7784
          %v7920 = vunpack.c.l.b16 %v7785
          %v7921 = vunpack.c.l.b16 %v7786
          %v7922 = vunpack.c.l.b16 %v7787
          %v7923 = vunpack.c.l.b16 %v7788
          %v7924 = vunpack.c.l.b16 %v7789
          %v7925 = vunpack.c.l.b16 %v7790
          %v7926 = vunpack.c.l.b16 %v7791
          %v7927 = vunpack.c.l.b16 %v7792
          %v7928 = vunpack.c.l.b16 %v7793
          %v7929 = vunpack.c.l.b16 %v7794
          %v7930 = vunpack.c.l.b16 %v7795
          %v7931 = vunpack.c.l.b16 %v7796
          %v7932 = vunpack.c.l.b16 %v7797
          %v7933 = vunpack.c.l.b16 %v7798
          %v7934 = vunpack.c.l.b16 %v7799
          %v7935 = vunpack.c.l.b16 %v7800
          %v7936 = vunpack.c.l.b16 %v7801
          %v7937 = vunpack.c.l.b16 %v7802
          %v7938 = vunpack.c.l.b16 %v7803
          %v7939 = vunpack.c.l.b16 %v7804
          %v7940 = vpack.c.b16 %v7877, %v7876
          %v7941 = vpack.c.b16 %v7879, %v7878
          %v7942 = vpack.c.b16 %v7881, %v7880
          %v7943 = vpack.c.b16 %v7883, %v7882
          %v7944 = vpack.c.b16 %v7885, %v7884
          %v7945 = vpack.c.b16 %v7887, %v7886
          %v7946 = vpack.c.b16 %v7889, %v7888
          %v7947 = vpack.c.b16 %v7891, %v7890
          %v7948 = vpack.c.b16 %v7893, %v7892
          %v7949 = vpack.c.b16 %v7895, %v7894
          %v7950 = vpack.c.b16 %v7897, %v7896
          %v7951 = vpack.c.b16 %v7899, %v7898
          %v7952 = vpack.c.b16 %v7901, %v7900
          %v7953 = vpack.c.b16 %v7903, %v7902
          %v7954 = vpack.c.b16 %v7905, %v7904
          %v7955 = vpack.c.b16 %v7907, %v7906
          %v7956 = vpack.c.b16 %v7909, %v7908
          %v7957 = vpack.c.b16 %v7911, %v7910
          %v7958 = vpack.c.b16 %v7913, %v7912
          %v7959 = vpack.c.b16 %v7915, %v7914
          %v7960 = vpack.c.b16 %v7917, %v7916
          %v7961 = vpack.c.b16 %v7919, %v7918
          %v7962 = vpack.c.b16 %v7921, %v7920
          %v7963 = vpack.c.b16 %v7923, %v7922
          %v7964 = vpack.c.b16 %v7925, %v7924
          %v7965 = vpack.c.b16 %v7927, %v7926
          %v7966 = vpack.c.b16 %v7929, %v7928
          %v7967 = vpack.c.b16 %v7931, %v7930
          %v7968 = vpack.c.b16 %v7933, %v7932
          %v7969 = vpack.c.b16 %v7935, %v7934
          %v7970 = vpack.c.b16 %v7937, %v7936
          %v7971 = vpack.c.b16 %v7939, %v7938
          %8004 = vmatprep.subr.bf16.mxu0 0
          %8005 = vmatpush1.bf16.msra.mxu0 %v7940
          %8006 = vmatprep.subr.bf16.mxu0 0
          %8007 = vmatpush1.bf16.msra.mxu0 %v7941
          %8008 = vmatprep.subr.bf16.mxu0 0
          %8009 = vmatpush1.bf16.msra.mxu0 %v7942
          %8010 = vmatprep.subr.bf16.mxu0 0
          %8011 = vmatpush1.bf16.msra.mxu0 %v7943
          %8012 = vmatprep.subr.bf16.mxu0 0
          %8013 = vmatpush1.bf16.msra.mxu0 %v7944
          %8014 = vmatprep.subr.bf16.mxu0 0
          %8015 = vmatpush1.bf16.msra.mxu0 %v7945
          %8016 = vmatprep.subr.bf16.mxu0 0
          %8017 = vmatpush1.bf16.msra.mxu0 %v7946
          %8018 = vmatprep.subr.bf16.mxu0 0
          %8019 = vmatpush1.bf16.msra.mxu0 %v7947
          %8020 = vmatprep.subr.bf16.mxu0 0
          %8021 = vmatpush1.bf16.msra.mxu0 %v7948
          %8022 = vmatprep.subr.bf16.mxu0 0
          %8023 = vmatpush1.bf16.msra.mxu0 %v7949
          %8024 = vmatprep.subr.bf16.mxu0 0
          %8025 = vmatpush1.bf16.msra.mxu0 %v7950
          %8026 = vmatprep.subr.bf16.mxu0 0
          %8027 = vmatpush1.bf16.msra.mxu0 %v7951
          %8028 = vmatprep.subr.bf16.mxu0 0
          %8029 = vmatpush1.bf16.msra.mxu0 %v7952
          %8030 = vmatprep.subr.bf16.mxu0 0
          %8031 = vmatpush1.bf16.msra.mxu0 %v7953
          %8032 = vmatprep.subr.bf16.mxu0 0
          %8033 = vmatpush1.bf16.msra.mxu0 %v7954
          %8034 = vmatprep.subr.bf16.mxu0 0
          %8035 = vmatpush1.bf16.msra.mxu0 %v7955
          %8036 = vmatprep.mubr.bf16.mxu0 %v7738
          %8037 = vmatmul.mubr.bf16.gmra.mrb[0].mxu0 %v7737
          %v8038 = vpop.f32.mrb[0].mxu0
          %v8039 = vadd.f32 %v7810, %v8038
          %v8040 = vpop.f32.mrb[0].mxu0
          %v8041 = vpop.f32.mrb[0].mxu0
          %v8042 = vpop.f32.mrb[0].mxu0
          %8043 = vdwg.mxu0
          %8044 = vmatprep.subr.bf16.mxu0 0
          %8045 = vmatpush1.bf16.msra.mxu0 %v7956
          %8046 = vmatprep.subr.bf16.mxu0 0
          %8047 = vmatpush1.bf16.msra.mxu0 %v7957
          %8048 = vmatprep.subr.bf16.mxu0 0
          %8049 = vmatpush1.bf16.msra.mxu0 %v7958
          %8050 = vmatprep.subr.bf16.mxu0 0
          %8051 = vmatpush1.bf16.msra.mxu0 %v7959
          %8052 = vmatprep.subr.bf16.mxu0 0
          %8053 = vmatpush1.bf16.msra.mxu0 %v7960
          %8054 = vmatprep.subr.bf16.mxu0 0
          %8055 = vmatpush1.bf16.msra.mxu0 %v7961
          %8056 = vmatprep.subr.bf16.mxu0 0
          %8057 = vmatpush1.bf16.msra.mxu0 %v7962
          %8058 = vmatprep.subr.bf16.mxu0 0
          %8059 = vmatpush1.bf16.msra.mxu0 %v7963
          %8060 = vmatprep.subr.bf16.mxu0 0
          %8061 = vmatpush1.bf16.msra.mxu0 %v7964
          %8062 = vmatprep.subr.bf16.mxu0 0
          %8063 = vmatpush1.bf16.msra.mxu0 %v7965
          %8064 = vmatprep.subr.bf16.mxu0 0
          %8065 = vmatpush1.bf16.msra.mxu0 %v7966
          %8066 = vmatprep.subr.bf16.mxu0 0
          %8067 = vmatpush1.bf16.msra.mxu0 %v7967
          %8068 = vmatprep.subr.bf16.mxu0 0
          %8069 = vmatpush1.bf16.msra.mxu0 %v7968
          %8070 = vmatprep.subr.bf16.mxu0 0
          %8071 = vmatpush1.bf16.msra.mxu0 %v7969
          %8072 = vmatprep.subr.bf16.mxu0 0
          %8073 = vmatpush1.bf16.msra.mxu0 %v7970
          %8074 = vmatprep.subr.bf16.mxu0 0
          %8075 = vmatpush1.bf16.msra.mxu0 %v7971
          %8076 = vmatprep.mubr.bf16.mxu0 %v7740
          %8077 = vmatmul.mubr.bf16.gmra.mrb[0].mxu0 %v7739
          %v8078 = vpop.f32.mrb[0].mxu0
          %v8079 = vadd.f32 %v8039, %v8078
          %v8080 = vpop.f32.mrb[0].mxu0
          %v8081 = vpop.f32.mrb[0].mxu0
          %v8082 = vpop.f32.mrb[0].mxu0
          %8083 = vdwg.mxu0
          %vm8084 = vcmask 39936
          %8085 = vst.msk [vmem:[#allocation14] sm:$0xff] %vm8084, %v8079
        $region100: #{transformer_forward.1} parent=59 // pred_fallthru
          _
        // Predicated region
        $region101: #{transformer_forward.1} parent=59 // pred_check
          %p8086 = pneg %p272
        $region102: #{transformer_forward.1} parent=59 // pred_check_branch
          %8088 = sbr.rel (%p8086) target = $region104
        $region103: #{transformer_forward.1} parent=59 // pred_region
          %s8090 = ssub.s32 128, 128
          %8091 = vsyncadd [#allocation5], %s8090
          %s8093 = sshll.u32 [#allocation14], 4
          %s8094 = int_to_ptr.vmem [resolvable:$true] %s8093
          %8096 = dma.vmem_to_hbm [thread:$0]  %s8094, 128, %s10, [#allocation5]
        $region104: #{transformer_forward.1} parent=59 // pred_fallthru
          _
        // Predicated region
        $region105: #{transformer_forward.1} parent=59 // pred_check
          %p8097 = pneg %p272
        $region106: #{transformer_forward.1} parent=59 // pred_check_branch
          %8099 = sbr.rel (%p8097) target = $region108
        $region107: #{transformer_forward.1} parent=59 // pred_region
          %8100 = dma.done [#allocation5], 128
        $region108: #{transformer_forward.1} parent=59 // pred_fallthru
          _
      $region60: #{transformer_forward.1} parent=5 // pred_fallthru
        _
      %p8101 = scmp.le.s32.totalorder 2, %s19
      // Predicated region
      $region109: #{transformer_forward.1} parent=5 // pred_check
        %p8102 = pneg %p8101
      $region110: #{transformer_forward.1} parent=5 // pred_check_branch
        %8104 = sbr.rel (%p8102) target = $region112
      $region111: #{transformer_forward.1} parent=5 // pred_region
        %s8105 = ssub.s32 %s19, 2
      $region112: #{transformer_forward.1} parent=5 // pred_fallthru
        _
    $region6: #{transformer_forward.1} parent=1 // loop_footer
      %s23 = sadd.s32 1, %s19
    $region7: #{transformer_forward.1} parent=1 // loop_footer_branch
      %18 = sbr.rel target = $region3
    $region8: #{transformer_forward.1} parent=1 // loop_exit
      _
    %8106 = vsyncpa [#allocation4], 1
    %s8107 = scalar_lea.sflag [#allocation4], 1
    %8108 = vsyncpa %s8107, 1
    %8109 = vsyncpa [#allocation7], 1
    %8110 = vsyncpa [#allocation5], 1
    %s8111 = scalar_lea.sflag [#allocation5], 1
    %8112 = vsyncpa %s8111, 1

</llo_original>
